<compile_context>
chip_gen: v5e
topology: v5e:2x2
jax: 0.10.0
libtpu: 0.0.40
codegen_flags: <defaults>
</compile_context>

<pallas_src>
import functools

import jax
import jax.numpy as jnp
from jax.experimental import pallas as pl
from jax.experimental.pallas import tpu as pltpu

BN_EPS = 1e-5
MATMUL_DTYPE = jnp.bfloat16       # MXU-native; accumulation / bias / relu / max stay f32
VMEM_LIMIT = 32 * 1024 * 1024     # scoped-VMEM budget: safe on v7x (64 MiB physical), raises v5e's 16 MiB default
TILE_N = 2048                     # points per grid step (multiple of 8); ~10-18 MiB working set at 2048


def _vmem_specs(n):
    return [pl.BlockSpec(memory_space=pltpu.MemorySpace.VMEM) for _ in range(n)]


# ----------------------- fused per-point MLP + max-pool -----------------------

def _mlp_pool_kernel(*refs, n_layers, per_batch, n_points, tile_n, tiles_per_split,
                     needs_mask, sub, compute_dtype):
    """refs = [x, (w, b) * n_layers, out, acc].
    x block: (1, TN, Cin) in compute_dtype; out block: (1, 1, 1, Cout_last) f32;
    acc scratch: (sub, Cout_last) f32 running max of the LAST layer's raw matmul output."""
    x_ref = refs[0]
    o_ref = refs[-2]
    acc_ref = refs[-1]
    s = pl.program_id(0)
    n = pl.program_id(2)

    @pl.when(n == 0)
    def _():
        acc_ref[...] = jnp.full_like(acc_ref, -jnp.inf)

    h = x_ref[0]                                          # (TN, Cin), compute_dtype
    y = None
    for li in range(n_layers):
        w_ref = refs[1 + 2 * li]
        b_ref = refs[2 + 2 * li]
        w = w_ref[0] if per_batch[li] else w_ref[...]     # weights are already compute_dtype
        y = jnp.dot(h, w, preferred_element_type=jnp.float32)    # MXU, f32 accumulate
        if li < n_layers - 1:
            # bias + relu in f32, then a single cast of the activations for the next MXU pass
            h = jnp.maximum(y + b_ref[...], 0.0).astype(compute_dtype)
        # last layer: bias + relu are hoisted past the max-pool (both commute with max)

    def _accumulate(v):                                   # VPU-only running max into (sub, Cout)
        part = jnp.max(v.reshape(tile_n // sub, sub, v.shape[-1]), axis=0)
        acc_ref[...] = jnp.maximum(acc_ref[...], part)

    if not needs_mask:
        _accumulate(y)
    else:
        abs_tile = s * tiles_per_split + n                # logical (unclamped) tile index
        tile_full = (abs_tile + 1) * tile_n <= n_points

        @pl.when(tile_full)
        def _():
            _accumulate(y)

        @pl.when(jnp.logical_not(tile_full))              # only tiles with padded rows pay the mask
        def _():
            row = jax.lax.broadcasted_iota(jnp.int32, (tile_n, 1), 0) + abs_tile * tile_n
            _accumulate(jnp.where(row < n_points, y, -jnp.inf))

    @pl.when(n == pl.num_programs(2) - 1)
    def _():
        b_last = refs[2 * n_layers][...]                  # (1, Cout_last), f32
        pooled = jnp.max(acc_ref[...], axis=0, keepdims=True)    # single cross-sublane collapse
        o_ref[...] = jnp.maximum(pooled + b_last, 0.0).reshape(o_ref.shape)


def fused_mlp_maxpool(x, layers, per_batch, *, tile_n=TILE_N, n_splits=1,
                      compute_dtype=MATMUL_DTYPE):
    """x: (B, N, Cin) f32.  layers: list of (w, b) with w (Cin,Cout) shared or (B,Cin,Cout)
    per-batch, b (1, Cout).  Computes relu(x @ w + b) per layer then max over N.
    Returns (B, Cout_last) f32."""
    B, N, Cin = x.shape
    tile_n = min(tile_n, N)
    if tile_n < N:                          # tiled sublane dim must be a multiple of 8
        tile_n = max(8, (tile_n // 8) * 8)
    n_tiles = pl.cdiv(N, tile_n)
    n_splits = max(1, min(n_splits, n_tiles))
    tiles_per_split = pl.cdiv(n_tiles, n_splits)
    sub = 8 if tile_n % 8 == 0 else 1
    needs_mask = (n_splits * tiles_per_split * tile_n) != N
    clamp = (n_splits * tiles_per_split) > n_tiles
    cout_last = layers[-1][0].shape[-1]

    if clamp:   # last split may contain logical tiles past the array; clamp the DMA index
        def x_map(s, b, n):
            return (b, jnp.minimum(s * tiles_per_split + n, n_tiles - 1), 0)
    else:
        def x_map(s, b, n):
            return (b, s * tiles_per_split + n, 0)

    in_specs = [pl.BlockSpec((1, tile_n, Cin), x_map)]
    args = [x.astype(compute_dtype)]                      # pre-cast once in the wrapper
    for (w, bias), pb in zip(layers, per_batch):
        if pb:    # per-batch effective weight (B, Cin, Cout): only re-fetched when b changes
            in_specs.append(pl.BlockSpec((1,) + w.shape[1:], lambda s, b, n: (b, 0, 0)))
        else:     # shared weight (Cin, Cout): stays resident in VMEM
            in_specs.append(pl.BlockSpec(w.shape, lambda s, b, n: (0, 0)))
        in_specs.append(pl.BlockSpec(bias.shape, lambda s, b, n: (0, 0)))
        args += [w.astype(compute_dtype), bias.astype(jnp.float32)]   # weights pre-cast here

    out = pl.pallas_call(
        functools.partial(_mlp_pool_kernel, n_layers=len(layers), per_batch=tuple(per_batch),
                          n_points=N, tile_n=tile_n, tiles_per_split=tiles_per_split,
                          needs_mask=needs_mask, sub=sub, compute_dtype=compute_dtype),
        out_shape=jax.ShapeDtypeStruct((n_splits, B, 1, cout_last), jnp.float32),
        grid=(n_splits, B, tiles_per_split),
        in_specs=in_specs,
        out_specs=pl.BlockSpec((1, 1, 1, cout_last), lambda s, b, n: (s, b, 0, 0)),
        scratch_shapes=[pltpu.VMEM((sub, cout_last), jnp.float32)],
        compiler_params=pltpu.CompilerParams(
            dimension_semantics=("parallel", "parallel", "arbitrary"),
            vmem_limit_bytes=VMEM_LIMIT),
    )(*args)
    # Combine per-split partial maxes (all already >= 0 after the hoisted ReLU).
    return jnp.max(out, axis=0).reshape(B, cout_last)


# ----------------------------- fused Tnet FC head -----------------------------

def _fc_head_kernel(x_ref, w1_ref, b1_ref, w2_ref, b2_ref, w3_ref, b3_ref, o_ref, *, compute_dtype):
    def mm(h, w_ref):
        return jnp.dot(h, w_ref[...], preferred_element_type=jnp.float32)
    h = jnp.maximum(mm(x_ref[...], w1_ref) + b1_ref[...], 0.0).astype(compute_dtype)   # fc1+bn4+relu
    h = jnp.maximum(mm(h, w2_ref) + b2_ref[...], 0.0).astype(compute_dtype)            # fc2+bn5+relu
    o_ref[...] = mm(h, w3_ref) + b3_ref[...]                                           # fc3 (no relu)


def fc_head(pooled, tnet_params, *, compute_dtype=MATMUL_DTYPE):
    """pooled: (B, 1024) -> (B, k*k).  One fused call; weights pre-cast to compute_dtype."""
    B = pooled.shape[0]
    kk = tnet_params["fc3"][0].shape[1]
    args = [pooled.astype(compute_dtype)]
    for name in ("fc1", "fc2", "fc3"):
        w, b = tnet_params[name]
        args += [w.astype(compute_dtype), b.astype(jnp.float32)]
    return pl.pallas_call(
        functools.partial(_fc_head_kernel, compute_dtype=compute_dtype),
        out_shape=jax.ShapeDtypeStruct((B, kk), jnp.float32),
        in_specs=_vmem_specs(7),
        out_specs=pl.BlockSpec(memory_space=pltpu.MemorySpace.VMEM),
        compiler_params=pltpu.CompilerParams(vmem_limit_bytes=VMEM_LIMIT),
    )(*args)


# ---------------------- deterministic parameter init ----------------------

def _init_layer_bn(key, cin, cout):
    """Conv1d(cin,cout,1)/Linear(cin,cout) + BatchNorm1d(cout) folded (eval mode)."""
    k1, k2, k3, k4 = jax.random.split(key, 4)
    bound = 1.0 / (cin ** 0.5)
    w = jax.random.uniform(k1, (cin, cout), jnp.float32, -bound, bound)
    b = jax.random.uniform(k2, (cout,), jnp.float32, -bound, bound)
    gamma = 1.0 + 0.1 * jax.random.normal(k3, (cout,), jnp.float32)
    beta = 0.1 * jax.random.normal(k4, (cout,), jnp.float32)
    run_mean = jnp.zeros((cout,), jnp.float32)
    run_var = jnp.ones((cout,), jnp.float32)
    scale = gamma / jnp.sqrt(run_var + BN_EPS)
    w_eff = w * scale[None, :]
    b_eff = (b - run_mean) * scale + beta
    return w_eff, b_eff.reshape(1, cout)


def _init_linear(key, cin, cout):
    k1, k2 = jax.random.split(key)
    bound = 1.0 / (cin ** 0.5)
    w = jax.random.uniform(k1, (cin, cout), jnp.float32, -bound, bound)
    b = jax.random.uniform(k2, (cout,), jnp.float32, -bound, bound)
    return w, b.reshape(1, cout)


def init_tnet(key, k):
    keys = jax.random.split(key, 6)
    return {
        "mlp1": _init_layer_bn(keys[0], k, 64),
        "mlp2": _init_layer_bn(keys[1], 64, 128),
        "mlp3": _init_layer_bn(keys[2], 128, 1024),
        "fc1": _init_layer_bn(keys[3], 1024, 512),   # fc1 + bn4
        "fc2": _init_layer_bn(keys[4], 512, 128),    # fc2 + bn5
        "fc3": _init_linear(keys[5], 128, k * k),    # no BN, no relu
    }


def init_feature_transform(key):
    keys = jax.random.split(key, 5)
    return {
        "tnet3": init_tnet(keys[0], 3),
        "tnet64": init_tnet(keys[1], 64),
        "mlp1": _init_layer_bn(keys[2], 3, 64),
        "mlp2": _init_layer_bn(keys[3], 64, 128),
        "mlp3": _init_layer_bn(keys[4], 128, 1024),
    }


# ------------------------------- forward -------------------------------

def feature_transform_forward(params, x_bcn, *, tile_n=TILE_N, n_splits=None,
                              compute_dtype=MATMUL_DTYPE):
    """x_bcn: (B, 3, N) — PyTorch NCW.  Returns (flat (B,1024), matrix3x3, matrix64x64)."""
    B, _, N = x_bcn.shape
    if n_splits is None:
        # v7x has 2 TensorCores: if B is too small to feed both, split the N axis instead.
        n_splits = 2 if B < 2 else 1
    x = jnp.transpose(x_bcn, (0, 2, 1))                               # (B, N, 3) channels-last
    hi = jax.lax.Precision.HIGHEST
    pool = functools.partial(fused_mlp_maxpool, tile_n=tile_n, n_splits=n_splits,
                             compute_dtype=compute_dtype)

    # ---- Tnet(k=3): fused trunk (3->64->128->1024) + max-pool, then fused FC head ----
    t3 = params["tnet3"]
    pooled3 = pool(x, [t3["mlp1"], t3["mlp2"], t3["mlp3"]], per_batch=(False, False, False))
    matrix3x3 = fc_head(pooled3, t3, compute_dtype=compute_dtype).reshape(B, 3, 3)
    matrix3x3 = matrix3x3 + jnp.eye(3, dtype=jnp.float32)[None]

    # Fold bmm(x, m3) into main mlp1:  (x @ m3) @ W1 == x @ (m3 @ W1)  (tiny per-batch matmul, f32)
    w1, b1 = params["mlp1"]
    w1_eff = jnp.einsum("bij,jk->bik", matrix3x3, w1, precision=hi)    # (B, 3, 64)

    # ---- Tnet(k=64): first layer is main mlp1 with the per-batch folded weight, then its trunk ----
    t64 = params["tnet64"]
    pooled64 = pool(x, [(w1_eff, b1), t64["mlp1"], t64["mlp2"], t64["mlp3"]],
                    per_batch=(True, False, False, False))
    matrix64x64 = fc_head(pooled64, t64, compute_dtype=compute_dtype).reshape(B, 64, 64)
    matrix64x64 = matrix64x64 + jnp.eye(64, dtype=jnp.float32)[None]

    # Fold bmm(xb1, m64) into main mlp2:  (xb1 @ m64) @ W2 == xb1 @ (m64 @ W2)
    w2, b2 = params["mlp2"]
    w2_eff = jnp.einsum("bij,jk->bik", matrix64x64, w2, precision=hi)  # (B, 64, 128)

    # ---- Main trunk: recompute xb1 from x (12 B/point) instead of an HBM round trip of (B,N,64) ----
    flat = pool(x, [(w1_eff, b1), (w2_eff, b2), params["mlp3"]], per_batch=(True, True, False))

    return flat, matrix3x3, matrix64x64


# -------------------------- plain-JAX reference (for self-check) --------------------------

def _reference_forward(params, x_bcn):
    hi = jax.lax.Precision.HIGHEST
    x = jnp.transpose(x_bcn, (0, 2, 1)).astype(jnp.float32)

    def mlp(h, wb):
        w, b = wb
        return jnp.maximum(jnp.einsum("bnc,cd->bnd", h, w, precision=hi) + b, 0.0)

    def tnet(tp, h, k):
        h = mlp(h, tp["mlp1"]); h = mlp(h, tp["mlp2"]); h = mlp(h, tp["mlp3"])
        pooled = jnp.max(h, axis=1)
        h = jnp.maximum(jnp.einsum("bc,cd->bd", pooled, tp["fc1"][0], precision=hi) + tp["fc1"][1], 0.0)
        h = jnp.maximum(jnp.einsum("bc,cd->bd", h, tp["fc2"][0], precision=hi) + tp["fc2"][1], 0.0)
        m = jnp.einsum("bc,cd->bd", h, tp["fc3"][0], precision=hi) + tp["fc3"][1]
        return m.reshape(-1, k, k) + jnp.eye(k, dtype=jnp.float32)[None]

    m3 = tnet(params["tnet3"], x, 3)
    xb = jnp.einsum("bnc,bcd->bnd", x, m3, precision=hi)
    xb = mlp(xb, params["mlp1"])
    m64 = tnet(params["tnet64"], xb, 64)
    xb = jnp.einsum("bnc,bcd->bnd", xb, m64, precision=hi)
    xb = mlp(xb, params["mlp2"])
    xb = mlp(xb, params["mlp3"])
    return jnp.max(xb, axis=1), m3, m64


if __name__ == "__main__":
    key = jax.random.PRNGKey(0)
    pkey, xkey1, xkey2 = jax.random.split(key, 3)
    params = init_feature_transform(pkey)
    ref_fwd = jax.jit(_reference_forward)

    def check(outs, x, B):
        flat, m3, m64 = outs
        assert flat.shape == (B, 1024) and flat.dtype == jnp.float32
        assert m3.shape == (B, 3, 3) and m64.shape == (B, 64, 64)
        rflat, rm3, rm64 = ref_fwd(params, x)
        jax.block_until_ready((rflat, rm3, rm64))
        tol = dict(atol=3e-2, rtol=3e-2)      # bf16 MXU vs f32 reference
        assert jnp.allclose(m3, rm3, **tol)
        assert jnp.allclose(m64, rm64, **tol)
        assert jnp.allclose(flat, rflat, **tol)

    # Case 1: B=2, N=64 — single N tile per batch, no split (default fast path, no masking).
    B1, N1 = 2, 64
    x1 = jax.random.normal(xkey1, (B1, 3, N1), jnp.float32)
    out1 = jax.jit(feature_transform_forward)(params, x1)
    jax.block_until_ready(out1)
    check(out1, x1, B1)

    # Case 2: B=1, N=40, tile_n=16, n_splits=2 — exercises multi-tile max accumulation, the
    # pl.when-gated partial-tile mask, the clamped fully-padded tile, and the two-way N split (v7x).
    B2, N2 = 1, 40
    x2 = jax.random.normal(xkey2, (B2, 3, N2), jnp.float32)
    fwd2 = jax.jit(functools.partial(feature_transform_forward, tile_n=16, n_splits=2))
    out2 = fwd2(params, x2)
    jax.block_until_ready(out2)
    check(out2, x2, B2)

    print("KERNEL_OK")
</pallas_src>

<mosaic_0001>
module attributes {stable_mosaic.version = 11 : i64} {
  func.func @_fc_head_kernel(%arg0: memref<2x1024xbf16, #tpu.memory_space<vmem>>, %arg1: memref<1024x512xbf16, #tpu.memory_space<vmem>>, %arg2: memref<1x512xf32, #tpu.memory_space<vmem>>, %arg3: memref<512x128xbf16, #tpu.memory_space<vmem>>, %arg4: memref<1x128xf32, #tpu.memory_space<vmem>>, %arg5: memref<128x9xbf16, #tpu.memory_space<vmem>>, %arg6: memref<1x9xf32, #tpu.memory_space<vmem>>, %arg7: memref<2x9xf32, #tpu.memory_space<vmem>>) attributes {dimension_semantics = [], scalar_prefetch = 0 : i64, scratch_operands = 0 : i64, tpu.core_type = #tpu.core_type<tc>} {
    %c0 = arith.constant 0 : index
    %c0_0 = arith.constant 0 : index
    %0 = vector.load %arg0[%c0, %c0_0] : memref<2x1024xbf16, #tpu.memory_space<vmem>>, vector<2x1024xbf16>
    %c0_1 = arith.constant 0 : index
    %c0_2 = arith.constant 0 : index
    %1 = vector.load %arg1[%c0_1, %c0_2] : memref<1024x512xbf16, #tpu.memory_space<vmem>>, vector<1024x512xbf16>
    %cst = arith.constant dense<0.000000e+00> : vector<2x512xf32>
    %2 = tpu.matmul %0, %1, %cst {dimension_numbers = #tpu.dot_dimension_numbers<[1], [0], [0], [1], [0, 0, 1, 1], [], []>} : vector<2x1024xbf16>, vector<1024x512xbf16>, vector<2x512xf32> -> vector<2x512xf32>
    %c0_3 = arith.constant 0 : index
    %c0_4 = arith.constant 0 : index
    %3 = vector.load %arg2[%c0_3, %c0_4] : memref<1x512xf32, #tpu.memory_space<vmem>>, vector<1x512xf32>
    %4 = vector.broadcast %3 : vector<1x512xf32> to vector<2x512xf32>
    %5 = arith.addf %2, %4 : vector<2x512xf32>
    %cst_5 = arith.constant 0.000000e+00 : f32
    %6 = vector.broadcast %cst_5 : f32 to vector<2x512xf32>
    %7 = arith.maximumf %5, %6 : vector<2x512xf32>
    %8 = arith.truncf %7 : vector<2x512xf32> to vector<2x512xbf16>
    %c0_6 = arith.constant 0 : index
    %c0_7 = arith.constant 0 : index
    %9 = vector.load %arg3[%c0_6, %c0_7] : memref<512x128xbf16, #tpu.memory_space<vmem>>, vector<512x128xbf16>
    %cst_8 = arith.constant dense<0.000000e+00> : vector<2x128xf32>
    %10 = tpu.matmul %8, %9, %cst_8 {dimension_numbers = #tpu.dot_dimension_numbers<[1], [0], [0], [1], [0, 0, 1, 1], [], []>} : vector<2x512xbf16>, vector<512x128xbf16>, vector<2x128xf32> -> vector<2x128xf32>
    %c0_9 = arith.constant 0 : index
    %c0_10 = arith.constant 0 : index
    %11 = vector.load %arg4[%c0_9, %c0_10] : memref<1x128xf32, #tpu.memory_space<vmem>>, vector<1x128xf32>
    %12 = vector.broadcast %11 : vector<1x128xf32> to vector<2x128xf32>
    %13 = arith.addf %10, %12 : vector<2x128xf32>
    %cst_11 = arith.constant 0.000000e+00 : f32
    %14 = vector.broadcast %cst_11 : f32 to vector<2x128xf32>
    %15 = arith.maximumf %13, %14 : vector<2x128xf32>
    %16 = arith.truncf %15 : vector<2x128xf32> to vector<2x128xbf16>
    %c0_12 = arith.constant 0 : index
    %c0_13 = arith.constant 0 : index
    %17 = vector.load %arg5[%c0_12, %c0_13] : memref<128x9xbf16, #tpu.memory_space<vmem>>, vector<128x9xbf16>
    %cst_14 = arith.constant dense<0.000000e+00> : vector<2x9xf32>
    %18 = tpu.matmul %16, %17, %cst_14 {dimension_numbers = #tpu.dot_dimension_numbers<[1], [0], [0], [1], [0, 0, 1, 1], [], []>} : vector<2x128xbf16>, vector<128x9xbf16>, vector<2x9xf32> -> vector<2x9xf32>
    %c0_15 = arith.constant 0 : index
    %c0_16 = arith.constant 0 : index
    %19 = vector.load %arg6[%c0_15, %c0_16] : memref<1x9xf32, #tpu.memory_space<vmem>>, vector<1x9xf32>
    %20 = vector.broadcast %19 : vector<1x9xf32> to vector<2x9xf32>
    %21 = arith.addf %18, %20 : vector<2x9xf32>
    %c0_17 = arith.constant 0 : index
    %c0_18 = arith.constant 0 : index
    %22 = vector.load %arg7[%c0_17, %c0_18] : memref<2x9xf32, #tpu.memory_space<vmem>>, vector<2x9xf32>
    tpu.vector_store %arg7[%c0_17, %c0_18], %21 {strides = array<i32>} : memref<2x9xf32, #tpu.memory_space<vmem>>, vector<2x9xf32>,
    return
  }
}

module attributes {stable_mosaic.version = 11 : i64} {
  func.func @_mlp_pool_kernel(%arg0: i32, %arg1: i32, %arg2: i32, %arg3: memref<1x64x3xbf16, #tpu.memory_space<vmem>>, %arg4: memref<3x64xbf16, #tpu.memory_space<vmem>>, %arg5: memref<1x64xf32, #tpu.memory_space<vmem>>, %arg6: memref<64x128xbf16, #tpu.memory_space<vmem>>, %arg7: memref<1x128xf32, #tpu.memory_space<vmem>>, %arg8: memref<128x1024xbf16, #tpu.memory_space<vmem>>, %arg9: memref<1x1024xf32, #tpu.memory_space<vmem>>, %arg10: memref<1x1x1x1024xf32, #tpu.memory_space<vmem>>, %arg11: memref<8x1024xf32, #tpu.memory_space<vmem>>) attributes {dimension_semantics = [#tpu.dimension_semantics<parallel>, #tpu.dimension_semantics<parallel>, #tpu.dimension_semantics<arbitrary>], iteration_bounds = array<i64: 1, 2, 1>, scalar_prefetch = 0 : i64, scratch_operands = 1 : i64, tpu.core_type = #tpu.core_type<tc>, window_params = [{transform_indices = @transform_0, window_bounds = array<i64: 1, 64, 3>}, {pipeline_mode = #tpu.pipeline_mode<synchronous>, transform_indices = @transform_1, window_bounds = array<i64: 3, 64>}, {pipeline_mode = #tpu.pipeline_mode<synchronous>, transform_indices = @transform_2, window_bounds = array<i64: 1, 64>}, {pipeline_mode = #tpu.pipeline_mode<synchronous>, transform_indices = @transform_3, window_bounds = array<i64: 64, 128>}, {pipeline_mode = #tpu.pipeline_mode<synchronous>, transform_indices = @transform_4, window_bounds = array<i64: 1, 128>}, {pipeline_mode = #tpu.pipeline_mode<synchronous>, transform_indices = @transform_5, window_bounds = array<i64: 128, 1024>}, {pipeline_mode = #tpu.pipeline_mode<synchronous>, transform_indices = @transform_6, window_bounds = array<i64: 1, 1024>}, {transform_indices = @transform_7, window_bounds = array<i64: 1, 1, 1, 1024>}]} {
    %c0_i32 = arith.constant 0 : i32
    %0 = arith.cmpi eq, %arg2, %c0_i32 : i32
    %1 = arith.extui %0 : i1 to i32
    %c0_i32_0 = arith.constant 0 : i32
    %2 = arith.cmpi ne, %1, %c0_i32_0 : i32
    scf.if %2 {
      %cst_24 = arith.constant 0xFF800000 : f32
      %31 = vector.broadcast %cst_24 : f32 to vector<8x1024xf32>
      %c0_25 = arith.constant 0 : index
      %c0_26 = arith.constant 0 : index
      %32 = vector.load %arg11[%c0_25, %c0_26] : memref<8x1024xf32, #tpu.memory_space<vmem>>, vector<8x1024xf32>
      tpu.vector_store %arg11[%c0_25, %c0_26], %31 {strides = array<i32>} : memref<8x1024xf32, #tpu.memory_space<vmem>>, vector<8x1024xf32>,
    } else {
    }
    %c0 = arith.constant 0 : index
    %c0_1 = arith.constant 0 : index
    %c0_2 = arith.constant 0 : index
    %3 = vector.load %arg3[%c0, %c0_1, %c0_2] : memref<1x64x3xbf16, #tpu.memory_space<vmem>>, vector<1x64x3xbf16>
    %4 = vector.shape_cast %3 : vector<1x64x3xbf16> to vector<64x3xbf16>
    %c0_3 = arith.constant 0 : index
    %c0_4 = arith.constant 0 : index
    %5 = vector.load %arg4[%c0_3, %c0_4] : memref<3x64xbf16, #tpu.memory_space<vmem>>, vector<3x64xbf16>
    %cst = arith.constant dense<0.000000e+00> : vector<64x64xf32>
    %6 = tpu.matmul %4, %5, %cst {dimension_numbers = #tpu.dot_dimension_numbers<[1], [0], [0], [1], [0, 0, 1, 1], [], []>} : vector<64x3xbf16>, vector<3x64xbf16>, vector<64x64xf32> -> vector<64x64xf32>
    %c0_5 = arith.constant 0 : index
    %c0_6 = arith.constant 0 : index
    %7 = vector.load %arg5[%c0_5, %c0_6] : memref<1x64xf32, #tpu.memory_space<vmem>>, vector<1x64xf32>
    %8 = vector.broadcast %7 : vector<1x64xf32> to vector<64x64xf32>
    %9 = arith.addf %6, %8 : vector<64x64xf32>
    %cst_7 = arith.constant 0.000000e+00 : f32
    %10 = vector.broadcast %cst_7 : f32 to vector<64x64xf32>
    %11 = arith.maximumf %9, %10 : vector<64x64xf32>
    %12 = arith.truncf %11 : vector<64x64xf32> to vector<64x64xbf16>
    %c0_8 = arith.constant 0 : index
    %c0_9 = arith.constant 0 : index
    %13 = vector.load %arg6[%c0_8, %c0_9] : memref<64x128xbf16, #tpu.memory_space<vmem>>, vector<64x128xbf16>
    %cst_10 = arith.constant dense<0.000000e+00> : vector<64x128xf32>
    %14 = tpu.matmul %12, %13, %cst_10 {dimension_numbers = #tpu.dot_dimension_numbers<[1], [0], [0], [1], [0, 0, 1, 1], [], []>} : vector<64x64xbf16>, vector<64x128xbf16>, vector<64x128xf32> -> vector<64x128xf32>
    %c0_11 = arith.constant 0 : index
    %c0_12 = arith.constant 0 : index
    %15 = vector.load %arg7[%c0_11, %c0_12] : memref<1x128xf32, #tpu.memory_space<vmem>>, vector<1x128xf32>
    %16 = vector.broadcast %15 : vector<1x128xf32> to vector<64x128xf32>
    %17 = arith.addf %14, %16 : vector<64x128xf32>
    %cst_13 = arith.constant 0.000000e+00 : f32
    %18 = vector.broadcast %cst_13 : f32 to vector<64x128xf32>
    %19 = arith.maximumf %17, %18 : vector<64x128xf32>
    %20 = arith.truncf %19 : vector<64x128xf32> to vector<64x128xbf16>
    %c0_14 = arith.constant 0 : index
    %c0_15 = arith.constant 0 : index
    %21 = vector.load %arg8[%c0_14, %c0_15] : memref<128x1024xbf16, #tpu.memory_space<vmem>>, vector<128x1024xbf16>
    %cst_16 = arith.constant dense<0.000000e+00> : vector<64x1024xf32>
    %22 = tpu.matmul %20, %21, %cst_16 {dimension_numbers = #tpu.dot_dimension_numbers<[1], [0], [0], [1], [0, 0, 1, 1], [], []>} : vector<64x128xbf16>, vector<128x1024xbf16>, vector<64x1024xf32> -> vector<64x1024xf32>
    %23 = vector.shape_cast %22 : vector<64x1024xf32> to vector<8x8x1024xf32>
    %cst_17 = arith.constant dense<0xFF800000> : vector<8x1024xf32>
    %24 = vector.multi_reduction <maximumf>, %23, %cst_17 [0] : vector<8x8x1024xf32> to vector<8x1024xf32>
    %c0_18 = arith.constant 0 : index
    %c0_19 = arith.constant 0 : index
    %25 = vector.load %arg11[%c0_18, %c0_19] : memref<8x1024xf32, #tpu.memory_space<vmem>>, vector<8x1024xf32>
    %26 = arith.maximumf %25, %24 : vector<8x1024xf32>
    %c0_20 = arith.constant 0 : index
    %c0_21 = arith.constant 0 : index
    %27 = vector.load %arg11[%c0_20, %c0_21] : memref<8x1024xf32, #tpu.memory_space<vmem>>, vector<8x1024xf32>
    tpu.vector_store %arg11[%c0_20, %c0_21], %26 {strides = array<i32>} : memref<8x1024xf32, #tpu.memory_space<vmem>>, vector<8x1024xf32>,
    %c0_i32_22 = arith.constant 0 : i32
    %28 = arith.cmpi eq, %arg2, %c0_i32_22 : i32
    %29 = arith.extui %28 : i1 to i32
    %c0_i32_23 = arith.constant 0 : i32
    %30 = arith.cmpi ne, %29, %c0_i32_23 : i32
    scf.if %30 {
      %c0_24 = arith.constant 0 : index
      %c0_25 = arith.constant 0 : index
      %31 = vector.load %arg9[%c0_24, %c0_25] : memref<1x1024xf32, #tpu.memory_space<vmem>>, vector<1x1024xf32>
      %c0_26 = arith.constant 0 : index
      %c0_27 = arith.constant 0 : index
      %32 = vector.load %arg11[%c0_26, %c0_27] : memref<8x1024xf32, #tpu.memory_space<vmem>>, vector<8x1024xf32>
      %cst_28 = arith.constant dense<0xFF800000> : vector<1024xf32>
      %33 = vector.multi_reduction <maximumf>, %32, %cst_28 [0] : vector<8x1024xf32> to vector<1024xf32>
      %34 = vector.shape_cast %33 : vector<1024xf32> to vector<1x1024xf32>
      %35 = arith.addf %34, %31 : vector<1x1024xf32>
      %cst_29 = arith.constant 0.000000e+00 : f32
      %36 = vector.broadcast %cst_29 : f32 to vector<1x1024xf32>
      %37 = arith.maximumf %35, %36 : vector<1x1024xf32>
      %38 = vector.shape_cast %37 : vector<1x1024xf32> to vector<1x1x1x1024xf32>
      %c0_30 = arith.constant 0 : index
      %c0_31 = arith.constant 0 : index
      %c0_32 = arith.constant 0 : index
      %c0_33 = arith.constant 0 : index
      %39 = vector.load %arg10[%c0_30, %c0_31, %c0_32, %c0_33] : memref<1x1x1x1024xf32, #tpu.memory_space<vmem>>, vector<1x1x1x1024xf32>
      tpu.vector_store %arg10[%c0_30, %c0_31, %c0_32, %c0_33], %38 {strides = array<i32>} : memref<1x1x1x1024xf32, #tpu.memory_space<vmem>>, vector<1x1x1x1024xf32>,
    } else {
    }
    return
  }
  func.func @transform_0(%arg0: i32, %arg1: i32, %arg2: i32) -> (i32, i32, i32) {
    %c1_i32 = arith.constant 1 : i32
    %0 = arith.muli %arg0, %c1_i32 : i32
    %1 = arith.addi %0, %arg2 : i32
    %c0_i32 = arith.constant 0 : i32
    %c0_i32_0 = arith.constant 0 : i32
    return %arg1, %1, %c0_i32 : i32, i32, i32
  }
  func.func @transform_1(%arg0: i32, %arg1: i32, %arg2: i32) -> (i32, i32) {
    %c0_i32 = arith.constant 0 : i32
    %c0_i32_0 = arith.constant 0 : i32
    %c0_i32_1 = arith.constant 0 : i32
    return %c0_i32, %c0_i32_0 : i32, i32
  }
  func.func @transform_2(%arg0: i32, %arg1: i32, %arg2: i32) -> (i32, i32) {
    %c0_i32 = arith.constant 0 : i32
    %c0_i32_0 = arith.constant 0 : i32
    %c0_i32_1 = arith.constant 0 : i32
    return %c0_i32, %c0_i32_0 : i32, i32
  }
  func.func @transform_3(%arg0: i32, %arg1: i32, %arg2: i32) -> (i32, i32) {
    %c0_i32 = arith.constant 0 : i32
    %c0_i32_0 = arith.constant 0 : i32
    %c0_i32_1 = arith.constant 0 : i32
    return %c0_i32, %c0_i32_0 : i32, i32
  }
  func.func @transform_4(%arg0: i32, %arg1: i32, %arg2: i32) -> (i32, i32) {
    %c0_i32 = arith.constant 0 : i32
    %c0_i32_0 = arith.constant 0 : i32
    %c0_i32_1 = arith.constant 0 : i32
    return %c0_i32, %c0_i32_0 : i32, i32
  }
  func.func @transform_5(%arg0: i32, %arg1: i32, %arg2: i32) -> (i32, i32) {
    %c0_i32 = arith.constant 0 : i32
    %c0_i32_0 = arith.constant 0 : i32
    %c0_i32_1 = arith.constant 0 : i32
    return %c0_i32, %c0_i32_0 : i32, i32
  }
  func.func @transform_6(%arg0: i32, %arg1: i32, %arg2: i32) -> (i32, i32) {
    %c0_i32 = arith.constant 0 : i32
    %c0_i32_0 = arith.constant 0 : i32
    %c0_i32_1 = arith.constant 0 : i32
    return %c0_i32, %c0_i32_0 : i32, i32
  }
  func.func @transform_7(%arg0: i32, %arg1: i32, %arg2: i32) -> (i32, i32, i32, i32) {
    %c0_i32 = arith.constant 0 : i32
    %c0_i32_0 = arith.constant 0 : i32
    %c0_i32_1 = arith.constant 0 : i32
    return %arg0, %arg1, %c0_i32, %c0_i32_0 : i32, i32, i32, i32
  }
}

module attributes {stable_mosaic.version = 11 : i64} {
  func.func @_mlp_pool_kernel(%arg0: i32, %arg1: i32, %arg2: i32, %arg3: memref<1x64x3xbf16, #tpu.memory_space<vmem>>, %arg4: memref<1x3x64xbf16, #tpu.memory_space<vmem>>, %arg5: memref<1x64xf32, #tpu.memory_space<vmem>>, %arg6: memref<64x64xbf16, #tpu.memory_space<vmem>>, %arg7: memref<1x64xf32, #tpu.memory_space<vmem>>, %arg8: memref<64x128xbf16, #tpu.memory_space<vmem>>, %arg9: memref<1x128xf32, #tpu.memory_space<vmem>>, %arg10: memref<128x1024xbf16, #tpu.memory_space<vmem>>, %arg11: memref<1x1024xf32, #tpu.memory_space<vmem>>, %arg12: memref<1x1x1x1024xf32, #tpu.memory_space<vmem>>, %arg13: memref<8x1024xf32, #tpu.memory_space<vmem>>) attributes {dimension_semantics = [#tpu.dimension_semantics<parallel>, #tpu.dimension_semantics<parallel>, #tpu.dimension_semantics<arbitrary>], iteration_bounds = array<i64: 1, 2, 1>, scalar_prefetch = 0 : i64, scratch_operands = 1 : i64, tpu.core_type = #tpu.core_type<tc>, window_params = [{transform_indices = @transform_0, window_bounds = array<i64: 1, 64, 3>}, {transform_indices = @transform_1, window_bounds = array<i64: 1, 3, 64>}, {pipeline_mode = #tpu.pipeline_mode<synchronous>, transform_indices = @transform_2, window_bounds = array<i64: 1, 64>}, {pipeline_mode = #tpu.pipeline_mode<synchronous>, transform_indices = @transform_3, window_bounds = array<i64: 64, 64>}, {pipeline_mode = #tpu.pipeline_mode<synchronous>, transform_indices = @transform_4, window_bounds = array<i64: 1, 64>}, {pipeline_mode = #tpu.pipeline_mode<synchronous>, transform_indices = @transform_5, window_bounds = array<i64: 64, 128>}, {pipeline_mode = #tpu.pipeline_mode<synchronous>, transform_indices = @transform_6, window_bounds = array<i64: 1, 128>}, {pipeline_mode = #tpu.pipeline_mode<synchronous>, transform_indices = @transform_7, window_bounds = array<i64: 128, 1024>}, {pipeline_mode = #tpu.pipeline_mode<synchronous>, transform_indices = @transform_8, window_bounds = array<i64: 1, 1024>}, {transform_indices = @transform_9, window_bounds = array<i64: 1, 1, 1, 1024>}]} {
    %c0_i32 = arith.constant 0 : i32
    %0 = arith.cmpi eq, %arg2, %c0_i32 : i32
    %1 = arith.extui %0 : i1 to i32
    %c0_i32_0 = arith.constant 0 : i32
    %2 = arith.cmpi ne, %1, %c0_i32_0 : i32
    scf.if %2 {
      %cst_31 = arith.constant 0xFF800000 : f32
      %40 = vector.broadcast %cst_31 : f32 to vector<8x1024xf32>
      %c0_32 = arith.constant 0 : index
      %c0_33 = arith.constant 0 : index
      %41 = vector.load %arg13[%c0_32, %c0_33] : memref<8x1024xf32, #tpu.memory_space<vmem>>, vector<8x1024xf32>
      tpu.vector_store %arg13[%c0_32, %c0_33], %40 {strides = array<i32>} : memref<8x1024xf32, #tpu.memory_space<vmem>>, vector<8x1024xf32>,
    } else {
    }
    %c0 = arith.constant 0 : index
    %c0_1 = arith.constant 0 : index
    %c0_2 = arith.constant 0 : index
    %3 = vector.load %arg3[%c0, %c0_1, %c0_2] : memref<1x64x3xbf16, #tpu.memory_space<vmem>>, vector<1x64x3xbf16>
    %4 = vector.shape_cast %3 : vector<1x64x3xbf16> to vector<64x3xbf16>
    %c0_3 = arith.constant 0 : index
    %c0_4 = arith.constant 0 : index
    %c0_5 = arith.constant 0 : index
    %5 = vector.load %arg4[%c0_3, %c0_4, %c0_5] : memref<1x3x64xbf16, #tpu.memory_space<vmem>>, vector<1x3x64xbf16>
    %6 = vector.shape_cast %5 : vector<1x3x64xbf16> to vector<3x64xbf16>
    %cst = arith.constant dense<0.000000e+00> : vector<64x64xf32>
    %7 = tpu.matmul %4, %6, %cst {dimension_numbers = #tpu.dot_dimension_numbers<[1], [0], [0], [1], [0, 0, 1, 1], [], []>} : vector<64x3xbf16>, vector<3x64xbf16>, vector<64x64xf32> -> vector<64x64xf32>
    %c0_6 = arith.constant 0 : index
    %c0_7 = arith.constant 0 : index
    %8 = vector.load %arg5[%c0_6, %c0_7] : memref<1x64xf32, #tpu.memory_space<vmem>>, vector<1x64xf32>
    %9 = vector.broadcast %8 : vector<1x64xf32> to vector<64x64xf32>
    %10 = arith.addf %7, %9 : vector<64x64xf32>
    %cst_8 = arith.constant 0.000000e+00 : f32
    %11 = vector.broadcast %cst_8 : f32 to vector<64x64xf32>
    %12 = arith.maximumf %10, %11 : vector<64x64xf32>
    %13 = arith.truncf %12 : vector<64x64xf32> to vector<64x64xbf16>
    %c0_9 = arith.constant 0 : index
    %c0_10 = arith.constant 0 : index
    %14 = vector.load %arg6[%c0_9, %c0_10] : memref<64x64xbf16, #tpu.memory_space<vmem>>, vector<64x64xbf16>
    %cst_11 = arith.constant dense<0.000000e+00> : vector<64x64xf32>
    %15 = tpu.matmul %13, %14, %cst_11 {dimension_numbers = #tpu.dot_dimension_numbers<[1], [0], [0], [1], [0, 0, 1, 1], [], []>} : vector<64x64xbf16>, vector<64x64xbf16>, vector<64x64xf32> -> vector<64x64xf32>
    %c0_12 = arith.constant 0 : index
    %c0_13 = arith.constant 0 : index
    %16 = vector.load %arg7[%c0_12, %c0_13] : memref<1x64xf32, #tpu.memory_space<vmem>>, vector<1x64xf32>
    %17 = vector.broadcast %16 : vector<1x64xf32> to vector<64x64xf32>
    %18 = arith.addf %15, %17 : vector<64x64xf32>
    %cst_14 = arith.constant 0.000000e+00 : f32
    %19 = vector.broadcast %cst_14 : f32 to vector<64x64xf32>
    %20 = arith.maximumf %18, %19 : vector<64x64xf32>
    %21 = arith.truncf %20 : vector<64x64xf32> to vector<64x64xbf16>
    %c0_15 = arith.constant 0 : index
    %c0_16 = arith.constant 0 : index
    %22 = vector.load %arg8[%c0_15, %c0_16] : memref<64x128xbf16, #tpu.memory_space<vmem>>, vector<64x128xbf16>
    %cst_17 = arith.constant dense<0.000000e+00> : vector<64x128xf32>
    %23 = tpu.matmul %21, %22, %cst_17 {dimension_numbers = #tpu.dot_dimension_numbers<[1], [0], [0], [1], [0, 0, 1, 1], [], []>} : vector<64x64xbf16>, vector<64x128xbf16>, vector<64x128xf32> -> vector<64x128xf32>
    %c0_18 = arith.constant 0 : index
    %c0_19 = arith.constant 0 : index
    %24 = vector.load %arg9[%c0_18, %c0_19] : memref<1x128xf32, #tpu.memory_space<vmem>>, vector<1x128xf32>
    %25 = vector.broadcast %24 : vector<1x128xf32> to vector<64x128xf32>
    %26 = arith.addf %23, %25 : vector<64x128xf32>
    %cst_20 = arith.constant 0.000000e+00 : f32
    %27 = vector.broadcast %cst_20 : f32 to vector<64x128xf32>
    %28 = arith.maximumf %26, %27 : vector<64x128xf32>
    %29 = arith.truncf %28 : vector<64x128xf32> to vector<64x128xbf16>
    %c0_21 = arith.constant 0 : index
    %c0_22 = arith.constant 0 : index
    %30 = vector.load %arg10[%c0_21, %c0_22] : memref<128x1024xbf16, #tpu.memory_space<vmem>>, vector<128x1024xbf16>
    %cst_23 = arith.constant dense<0.000000e+00> : vector<64x1024xf32>
    %31 = tpu.matmul %29, %30, %cst_23 {dimension_numbers = #tpu.dot_dimension_numbers<[1], [0], [0], [1], [0, 0, 1, 1], [], []>} : vector<64x128xbf16>, vector<128x1024xbf16>, vector<64x1024xf32> -> vector<64x1024xf32>
    %32 = vector.shape_cast %31 : vector<64x1024xf32> to vector<8x8x1024xf32>
    %cst_24 = arith.constant dense<0xFF800000> : vector<8x1024xf32>
    %33 = vector.multi_reduction <maximumf>, %32, %cst_24 [0] : vector<8x8x1024xf32> to vector<8x1024xf32>
    %c0_25 = arith.constant 0 : index
    %c0_26 = arith.constant 0 : index
    %34 = vector.load %arg13[%c0_25, %c0_26] : memref<8x1024xf32, #tpu.memory_space<vmem>>, vector<8x1024xf32>
    %35 = arith.maximumf %34, %33 : vector<8x1024xf32>
    %c0_27 = arith.constant 0 : index
    %c0_28 = arith.constant 0 : index
    %36 = vector.load %arg13[%c0_27, %c0_28] : memref<8x1024xf32, #tpu.memory_space<vmem>>, vector<8x1024xf32>
    tpu.vector_store %arg13[%c0_27, %c0_28], %35 {strides = array<i32>} : memref<8x1024xf32, #tpu.memory_space<vmem>>, vector<8x1024xf32>,
    %c0_i32_29 = arith.constant 0 : i32
    %37 = arith.cmpi eq, %arg2, %c0_i32_29 : i32
    %38 = arith.extui %37 : i1 to i32
    %c0_i32_30 = arith.constant 0 : i32
    %39 = arith.cmpi ne, %38, %c0_i32_30 : i32
    scf.if %39 {
      %c0_31 = arith.constant 0 : index
      %c0_32 = arith.constant 0 : index
      %40 = vector.load %arg11[%c0_31, %c0_32] : memref<1x1024xf32, #tpu.memory_space<vmem>>, vector<1x1024xf32>
      %c0_33 = arith.constant 0 : index
      %c0_34 = arith.constant 0 : index
      %41 = vector.load %arg13[%c0_33, %c0_34] : memref<8x1024xf32, #tpu.memory_space<vmem>>, vector<8x1024xf32>
      %cst_35 = arith.constant dense<0xFF800000> : vector<1024xf32>
      %42 = vector.multi_reduction <maximumf>, %41, %cst_35 [0] : vector<8x1024xf32> to vector<1024xf32>
      %43 = vector.shape_cast %42 : vector<1024xf32> to vector<1x1024xf32>
      %44 = arith.addf %43, %40 : vector<1x1024xf32>
      %cst_36 = arith.constant 0.000000e+00 : f32
      %45 = vector.broadcast %cst_36 : f32 to vector<1x1024xf32>
      %46 = arith.maximumf %44, %45 : vector<1x1024xf32>
      %47 = vector.shape_cast %46 : vector<1x1024xf32> to vector<1x1x1x1024xf32>
      %c0_37 = arith.constant 0 : index
      %c0_38 = arith.constant 0 : index
      %c0_39 = arith.constant 0 : index
      %c0_40 = arith.constant 0 : index
      %48 = vector.load %arg12[%c0_37, %c0_38, %c0_39, %c0_40] : memref<1x1x1x1024xf32, #tpu.memory_space<vmem>>, vector<1x1x1x1024xf32>
      tpu.vector_store %arg12[%c0_37, %c0_38, %c0_39, %c0_40], %47 {strides = array<i32>} : memref<1x1x1x1024xf32, #tpu.memory_space<vmem>>, vector<1x1x1x1024xf32>,
    } else {
    }
    return
  }
  func.func @transform_0(%arg0: i32, %arg1: i32, %arg2: i32) -> (i32, i32, i32) {
    %c1_i32 = arith.constant 1 : i32
    %0 = arith.muli %arg0, %c1_i32 : i32
    %1 = arith.addi %0, %arg2 : i32
    %c0_i32 = arith.constant 0 : i32
    %c0_i32_0 = arith.constant 0 : i32
    return %arg1, %1, %c0_i32 : i32, i32, i32
  }
  func.func @transform_1(%arg0: i32, %arg1: i32, %arg2: i32) -> (i32, i32, i32) {
    %c0_i32 = arith.constant 0 : i32
    %c0_i32_0 = arith.constant 0 : i32
    %c0_i32_1 = arith.constant 0 : i32
    return %arg1, %c0_i32, %c0_i32_0 : i32, i32, i32
  }
  func.func @transform_2(%arg0: i32, %arg1: i32, %arg2: i32) -> (i32, i32) {
    %c0_i32 = arith.constant 0 : i32
    %c0_i32_0 = arith.constant 0 : i32
    %c0_i32_1 = arith.constant 0 : i32
    return %c0_i32, %c0_i32_0 : i32, i32
  }
  func.func @transform_3(%arg0: i32, %arg1: i32, %arg2: i32) -> (i32, i32) {
    %c0_i32 = arith.constant 0 : i32
    %c0_i32_0 = arith.constant 0 : i32
    %c0_i32_1 = arith.constant 0 : i32
    return %c0_i32, %c0_i32_0 : i32, i32
  }
  func.func @transform_4(%arg0: i32, %arg1: i32, %arg2: i32) -> (i32, i32) {
    %c0_i32 = arith.constant 0 : i32
    %c0_i32_0 = arith.constant 0 : i32
    %c0_i32_1 = arith.constant 0 : i32
    return %c0_i32, %c0_i32_0 : i32, i32
  }
  func.func @transform_5(%arg0: i32, %arg1: i32, %arg2: i32) -> (i32, i32) {
    %c0_i32 = arith.constant 0 : i32
    %c0_i32_0 = arith.constant 0 : i32
    %c0_i32_1 = arith.constant 0 : i32
    return %c0_i32, %c0_i32_0 : i32, i32
  }
  func.func @transform_6(%arg0: i32, %arg1: i32, %arg2: i32) -> (i32, i32) {
    %c0_i32 = arith.constant 0 : i32
    %c0_i32_0 = arith.constant 0 : i32
    %c0_i32_1 = arith.constant 0 : i32
    return %c0_i32, %c0_i32_0 : i32, i32
  }
  func.func @transform_7(%arg0: i32, %arg1: i32, %arg2: i32) -> (i32, i32) {
    %c0_i32 = arith.constant 0 : i32
    %c0_i32_0 = arith.constant 0 : i32
    %c0_i32_1 = arith.constant 0 : i32
    return %c0_i32, %c0_i32_0 : i32, i32
  }
  func.func @transform_8(%arg0: i32, %arg1: i32, %arg2: i32) -> (i32, i32) {
    %c0_i32 = arith.constant 0 : i32
    %c0_i32_0 = arith.constant 0 : i32
    %c0_i32_1 = arith.constant 0 : i32
    return %c0_i32, %c0_i32_0 : i32, i32
  }
  func.func @transform_9(%arg0: i32, %arg1: i32, %arg2: i32) -> (i32, i32, i32, i32) {
    %c0_i32 = arith.constant 0 : i32
    %c0_i32_0 = arith.constant 0 : i32
    %c0_i32_1 = arith.constant 0 : i32
    return %arg0, %arg1, %c0_i32, %c0_i32_0 : i32, i32, i32, i32
  }
}

module attributes {stable_mosaic.version = 11 : i64} {
  func.func @_fc_head_kernel(%arg0: memref<2x1024xbf16, #tpu.memory_space<vmem>>, %arg1: memref<1024x512xbf16, #tpu.memory_space<vmem>>, %arg2: memref<1x512xf32, #tpu.memory_space<vmem>>, %arg3: memref<512x128xbf16, #tpu.memory_space<vmem>>, %arg4: memref<1x128xf32, #tpu.memory_space<vmem>>, %arg5: memref<128x4096xbf16, #tpu.memory_space<vmem>>, %arg6: memref<1x4096xf32, #tpu.memory_space<vmem>>, %arg7: memref<2x4096xf32, #tpu.memory_space<vmem>>) attributes {dimension_semantics = [], scalar_prefetch = 0 : i64, scratch_operands = 0 : i64, tpu.core_type = #tpu.core_type<tc>} {
    %c0 = arith.constant 0 : index
    %c0_0 = arith.constant 0 : index
    %0 = vector.load %arg0[%c0, %c0_0] : memref<2x1024xbf16, #tpu.memory_space<vmem>>, vector<2x1024xbf16>
    %c0_1 = arith.constant 0 : index
    %c0_2 = arith.constant 0 : index
    %1 = vector.load %arg1[%c0_1, %c0_2] : memref<1024x512xbf16, #tpu.memory_space<vmem>>, vector<1024x512xbf16>
    %cst = arith.constant dense<0.000000e+00> : vector<2x512xf32>
    %2 = tpu.matmul %0, %1, %cst {dimension_numbers = #tpu.dot_dimension_numbers<[1], [0], [0], [1], [0, 0, 1, 1], [], []>} : vector<2x1024xbf16>, vector<1024x512xbf16>, vector<2x512xf32> -> vector<2x512xf32>
    %c0_3 = arith.constant 0 : index
    %c0_4 = arith.constant 0 : index
    %3 = vector.load %arg2[%c0_3, %c0_4] : memref<1x512xf32, #tpu.memory_space<vmem>>, vector<1x512xf32>
    %4 = vector.broadcast %3 : vector<1x512xf32> to vector<2x512xf32>
    %5 = arith.addf %2, %4 : vector<2x512xf32>
    %cst_5 = arith.constant 0.000000e+00 : f32
    %6 = vector.broadcast %cst_5 : f32 to vector<2x512xf32>
    %7 = arith.maximumf %5, %6 : vector<2x512xf32>
    %8 = arith.truncf %7 : vector<2x512xf32> to vector<2x512xbf16>
    %c0_6 = arith.constant 0 : index
    %c0_7 = arith.constant 0 : index
    %9 = vector.load %arg3[%c0_6, %c0_7] : memref<512x128xbf16, #tpu.memory_space<vmem>>, vector<512x128xbf16>
    %cst_8 = arith.constant dense<0.000000e+00> : vector<2x128xf32>
    %10 = tpu.matmul %8, %9, %cst_8 {dimension_numbers = #tpu.dot_dimension_numbers<[1], [0], [0], [1], [0, 0, 1, 1], [], []>} : vector<2x512xbf16>, vector<512x128xbf16>, vector<2x128xf32> -> vector<2x128xf32>
    %c0_9 = arith.constant 0 : index
    %c0_10 = arith.constant 0 : index
    %11 = vector.load %arg4[%c0_9, %c0_10] : memref<1x128xf32, #tpu.memory_space<vmem>>, vector<1x128xf32>
    %12 = vector.broadcast %11 : vector<1x128xf32> to vector<2x128xf32>
    %13 = arith.addf %10, %12 : vector<2x128xf32>
    %cst_11 = arith.constant 0.000000e+00 : f32
    %14 = vector.broadcast %cst_11 : f32 to vector<2x128xf32>
    %15 = arith.maximumf %13, %14 : vector<2x128xf32>
    %16 = arith.truncf %15 : vector<2x128xf32> to vector<2x128xbf16>
    %c0_12 = arith.constant 0 : index
    %c0_13 = arith.constant 0 : index
    %17 = vector.load %arg5[%c0_12, %c0_13] : memref<128x4096xbf16, #tpu.memory_space<vmem>>, vector<128x4096xbf16>
    %cst_14 = arith.constant dense<0.000000e+00> : vector<2x4096xf32>
    %18 = tpu.matmul %16, %17, %cst_14 {dimension_numbers = #tpu.dot_dimension_numbers<[1], [0], [0], [1], [0, 0, 1, 1], [], []>} : vector<2x128xbf16>, vector<128x4096xbf16>, vector<2x4096xf32> -> vector<2x4096xf32>
    %c0_15 = arith.constant 0 : index
    %c0_16 = arith.constant 0 : index
    %19 = vector.load %arg6[%c0_15, %c0_16] : memref<1x4096xf32, #tpu.memory_space<vmem>>, vector<1x4096xf32>
    %20 = vector.broadcast %19 : vector<1x4096xf32> to vector<2x4096xf32>
    %21 = arith.addf %18, %20 : vector<2x4096xf32>
    %c0_17 = arith.constant 0 : index
    %c0_18 = arith.constant 0 : index
    %22 = vector.load %arg7[%c0_17, %c0_18] : memref<2x4096xf32, #tpu.memory_space<vmem>>, vector<2x4096xf32>
    tpu.vector_store %arg7[%c0_17, %c0_18], %21 {strides = array<i32>} : memref<2x4096xf32, #tpu.memory_space<vmem>>, vector<2x4096xf32>,
    return
  }
}

module attributes {stable_mosaic.version = 11 : i64} {
  func.func @_mlp_pool_kernel(%arg0: i32, %arg1: i32, %arg2: i32, %arg3: memref<1x64x3xbf16, #tpu.memory_space<vmem>>, %arg4: memref<1x3x64xbf16, #tpu.memory_space<vmem>>, %arg5: memref<1x64xf32, #tpu.memory_space<vmem>>, %arg6: memref<1x64x128xbf16, #tpu.memory_space<vmem>>, %arg7: memref<1x128xf32, #tpu.memory_space<vmem>>, %arg8: memref<128x1024xbf16, #tpu.memory_space<vmem>>, %arg9: memref<1x1024xf32, #tpu.memory_space<vmem>>, %arg10: memref<1x1x1x1024xf32, #tpu.memory_space<vmem>>, %arg11: memref<8x1024xf32, #tpu.memory_space<vmem>>) attributes {dimension_semantics = [#tpu.dimension_semantics<parallel>, #tpu.dimension_semantics<parallel>, #tpu.dimension_semantics<arbitrary>], iteration_bounds = array<i64: 1, 2, 1>, scalar_prefetch = 0 : i64, scratch_operands = 1 : i64, tpu.core_type = #tpu.core_type<tc>, window_params = [{transform_indices = @transform_0, window_bounds = array<i64: 1, 64, 3>}, {transform_indices = @transform_1, window_bounds = array<i64: 1, 3, 64>}, {pipeline_mode = #tpu.pipeline_mode<synchronous>, transform_indices = @transform_2, window_bounds = array<i64: 1, 64>}, {transform_indices = @transform_3, window_bounds = array<i64: 1, 64, 128>}, {pipeline_mode = #tpu.pipeline_mode<synchronous>, transform_indices = @transform_4, window_bounds = array<i64: 1, 128>}, {pipeline_mode = #tpu.pipeline_mode<synchronous>, transform_indices = @transform_5, window_bounds = array<i64: 128, 1024>}, {pipeline_mode = #tpu.pipeline_mode<synchronous>, transform_indices = @transform_6, window_bounds = array<i64: 1, 1024>}, {transform_indices = @transform_7, window_bounds = array<i64: 1, 1, 1, 1024>}]} {
    %c0_i32 = arith.constant 0 : i32
    %0 = arith.cmpi eq, %arg2, %c0_i32 : i32
    %1 = arith.extui %0 : i1 to i32
    %c0_i32_0 = arith.constant 0 : i32
    %2 = arith.cmpi ne, %1, %c0_i32_0 : i32
    scf.if %2 {
      %cst_26 = arith.constant 0xFF800000 : f32
      %33 = vector.broadcast %cst_26 : f32 to vector<8x1024xf32>
      %c0_27 = arith.constant 0 : index
      %c0_28 = arith.constant 0 : index
      %34 = vector.load %arg11[%c0_27, %c0_28] : memref<8x1024xf32, #tpu.memory_space<vmem>>, vector<8x1024xf32>
      tpu.vector_store %arg11[%c0_27, %c0_28], %33 {strides = array<i32>} : memref<8x1024xf32, #tpu.memory_space<vmem>>, vector<8x1024xf32>,
    } else {
    }
    %c0 = arith.constant 0 : index
    %c0_1 = arith.constant 0 : index
    %c0_2 = arith.constant 0 : index
    %3 = vector.load %arg3[%c0, %c0_1, %c0_2] : memref<1x64x3xbf16, #tpu.memory_space<vmem>>, vector<1x64x3xbf16>
    %4 = vector.shape_cast %3 : vector<1x64x3xbf16> to vector<64x3xbf16>
    %c0_3 = arith.constant 0 : index
    %c0_4 = arith.constant 0 : index
    %c0_5 = arith.constant 0 : index
    %5 = vector.load %arg4[%c0_3, %c0_4, %c0_5] : memref<1x3x64xbf16, #tpu.memory_space<vmem>>, vector<1x3x64xbf16>
    %6 = vector.shape_cast %5 : vector<1x3x64xbf16> to vector<3x64xbf16>
    %cst = arith.constant dense<0.000000e+00> : vector<64x64xf32>
    %7 = tpu.matmul %4, %6, %cst {dimension_numbers = #tpu.dot_dimension_numbers<[1], [0], [0], [1], [0, 0, 1, 1], [], []>} : vector<64x3xbf16>, vector<3x64xbf16>, vector<64x64xf32> -> vector<64x64xf32>
    %c0_6 = arith.constant 0 : index
    %c0_7 = arith.constant 0 : index
    %8 = vector.load %arg5[%c0_6, %c0_7] : memref<1x64xf32, #tpu.memory_space<vmem>>, vector<1x64xf32>
    %9 = vector.broadcast %8 : vector<1x64xf32> to vector<64x64xf32>
    %10 = arith.addf %7, %9 : vector<64x64xf32>
    %cst_8 = arith.constant 0.000000e+00 : f32
    %11 = vector.broadcast %cst_8 : f32 to vector<64x64xf32>
    %12 = arith.maximumf %10, %11 : vector<64x64xf32>
    %13 = arith.truncf %12 : vector<64x64xf32> to vector<64x64xbf16>
    %c0_9 = arith.constant 0 : index
    %c0_10 = arith.constant 0 : index
    %c0_11 = arith.constant 0 : index
    %14 = vector.load %arg6[%c0_9, %c0_10, %c0_11] : memref<1x64x128xbf16, #tpu.memory_space<vmem>>, vector<1x64x128xbf16>
    %15 = vector.shape_cast %14 : vector<1x64x128xbf16> to vector<64x128xbf16>
    %cst_12 = arith.constant dense<0.000000e+00> : vector<64x128xf32>
    %16 = tpu.matmul %13, %15, %cst_12 {dimension_numbers = #tpu.dot_dimension_numbers<[1], [0], [0], [1], [0, 0, 1, 1], [], []>} : vector<64x64xbf16>, vector<64x128xbf16>, vector<64x128xf32> -> vector<64x128xf32>
    %c0_13 = arith.constant 0 : index
    %c0_14 = arith.constant 0 : index
    %17 = vector.load %arg7[%c0_13, %c0_14] : memref<1x128xf32, #tpu.memory_space<vmem>>, vector<1x128xf32>
    %18 = vector.broadcast %17 : vector<1x128xf32> to vector<64x128xf32>
    %19 = arith.addf %16, %18 : vector<64x128xf32>
    %cst_15 = arith.constant 0.000000e+00 : f32
    %20 = vector.broadcast %cst_15 : f32 to vector<64x128xf32>
    %21 = arith.maximumf %19, %20 : vector<64x128xf32>
    %22 = arith.truncf %21 : vector<64x128xf32> to vector<64x128xbf16>
    %c0_16 = arith.constant 0 : index
    %c0_17 = arith.constant 0 : index
    %23 = vector.load %arg8[%c0_16, %c0_17] : memref<128x1024xbf16, #tpu.memory_space<vmem>>, vector<128x1024xbf16>
    %cst_18 = arith.constant dense<0.000000e+00> : vector<64x1024xf32>
    %24 = tpu.matmul %22, %23, %cst_18 {dimension_numbers = #tpu.dot_dimension_numbers<[1], [0], [0], [1], [0, 0, 1, 1], [], []>} : vector<64x128xbf16>, vector<128x1024xbf16>, vector<64x1024xf32> -> vector<64x1024xf32>
    %25 = vector.shape_cast %24 : vector<64x1024xf32> to vector<8x8x1024xf32>
    %cst_19 = arith.constant dense<0xFF800000> : vector<8x1024xf32>
    %26 = vector.multi_reduction <maximumf>, %25, %cst_19 [0] : vector<8x8x1024xf32> to vector<8x1024xf32>
    %c0_20 = arith.constant 0 : index
    %c0_21 = arith.constant 0 : index
    %27 = vector.load %arg11[%c0_20, %c0_21] : memref<8x1024xf32, #tpu.memory_space<vmem>>, vector<8x1024xf32>
    %28 = arith.maximumf %27, %26 : vector<8x1024xf32>
    %c0_22 = arith.constant 0 : index
    %c0_23 = arith.constant 0 : index
    %29 = vector.load %arg11[%c0_22, %c0_23] : memref<8x1024xf32, #tpu.memory_space<vmem>>, vector<8x1024xf32>
    tpu.vector_store %arg11[%c0_22, %c0_23], %28 {strides = array<i32>} : memref<8x1024xf32, #tpu.memory_space<vmem>>, vector<8x1024xf32>,
    %c0_i32_24 = arith.constant 0 : i32
    %30 = arith.cmpi eq, %arg2, %c0_i32_24 : i32
    %31 = arith.extui %30 : i1 to i32
    %c0_i32_25 = arith.constant 0 : i32
    %32 = arith.cmpi ne, %31, %c0_i32_25 : i32
    scf.if %32 {
      %c0_26 = arith.constant 0 : index
      %c0_27 = arith.constant 0 : index
      %33 = vector.load %arg9[%c0_26, %c0_27] : memref<1x1024xf32, #tpu.memory_space<vmem>>, vector<1x1024xf32>
      %c0_28 = arith.constant 0 : index
      %c0_29 = arith.constant 0 : index
      %34 = vector.load %arg11[%c0_28, %c0_29] : memref<8x1024xf32, #tpu.memory_space<vmem>>, vector<8x1024xf32>
      %cst_30 = arith.constant dense<0xFF800000> : vector<1024xf32>
      %35 = vector.multi_reduction <maximumf>, %34, %cst_30 [0] : vector<8x1024xf32> to vector<1024xf32>
      %36 = vector.shape_cast %35 : vector<1024xf32> to vector<1x1024xf32>
      %37 = arith.addf %36, %33 : vector<1x1024xf32>
      %cst_31 = arith.constant 0.000000e+00 : f32
      %38 = vector.broadcast %cst_31 : f32 to vector<1x1024xf32>
      %39 = arith.maximumf %37, %38 : vector<1x1024xf32>
      %40 = vector.shape_cast %39 : vector<1x1024xf32> to vector<1x1x1x1024xf32>
      %c0_32 = arith.constant 0 : index
      %c0_33 = arith.constant 0 : index
      %c0_34 = arith.constant 0 : index
      %c0_35 = arith.constant 0 : index
      %41 = vector.load %arg10[%c0_32, %c0_33, %c0_34, %c0_35] : memref<1x1x1x1024xf32, #tpu.memory_space<vmem>>, vector<1x1x1x1024xf32>
      tpu.vector_store %arg10[%c0_32, %c0_33, %c0_34, %c0_35], %40 {strides = array<i32>} : memref<1x1x1x1024xf32, #tpu.memory_space<vmem>>, vector<1x1x1x1024xf32>,
    } else {
    }
    return
  }
  func.func @transform_0(%arg0: i32, %arg1: i32, %arg2: i32) -> (i32, i32, i32) {
    %c1_i32 = arith.constant 1 : i32
    %0 = arith.muli %arg0, %c1_i32 : i32
    %1 = arith.addi %0, %arg2 : i32
    %c0_i32 = arith.constant 0 : i32
    %c0_i32_0 = arith.constant 0 : i32
    return %arg1, %1, %c0_i32 : i32, i32, i32
  }
  func.func @transform_1(%arg0: i32, %arg1: i32, %arg2: i32) -> (i32, i32, i32) {
    %c0_i32 = arith.constant 0 : i32
    %c0_i32_0 = arith.constant 0 : i32
    %c0_i32_1 = arith.constant 0 : i32
    return %arg1, %c0_i32, %c0_i32_0 : i32, i32, i32
  }
  func.func @transform_2(%arg0: i32, %arg1: i32, %arg2: i32) -> (i32, i32) {
    %c0_i32 = arith.constant 0 : i32
    %c0_i32_0 = arith.constant 0 : i32
    %c0_i32_1 = arith.constant 0 : i32
    return %c0_i32, %c0_i32_0 : i32, i32
  }
  func.func @transform_3(%arg0: i32, %arg1: i32, %arg2: i32) -> (i32, i32, i32) {
    %c0_i32 = arith.constant 0 : i32
    %c0_i32_0 = arith.constant 0 : i32
    %c0_i32_1 = arith.constant 0 : i32
    return %arg1, %c0_i32, %c0_i32_0 : i32, i32, i32
  }
  func.func @transform_4(%arg0: i32, %arg1: i32, %arg2: i32) -> (i32, i32) {
    %c0_i32 = arith.constant 0 : i32
    %c0_i32_0 = arith.constant 0 : i32
    %c0_i32_1 = arith.constant 0 : i32
    return %c0_i32, %c0_i32_0 : i32, i32
  }
  func.func @transform_5(%arg0: i32, %arg1: i32, %arg2: i32) -> (i32, i32) {
    %c0_i32 = arith.constant 0 : i32
    %c0_i32_0 = arith.constant 0 : i32
    %c0_i32_1 = arith.constant 0 : i32
    return %c0_i32, %c0_i32_0 : i32, i32
  }
  func.func @transform_6(%arg0: i32, %arg1: i32, %arg2: i32) -> (i32, i32) {
    %c0_i32 = arith.constant 0 : i32
    %c0_i32_0 = arith.constant 0 : i32
    %c0_i32_1 = arith.constant 0 : i32
    return %c0_i32, %c0_i32_0 : i32, i32
  }
  func.func @transform_7(%arg0: i32, %arg1: i32, %arg2: i32) -> (i32, i32, i32, i32) {
    %c0_i32 = arith.constant 0 : i32
    %c0_i32_0 = arith.constant 0 : i32
    %c0_i32_1 = arith.constant 0 : i32
    return %arg0, %arg1, %c0_i32, %c0_i32_0 : i32, i32, i32, i32
  }
}

</mosaic_0001>

<llo_original>
// kernel: feature_transform_forward.5
$region0: #{feature_transform_forward.5}
  #allocation0 [shape = 'u32[]', space=smem, size = 0x4, offset = 0x4, fixed_abs, tag = 'smem constant byte address 0x4 - core index']
  #allocation1 [shape = 'u32[72,128]{1,0:T(1,128)}', space=vmem, size = 0x9000, scoped, tag = 'internal scratch']
  #allocation2 [shape = 'f32[8,1024]{1,0:T(8,128)}', space=vmem, size = 0x8000, scoped, tag = 'scratch operand']
  %s0 = inlined_call_operand.vmem [shape: bf16[2,64,3], index: 0, kind: input, shape index: {}]
  %s1 = inlined_call_operand.vmem [shape: bf16[3,64], index: 1, kind: input, shape index: {}]
  %s2 = inlined_call_operand.hbm [shape: f32[1,64], index: 2, kind: input, shape index: {}]
  %s3 = inlined_call_operand.vmem [shape: bf16[64,128], index: 3, kind: input, shape index: {}]
  %s4 = inlined_call_operand.hbm [shape: f32[1,128], index: 4, kind: input, shape index: {}]
  %s5 = inlined_call_operand.vmem [shape: bf16[128,1024], index: 5, kind: input, shape index: {}]
  %s6 = inlined_call_operand.hbm [shape: f32[1,1024], index: 6, kind: input, shape index: {}]
  %s7 = inlined_call_operand.vmem [shape: f32[1,2,1,1024], index: 7, kind: output, shape index: {}]
  %s8 = sld [smem:[#allocation0]]
  $region81: #{feature_transform_forward.5} parent=0
    _
  %s10 = ssub.s32 1, %s8
  %s11 = scalar_select 0, %s10, %s8
  $region1: #{feature_transform_forward.5} parent=0
    #allocation3 [shape = 'u8[512]{0}', space=vmem, size = 0x400, scoped, tag = 'input window, operand 2, single buffered']
    #allocation4 [shape = 's32[2]{0}', space=sflag, size = 0x8, scoped, tag = 'scoped memory for feature_transform_forward.5']
    #allocation5 [shape = 'u8[512]{0}', space=vmem, size = 0x400, scoped, tag = 'input window, operand 4, single buffered']
    #allocation6 [shape = 's32[1]{0}', space=sflag, size = 0x4, scoped, tag = 'scoped memory for feature_transform_forward.5']
    #allocation7 [shape = 'u8[4096]{0}', space=vmem, size = 0x1000, scoped, tag = 'input window, operand 6, single buffered']
    %12 = vsyncpa [#allocation4], 0
    %13 = vsyncpa [#allocation6], 0
    loop: start=0, step=1, limit=4
    $region2: #{feature_transform_forward.5} parent=1 // loop_pre_header
      _
    $region3: #{feature_transform_forward.5} parent=1 // loop_header
      %s15 = sphi 0, %s19
      %p16 = scmp.ge.s32.totalorder %s15, 4
      %s22 = sphi 0, %s41
      %s23 = sphi 0, %s37
      %s24 = sphi 0, %s33
      %s25 = sphi 0, %s22
      %s26 = sphi 0, %s23
      %s27 = sphi 0, %s24
      %s28 = sphi 0, %s25
      %s29 = sphi 0, %s26
      %s30 = sphi 0, %s27
      %s48 = sphi 0, %s50
      %s51 = sphi 0, %s48
      %s52 = sphi 0, %s51
      %s68 = sphi 0, %s52
      %s72 = sphi 0, %s72
      %s74 = sphi 0, %s72
      %s75 = sphi 0, %s74
      %s89 = sphi 0, %s75
      %s93 = sphi 0, %s93
      %s95 = sphi 0, %s93
      %s96 = sphi 0, %s95
      %s110 = sphi 0, %s96
      %s114 = sphi 0, %s114
      %s116 = sphi 0, %s114
      %s117 = sphi 0, %s116
      %s131 = sphi 0, %s117
      %s135 = sphi 0, %s135
      %s137 = sphi 0, %s135
      %s138 = sphi 0, %s137
      %s152 = sphi 0, %s138
      %s156 = sphi 0, %s156
      %s158 = sphi 0, %s156
      %s159 = sphi 0, %s158
      %s173 = sphi 0, %s159
      %s177 = sphi 0, %s177
      %s179 = sphi 0, %s177
      %s180 = sphi 0, %s179
      %s194 = sphi 0, %s180
      %s202 = sphi 0, %s204
      %s205 = sphi 0, %s202
      %s206 = sphi 0, %s205
      %s222 = sphi 0, %s206
    $region4: #{feature_transform_forward.5} parent=1 // loop_header_branch
      %18 = sbr.rel (%p16) target = $region8
    $region5: #{feature_transform_forward.5} parent=1 // loop_body
      %s20 = ssub.s32 %s15, 1
      %s21 = ssub.s32 %s15, 2
      %s31 = sadd.s32 1, %s24
      %p32 = scmp.ge.s32.totalorder %s31, 1
      %s33 = scalar_select %p32, 0, %s31
      %s34 = sadd.s32 1, %s23
      %s35 = scalar_select %p32, %s34, %s23
      %p36 = scmp.ge.s32.totalorder %s35, 2
      %s37 = scalar_select %p36, 0, %s35
      %s38 = sadd.s32 1, %s22
      %s39 = scalar_select %p36, %s38, %s22
      %p40 = scmp.ge.s32.totalorder %s39, 1
      %s41 = scalar_select %p40, 0, %s39
      %s42 = sadd.s32 %s22, %s24
      %s43 = sadd.s32 %s41, %s33
      %s44 = ssub.s32 %s23, %s37
      %s45 = ssub.s32 %s42, %s43
      %s46 = sor.u32 %s44, %s45
      %p47 = scmp.eq.s32.totalorder %s46, 0
      %s49 = sadd.s32 %s48, 1
      %s50 = scalar_select %p47, %s48, %s49
      %p53 = pneg %p47
      %p54 = scmp.eq.s32.totalorder %s15, 1
      %p55 = por %p53, %p54
      %p56 = scmp.ne.s32.totalorder %s48, %s51
      %p57 = scmp.eq.s32.totalorder %s15, 0
      %p58 = por %p56, %p57
      %p59 = scmp.ne.s32.totalorder %s48, %s51
      %p60 = scmp.eq.s32.totalorder %s20, 1
      %p61 = por %p59, %p60
      %p62 = scmp.ne.s32.totalorder %s51, %s52
      %p63 = scmp.eq.s32.totalorder %s20, 0
      %p64 = por %p62, %p63
      %p65 = scmp.ne.s32.totalorder %s51, %s52
      %p66 = scmp.eq.s32.totalorder %s21, 1
      %p67 = por %p65, %p66
      %p69 = scmp.ne.s32.totalorder %s52, %s68
      %p70 = scmp.eq.s32.totalorder %s21, 0
      %p71 = por %p69, %p70
      %s73 = sadd.s32 %s72, 1
      %p76 = scmp.eq.s32.totalorder %s15, 1
      %p77 = scmp.ne.s32.totalorder %s72, %s74
      %p78 = scmp.eq.s32.totalorder %s15, 0
      %p79 = por %p77, %p78
      %p80 = scmp.ne.s32.totalorder %s72, %s74
      %p81 = scmp.eq.s32.totalorder %s20, 1
      %p82 = por %p80, %p81
      %p83 = scmp.ne.s32.totalorder %s74, %s75
      %p84 = scmp.eq.s32.totalorder %s20, 0
      %p85 = por %p83, %p84
      %p86 = scmp.ne.s32.totalorder %s74, %s75
      %p87 = scmp.eq.s32.totalorder %s21, 1
      %p88 = por %p86, %p87
      %p90 = scmp.ne.s32.totalorder %s75, %s89
      %p91 = scmp.eq.s32.totalorder %s21, 0
      %p92 = por %p90, %p91
      %s94 = sadd.s32 %s93, 1
      %p97 = scmp.eq.s32.totalorder %s15, 1
      %p98 = scmp.ne.s32.totalorder %s93, %s95
      %p99 = scmp.eq.s32.totalorder %s15, 0
      %p100 = por %p98, %p99
      %p101 = scmp.ne.s32.totalorder %s93, %s95
      %p102 = scmp.eq.s32.totalorder %s20, 1
      %p103 = por %p101, %p102
      %p104 = scmp.ne.s32.totalorder %s95, %s96
      %p105 = scmp.eq.s32.totalorder %s20, 0
      %p106 = por %p104, %p105
      %p107 = scmp.ne.s32.totalorder %s95, %s96
      %p108 = scmp.eq.s32.totalorder %s21, 1
      %p109 = por %p107, %p108
      %p111 = scmp.ne.s32.totalorder %s96, %s110
      %p112 = scmp.eq.s32.totalorder %s21, 0
      %p113 = por %p111, %p112
      %s115 = sadd.s32 %s114, 1
      %p118 = scmp.eq.s32.totalorder %s15, 1
      %p119 = scmp.ne.s32.totalorder %s114, %s116
      %p120 = scmp.eq.s32.totalorder %s15, 0
      %p121 = por %p119, %p120
      %p122 = scmp.ne.s32.totalorder %s114, %s116
      %p123 = scmp.eq.s32.totalorder %s20, 1
      %p124 = por %p122, %p123
      %p125 = scmp.ne.s32.totalorder %s116, %s117
      %p126 = scmp.eq.s32.totalorder %s20, 0
      %p127 = por %p125, %p126
      %p128 = scmp.ne.s32.totalorder %s116, %s117
      %p129 = scmp.eq.s32.totalorder %s21, 1
      %p130 = por %p128, %p129
      %p132 = scmp.ne.s32.totalorder %s117, %s131
      %p133 = scmp.eq.s32.totalorder %s21, 0
      %p134 = por %p132, %p133
      %s136 = sadd.s32 %s135, 1
      %p139 = scmp.eq.s32.totalorder %s15, 1
      %p140 = scmp.ne.s32.totalorder %s135, %s137
      %p141 = scmp.eq.s32.totalorder %s15, 0
      %p142 = por %p140, %p141
      %p143 = scmp.ne.s32.totalorder %s135, %s137
      %p144 = scmp.eq.s32.totalorder %s20, 1
      %p145 = por %p143, %p144
      %p146 = scmp.ne.s32.totalorder %s137, %s138
      %p147 = scmp.eq.s32.totalorder %s20, 0
      %p148 = por %p146, %p147
      %p149 = scmp.ne.s32.totalorder %s137, %s138
      %p150 = scmp.eq.s32.totalorder %s21, 1
      %p151 = por %p149, %p150
      %p153 = scmp.ne.s32.totalorder %s138, %s152
      %p154 = scmp.eq.s32.totalorder %s21, 0
      %p155 = por %p153, %p154
      %s157 = sadd.s32 %s156, 1
      %p160 = scmp.eq.s32.totalorder %s15, 1
      %p161 = scmp.ne.s32.totalorder %s156, %s158
      %p162 = scmp.eq.s32.totalorder %s15, 0
      %p163 = por %p161, %p162
      %p164 = scmp.ne.s32.totalorder %s156, %s158
      %p165 = scmp.eq.s32.totalorder %s20, 1
      %p166 = por %p164, %p165
      %p167 = scmp.ne.s32.totalorder %s158, %s159
      %p168 = scmp.eq.s32.totalorder %s20, 0
      %p169 = por %p167, %p168
      %p170 = scmp.ne.s32.totalorder %s158, %s159
      %p171 = scmp.eq.s32.totalorder %s21, 1
      %p172 = por %p170, %p171
      %p174 = scmp.ne.s32.totalorder %s159, %s173
      %p175 = scmp.eq.s32.totalorder %s21, 0
      %p176 = por %p174, %p175
      %s178 = sadd.s32 %s177, 1
      %p181 = scmp.eq.s32.totalorder %s15, 1
      %p182 = scmp.ne.s32.totalorder %s177, %s179
      %p183 = scmp.eq.s32.totalorder %s15, 0
      %p184 = por %p182, %p183
      %p185 = scmp.ne.s32.totalorder %s177, %s179
      %p186 = scmp.eq.s32.totalorder %s20, 1
      %p187 = por %p185, %p186
      %p188 = scmp.ne.s32.totalorder %s179, %s180
      %p189 = scmp.eq.s32.totalorder %s20, 0
      %p190 = por %p188, %p189
      %p191 = scmp.ne.s32.totalorder %s179, %s180
      %p192 = scmp.eq.s32.totalorder %s21, 1
      %p193 = por %p191, %p192
      %p195 = scmp.ne.s32.totalorder %s180, %s194
      %p196 = scmp.eq.s32.totalorder %s21, 0
      %p197 = por %p195, %p196
      %s198 = ssub.s32 %s22, %s41
      %s199 = ssub.s32 %s23, %s37
      %s200 = sor.u32 %s198, %s199
      %p201 = scmp.eq.s32.totalorder %s200, 0
      %s203 = sadd.s32 %s202, 1
      %s204 = scalar_select %p201, %s202, %s203
      %p207 = pneg %p201
      %p208 = scmp.eq.s32.totalorder %s15, 1
      %p209 = por %p207, %p208
      %p210 = scmp.ne.s32.totalorder %s202, %s205
      %p211 = scmp.eq.s32.totalorder %s15, 0
      %p212 = por %p210, %p211
      %p213 = scmp.ne.s32.totalorder %s202, %s205
      %p214 = scmp.eq.s32.totalorder %s20, 1
      %p215 = por %p213, %p214
      %p216 = scmp.ne.s32.totalorder %s205, %s206
      %p217 = scmp.eq.s32.totalorder %s20, 0
      %p218 = por %p216, %p217
      %p219 = scmp.ne.s32.totalorder %s205, %s206
      %p220 = scmp.eq.s32.totalorder %s21, 1
      %p221 = por %p219, %p220
      %p223 = scmp.ne.s32.totalorder %s206, %s222
      %p224 = scmp.eq.s32.totalorder %s21, 0
      %p225 = por %p223, %p224
      %p226 = scmp.le.s32.totalorder 1, %s15
      %p227 = scmp.lt.s32.totalorder %s15, 3
      %p228 = pnand %p226, %p227
      %p229 = pneg %p228
      // Predicated region
      $region9: #{feature_transform_forward.5} parent=5 // pred_check
        _
      $region10: #{feature_transform_forward.5} parent=5 // pred_check_branch
        %231 = sbr.rel (%p228) target = $region12
      $region11: #{feature_transform_forward.5} parent=5 // pred_region
        %s232 = ssub.s32 %s15, 1
        // Predicated region
        $region13: #{feature_transform_forward.5} parent=11 // pred_check
          %p233 = pneg %p85
        $region14: #{feature_transform_forward.5} parent=11 // pred_check_branch
          %235 = sbr.rel (%p233) target = $region16
        $region15: #{feature_transform_forward.5} parent=11 // pred_region
          _
        $region16: #{feature_transform_forward.5} parent=11 // pred_fallthru
          _
        // Predicated region
        $region17: #{feature_transform_forward.5} parent=11 // pred_check
          %p236 = pneg %p106
        $region18: #{feature_transform_forward.5} parent=11 // pred_check_branch
          %238 = sbr.rel (%p236) target = $region20
        $region19: #{feature_transform_forward.5} parent=11 // pred_region
          %240 = vsyncadd [#allocation4], 0
          %s242 = sshll.u32 %s2, 4
          %s243 = int_to_ptr.hbm [resolvable:$true] %s242
          %s244 = sshll.u32 [#allocation3], 4
          %s245 = int_to_ptr.vmem [resolvable:$true] %s244
          %247 = dma.hbm_to_vmem [thread:$0]  %s243, 16, %s245, [#allocation4]
        $region20: #{feature_transform_forward.5} parent=11 // pred_fallthru
          _
        // Predicated region
        $region21: #{feature_transform_forward.5} parent=11 // pred_check
          %p248 = pneg %p127
        $region22: #{feature_transform_forward.5} parent=11 // pred_check_branch
          %250 = sbr.rel (%p248) target = $region24
        $region23: #{feature_transform_forward.5} parent=11 // pred_region
          _
        $region24: #{feature_transform_forward.5} parent=11 // pred_fallthru
          _
        // Predicated region
        $region25: #{feature_transform_forward.5} parent=11 // pred_check
          %p251 = pneg %p148
        $region26: #{feature_transform_forward.5} parent=11 // pred_check_branch
          %253 = sbr.rel (%p251) target = $region28
        $region27: #{feature_transform_forward.5} parent=11 // pred_region
          %255 = vsyncadd [#allocation6], 0
          %s257 = sshll.u32 %s4, 4
          %s258 = int_to_ptr.hbm [resolvable:$true] %s257
          %s259 = sshll.u32 [#allocation5], 4
          %s260 = int_to_ptr.vmem [resolvable:$true] %s259
          %262 = dma.hbm_to_vmem [thread:$0]  %s258, 16, %s260, [#allocation6]
        $region28: #{feature_transform_forward.5} parent=11 // pred_fallthru
          _
        // Predicated region
        $region29: #{feature_transform_forward.5} parent=11 // pred_check
          %p263 = pneg %p169
        $region30: #{feature_transform_forward.5} parent=11 // pred_check_branch
          %265 = sbr.rel (%p263) target = $region32
        $region31: #{feature_transform_forward.5} parent=11 // pred_region
          _
        $region32: #{feature_transform_forward.5} parent=11 // pred_fallthru
          _
        // Predicated region
        $region33: #{feature_transform_forward.5} parent=11 // pred_check
          %p266 = pneg %p190
        $region34: #{feature_transform_forward.5} parent=11 // pred_check_branch
          %268 = sbr.rel (%p266) target = $region36
        $region35: #{feature_transform_forward.5} parent=11 // pred_region
          %270 = vsyncadd [#allocation6], 0
          %s272 = sshll.u32 %s6, 4
          %s273 = int_to_ptr.hbm [resolvable:$true] %s272
          %s274 = sshll.u32 [#allocation7], 4
          %s275 = int_to_ptr.vmem [resolvable:$true] %s274
          %277 = dma.hbm_to_vmem [thread:$0]  %s273, 128, %s275, [#allocation6]
        $region36: #{feature_transform_forward.5} parent=11 // pred_fallthru
          _
      $region12: #{feature_transform_forward.5} parent=5 // pred_fallthru
        _
      %p278 = scmp.lt.s32.totalorder %s15, 2
      // Predicated region
      $region37: #{feature_transform_forward.5} parent=5 // pred_check
        %p279 = pneg %p278
      $region38: #{feature_transform_forward.5} parent=5 // pred_check_branch
        %281 = sbr.rel (%p279) target = $region40
      $region39: #{feature_transform_forward.5} parent=5 // pred_region
        // Predicated region
        $region41: #{feature_transform_forward.5} parent=39 // pred_check
          %p282 = pneg %p58
        $region42: #{feature_transform_forward.5} parent=39 // pred_check_branch
          %284 = sbr.rel (%p282) target = $region44
        $region43: #{feature_transform_forward.5} parent=39 // pred_region
          %s285 = sadd.s32 %s22, %s24
          %s286 = smul.u32 8, %s285
          %p287 = scmp.lt.s32.totalorder %s23, 1
          %s288 = scalar_select %p287, %s23, 1
          %p289 = scmp.lt.s32.totalorder %s286, 7
          %s290 = scalar_select %p289, %s286, 7
          %s291 = smul.addr %s288, 8
          %s292 = sadd.s32 %s290, %s291
          %s293 = smul.addr %s292, 4
          %s294 = scalar_lea.vmem %s0, %s293
          %s295 = sadd.s32 %s22, %s24
          %s296 = smul.u32 8, %s295
        $region44: #{feature_transform_forward.5} parent=39 // pred_fallthru
          _
      $region40: #{feature_transform_forward.5} parent=5 // pred_fallthru
        _
      %p297 = scmp.le.s32.totalorder 1, %s15
      %p298 = scmp.lt.s32.totalorder %s15, 3
      %p299 = pnand %p297, %p298
      %p300 = pneg %p299
      // Predicated region
      $region45: #{feature_transform_forward.5} parent=5 // pred_check
        _
      $region46: #{feature_transform_forward.5} parent=5 // pred_check_branch
        %302 = sbr.rel (%p299) target = $region48
      $region47: #{feature_transform_forward.5} parent=5 // pred_region
        %s303 = ssub.s32 %s15, 1
        // Predicated region
        $region49: #{feature_transform_forward.5} parent=47 // pred_check
          %p304 = pneg %p106
        $region50: #{feature_transform_forward.5} parent=47 // pred_check_branch
          %306 = sbr.rel (%p304) target = $region52
        $region51: #{feature_transform_forward.5} parent=47 // pred_region
          %308 = dma.done [#allocation4], 16
        $region52: #{feature_transform_forward.5} parent=47 // pred_fallthru
          _
        // Predicated region
        $region53: #{feature_transform_forward.5} parent=47 // pred_check
          %p309 = pneg %p148
        $region54: #{feature_transform_forward.5} parent=47 // pred_check_branch
          %311 = sbr.rel (%p309) target = $region56
        $region55: #{feature_transform_forward.5} parent=47 // pred_region
          %313 = dma.done [#allocation6], 16
        $region56: #{feature_transform_forward.5} parent=47 // pred_fallthru
          _
        // Predicated region
        $region57: #{feature_transform_forward.5} parent=47 // pred_check
          %p314 = pneg %p190
        $region58: #{feature_transform_forward.5} parent=47 // pred_check_branch
          %316 = sbr.rel (%p314) target = $region60
        $region59: #{feature_transform_forward.5} parent=47 // pred_region
          %318 = dma.done [#allocation6], 128
        $region60: #{feature_transform_forward.5} parent=47 // pred_fallthru
          _
        %s319 = sadd.s32 %s25, %s27
        %s320 = smul.u32 8, %s319
        %p321 = scmp.lt.s32.totalorder %s26, 1
        %s322 = scalar_select %p321, %s26, 1
        %p323 = scmp.lt.s32.totalorder %s320, 7
        %s324 = scalar_select %p323, %s320, 7
        %s325 = smul.addr %s322, 8
        %s326 = sadd.s32 %s324, %s325
        %s327 = smul.addr %s326, 4
        %s328 = scalar_lea.vmem %s0, %s327
        %p329 = pneg %p64
        %p330 = pneg %p61
        %p331 = pneg %p85
        %p332 = pneg %p82
        %p333 = pneg %p106
        %p334 = pneg %p103
        %p335 = pneg %p127
        %p336 = pneg %p124
        %p337 = pneg %p148
        %p338 = pneg %p145
        %p339 = pneg %p169
        %p340 = pneg %p166
        %p341 = pneg %p190
        %p342 = pneg %p187
        %p343 = pneg %p218
        %p344 = pneg %p215
        %p345 = scmp.lt.s32.totalorder %s25, 0
        %s346 = scalar_select %p345, %s25, 0
        %p347 = scmp.lt.s32.totalorder %s26, 1
        %s348 = scalar_select %p347, %s26, 1
        %s349 = smul.addr %s348, 8
        %s350 = smul.addr %s346, 16
        %s351 = sadd.s32 %s349, %s350
        %s352 = scalar_lea.vmem %s7, %s351
        %s353 = sadd.s32 %s25, %s27
        %s354 = smul.u32 8, %s353
        %p355 = scmp.lt.s32.totalorder %s26, 1
        %s356 = scalar_select %p355, %s26, 1
        %p357 = scmp.lt.s32.totalorder %s354, 7
        %s358 = scalar_select %p357, %s354, 7
        %s359 = smul.addr %s356, 8
        %s360 = sadd.s32 %s358, %s359
        %s361 = smul.addr %s360, 4
        %s362 = scalar_lea.vmem %s0, %s361
        %s363 = sadd.s32 %s25, %s27
        %s364 = smul.u32 8, %s363
        %p365 = scmp.lt.s32.totalorder %s25, 0
        %s366 = scalar_select %p365, %s25, 0
        %p367 = scmp.lt.s32.totalorder %s26, 1
        %s368 = scalar_select %p367, %s26, 1
        %s369 = smul.addr %s368, 8
        %s370 = smul.addr %s366, 16
        %s371 = sadd.s32 %s369, %s370
        %s372 = scalar_lea.vmem %s7, %s371
        %p374 = scmp.eq.s32.totalorder %s27, 0
        // Predicated region
        $region61: #{feature_transform_forward.5} parent=47 // pred_check
          %p375 = pneg %p374
        $region62: #{feature_transform_forward.5} parent=47 // pred_check_branch
          %377 = sbr.rel (%p375) target = $region64
        $region63: #{feature_transform_forward.5} parent=47 // pred_region
          %378 = vst [vmem:[#allocation2] sm:$0xff] -inf
          %379 = vst [vmem:[#allocation2 + $0x8] sm:$0xff] -inf
          %380 = vst [vmem:[#allocation2 + $0x10] sm:$0xff] -inf
          %381 = vst [vmem:[#allocation2 + $0x18] sm:$0xff] -inf
          %382 = vst [vmem:[#allocation2 + $0x20] sm:$0xff] -inf
          %383 = vst [vmem:[#allocation2 + $0x28] sm:$0xff] -inf
          %384 = vst [vmem:[#allocation2 + $0x30] sm:$0xff] -inf
          %385 = vst [vmem:[#allocation2 + $0x38] sm:$0xff] -inf
        $region64: #{feature_transform_forward.5} parent=47 // pred_fallthru
          _
        %v386 = vld [vmem:[%s362] sm:$0xf]
        %v387 = vld [vmem:[%s362 + $0x4] sm:$0xf]
        %v388 = vld [vmem:[%s362 + $0x8] sm:$0xf]
        %v389 = vld [vmem:[%s362 + $0xc] sm:$0xf]
        %v390 = vld [vmem:[%s362 + $0x10] sm:$0xf]
        %v391 = vld [vmem:[%s362 + $0x14] sm:$0xf]
        %v392 = vld [vmem:[%s362 + $0x18] sm:$0xf]
        %v393 = vld [vmem:[%s362 + $0x1c] sm:$0xf]
        %v394 = vld [vmem:[%s1] sm:$0x3]
        %v395 = vld [vmem:[#allocation3] sm:$0x1]
        %v397 = vperm.slane %v395, 0
        %v407 = vunpack.c.l.b16 %v386
        %v408 = vunpack.c.l.b16 %v387
        %v409 = vunpack.c.l.b16 %v388
        %v410 = vunpack.c.l.b16 %v389
        %v411 = vunpack.c.l.b16 %v390
        %v412 = vunpack.c.l.b16 %v391
        %v413 = vunpack.c.l.b16 %v392
        %v414 = vunpack.c.l.b16 %v393
        %v415 = vpack.c.b16 %v408, %v407
        %v416 = vpack.c.b16 %v410, %v409
        %v417 = vpack.c.b16 %v412, %v411
        %v418 = vpack.c.b16 %v414, %v413
        %vm419 = vcmask 23552
        %v421 = vsel %vm419, %v415, 0
        %v424 = vsel %vm419, %v416, 0
        %v427 = vsel %vm419, %v417, 0
        %v430 = vsel %vm419, %v418, 0
        %vm432 = vcmask 1040384
        %vm433 = vcmask 1041408
        %v434 = vsel %vm432, 4294967295, 65535
        %v435 = vsel %vm433, %v434, 0
        %v437 = vand.u32 %v394, %v435
        %439 = vmatpush.bf16.msra.mxu0 0
        %440 = vmatpush.bf16.msra.mxu0 0
        %441 = vmatpush.bf16.msra.mxu0 0
        %442 = vmatpush.bf16.msra.mxu0 0
        %443 = vmatpush.bf16.msra.mxu0 0
        %444 = vmatpush.bf16.msra.mxu0 0
        %445 = vmatpush.bf16.msra.mxu0 0
        %446 = vmatpush.bf16.msra.mxu0 %v437
        %447 = vmatmul.bf16.gmra.mxu0 %v421
        %v448 = vpop.f32.mrf.mxu0
        %v449 = vadd.f32 %v397, %v448
        %v450 = vpop.f32.mrf.mxu0
        %v451 = vadd.f32 %v397, %v450
        %452 = vmatmul.bf16.gmra.mxu0 %v424
        %v453 = vpop.f32.mrf.mxu0
        %v454 = vadd.f32 %v397, %v453
        %v455 = vpop.f32.mrf.mxu0
        %v456 = vadd.f32 %v397, %v455
        %457 = vmatmul.bf16.gmra.mxu0 %v427
        %v458 = vpop.f32.mrf.mxu0
        %v459 = vadd.f32 %v397, %v458
        %v460 = vpop.f32.mrf.mxu0
        %v461 = vadd.f32 %v397, %v460
        %462 = vmatmul.bf16.gmra.mxu0 %v430
        %v463 = vpop.f32.mrf.mxu0
        %v464 = vadd.f32 %v397, %v463
        %v465 = vpop.f32.mrf.mxu0
        %v466 = vadd.f32 %v397, %v465
        %467 = vdwg.mxu0
        %v468 = vmax.f32 %v449, 0.0
        %v469 = vmax.f32 %v451, 0.0
        %v470 = vmax.f32 %v454, 0.0
        %v471 = vmax.f32 %v456, 0.0
        %v472 = vmax.f32 %v459, 0.0
        %v473 = vmax.f32 %v461, 0.0
        %v474 = vmax.f32 %v464, 0.0
        %v475 = vmax.f32 %v466, 0.0
        %v476 = vpack.c.bf16 %v469, %v468
        %v477 = vpack.c.bf16 %v471, %v470
        %v478 = vpack.c.bf16 %v473, %v472
        %v479 = vpack.c.bf16 %v475, %v474
        %v480 = vld [vmem:[%s3] sm:$0xf]
        %v481 = vld [vmem:[%s3 + $0x4] sm:$0xf]
        %v482 = vld [vmem:[%s3 + $0x8] sm:$0xf]
        %v483 = vld [vmem:[%s3 + $0xc] sm:$0xf]
        %v484 = vld [vmem:[%s3 + $0x10] sm:$0xf]
        %v485 = vld [vmem:[%s3 + $0x14] sm:$0xf]
        %v486 = vld [vmem:[%s3 + $0x18] sm:$0xf]
        %v487 = vld [vmem:[%s3 + $0x1c] sm:$0xf]
        %v488 = vld [vmem:[#allocation5] sm:$0x1]
        %v490 = vperm.slane %v488, 0
        %v500 = vunpack.c.l.b16 %v480
        %v501 = vunpack.c.l.b16 %v481
        %v502 = vunpack.c.l.b16 %v482
        %v503 = vunpack.c.l.b16 %v483
        %v504 = vunpack.c.l.b16 %v484
        %v505 = vunpack.c.l.b16 %v485
        %v506 = vunpack.c.l.b16 %v486
        %v507 = vunpack.c.l.b16 %v487
        %v508 = vpack.c.b16 %v501, %v500
        %v509 = vpack.c.b16 %v503, %v502
        %v510 = vpack.c.b16 %v505, %v504
        %v511 = vpack.c.b16 %v507, %v506
        %vm516 = vcmask 523264
        %v518 = vsel %vm516, %v476, 0
        %v521 = vsel %vm516, %v477, 0
        %v524 = vsel %vm516, %v478, 0
        %v527 = vsel %vm516, %v479, 0
        %529 = vmatpush.bf16.msra.mxu0 0
        %530 = vmatpush.bf16.msra.mxu0 0
        %531 = vmatpush.bf16.msra.mxu0 0
        %532 = vmatpush.bf16.msra.mxu0 0
        %533 = vmatpush.bf16.msra.mxu0 %v511
        %534 = vmatpush.bf16.msra.mxu0 %v510
        %535 = vmatpush.bf16.msra.mxu0 %v509
        %536 = vmatpush.bf16.msra.mxu0 %v508
        %537 = vmatmul.bf16.gmra.mxu0 %v518
        %v538 = vpop.f32.mrf.mxu0
        %v539 = vadd.f32 %v490, %v538
        %v540 = vpop.f32.mrf.mxu0
        %v541 = vadd.f32 %v490, %v540
        %542 = vmatmul.bf16.gmra.mxu0 %v521
        %v543 = vpop.f32.mrf.mxu0
        %v544 = vadd.f32 %v490, %v543
        %v545 = vpop.f32.mrf.mxu0
        %v546 = vadd.f32 %v490, %v545
        %547 = vmatmul.bf16.gmra.mxu0 %v524
        %v548 = vpop.f32.mrf.mxu0
        %v549 = vadd.f32 %v490, %v548
        %v550 = vpop.f32.mrf.mxu0
        %v551 = vadd.f32 %v490, %v550
        %552 = vmatmul.bf16.gmra.mxu0 %v527
        %v553 = vpop.f32.mrf.mxu0
        %v554 = vadd.f32 %v490, %v553
        %v555 = vpop.f32.mrf.mxu0
        %v556 = vadd.f32 %v490, %v555
        %557 = vdwg.mxu0
        %v558 = vmax.f32 %v539, 0.0
        %v559 = vmax.f32 %v541, 0.0
        %v560 = vmax.f32 %v544, 0.0
        %v561 = vmax.f32 %v546, 0.0
        %v562 = vmax.f32 %v549, 0.0
        %v563 = vmax.f32 %v551, 0.0
        %v564 = vmax.f32 %v554, 0.0
        %v565 = vmax.f32 %v556, 0.0
        %v566 = vpack.c.bf16 %v559, %v558
        %v567 = vpack.c.bf16 %v561, %v560
        %v568 = vpack.c.bf16 %v563, %v562
        %v569 = vpack.c.bf16 %v565, %v564
        %v570 = vld [vmem:[%s5] sm:$0xff]
        %v571 = vld [vmem:[%s5 + $0x8] sm:$0xff]
        %v572 = vld [vmem:[%s5 + $0x10] sm:$0xff]
        %v573 = vld [vmem:[%s5 + $0x18] sm:$0xff]
        %v574 = vld [vmem:[%s5 + $0x20] sm:$0xff]
        %v575 = vld [vmem:[%s5 + $0x28] sm:$0xff]
        %v576 = vld [vmem:[%s5 + $0x30] sm:$0xff]
        %v577 = vld [vmem:[%s5 + $0x38] sm:$0xff]
        %v578 = vld [vmem:[%s5 + $0x40] sm:$0xff]
        %v579 = vld [vmem:[%s5 + $0x48] sm:$0xff]
        %v580 = vld [vmem:[%s5 + $0x50] sm:$0xff]
        %v581 = vld [vmem:[%s5 + $0x58] sm:$0xff]
        %v582 = vld [vmem:[%s5 + $0x60] sm:$0xff]
        %v583 = vld [vmem:[%s5 + $0x68] sm:$0xff]
        %v584 = vld [vmem:[%s5 + $0x70] sm:$0xff]
        %v585 = vld [vmem:[%s5 + $0x78] sm:$0xff]
        %v586 = vld [vmem:[%s5 + $0x80] sm:$0xff]
        %v587 = vld [vmem:[%s5 + $0x88] sm:$0xff]
        %v588 = vld [vmem:[%s5 + $0x90] sm:$0xff]
        %v589 = vld [vmem:[%s5 + $0x98] sm:$0xff]
        %v590 = vld [vmem:[%s5 + $0xa0] sm:$0xff]
        %v591 = vld [vmem:[%s5 + $0xa8] sm:$0xff]
        %v592 = vld [vmem:[%s5 + $0xb0] sm:$0xff]
        %v593 = vld [vmem:[%s5 + $0xb8] sm:$0xff]
        %v594 = vld [vmem:[%s5 + $0xc0] sm:$0xff]
        %v595 = vld [vmem:[%s5 + $0xc8] sm:$0xff]
        %v596 = vld [vmem:[%s5 + $0xd0] sm:$0xff]
        %v597 = vld [vmem:[%s5 + $0xd8] sm:$0xff]
        %v598 = vld [vmem:[%s5 + $0xe0] sm:$0xff]
        %v599 = vld [vmem:[%s5 + $0xe8] sm:$0xff]
        %v600 = vld [vmem:[%s5 + $0xf0] sm:$0xff]
        %v601 = vld [vmem:[%s5 + $0xf8] sm:$0xff]
        %v602 = vld [vmem:[%s5 + $0x100] sm:$0xff]
        %v603 = vld [vmem:[%s5 + $0x108] sm:$0xff]
        %v604 = vld [vmem:[%s5 + $0x110] sm:$0xff]
        %v605 = vld [vmem:[%s5 + $0x118] sm:$0xff]
        %v606 = vld [vmem:[%s5 + $0x120] sm:$0xff]
        %v607 = vld [vmem:[%s5 + $0x128] sm:$0xff]
        %v608 = vld [vmem:[%s5 + $0x130] sm:$0xff]
        %v609 = vld [vmem:[%s5 + $0x138] sm:$0xff]
        %v610 = vld [vmem:[%s5 + $0x140] sm:$0xff]
        %v611 = vld [vmem:[%s5 + $0x148] sm:$0xff]
        %v612 = vld [vmem:[%s5 + $0x150] sm:$0xff]
        %v613 = vld [vmem:[%s5 + $0x158] sm:$0xff]
        %v614 = vld [vmem:[%s5 + $0x160] sm:$0xff]
        %v615 = vld [vmem:[%s5 + $0x168] sm:$0xff]
        %v616 = vld [vmem:[%s5 + $0x170] sm:$0xff]
        %v617 = vld [vmem:[%s5 + $0x178] sm:$0xff]
        %v618 = vld [vmem:[%s5 + $0x180] sm:$0xff]
        %v619 = vld [vmem:[%s5 + $0x188] sm:$0xff]
        %v620 = vld [vmem:[%s5 + $0x190] sm:$0xff]
        %v621 = vld [vmem:[%s5 + $0x198] sm:$0xff]
        %v622 = vld [vmem:[%s5 + $0x1a0] sm:$0xff]
        %v623 = vld [vmem:[%s5 + $0x1a8] sm:$0xff]
        %v624 = vld [vmem:[%s5 + $0x1b0] sm:$0xff]
        %v625 = vld [vmem:[%s5 + $0x1b8] sm:$0xff]
        %v626 = vld [vmem:[%s5 + $0x1c0] sm:$0xff]
        %v627 = vld [vmem:[%s5 + $0x1c8] sm:$0xff]
        %v628 = vld [vmem:[%s5 + $0x1d0] sm:$0xff]
        %v629 = vld [vmem:[%s5 + $0x1d8] sm:$0xff]
        %v630 = vld [vmem:[%s5 + $0x1e0] sm:$0xff]
        %v631 = vld [vmem:[%s5 + $0x1e8] sm:$0xff]
        %v632 = vld [vmem:[%s5 + $0x1f0] sm:$0xff]
        %v633 = vld [vmem:[%s5 + $0x1f8] sm:$0xff]
        %v698 = vunpack.c.l.b16 %v570
        %v699 = vunpack.c.h.b16 %v570
        %v700 = vunpack.c.l.b16 %v571
        %v701 = vunpack.c.h.b16 %v571
        %v702 = vunpack.c.l.b16 %v572
        %v703 = vunpack.c.h.b16 %v572
        %v704 = vunpack.c.l.b16 %v573
        %v705 = vunpack.c.h.b16 %v573
        %v706 = vunpack.c.l.b16 %v574
        %v707 = vunpack.c.h.b16 %v574
        %v708 = vunpack.c.l.b16 %v575
        %v709 = vunpack.c.h.b16 %v575
        %v710 = vunpack.c.l.b16 %v576
        %v711 = vunpack.c.h.b16 %v576
        %v712 = vunpack.c.l.b16 %v577
        %v713 = vunpack.c.h.b16 %v577
        %v714 = vunpack.c.l.b16 %v578
        %v715 = vunpack.c.h.b16 %v578
        %v716 = vunpack.c.l.b16 %v579
        %v717 = vunpack.c.h.b16 %v579
        %v718 = vunpack.c.l.b16 %v580
        %v719 = vunpack.c.h.b16 %v580
        %v720 = vunpack.c.l.b16 %v581
        %v721 = vunpack.c.h.b16 %v581
        %v722 = vunpack.c.l.b16 %v582
        %v723 = vunpack.c.h.b16 %v582
        %v724 = vunpack.c.l.b16 %v583
        %v725 = vunpack.c.h.b16 %v583
        %v726 = vunpack.c.l.b16 %v584
        %v727 = vunpack.c.h.b16 %v584
        %v728 = vunpack.c.l.b16 %v585
        %v729 = vunpack.c.h.b16 %v585
        %v730 = vunpack.c.l.b16 %v586
        %v731 = vunpack.c.h.b16 %v586
        %v732 = vunpack.c.l.b16 %v587
        %v733 = vunpack.c.h.b16 %v587
        %v734 = vunpack.c.l.b16 %v588
        %v735 = vunpack.c.h.b16 %v588
        %v736 = vunpack.c.l.b16 %v589
        %v737 = vunpack.c.h.b16 %v589
        %v738 = vunpack.c.l.b16 %v590
        %v739 = vunpack.c.h.b16 %v590
        %v740 = vunpack.c.l.b16 %v591
        %v741 = vunpack.c.h.b16 %v591
        %v742 = vunpack.c.l.b16 %v592
        %v743 = vunpack.c.h.b16 %v592
        %v744 = vunpack.c.l.b16 %v593
        %v745 = vunpack.c.h.b16 %v593
        %v746 = vunpack.c.l.b16 %v594
        %v747 = vunpack.c.h.b16 %v594
        %v748 = vunpack.c.l.b16 %v595
        %v749 = vunpack.c.h.b16 %v595
        %v750 = vunpack.c.l.b16 %v596
        %v751 = vunpack.c.h.b16 %v596
        %v752 = vunpack.c.l.b16 %v597
        %v753 = vunpack.c.h.b16 %v597
        %v754 = vunpack.c.l.b16 %v598
        %v755 = vunpack.c.h.b16 %v598
        %v756 = vunpack.c.l.b16 %v599
        %v757 = vunpack.c.h.b16 %v599
        %v758 = vunpack.c.l.b16 %v600
        %v759 = vunpack.c.h.b16 %v600
        %v760 = vunpack.c.l.b16 %v601
        %v761 = vunpack.c.h.b16 %v601
        %v762 = vunpack.c.l.b16 %v602
        %v763 = vunpack.c.h.b16 %v602
        %v764 = vunpack.c.l.b16 %v603
        %v765 = vunpack.c.h.b16 %v603
        %v766 = vunpack.c.l.b16 %v604
        %v767 = vunpack.c.h.b16 %v604
        %v768 = vunpack.c.l.b16 %v605
        %v769 = vunpack.c.h.b16 %v605
        %v770 = vunpack.c.l.b16 %v606
        %v771 = vunpack.c.h.b16 %v606
        %v772 = vunpack.c.l.b16 %v607
        %v773 = vunpack.c.h.b16 %v607
        %v774 = vunpack.c.l.b16 %v608
        %v775 = vunpack.c.h.b16 %v608
        %v776 = vunpack.c.l.b16 %v609
        %v777 = vunpack.c.h.b16 %v609
        %v778 = vunpack.c.l.b16 %v610
        %v779 = vunpack.c.h.b16 %v610
        %v780 = vunpack.c.l.b16 %v611
        %v781 = vunpack.c.h.b16 %v611
        %v782 = vunpack.c.l.b16 %v612
        %v783 = vunpack.c.h.b16 %v612
        %v784 = vunpack.c.l.b16 %v613
        %v785 = vunpack.c.h.b16 %v613
        %v786 = vunpack.c.l.b16 %v614
        %v787 = vunpack.c.h.b16 %v614
        %v788 = vunpack.c.l.b16 %v615
        %v789 = vunpack.c.h.b16 %v615
        %v790 = vunpack.c.l.b16 %v616
        %v791 = vunpack.c.h.b16 %v616
        %v792 = vunpack.c.l.b16 %v617
        %v793 = vunpack.c.h.b16 %v617
        %v794 = vunpack.c.l.b16 %v618
        %v795 = vunpack.c.h.b16 %v618
        %v796 = vunpack.c.l.b16 %v619
        %v797 = vunpack.c.h.b16 %v619
        %v798 = vunpack.c.l.b16 %v620
        %v799 = vunpack.c.h.b16 %v620
        %v800 = vunpack.c.l.b16 %v621
        %v801 = vunpack.c.h.b16 %v621
        %v802 = vunpack.c.l.b16 %v622
        %v803 = vunpack.c.h.b16 %v622
        %v804 = vunpack.c.l.b16 %v623
        %v805 = vunpack.c.h.b16 %v623
        %v806 = vunpack.c.l.b16 %v624
        %v807 = vunpack.c.h.b16 %v624
        %v808 = vunpack.c.l.b16 %v625
        %v809 = vunpack.c.h.b16 %v625
        %v810 = vunpack.c.l.b16 %v626
        %v811 = vunpack.c.h.b16 %v626
        %v812 = vunpack.c.l.b16 %v627
        %v813 = vunpack.c.h.b16 %v627
        %v814 = vunpack.c.l.b16 %v628
        %v815 = vunpack.c.h.b16 %v628
        %v816 = vunpack.c.l.b16 %v629
        %v817 = vunpack.c.h.b16 %v629
        %v818 = vunpack.c.l.b16 %v630
        %v819 = vunpack.c.h.b16 %v630
        %v820 = vunpack.c.l.b16 %v631
        %v821 = vunpack.c.h.b16 %v631
        %v822 = vunpack.c.l.b16 %v632
        %v823 = vunpack.c.h.b16 %v632
        %v824 = vunpack.c.l.b16 %v633
        %v825 = vunpack.c.h.b16 %v633
        %v826 = vpack.c.b16 %v706, %v698
        %v827 = vpack.c.b16 %v707, %v699
        %v828 = vpack.c.b16 %v708, %v700
        %v829 = vpack.c.b16 %v709, %v701
        %v830 = vpack.c.b16 %v710, %v702
        %v831 = vpack.c.b16 %v711, %v703
        %v832 = vpack.c.b16 %v712, %v704
        %v833 = vpack.c.b16 %v713, %v705
        %v834 = vpack.c.b16 %v722, %v714
        %v835 = vpack.c.b16 %v723, %v715
        %v836 = vpack.c.b16 %v724, %v716
        %v837 = vpack.c.b16 %v725, %v717
        %v838 = vpack.c.b16 %v726, %v718
        %v839 = vpack.c.b16 %v727, %v719
        %v840 = vpack.c.b16 %v728, %v720
        %v841 = vpack.c.b16 %v729, %v721
        %v842 = vpack.c.b16 %v738, %v730
        %v843 = vpack.c.b16 %v739, %v731
        %v844 = vpack.c.b16 %v740, %v732
        %v845 = vpack.c.b16 %v741, %v733
        %v846 = vpack.c.b16 %v742, %v734
        %v847 = vpack.c.b16 %v743, %v735
        %v848 = vpack.c.b16 %v744, %v736
        %v849 = vpack.c.b16 %v745, %v737
        %v850 = vpack.c.b16 %v754, %v746
        %v851 = vpack.c.b16 %v755, %v747
        %v852 = vpack.c.b16 %v756, %v748
        %v853 = vpack.c.b16 %v757, %v749
        %v854 = vpack.c.b16 %v758, %v750
        %v855 = vpack.c.b16 %v759, %v751
        %v856 = vpack.c.b16 %v760, %v752
        %v857 = vpack.c.b16 %v761, %v753
        %v858 = vpack.c.b16 %v770, %v762
        %v859 = vpack.c.b16 %v771, %v763
        %v860 = vpack.c.b16 %v772, %v764
        %v861 = vpack.c.b16 %v773, %v765
        %v862 = vpack.c.b16 %v774, %v766
        %v863 = vpack.c.b16 %v775, %v767
        %v864 = vpack.c.b16 %v776, %v768
        %v865 = vpack.c.b16 %v777, %v769
        %v866 = vpack.c.b16 %v786, %v778
        %v867 = vpack.c.b16 %v787, %v779
        %v868 = vpack.c.b16 %v788, %v780
        %v869 = vpack.c.b16 %v789, %v781
        %v870 = vpack.c.b16 %v790, %v782
        %v871 = vpack.c.b16 %v791, %v783
        %v872 = vpack.c.b16 %v792, %v784
        %v873 = vpack.c.b16 %v793, %v785
        %v874 = vpack.c.b16 %v802, %v794
        %v875 = vpack.c.b16 %v803, %v795
        %v876 = vpack.c.b16 %v804, %v796
        %v877 = vpack.c.b16 %v805, %v797
        %v878 = vpack.c.b16 %v806, %v798
        %v879 = vpack.c.b16 %v807, %v799
        %v880 = vpack.c.b16 %v808, %v800
        %v881 = vpack.c.b16 %v809, %v801
        %v882 = vpack.c.b16 %v818, %v810
        %v883 = vpack.c.b16 %v819, %v811
        %v884 = vpack.c.b16 %v820, %v812
        %v885 = vpack.c.b16 %v821, %v813
        %v886 = vpack.c.b16 %v822, %v814
        %v887 = vpack.c.b16 %v823, %v815
        %v888 = vpack.c.b16 %v824, %v816
        %v889 = vpack.c.b16 %v825, %v817
        %954 = vmatpush.bf16.msra.mxu0 %v882
        %955 = vmatpush.bf16.msra.mxu0 %v874
        %956 = vmatpush.bf16.msra.mxu0 %v866
        %957 = vmatpush.bf16.msra.mxu0 %v858
        %958 = vmatpush.bf16.msra.mxu0 %v850
        %959 = vmatpush.bf16.msra.mxu0 %v842
        %960 = vmatpush.bf16.msra.mxu0 %v834
        %961 = vmatpush.bf16.msra.mxu0 %v826
        %962 = vmatmul.bf16.gmra.mxu0 %v566
        %v963 = vpop.f32.mrf.mxu0
        %v964 = vadd.f32 0.0, %v963
        %v965 = vpop.f32.mrf.mxu0
        %v966 = vadd.f32 0.0, %v965
        %967 = vmatmul.bf16.gmra.mxu0 %v567
        %v968 = vpop.f32.mrf.mxu0
        %v969 = vadd.f32 0.0, %v968
        %v970 = vpop.f32.mrf.mxu0
        %v971 = vadd.f32 0.0, %v970
        %972 = vmatmul.bf16.gmra.mxu0 %v568
        %v973 = vpop.f32.mrf.mxu0
        %v974 = vadd.f32 0.0, %v973
        %v975 = vpop.f32.mrf.mxu0
        %v976 = vadd.f32 0.0, %v975
        %977 = vmatmul.bf16.gmra.mxu0 %v569
        %v978 = vpop.f32.mrf.mxu0
        %v979 = vadd.f32 0.0, %v978
        %v980 = vpop.f32.mrf.mxu0
        %v981 = vadd.f32 0.0, %v980
        %982 = vdwg.mxu0
        %983 = vmatpush.bf16.msra.mxu0 %v883
        %984 = vmatpush.bf16.msra.mxu0 %v875
        %985 = vmatpush.bf16.msra.mxu0 %v867
        %986 = vmatpush.bf16.msra.mxu0 %v859
        %987 = vmatpush.bf16.msra.mxu0 %v851
        %988 = vmatpush.bf16.msra.mxu0 %v843
        %989 = vmatpush.bf16.msra.mxu0 %v835
        %990 = vmatpush.bf16.msra.mxu0 %v827
        %991 = vmatmul.bf16.gmra.mxu0 %v566
        %v992 = vpop.f32.mrf.mxu0
        %v993 = vadd.f32 0.0, %v992
        %v994 = vpop.f32.mrf.mxu0
        %v995 = vadd.f32 0.0, %v994
        %996 = vmatmul.bf16.gmra.mxu0 %v567
        %v997 = vpop.f32.mrf.mxu0
        %v998 = vadd.f32 0.0, %v997
        %v999 = vpop.f32.mrf.mxu0
        %v1000 = vadd.f32 0.0, %v999
        %1001 = vmatmul.bf16.gmra.mxu0 %v568
        %v1002 = vpop.f32.mrf.mxu0
        %v1003 = vadd.f32 0.0, %v1002
        %v1004 = vpop.f32.mrf.mxu0
        %v1005 = vadd.f32 0.0, %v1004
        %1006 = vmatmul.bf16.gmra.mxu0 %v569
        %v1007 = vpop.f32.mrf.mxu0
        %v1008 = vadd.f32 0.0, %v1007
        %v1009 = vpop.f32.mrf.mxu0
        %v1010 = vadd.f32 0.0, %v1009
        %1011 = vdwg.mxu0
        %1012 = vmatpush.bf16.msra.mxu0 %v884
        %1013 = vmatpush.bf16.msra.mxu0 %v876
        %1014 = vmatpush.bf16.msra.mxu0 %v868
        %1015 = vmatpush.bf16.msra.mxu0 %v860
        %1016 = vmatpush.bf16.msra.mxu0 %v852
        %1017 = vmatpush.bf16.msra.mxu0 %v844
        %1018 = vmatpush.bf16.msra.mxu0 %v836
        %1019 = vmatpush.bf16.msra.mxu0 %v828
        %1020 = vmatmul.bf16.gmra.mxu0 %v566
        %v1021 = vpop.f32.mrf.mxu0
        %v1022 = vadd.f32 0.0, %v1021
        %v1023 = vpop.f32.mrf.mxu0
        %v1024 = vadd.f32 0.0, %v1023
        %1025 = vmatmul.bf16.gmra.mxu0 %v567
        %v1026 = vpop.f32.mrf.mxu0
        %v1027 = vadd.f32 0.0, %v1026
        %v1028 = vpop.f32.mrf.mxu0
        %v1029 = vadd.f32 0.0, %v1028
        %1030 = vmatmul.bf16.gmra.mxu0 %v568
        %v1031 = vpop.f32.mrf.mxu0
        %v1032 = vadd.f32 0.0, %v1031
        %v1033 = vpop.f32.mrf.mxu0
        %v1034 = vadd.f32 0.0, %v1033
        %1035 = vmatmul.bf16.gmra.mxu0 %v569
        %v1036 = vpop.f32.mrf.mxu0
        %v1037 = vadd.f32 0.0, %v1036
        %v1038 = vpop.f32.mrf.mxu0
        %v1039 = vadd.f32 0.0, %v1038
        %1040 = vdwg.mxu0
        %1041 = vmatpush.bf16.msra.mxu0 %v885
        %1042 = vmatpush.bf16.msra.mxu0 %v877
        %1043 = vmatpush.bf16.msra.mxu0 %v869
        %1044 = vmatpush.bf16.msra.mxu0 %v861
        %1045 = vmatpush.bf16.msra.mxu0 %v853
        %1046 = vmatpush.bf16.msra.mxu0 %v845
        %1047 = vmatpush.bf16.msra.mxu0 %v837
        %1048 = vmatpush.bf16.msra.mxu0 %v829
        %1049 = vmatmul.bf16.gmra.mxu0 %v566
        %v1050 = vpop.f32.mrf.mxu0
        %v1051 = vadd.f32 0.0, %v1050
        %v1052 = vpop.f32.mrf.mxu0
        %v1053 = vadd.f32 0.0, %v1052
        %1054 = vmatmul.bf16.gmra.mxu0 %v567
        %v1055 = vpop.f32.mrf.mxu0
        %v1056 = vadd.f32 0.0, %v1055
        %v1057 = vpop.f32.mrf.mxu0
        %v1058 = vadd.f32 0.0, %v1057
        %1059 = vmatmul.bf16.gmra.mxu0 %v568
        %v1060 = vpop.f32.mrf.mxu0
        %v1061 = vadd.f32 0.0, %v1060
        %v1062 = vpop.f32.mrf.mxu0
        %v1063 = vadd.f32 0.0, %v1062
        %1064 = vmatmul.bf16.gmra.mxu0 %v569
        %v1065 = vpop.f32.mrf.mxu0
        %v1066 = vadd.f32 0.0, %v1065
        %v1067 = vpop.f32.mrf.mxu0
        %v1068 = vadd.f32 0.0, %v1067
        %1069 = vdwg.mxu0
        %1070 = vmatpush.bf16.msra.mxu0 %v886
        %1071 = vmatpush.bf16.msra.mxu0 %v878
        %1072 = vmatpush.bf16.msra.mxu0 %v870
        %1073 = vmatpush.bf16.msra.mxu0 %v862
        %1074 = vmatpush.bf16.msra.mxu0 %v854
        %1075 = vmatpush.bf16.msra.mxu0 %v846
        %1076 = vmatpush.bf16.msra.mxu0 %v838
        %1077 = vmatpush.bf16.msra.mxu0 %v830
        %1078 = vmatmul.bf16.gmra.mxu0 %v566
        %v1079 = vpop.f32.mrf.mxu0
        %v1080 = vadd.f32 0.0, %v1079
        %v1081 = vpop.f32.mrf.mxu0
        %v1082 = vadd.f32 0.0, %v1081
        %1083 = vmatmul.bf16.gmra.mxu0 %v567
        %v1084 = vpop.f32.mrf.mxu0
        %v1085 = vadd.f32 0.0, %v1084
        %v1086 = vpop.f32.mrf.mxu0
        %v1087 = vadd.f32 0.0, %v1086
        %1088 = vmatmul.bf16.gmra.mxu0 %v568
        %v1089 = vpop.f32.mrf.mxu0
        %v1090 = vadd.f32 0.0, %v1089
        %v1091 = vpop.f32.mrf.mxu0
        %v1092 = vadd.f32 0.0, %v1091
        %1093 = vmatmul.bf16.gmra.mxu0 %v569
        %v1094 = vpop.f32.mrf.mxu0
        %v1095 = vadd.f32 0.0, %v1094
        %v1096 = vpop.f32.mrf.mxu0
        %v1097 = vadd.f32 0.0, %v1096
        %1098 = vdwg.mxu0
        %1099 = vmatpush.bf16.msra.mxu0 %v887
        %1100 = vmatpush.bf16.msra.mxu0 %v879
        %1101 = vmatpush.bf16.msra.mxu0 %v871
        %1102 = vmatpush.bf16.msra.mxu0 %v863
        %1103 = vmatpush.bf16.msra.mxu0 %v855
        %1104 = vmatpush.bf16.msra.mxu0 %v847
        %1105 = vmatpush.bf16.msra.mxu0 %v839
        %1106 = vmatpush.bf16.msra.mxu0 %v831
        %1107 = vmatmul.bf16.gmra.mxu0 %v566
        %v1108 = vpop.f32.mrf.mxu0
        %v1109 = vadd.f32 0.0, %v1108
        %v1110 = vpop.f32.mrf.mxu0
        %v1111 = vadd.f32 0.0, %v1110
        %1112 = vmatmul.bf16.gmra.mxu0 %v567
        %v1113 = vpop.f32.mrf.mxu0
        %v1114 = vadd.f32 0.0, %v1113
        %v1115 = vpop.f32.mrf.mxu0
        %v1116 = vadd.f32 0.0, %v1115
        %1117 = vmatmul.bf16.gmra.mxu0 %v568
        %v1118 = vpop.f32.mrf.mxu0
        %v1119 = vadd.f32 0.0, %v1118
        %v1120 = vpop.f32.mrf.mxu0
        %v1121 = vadd.f32 0.0, %v1120
        %1122 = vmatmul.bf16.gmra.mxu0 %v569
        %v1123 = vpop.f32.mrf.mxu0
        %v1124 = vadd.f32 0.0, %v1123
        %v1125 = vpop.f32.mrf.mxu0
        %v1126 = vadd.f32 0.0, %v1125
        %1127 = vdwg.mxu0
        %1128 = vmatpush.bf16.msra.mxu0 %v888
        %1129 = vmatpush.bf16.msra.mxu0 %v880
        %1130 = vmatpush.bf16.msra.mxu0 %v872
        %1131 = vmatpush.bf16.msra.mxu0 %v864
        %1132 = vmatpush.bf16.msra.mxu0 %v856
        %1133 = vmatpush.bf16.msra.mxu0 %v848
        %1134 = vmatpush.bf16.msra.mxu0 %v840
        %1135 = vmatpush.bf16.msra.mxu0 %v832
        %1136 = vmatmul.bf16.gmra.mxu0 %v566
        %v1137 = vpop.f32.mrf.mxu0
        %v1138 = vadd.f32 0.0, %v1137
        %v1139 = vpop.f32.mrf.mxu0
        %v1140 = vadd.f32 0.0, %v1139
        %1141 = vmatmul.bf16.gmra.mxu0 %v567
        %v1142 = vpop.f32.mrf.mxu0
        %v1143 = vadd.f32 0.0, %v1142
        %v1144 = vpop.f32.mrf.mxu0
        %v1145 = vadd.f32 0.0, %v1144
        %1146 = vmatmul.bf16.gmra.mxu0 %v568
        %v1147 = vpop.f32.mrf.mxu0
        %v1148 = vadd.f32 0.0, %v1147
        %v1149 = vpop.f32.mrf.mxu0
        %v1150 = vadd.f32 0.0, %v1149
        %1151 = vmatmul.bf16.gmra.mxu0 %v569
        %v1152 = vpop.f32.mrf.mxu0
        %v1153 = vadd.f32 0.0, %v1152
        %v1154 = vpop.f32.mrf.mxu0
        %v1155 = vadd.f32 0.0, %v1154
        %1156 = vdwg.mxu0
        %1157 = vmatpush.bf16.msra.mxu0 %v889
        %1158 = vmatpush.bf16.msra.mxu0 %v881
        %1159 = vmatpush.bf16.msra.mxu0 %v873
        %1160 = vmatpush.bf16.msra.mxu0 %v865
        %1161 = vmatpush.bf16.msra.mxu0 %v857
        %1162 = vmatpush.bf16.msra.mxu0 %v849
        %1163 = vmatpush.bf16.msra.mxu0 %v841
        %1164 = vmatpush.bf16.msra.mxu0 %v833
        %1165 = vmatmul.bf16.gmra.mxu0 %v566
        %v1166 = vpop.f32.mrf.mxu0
        %v1167 = vadd.f32 0.0, %v1166
        %v1168 = vpop.f32.mrf.mxu0
        %v1169 = vadd.f32 0.0, %v1168
        %1170 = vmatmul.bf16.gmra.mxu0 %v567
        %v1171 = vpop.f32.mrf.mxu0
        %v1172 = vadd.f32 0.0, %v1171
        %v1173 = vpop.f32.mrf.mxu0
        %v1174 = vadd.f32 0.0, %v1173
        %1175 = vmatmul.bf16.gmra.mxu0 %v568
        %v1176 = vpop.f32.mrf.mxu0
        %v1177 = vadd.f32 0.0, %v1176
        %v1178 = vpop.f32.mrf.mxu0
        %v1179 = vadd.f32 0.0, %v1178
        %1180 = vmatmul.bf16.gmra.mxu0 %v569
        %v1181 = vpop.f32.mrf.mxu0
        %v1182 = vadd.f32 0.0, %v1181
        %v1183 = vpop.f32.mrf.mxu0
        %v1184 = vadd.f32 0.0, %v1183
        %1185 = vdwg.mxu0
        %v1186 = vmax.f32 %v964, %v966
        %v1187 = vmax.f32 %v1186, %v969
        %v1188 = vmax.f32 %v1187, %v971
        %v1189 = vmax.f32 %v1188, %v974
        %v1190 = vmax.f32 %v1189, %v976
        %v1191 = vmax.f32 %v1190, %v979
        %v1192 = vmax.f32 %v1191, %v981
        %v1193 = vmax.f32 %v993, %v995
        %v1194 = vmax.f32 %v1193, %v998
        %v1195 = vmax.f32 %v1194, %v1000
        %v1196 = vmax.f32 %v1195, %v1003
        %v1197 = vmax.f32 %v1196, %v1005
        %v1198 = vmax.f32 %v1197, %v1008
        %v1199 = vmax.f32 %v1198, %v1010
        %v1200 = vmax.f32 %v1022, %v1024
        %v1201 = vmax.f32 %v1200, %v1027
        %v1202 = vmax.f32 %v1201, %v1029
        %v1203 = vmax.f32 %v1202, %v1032
        %v1204 = vmax.f32 %v1203, %v1034
        %v1205 = vmax.f32 %v1204, %v1037
        %v1206 = vmax.f32 %v1205, %v1039
        %v1207 = vmax.f32 %v1051, %v1053
        %v1208 = vmax.f32 %v1207, %v1056
        %v1209 = vmax.f32 %v1208, %v1058
        %v1210 = vmax.f32 %v1209, %v1061
        %v1211 = vmax.f32 %v1210, %v1063
        %v1212 = vmax.f32 %v1211, %v1066
        %v1213 = vmax.f32 %v1212, %v1068
        %v1214 = vmax.f32 %v1080, %v1082
        %v1215 = vmax.f32 %v1214, %v1085
        %v1216 = vmax.f32 %v1215, %v1087
        %v1217 = vmax.f32 %v1216, %v1090
        %v1218 = vmax.f32 %v1217, %v1092
        %v1219 = vmax.f32 %v1218, %v1095
        %v1220 = vmax.f32 %v1219, %v1097
        %v1221 = vmax.f32 %v1109, %v1111
        %v1222 = vmax.f32 %v1221, %v1114
        %v1223 = vmax.f32 %v1222, %v1116
        %v1224 = vmax.f32 %v1223, %v1119
        %v1225 = vmax.f32 %v1224, %v1121
        %v1226 = vmax.f32 %v1225, %v1124
        %v1227 = vmax.f32 %v1226, %v1126
        %v1228 = vmax.f32 %v1138, %v1140
        %v1229 = vmax.f32 %v1228, %v1143
        %v1230 = vmax.f32 %v1229, %v1145
        %v1231 = vmax.f32 %v1230, %v1148
        %v1232 = vmax.f32 %v1231, %v1150
        %v1233 = vmax.f32 %v1232, %v1153
        %v1234 = vmax.f32 %v1233, %v1155
        %v1235 = vmax.f32 %v1167, %v1169
        %v1236 = vmax.f32 %v1235, %v1172
        %v1237 = vmax.f32 %v1236, %v1174
        %v1238 = vmax.f32 %v1237, %v1177
        %v1239 = vmax.f32 %v1238, %v1179
        %v1240 = vmax.f32 %v1239, %v1182
        %v1241 = vmax.f32 %v1240, %v1184
        %v1242 = vld [vmem:[#allocation2] sm:$0xff]
        %v1243 = vld [vmem:[#allocation2 + $0x8] sm:$0xff]
        %v1244 = vld [vmem:[#allocation2 + $0x10] sm:$0xff]
        %v1245 = vld [vmem:[#allocation2 + $0x18] sm:$0xff]
        %v1246 = vld [vmem:[#allocation2 + $0x20] sm:$0xff]
        %v1247 = vld [vmem:[#allocation2 + $0x28] sm:$0xff]
        %v1248 = vld [vmem:[#allocation2 + $0x30] sm:$0xff]
        %v1249 = vld [vmem:[#allocation2 + $0x38] sm:$0xff]
        %v1250 = vmax.f32 %v1242, %v1192
        %v1251 = vmax.f32 %v1243, %v1199
        %v1252 = vmax.f32 %v1244, %v1206
        %v1253 = vmax.f32 %v1245, %v1213
        %v1254 = vmax.f32 %v1246, %v1220
        %v1255 = vmax.f32 %v1247, %v1227
        %v1256 = vmax.f32 %v1248, %v1234
        %v1257 = vmax.f32 %v1249, %v1241
        %1258 = vst [vmem:[#allocation2] sm:$0xff] %v1250
        %1259 = vst [vmem:[#allocation2 + $0x8] sm:$0xff] %v1251
        %1260 = vst [vmem:[#allocation2 + $0x10] sm:$0xff] %v1252
        %1261 = vst [vmem:[#allocation2 + $0x18] sm:$0xff] %v1253
        %1262 = vst [vmem:[#allocation2 + $0x20] sm:$0xff] %v1254
        %1263 = vst [vmem:[#allocation2 + $0x28] sm:$0xff] %v1255
        %1264 = vst [vmem:[#allocation2 + $0x30] sm:$0xff] %v1256
        %1265 = vst [vmem:[#allocation2 + $0x38] sm:$0xff] %v1257
        // Predicated region
        $region65: #{feature_transform_forward.5} parent=47 // pred_check
          %p1266 = pneg %p374
        $region66: #{feature_transform_forward.5} parent=47 // pred_check_branch
          %1268 = sbr.rel (%p1266) target = $region68
        $region67: #{feature_transform_forward.5} parent=47 // pred_region
          %v1269 = vld [vmem:[#allocation7] sm:$0xff]
          %v1270 = vld [vmem:[#allocation2] sm:$0xff]
          %v1271 = vld [vmem:[#allocation2 + $0x8] sm:$0xff]
          %v1272 = vld [vmem:[#allocation2 + $0x10] sm:$0xff]
          %v1273 = vld [vmem:[#allocation2 + $0x18] sm:$0xff]
          %v1274 = vld [vmem:[#allocation2 + $0x20] sm:$0xff]
          %v1275 = vld [vmem:[#allocation2 + $0x28] sm:$0xff]
          %v1276 = vld [vmem:[#allocation2 + $0x30] sm:$0xff]
          %v1277 = vld [vmem:[#allocation2 + $0x38] sm:$0xff]
          %v1278 = vrot.slane %v1270, 4
          %v1279 = vmax.f32 %v1270, %v1278
          %v1280 = vrot.slane %v1279, 2
          %v1281 = vmax.f32 %v1279, %v1280
          %v1282 = vrot.slane %v1281, 1
          %v1283 = vmax.f32 %v1281, %v1282
          %v1284 = vrot.slane %v1271, 4
          %v1285 = vmax.f32 %v1271, %v1284
          %v1286 = vrot.slane %v1285, 2
          %v1287 = vmax.f32 %v1285, %v1286
          %v1288 = vrot.slane %v1287, 1
          %v1289 = vmax.f32 %v1287, %v1288
          %v1290 = vrot.slane %v1272, 4
          %v1291 = vmax.f32 %v1272, %v1290
          %v1292 = vrot.slane %v1291, 2
          %v1293 = vmax.f32 %v1291, %v1292
          %v1294 = vrot.slane %v1293, 1
          %v1295 = vmax.f32 %v1293, %v1294
          %v1296 = vrot.slane %v1273, 4
          %v1297 = vmax.f32 %v1273, %v1296
          %v1298 = vrot.slane %v1297, 2
          %v1299 = vmax.f32 %v1297, %v1298
          %v1300 = vrot.slane %v1299, 1
          %v1301 = vmax.f32 %v1299, %v1300
          %v1302 = vrot.slane %v1274, 4
          %v1303 = vmax.f32 %v1274, %v1302
          %v1304 = vrot.slane %v1303, 2
          %v1305 = vmax.f32 %v1303, %v1304
          %v1306 = vrot.slane %v1305, 1
          %v1307 = vmax.f32 %v1305, %v1306
          %v1308 = vrot.slane %v1275, 4
          %v1309 = vmax.f32 %v1275, %v1308
          %v1310 = vrot.slane %v1309, 2
          %v1311 = vmax.f32 %v1309, %v1310
          %v1312 = vrot.slane %v1311, 1
          %v1313 = vmax.f32 %v1311, %v1312
          %v1314 = vrot.slane %v1276, 4
          %v1315 = vmax.f32 %v1276, %v1314
          %v1316 = vrot.slane %v1315, 2
          %v1317 = vmax.f32 %v1315, %v1316
          %v1318 = vrot.slane %v1317, 1
          %v1319 = vmax.f32 %v1317, %v1318
          %v1320 = vrot.slane %v1277, 4
          %v1321 = vmax.f32 %v1277, %v1320
          %v1322 = vrot.slane %v1321, 2
          %v1323 = vmax.f32 %v1321, %v1322
          %v1324 = vrot.slane %v1323, 1
          %v1325 = vmax.f32 %v1323, %v1324
          %v1327 = vperm.slane %v1269, 0
          %v1328 = vperm.slane %v1269, 1
          %v1329 = vperm.slane %v1269, 2
          %v1330 = vperm.slane %v1269, 3
          %v1331 = vperm.slane %v1269, 4
          %v1332 = vperm.slane %v1269, 5
          %v1333 = vperm.slane %v1269, 6
          %v1334 = vperm.slane %v1269, 7
          %v1343 = vadd.f32 %v1283, %v1327
          %v1344 = vadd.f32 %v1289, %v1328
          %v1345 = vadd.f32 %v1295, %v1329
          %v1346 = vadd.f32 %v1301, %v1330
          %v1347 = vadd.f32 %v1307, %v1331
          %v1348 = vadd.f32 %v1313, %v1332
          %v1349 = vadd.f32 %v1319, %v1333
          %v1350 = vadd.f32 %v1325, %v1334
          %v1351 = vmax.f32 %v1343, 0.0
          %v1352 = vmax.f32 %v1344, 0.0
          %v1353 = vmax.f32 %v1345, 0.0
          %v1354 = vmax.f32 %v1346, 0.0
          %v1355 = vmax.f32 %v1347, 0.0
          %v1356 = vmax.f32 %v1348, 0.0
          %v1357 = vmax.f32 %v1349, 0.0
          %v1358 = vmax.f32 %v1350, 0.0
          %v1367 = vrot.slane %v1352, 7
          %v1368 = vrot.slane %v1353, 6
          %v1369 = vrot.slane %v1354, 5
          %v1370 = vrot.slane %v1355, 4
          %v1371 = vrot.slane %v1356, 3
          %v1372 = vrot.slane %v1357, 2
          %v1373 = vrot.slane %v1358, 1
          %v1374 = vsel %vm432, %v1351, %v1367
          %vm1375 = vcmask 1042434
          %v1376 = vsel %vm1375, %v1368, %v1369
          %v1377 = vsel %vm433, %v1374, %v1376
          %vm1378 = vcmask 1044484
          %v1379 = vsel %vm1378, %v1370, %v1371
          %vm1380 = vcmask 1046534
          %v1381 = vsel %vm1380, %v1372, %v1373
          %vm1382 = vcmask 1045508
          %v1383 = vsel %vm1382, %v1379, %v1381
          %vm1384 = vcmask 1043456
          %v1385 = vsel %vm1384, %v1377, %v1383
          %1387 = vst [vmem:[%s372] sm:$0xff] %v1385
        $region68: #{feature_transform_forward.5} parent=47 // pred_fallthru
          _
        %p1388 = scmp.lt.s32.totalorder %s25, 0
        %s1389 = scalar_select %p1388, %s25, 0
        %p1390 = scmp.lt.s32.totalorder %s26, 1
        %s1391 = scalar_select %p1390, %s26, 1
        %s1392 = smul.addr %s1391, 8
        %s1393 = smul.addr %s1389, 16
        %s1394 = sadd.s32 %s1392, %s1393
        %s1395 = scalar_lea.vmem %s7, %s1394
        // Predicated region
        $region69: #{feature_transform_forward.5} parent=47 // pred_check
          %p1396 = pneg %p215
        $region70: #{feature_transform_forward.5} parent=47 // pred_check_branch
          %1398 = sbr.rel (%p1396) target = $region72
        $region71: #{feature_transform_forward.5} parent=47 // pred_region
          _
        $region72: #{feature_transform_forward.5} parent=47 // pred_fallthru
          _
      $region48: #{feature_transform_forward.5} parent=5 // pred_fallthru
        _
      %p1399 = scmp.le.s32.totalorder 2, %s15
      // Predicated region
      $region73: #{feature_transform_forward.5} parent=5 // pred_check
        %p1400 = pneg %p1399
      $region74: #{feature_transform_forward.5} parent=5 // pred_check_branch
        %1402 = sbr.rel (%p1400) target = $region76
      $region75: #{feature_transform_forward.5} parent=5 // pred_region
        %s1403 = ssub.s32 %s15, 2
        // Predicated region
        $region77: #{feature_transform_forward.5} parent=75 // pred_check
          %p1404 = pneg %p221
        $region78: #{feature_transform_forward.5} parent=75 // pred_check_branch
          %1406 = sbr.rel (%p1404) target = $region80
        $region79: #{feature_transform_forward.5} parent=75 // pred_region
          %p1407 = scmp.lt.s32.totalorder %s28, 0
          %s1408 = scalar_select %p1407, %s28, 0
          %p1409 = scmp.lt.s32.totalorder %s29, 1
          %s1410 = scalar_select %p1409, %s29, 1
          %s1411 = smul.addr %s1410, 8
          %s1412 = smul.addr %s1408, 16
          %s1413 = sadd.s32 %s1411, %s1412
          %s1414 = scalar_lea.vmem %s7, %s1413
        $region80: #{feature_transform_forward.5} parent=75 // pred_fallthru
          _
      $region76: #{feature_transform_forward.5} parent=5 // pred_fallthru
        _
    $region6: #{feature_transform_forward.5} parent=1 // loop_footer
      %s19 = sadd.s32 1, %s15
    $region7: #{feature_transform_forward.5} parent=1 // loop_footer_branch
      %14 = sbr.rel target = $region3
    $region8: #{feature_transform_forward.5} parent=1 // loop_exit
      _
    %1415 = vsyncpa [#allocation4], 1
    %s1416 = scalar_lea.sflag [#allocation4], 1
    %1417 = vsyncpa %s1416, 1
    %1418 = vsyncpa [#allocation6], 1

// kernel: feature_transform_forward.6
$region0: #{feature_transform_forward.6}
  #allocation0 [shape = 'u32[]', space=smem, size = 0x4, offset = 0x4, fixed_abs, tag = 'smem constant byte address 0x4 - core index']
  #allocation1 [shape = 'u32[72,128]{1,0:T(1,128)}', space=vmem, size = 0x9000, scoped, tag = 'internal scratch']
  %s0 = inlined_call_operand.vmem [shape: bf16[2,1024], index: 0, kind: input, shape index: {}]
  %s1 = inlined_call_operand.vmem [shape: bf16[1024,512], index: 1, kind: input, shape index: {}]
  %s2 = inlined_call_operand.vmem [shape: f32[1,512], index: 2, kind: input, shape index: {}]
  %s3 = inlined_call_operand.vmem [shape: bf16[512,128], index: 3, kind: input, shape index: {}]
  %s4 = inlined_call_operand.vmem [shape: f32[1,128], index: 4, kind: input, shape index: {}]
  %s5 = inlined_call_operand.vmem [shape: bf16[128,9], index: 5, kind: input, shape index: {}]
  %s6 = inlined_call_operand.vmem [shape: f32[1,9], index: 6, kind: input, shape index: {}]
  %s7 = inlined_call_operand.vmem [shape: f32[2,9], index: 7, kind: output, shape index: {}]
  %s8 = sld [smem:[#allocation0]]
  $region38: #{feature_transform_forward.6} parent=0
    _
  %s10 = ssub.s32 1, %s8
  %s11 = scalar_select 0, %s10, %s8
  // Predicated region
  $region2: #{feature_transform_forward.6} parent=0 // pred_check
    _
  $region3: #{feature_transform_forward.6} parent=0 // pred_check_branch
    %13 = sbr.rel (0) target = $region5
  $region4: #{feature_transform_forward.6} parent=0 // pred_region
    _
  $region5: #{feature_transform_forward.6} parent=0 // pred_fallthru
    _
  // Predicated region
  $region6: #{feature_transform_forward.6} parent=0 // pred_check
    _
  $region7: #{feature_transform_forward.6} parent=0 // pred_check_branch
    %15 = sbr.rel (0) target = $region9
  $region8: #{feature_transform_forward.6} parent=0 // pred_region
    _
  $region9: #{feature_transform_forward.6} parent=0 // pred_fallthru
    _
  // Predicated region
  $region10: #{feature_transform_forward.6} parent=0 // pred_check
    _
  $region11: #{feature_transform_forward.6} parent=0 // pred_check_branch
    %17 = sbr.rel (0) target = $region13
  $region12: #{feature_transform_forward.6} parent=0 // pred_region
    _
  $region13: #{feature_transform_forward.6} parent=0 // pred_fallthru
    _
  // Predicated region
  $region14: #{feature_transform_forward.6} parent=0 // pred_check
    _
  $region15: #{feature_transform_forward.6} parent=0 // pred_check_branch
    %19 = sbr.rel (0) target = $region17
  $region16: #{feature_transform_forward.6} parent=0 // pred_region
    _
  $region17: #{feature_transform_forward.6} parent=0 // pred_fallthru
    _
  // Predicated region
  $region18: #{feature_transform_forward.6} parent=0 // pred_check
    _
  $region19: #{feature_transform_forward.6} parent=0 // pred_check_branch
    %21 = sbr.rel (0) target = $region21
  $region20: #{feature_transform_forward.6} parent=0 // pred_region
    _
  $region21: #{feature_transform_forward.6} parent=0 // pred_fallthru
    _
  // Predicated region
  $region22: #{feature_transform_forward.6} parent=0 // pred_check
    _
  $region23: #{feature_transform_forward.6} parent=0 // pred_check_branch
    %23 = sbr.rel (0) target = $region25
  $region24: #{feature_transform_forward.6} parent=0 // pred_region
    _
  $region25: #{feature_transform_forward.6} parent=0 // pred_fallthru
    _
  // Predicated region
  $region26: #{feature_transform_forward.6} parent=0 // pred_check
    _
  $region27: #{feature_transform_forward.6} parent=0 // pred_check_branch
    %25 = sbr.rel (0) target = $region29
  $region28: #{feature_transform_forward.6} parent=0 // pred_region
    _
  $region29: #{feature_transform_forward.6} parent=0 // pred_fallthru
    _
  %v26 = vld [vmem:[%s0] sm:$0xff]
  %v27 = vld [vmem:[%s1] sm:$0xff]
  %v28 = vld [vmem:[%s1 + $0x8] sm:$0xff]
  %v29 = vld [vmem:[%s1 + $0x10] sm:$0xff]
  %v30 = vld [vmem:[%s1 + $0x18] sm:$0xff]
  %v31 = vld [vmem:[%s1 + $0x20] sm:$0xff]
  %v32 = vld [vmem:[%s1 + $0x28] sm:$0xff]
  %v33 = vld [vmem:[%s1 + $0x30] sm:$0xff]
  %v34 = vld [vmem:[%s1 + $0x38] sm:$0xff]
  %v35 = vld [vmem:[%s1 + $0x40] sm:$0xff]
  %v36 = vld [vmem:[%s1 + $0x48] sm:$0xff]
  %v37 = vld [vmem:[%s1 + $0x50] sm:$0xff]
  %v38 = vld [vmem:[%s1 + $0x58] sm:$0xff]
  %v39 = vld [vmem:[%s1 + $0x60] sm:$0xff]
  %v40 = vld [vmem:[%s1 + $0x68] sm:$0xff]
  %v41 = vld [vmem:[%s1 + $0x70] sm:$0xff]
  %v42 = vld [vmem:[%s1 + $0x78] sm:$0xff]
  %v43 = vld [vmem:[%s1 + $0x80] sm:$0xff]
  %v44 = vld [vmem:[%s1 + $0x88] sm:$0xff]
  %v45 = vld [vmem:[%s1 + $0x90] sm:$0xff]
  %v46 = vld [vmem:[%s1 + $0x98] sm:$0xff]
  %v47 = vld [vmem:[%s1 + $0xa0] sm:$0xff]
  %v48 = vld [vmem:[%s1 + $0xa8] sm:$0xff]
  %v49 = vld [vmem:[%s1 + $0xb0] sm:$0xff]
  %v50 = vld [vmem:[%s1 + $0xb8] sm:$0xff]
  %v51 = vld [vmem:[%s1 + $0xc0] sm:$0xff]
  %v52 = vld [vmem:[%s1 + $0xc8] sm:$0xff]
  %v53 = vld [vmem:[%s1 + $0xd0] sm:$0xff]
  %v54 = vld [vmem:[%s1 + $0xd8] sm:$0xff]
  %v55 = vld [vmem:[%s1 + $0xe0] sm:$0xff]
  %v56 = vld [vmem:[%s1 + $0xe8] sm:$0xff]
  %v57 = vld [vmem:[%s1 + $0xf0] sm:$0xff]
  %v58 = vld [vmem:[%s1 + $0xf8] sm:$0xff]
  %v59 = vld [vmem:[%s1 + $0x100] sm:$0xff]
  %v60 = vld [vmem:[%s1 + $0x108] sm:$0xff]
  %v61 = vld [vmem:[%s1 + $0x110] sm:$0xff]
  %v62 = vld [vmem:[%s1 + $0x118] sm:$0xff]
  %v63 = vld [vmem:[%s1 + $0x120] sm:$0xff]
  %v64 = vld [vmem:[%s1 + $0x128] sm:$0xff]
  %v65 = vld [vmem:[%s1 + $0x130] sm:$0xff]
  %v66 = vld [vmem:[%s1 + $0x138] sm:$0xff]
  %v67 = vld [vmem:[%s1 + $0x140] sm:$0xff]
  %v68 = vld [vmem:[%s1 + $0x148] sm:$0xff]
  %v69 = vld [vmem:[%s1 + $0x150] sm:$0xff]
  %v70 = vld [vmem:[%s1 + $0x158] sm:$0xff]
  %v71 = vld [vmem:[%s1 + $0x160] sm:$0xff]
  %v72 = vld [vmem:[%s1 + $0x168] sm:$0xff]
  %v73 = vld [vmem:[%s1 + $0x170] sm:$0xff]
  %v74 = vld [vmem:[%s1 + $0x178] sm:$0xff]
  %v75 = vld [vmem:[%s1 + $0x180] sm:$0xff]
  %v76 = vld [vmem:[%s1 + $0x188] sm:$0xff]
  %v77 = vld [vmem:[%s1 + $0x190] sm:$0xff]
  %v78 = vld [vmem:[%s1 + $0x198] sm:$0xff]
  %v79 = vld [vmem:[%s1 + $0x1a0] sm:$0xff]
  %v80 = vld [vmem:[%s1 + $0x1a8] sm:$0xff]
  %v81 = vld [vmem:[%s1 + $0x1b0] sm:$0xff]
  %v82 = vld [vmem:[%s1 + $0x1b8] sm:$0xff]
  %v83 = vld [vmem:[%s1 + $0x1c0] sm:$0xff]
  %v84 = vld [vmem:[%s1 + $0x1c8] sm:$0xff]
  %v85 = vld [vmem:[%s1 + $0x1d0] sm:$0xff]
  %v86 = vld [vmem:[%s1 + $0x1d8] sm:$0xff]
  %v87 = vld [vmem:[%s1 + $0x1e0] sm:$0xff]
  %v88 = vld [vmem:[%s1 + $0x1e8] sm:$0xff]
  %v89 = vld [vmem:[%s1 + $0x1f0] sm:$0xff]
  %v90 = vld [vmem:[%s1 + $0x1f8] sm:$0xff]
  %v91 = vld [vmem:[%s1 + $0x200] sm:$0xff]
  %v92 = vld [vmem:[%s1 + $0x208] sm:$0xff]
  %v93 = vld [vmem:[%s1 + $0x210] sm:$0xff]
  %v94 = vld [vmem:[%s1 + $0x218] sm:$0xff]
  %v95 = vld [vmem:[%s1 + $0x220] sm:$0xff]
  %v96 = vld [vmem:[%s1 + $0x228] sm:$0xff]
  %v97 = vld [vmem:[%s1 + $0x230] sm:$0xff]
  %v98 = vld [vmem:[%s1 + $0x238] sm:$0xff]
  %v99 = vld [vmem:[%s1 + $0x240] sm:$0xff]
  %v100 = vld [vmem:[%s1 + $0x248] sm:$0xff]
  %v101 = vld [vmem:[%s1 + $0x250] sm:$0xff]
  %v102 = vld [vmem:[%s1 + $0x258] sm:$0xff]
  %v103 = vld [vmem:[%s1 + $0x260] sm:$0xff]
  %v104 = vld [vmem:[%s1 + $0x268] sm:$0xff]
  %v105 = vld [vmem:[%s1 + $0x270] sm:$0xff]
  %v106 = vld [vmem:[%s1 + $0x278] sm:$0xff]
  %v107 = vld [vmem:[%s1 + $0x280] sm:$0xff]
  %v108 = vld [vmem:[%s1 + $0x288] sm:$0xff]
  %v109 = vld [vmem:[%s1 + $0x290] sm:$0xff]
  %v110 = vld [vmem:[%s1 + $0x298] sm:$0xff]
  %v111 = vld [vmem:[%s1 + $0x2a0] sm:$0xff]
  %v112 = vld [vmem:[%s1 + $0x2a8] sm:$0xff]
  %v113 = vld [vmem:[%s1 + $0x2b0] sm:$0xff]
  %v114 = vld [vmem:[%s1 + $0x2b8] sm:$0xff]
  %v115 = vld [vmem:[%s1 + $0x2c0] sm:$0xff]
  %v116 = vld [vmem:[%s1 + $0x2c8] sm:$0xff]
  %v117 = vld [vmem:[%s1 + $0x2d0] sm:$0xff]
  %v118 = vld [vmem:[%s1 + $0x2d8] sm:$0xff]
  %v119 = vld [vmem:[%s1 + $0x2e0] sm:$0xff]
  %v120 = vld [vmem:[%s1 + $0x2e8] sm:$0xff]
  %v121 = vld [vmem:[%s1 + $0x2f0] sm:$0xff]
  %v122 = vld [vmem:[%s1 + $0x2f8] sm:$0xff]
  %v123 = vld [vmem:[%s1 + $0x300] sm:$0xff]
  %v124 = vld [vmem:[%s1 + $0x308] sm:$0xff]
  %v125 = vld [vmem:[%s1 + $0x310] sm:$0xff]
  %v126 = vld [vmem:[%s1 + $0x318] sm:$0xff]
  %v127 = vld [vmem:[%s1 + $0x320] sm:$0xff]
  %v128 = vld [vmem:[%s1 + $0x328] sm:$0xff]
  %v129 = vld [vmem:[%s1 + $0x330] sm:$0xff]
  %v130 = vld [vmem:[%s1 + $0x338] sm:$0xff]
  %v131 = vld [vmem:[%s1 + $0x340] sm:$0xff]
  %v132 = vld [vmem:[%s1 + $0x348] sm:$0xff]
  %v133 = vld [vmem:[%s1 + $0x350] sm:$0xff]
  %v134 = vld [vmem:[%s1 + $0x358] sm:$0xff]
  %v135 = vld [vmem:[%s1 + $0x360] sm:$0xff]
  %v136 = vld [vmem:[%s1 + $0x368] sm:$0xff]
  %v137 = vld [vmem:[%s1 + $0x370] sm:$0xff]
  %v138 = vld [vmem:[%s1 + $0x378] sm:$0xff]
  %v139 = vld [vmem:[%s1 + $0x380] sm:$0xff]
  %v140 = vld [vmem:[%s1 + $0x388] sm:$0xff]
  %v141 = vld [vmem:[%s1 + $0x390] sm:$0xff]
  %v142 = vld [vmem:[%s1 + $0x398] sm:$0xff]
  %v143 = vld [vmem:[%s1 + $0x3a0] sm:$0xff]
  %v144 = vld [vmem:[%s1 + $0x3a8] sm:$0xff]
  %v145 = vld [vmem:[%s1 + $0x3b0] sm:$0xff]
  %v146 = vld [vmem:[%s1 + $0x3b8] sm:$0xff]
  %v147 = vld [vmem:[%s1 + $0x3c0] sm:$0xff]
  %v148 = vld [vmem:[%s1 + $0x3c8] sm:$0xff]
  %v149 = vld [vmem:[%s1 + $0x3d0] sm:$0xff]
  %v150 = vld [vmem:[%s1 + $0x3d8] sm:$0xff]
  %v151 = vld [vmem:[%s1 + $0x3e0] sm:$0xff]
  %v152 = vld [vmem:[%s1 + $0x3e8] sm:$0xff]
  %v153 = vld [vmem:[%s1 + $0x3f0] sm:$0xff]
  %v154 = vld [vmem:[%s1 + $0x3f8] sm:$0xff]
  %v155 = vld [vmem:[%s1 + $0x400] sm:$0xff]
  %v156 = vld [vmem:[%s1 + $0x408] sm:$0xff]
  %v157 = vld [vmem:[%s1 + $0x410] sm:$0xff]
  %v158 = vld [vmem:[%s1 + $0x418] sm:$0xff]
  %v159 = vld [vmem:[%s1 + $0x420] sm:$0xff]
  %v160 = vld [vmem:[%s1 + $0x428] sm:$0xff]
  %v161 = vld [vmem:[%s1 + $0x430] sm:$0xff]
  %v162 = vld [vmem:[%s1 + $0x438] sm:$0xff]
  %v163 = vld [vmem:[%s1 + $0x440] sm:$0xff]
  %v164 = vld [vmem:[%s1 + $0x448] sm:$0xff]
  %v165 = vld [vmem:[%s1 + $0x450] sm:$0xff]
  %v166 = vld [vmem:[%s1 + $0x458] sm:$0xff]
  %v167 = vld [vmem:[%s1 + $0x460] sm:$0xff]
  %v168 = vld [vmem:[%s1 + $0x468] sm:$0xff]
  %v169 = vld [vmem:[%s1 + $0x470] sm:$0xff]
  %v170 = vld [vmem:[%s1 + $0x478] sm:$0xff]
  %v171 = vld [vmem:[%s1 + $0x480] sm:$0xff]
  %v172 = vld [vmem:[%s1 + $0x488] sm:$0xff]
  %v173 = vld [vmem:[%s1 + $0x490] sm:$0xff]
  %v174 = vld [vmem:[%s1 + $0x498] sm:$0xff]
  %v175 = vld [vmem:[%s1 + $0x4a0] sm:$0xff]
  %v176 = vld [vmem:[%s1 + $0x4a8] sm:$0xff]
  %v177 = vld [vmem:[%s1 + $0x4b0] sm:$0xff]
  %v178 = vld [vmem:[%s1 + $0x4b8] sm:$0xff]
  %v179 = vld [vmem:[%s1 + $0x4c0] sm:$0xff]
  %v180 = vld [vmem:[%s1 + $0x4c8] sm:$0xff]
  %v181 = vld [vmem:[%s1 + $0x4d0] sm:$0xff]
  %v182 = vld [vmem:[%s1 + $0x4d8] sm:$0xff]
  %v183 = vld [vmem:[%s1 + $0x4e0] sm:$0xff]
  %v184 = vld [vmem:[%s1 + $0x4e8] sm:$0xff]
  %v185 = vld [vmem:[%s1 + $0x4f0] sm:$0xff]
  %v186 = vld [vmem:[%s1 + $0x4f8] sm:$0xff]
  %v187 = vld [vmem:[%s1 + $0x500] sm:$0xff]
  %v188 = vld [vmem:[%s1 + $0x508] sm:$0xff]
  %v189 = vld [vmem:[%s1 + $0x510] sm:$0xff]
  %v190 = vld [vmem:[%s1 + $0x518] sm:$0xff]
  %v191 = vld [vmem:[%s1 + $0x520] sm:$0xff]
  %v192 = vld [vmem:[%s1 + $0x528] sm:$0xff]
  %v193 = vld [vmem:[%s1 + $0x530] sm:$0xff]
  %v194 = vld [vmem:[%s1 + $0x538] sm:$0xff]
  %v195 = vld [vmem:[%s1 + $0x540] sm:$0xff]
  %v196 = vld [vmem:[%s1 + $0x548] sm:$0xff]
  %v197 = vld [vmem:[%s1 + $0x550] sm:$0xff]
  %v198 = vld [vmem:[%s1 + $0x558] sm:$0xff]
  %v199 = vld [vmem:[%s1 + $0x560] sm:$0xff]
  %v200 = vld [vmem:[%s1 + $0x568] sm:$0xff]
  %v201 = vld [vmem:[%s1 + $0x570] sm:$0xff]
  %v202 = vld [vmem:[%s1 + $0x578] sm:$0xff]
  %v203 = vld [vmem:[%s1 + $0x580] sm:$0xff]
  %v204 = vld [vmem:[%s1 + $0x588] sm:$0xff]
  %v205 = vld [vmem:[%s1 + $0x590] sm:$0xff]
  %v206 = vld [vmem:[%s1 + $0x598] sm:$0xff]
  %v207 = vld [vmem:[%s1 + $0x5a0] sm:$0xff]
  %v208 = vld [vmem:[%s1 + $0x5a8] sm:$0xff]
  %v209 = vld [vmem:[%s1 + $0x5b0] sm:$0xff]
  %v210 = vld [vmem:[%s1 + $0x5b8] sm:$0xff]
  %v211 = vld [vmem:[%s1 + $0x5c0] sm:$0xff]
  %v212 = vld [vmem:[%s1 + $0x5c8] sm:$0xff]
  %v213 = vld [vmem:[%s1 + $0x5d0] sm:$0xff]
  %v214 = vld [vmem:[%s1 + $0x5d8] sm:$0xff]
  %v215 = vld [vmem:[%s1 + $0x5e0] sm:$0xff]
  %v216 = vld [vmem:[%s1 + $0x5e8] sm:$0xff]
  %v217 = vld [vmem:[%s1 + $0x5f0] sm:$0xff]
  %v218 = vld [vmem:[%s1 + $0x5f8] sm:$0xff]
  %v219 = vld [vmem:[%s1 + $0x600] sm:$0xff]
  %v220 = vld [vmem:[%s1 + $0x608] sm:$0xff]
  %v221 = vld [vmem:[%s1 + $0x610] sm:$0xff]
  %v222 = vld [vmem:[%s1 + $0x618] sm:$0xff]
  %v223 = vld [vmem:[%s1 + $0x620] sm:$0xff]
  %v224 = vld [vmem:[%s1 + $0x628] sm:$0xff]
  %v225 = vld [vmem:[%s1 + $0x630] sm:$0xff]
  %v226 = vld [vmem:[%s1 + $0x638] sm:$0xff]
  %v227 = vld [vmem:[%s1 + $0x640] sm:$0xff]
  %v228 = vld [vmem:[%s1 + $0x648] sm:$0xff]
  %v229 = vld [vmem:[%s1 + $0x650] sm:$0xff]
  %v230 = vld [vmem:[%s1 + $0x658] sm:$0xff]
  %v231 = vld [vmem:[%s1 + $0x660] sm:$0xff]
  %v232 = vld [vmem:[%s1 + $0x668] sm:$0xff]
  %v233 = vld [vmem:[%s1 + $0x670] sm:$0xff]
  %v234 = vld [vmem:[%s1 + $0x678] sm:$0xff]
  %v235 = vld [vmem:[%s1 + $0x680] sm:$0xff]
  %v236 = vld [vmem:[%s1 + $0x688] sm:$0xff]
  %v237 = vld [vmem:[%s1 + $0x690] sm:$0xff]
  %v238 = vld [vmem:[%s1 + $0x698] sm:$0xff]
  %v239 = vld [vmem:[%s1 + $0x6a0] sm:$0xff]
  %v240 = vld [vmem:[%s1 + $0x6a8] sm:$0xff]
  %v241 = vld [vmem:[%s1 + $0x6b0] sm:$0xff]
  %v242 = vld [vmem:[%s1 + $0x6b8] sm:$0xff]
  %v243 = vld [vmem:[%s1 + $0x6c0] sm:$0xff]
  %v244 = vld [vmem:[%s1 + $0x6c8] sm:$0xff]
  %v245 = vld [vmem:[%s1 + $0x6d0] sm:$0xff]
  %v246 = vld [vmem:[%s1 + $0x6d8] sm:$0xff]
  %v247 = vld [vmem:[%s1 + $0x6e0] sm:$0xff]
  %v248 = vld [vmem:[%s1 + $0x6e8] sm:$0xff]
  %v249 = vld [vmem:[%s1 + $0x6f0] sm:$0xff]
  %v250 = vld [vmem:[%s1 + $0x6f8] sm:$0xff]
  %v251 = vld [vmem:[%s1 + $0x700] sm:$0xff]
  %v252 = vld [vmem:[%s1 + $0x708] sm:$0xff]
  %v253 = vld [vmem:[%s1 + $0x710] sm:$0xff]
  %v254 = vld [vmem:[%s1 + $0x718] sm:$0xff]
  %v255 = vld [vmem:[%s1 + $0x720] sm:$0xff]
  %v256 = vld [vmem:[%s1 + $0x728] sm:$0xff]
  %v257 = vld [vmem:[%s1 + $0x730] sm:$0xff]
  %v258 = vld [vmem:[%s1 + $0x738] sm:$0xff]
  %v259 = vld [vmem:[%s1 + $0x740] sm:$0xff]
  %v260 = vld [vmem:[%s1 + $0x748] sm:$0xff]
  %v261 = vld [vmem:[%s1 + $0x750] sm:$0xff]
  %v262 = vld [vmem:[%s1 + $0x758] sm:$0xff]
  %v263 = vld [vmem:[%s1 + $0x760] sm:$0xff]
  %v264 = vld [vmem:[%s1 + $0x768] sm:$0xff]
  %v265 = vld [vmem:[%s1 + $0x770] sm:$0xff]
  %v266 = vld [vmem:[%s1 + $0x778] sm:$0xff]
  %v267 = vld [vmem:[%s1 + $0x780] sm:$0xff]
  %v268 = vld [vmem:[%s1 + $0x788] sm:$0xff]
  %v269 = vld [vmem:[%s1 + $0x790] sm:$0xff]
  %v270 = vld [vmem:[%s1 + $0x798] sm:$0xff]
  %v271 = vld [vmem:[%s1 + $0x7a0] sm:$0xff]
  %v272 = vld [vmem:[%s1 + $0x7a8] sm:$0xff]
  %v273 = vld [vmem:[%s1 + $0x7b0] sm:$0xff]
  %v274 = vld [vmem:[%s1 + $0x7b8] sm:$0xff]
  %v275 = vld [vmem:[%s1 + $0x7c0] sm:$0xff]
  %v276 = vld [vmem:[%s1 + $0x7c8] sm:$0xff]
  %v277 = vld [vmem:[%s1 + $0x7d0] sm:$0xff]
  %v278 = vld [vmem:[%s1 + $0x7d8] sm:$0xff]
  %v279 = vld [vmem:[%s1 + $0x7e0] sm:$0xff]
  %v280 = vld [vmem:[%s1 + $0x7e8] sm:$0xff]
  %v281 = vld [vmem:[%s1 + $0x7f0] sm:$0xff]
  %v282 = vld [vmem:[%s1 + $0x7f8] sm:$0xff]
  %v283 = vld [vmem:[%s2] sm:$0xf]
  %v285 = vperm.slane %v283, 0
  %v286 = vperm.slane %v283, 1
  %v287 = vperm.slane %v283, 2
  %v288 = vperm.slane %v283, 3
  %294 = vst [vmem:[#allocation1] ss:$9 sm:$0xff] %v26
  %v295 = vld [vmem:[#allocation1] sm:$0xff]
  %v296 = vld [vmem:[#allocation1 + $0x9] sm:$0xff]
  %v297 = vld [vmem:[#allocation1 + $0x12] sm:$0xff]
  %v298 = vld [vmem:[#allocation1 + $0x1b] sm:$0xff]
  %v299 = vld [vmem:[#allocation1 + $0x24] sm:$0xff]
  %v300 = vld [vmem:[#allocation1 + $0x2d] sm:$0xff]
  %v301 = vld [vmem:[#allocation1 + $0x36] sm:$0xff]
  %v302 = vld [vmem:[#allocation1 + $0x3f] sm:$0xff]
  %v567 = vunpack.c.l.b16 %v27
  %v568 = vunpack.c.h.b16 %v27
  %v569 = vunpack.c.l.b16 %v28
  %v570 = vunpack.c.h.b16 %v28
  %v571 = vunpack.c.l.b16 %v29
  %v572 = vunpack.c.h.b16 %v29
  %v573 = vunpack.c.l.b16 %v30
  %v574 = vunpack.c.h.b16 %v30
  %v575 = vunpack.c.l.b16 %v31
  %v576 = vunpack.c.h.b16 %v31
  %v577 = vunpack.c.l.b16 %v32
  %v578 = vunpack.c.h.b16 %v32
  %v579 = vunpack.c.l.b16 %v33
  %v580 = vunpack.c.h.b16 %v33
  %v581 = vunpack.c.l.b16 %v34
  %v582 = vunpack.c.h.b16 %v34
  %v583 = vunpack.c.l.b16 %v35
  %v584 = vunpack.c.h.b16 %v35
  %v585 = vunpack.c.l.b16 %v36
  %v586 = vunpack.c.h.b16 %v36
  %v587 = vunpack.c.l.b16 %v37
  %v588 = vunpack.c.h.b16 %v37
  %v589 = vunpack.c.l.b16 %v38
  %v590 = vunpack.c.h.b16 %v38
  %v591 = vunpack.c.l.b16 %v39
  %v592 = vunpack.c.h.b16 %v39
  %v593 = vunpack.c.l.b16 %v40
  %v594 = vunpack.c.h.b16 %v40
  %v595 = vunpack.c.l.b16 %v41
  %v596 = vunpack.c.h.b16 %v41
  %v597 = vunpack.c.l.b16 %v42
  %v598 = vunpack.c.h.b16 %v42
  %v599 = vunpack.c.l.b16 %v43
  %v600 = vunpack.c.h.b16 %v43
  %v601 = vunpack.c.l.b16 %v44
  %v602 = vunpack.c.h.b16 %v44
  %v603 = vunpack.c.l.b16 %v45
  %v604 = vunpack.c.h.b16 %v45
  %v605 = vunpack.c.l.b16 %v46
  %v606 = vunpack.c.h.b16 %v46
  %v607 = vunpack.c.l.b16 %v47
  %v608 = vunpack.c.h.b16 %v47
  %v609 = vunpack.c.l.b16 %v48
  %v610 = vunpack.c.h.b16 %v48
  %v611 = vunpack.c.l.b16 %v49
  %v612 = vunpack.c.h.b16 %v49
  %v613 = vunpack.c.l.b16 %v50
  %v614 = vunpack.c.h.b16 %v50
  %v615 = vunpack.c.l.b16 %v51
  %v616 = vunpack.c.h.b16 %v51
  %v617 = vunpack.c.l.b16 %v52
  %v618 = vunpack.c.h.b16 %v52
  %v619 = vunpack.c.l.b16 %v53
  %v620 = vunpack.c.h.b16 %v53
  %v621 = vunpack.c.l.b16 %v54
  %v622 = vunpack.c.h.b16 %v54
  %v623 = vunpack.c.l.b16 %v55
  %v624 = vunpack.c.h.b16 %v55
  %v625 = vunpack.c.l.b16 %v56
  %v626 = vunpack.c.h.b16 %v56
  %v627 = vunpack.c.l.b16 %v57
  %v628 = vunpack.c.h.b16 %v57
  %v629 = vunpack.c.l.b16 %v58
  %v630 = vunpack.c.h.b16 %v58
  %v631 = vunpack.c.l.b16 %v59
  %v632 = vunpack.c.h.b16 %v59
  %v633 = vunpack.c.l.b16 %v60
  %v634 = vunpack.c.h.b16 %v60
  %v635 = vunpack.c.l.b16 %v61
  %v636 = vunpack.c.h.b16 %v61
  %v637 = vunpack.c.l.b16 %v62
  %v638 = vunpack.c.h.b16 %v62
  %v639 = vunpack.c.l.b16 %v63
  %v640 = vunpack.c.h.b16 %v63
  %v641 = vunpack.c.l.b16 %v64
  %v642 = vunpack.c.h.b16 %v64
  %v643 = vunpack.c.l.b16 %v65
  %v644 = vunpack.c.h.b16 %v65
  %v645 = vunpack.c.l.b16 %v66
  %v646 = vunpack.c.h.b16 %v66
  %v647 = vunpack.c.l.b16 %v67
  %v648 = vunpack.c.h.b16 %v67
  %v649 = vunpack.c.l.b16 %v68
  %v650 = vunpack.c.h.b16 %v68
  %v651 = vunpack.c.l.b16 %v69
  %v652 = vunpack.c.h.b16 %v69
  %v653 = vunpack.c.l.b16 %v70
  %v654 = vunpack.c.h.b16 %v70
  %v655 = vunpack.c.l.b16 %v71
  %v656 = vunpack.c.h.b16 %v71
  %v657 = vunpack.c.l.b16 %v72
  %v658 = vunpack.c.h.b16 %v72
  %v659 = vunpack.c.l.b16 %v73
  %v660 = vunpack.c.h.b16 %v73
  %v661 = vunpack.c.l.b16 %v74
  %v662 = vunpack.c.h.b16 %v74
  %v663 = vunpack.c.l.b16 %v75
  %v664 = vunpack.c.h.b16 %v75
  %v665 = vunpack.c.l.b16 %v76
  %v666 = vunpack.c.h.b16 %v76
  %v667 = vunpack.c.l.b16 %v77
  %v668 = vunpack.c.h.b16 %v77
  %v669 = vunpack.c.l.b16 %v78
  %v670 = vunpack.c.h.b16 %v78
  %v671 = vunpack.c.l.b16 %v79
  %v672 = vunpack.c.h.b16 %v79
  %v673 = vunpack.c.l.b16 %v80
  %v674 = vunpack.c.h.b16 %v80
  %v675 = vunpack.c.l.b16 %v81
  %v676 = vunpack.c.h.b16 %v81
  %v677 = vunpack.c.l.b16 %v82
  %v678 = vunpack.c.h.b16 %v82
  %v679 = vunpack.c.l.b16 %v83
  %v680 = vunpack.c.h.b16 %v83
  %v681 = vunpack.c.l.b16 %v84
  %v682 = vunpack.c.h.b16 %v84
  %v683 = vunpack.c.l.b16 %v85
  %v684 = vunpack.c.h.b16 %v85
  %v685 = vunpack.c.l.b16 %v86
  %v686 = vunpack.c.h.b16 %v86
  %v687 = vunpack.c.l.b16 %v87
  %v688 = vunpack.c.h.b16 %v87
  %v689 = vunpack.c.l.b16 %v88
  %v690 = vunpack.c.h.b16 %v88
  %v691 = vunpack.c.l.b16 %v89
  %v692 = vunpack.c.h.b16 %v89
  %v693 = vunpack.c.l.b16 %v90
  %v694 = vunpack.c.h.b16 %v90
  %v695 = vunpack.c.l.b16 %v91
  %v696 = vunpack.c.h.b16 %v91
  %v697 = vunpack.c.l.b16 %v92
  %v698 = vunpack.c.h.b16 %v92
  %v699 = vunpack.c.l.b16 %v93
  %v700 = vunpack.c.h.b16 %v93
  %v701 = vunpack.c.l.b16 %v94
  %v702 = vunpack.c.h.b16 %v94
  %v703 = vunpack.c.l.b16 %v95
  %v704 = vunpack.c.h.b16 %v95
  %v705 = vunpack.c.l.b16 %v96
  %v706 = vunpack.c.h.b16 %v96
  %v707 = vunpack.c.l.b16 %v97
  %v708 = vunpack.c.h.b16 %v97
  %v709 = vunpack.c.l.b16 %v98
  %v710 = vunpack.c.h.b16 %v98
  %v711 = vunpack.c.l.b16 %v99
  %v712 = vunpack.c.h.b16 %v99
  %v713 = vunpack.c.l.b16 %v100
  %v714 = vunpack.c.h.b16 %v100
  %v715 = vunpack.c.l.b16 %v101
  %v716 = vunpack.c.h.b16 %v101
  %v717 = vunpack.c.l.b16 %v102
  %v718 = vunpack.c.h.b16 %v102
  %v719 = vunpack.c.l.b16 %v103
  %v720 = vunpack.c.h.b16 %v103
  %v721 = vunpack.c.l.b16 %v104
  %v722 = vunpack.c.h.b16 %v104
  %v723 = vunpack.c.l.b16 %v105
  %v724 = vunpack.c.h.b16 %v105
  %v725 = vunpack.c.l.b16 %v106
  %v726 = vunpack.c.h.b16 %v106
  %v727 = vunpack.c.l.b16 %v107
  %v728 = vunpack.c.h.b16 %v107
  %v729 = vunpack.c.l.b16 %v108
  %v730 = vunpack.c.h.b16 %v108
  %v731 = vunpack.c.l.b16 %v109
  %v732 = vunpack.c.h.b16 %v109
  %v733 = vunpack.c.l.b16 %v110
  %v734 = vunpack.c.h.b16 %v110
  %v735 = vunpack.c.l.b16 %v111
  %v736 = vunpack.c.h.b16 %v111
  %v737 = vunpack.c.l.b16 %v112
  %v738 = vunpack.c.h.b16 %v112
  %v739 = vunpack.c.l.b16 %v113
  %v740 = vunpack.c.h.b16 %v113
  %v741 = vunpack.c.l.b16 %v114
  %v742 = vunpack.c.h.b16 %v114
  %v743 = vunpack.c.l.b16 %v115
  %v744 = vunpack.c.h.b16 %v115
  %v745 = vunpack.c.l.b16 %v116
  %v746 = vunpack.c.h.b16 %v116
  %v747 = vunpack.c.l.b16 %v117
  %v748 = vunpack.c.h.b16 %v117
  %v749 = vunpack.c.l.b16 %v118
  %v750 = vunpack.c.h.b16 %v118
  %v751 = vunpack.c.l.b16 %v119
  %v752 = vunpack.c.h.b16 %v119
  %v753 = vunpack.c.l.b16 %v120
  %v754 = vunpack.c.h.b16 %v120
  %v755 = vunpack.c.l.b16 %v121
  %v756 = vunpack.c.h.b16 %v121
  %v757 = vunpack.c.l.b16 %v122
  %v758 = vunpack.c.h.b16 %v122
  %v759 = vunpack.c.l.b16 %v123
  %v760 = vunpack.c.h.b16 %v123
  %v761 = vunpack.c.l.b16 %v124
  %v762 = vunpack.c.h.b16 %v124
  %v763 = vunpack.c.l.b16 %v125
  %v764 = vunpack.c.h.b16 %v125
  %v765 = vunpack.c.l.b16 %v126
  %v766 = vunpack.c.h.b16 %v126
  %v767 = vunpack.c.l.b16 %v127
  %v768 = vunpack.c.h.b16 %v127
  %v769 = vunpack.c.l.b16 %v128
  %v770 = vunpack.c.h.b16 %v128
  %v771 = vunpack.c.l.b16 %v129
  %v772 = vunpack.c.h.b16 %v129
  %v773 = vunpack.c.l.b16 %v130
  %v774 = vunpack.c.h.b16 %v130
  %v775 = vunpack.c.l.b16 %v131
  %v776 = vunpack.c.h.b16 %v131
  %v777 = vunpack.c.l.b16 %v132
  %v778 = vunpack.c.h.b16 %v132
  %v779 = vunpack.c.l.b16 %v133
  %v780 = vunpack.c.h.b16 %v133
  %v781 = vunpack.c.l.b16 %v134
  %v782 = vunpack.c.h.b16 %v134
  %v783 = vunpack.c.l.b16 %v135
  %v784 = vunpack.c.h.b16 %v135
  %v785 = vunpack.c.l.b16 %v136
  %v786 = vunpack.c.h.b16 %v136
  %v787 = vunpack.c.l.b16 %v137
  %v788 = vunpack.c.h.b16 %v137
  %v789 = vunpack.c.l.b16 %v138
  %v790 = vunpack.c.h.b16 %v138
  %v791 = vunpack.c.l.b16 %v139
  %v792 = vunpack.c.h.b16 %v139
  %v793 = vunpack.c.l.b16 %v140
  %v794 = vunpack.c.h.b16 %v140
  %v795 = vunpack.c.l.b16 %v141
  %v796 = vunpack.c.h.b16 %v141
  %v797 = vunpack.c.l.b16 %v142
  %v798 = vunpack.c.h.b16 %v142
  %v799 = vunpack.c.l.b16 %v143
  %v800 = vunpack.c.h.b16 %v143
  %v801 = vunpack.c.l.b16 %v144
  %v802 = vunpack.c.h.b16 %v144
  %v803 = vunpack.c.l.b16 %v145
  %v804 = vunpack.c.h.b16 %v145
  %v805 = vunpack.c.l.b16 %v146
  %v806 = vunpack.c.h.b16 %v146
  %v807 = vunpack.c.l.b16 %v147
  %v808 = vunpack.c.h.b16 %v147
  %v809 = vunpack.c.l.b16 %v148
  %v810 = vunpack.c.h.b16 %v148
  %v811 = vunpack.c.l.b16 %v149
  %v812 = vunpack.c.h.b16 %v149
  %v813 = vunpack.c.l.b16 %v150
  %v814 = vunpack.c.h.b16 %v150
  %v815 = vunpack.c.l.b16 %v151
  %v816 = vunpack.c.h.b16 %v151
  %v817 = vunpack.c.l.b16 %v152
  %v818 = vunpack.c.h.b16 %v152
  %v819 = vunpack.c.l.b16 %v153
  %v820 = vunpack.c.h.b16 %v153
  %v821 = vunpack.c.l.b16 %v154
  %v822 = vunpack.c.h.b16 %v154
  %v823 = vunpack.c.l.b16 %v155
  %v824 = vunpack.c.h.b16 %v155
  %v825 = vunpack.c.l.b16 %v156
  %v826 = vunpack.c.h.b16 %v156
  %v827 = vunpack.c.l.b16 %v157
  %v828 = vunpack.c.h.b16 %v157
  %v829 = vunpack.c.l.b16 %v158
  %v830 = vunpack.c.h.b16 %v158
  %v831 = vunpack.c.l.b16 %v159
  %v832 = vunpack.c.h.b16 %v159
  %v833 = vunpack.c.l.b16 %v160
  %v834 = vunpack.c.h.b16 %v160
  %v835 = vunpack.c.l.b16 %v161
  %v836 = vunpack.c.h.b16 %v161
  %v837 = vunpack.c.l.b16 %v162
  %v838 = vunpack.c.h.b16 %v162
  %v839 = vunpack.c.l.b16 %v163
  %v840 = vunpack.c.h.b16 %v163
  %v841 = vunpack.c.l.b16 %v164
  %v842 = vunpack.c.h.b16 %v164
  %v843 = vunpack.c.l.b16 %v165
  %v844 = vunpack.c.h.b16 %v165
  %v845 = vunpack.c.l.b16 %v166
  %v846 = vunpack.c.h.b16 %v166
  %v847 = vunpack.c.l.b16 %v167
  %v848 = vunpack.c.h.b16 %v167
  %v849 = vunpack.c.l.b16 %v168
  %v850 = vunpack.c.h.b16 %v168
  %v851 = vunpack.c.l.b16 %v169
  %v852 = vunpack.c.h.b16 %v169
  %v853 = vunpack.c.l.b16 %v170
  %v854 = vunpack.c.h.b16 %v170
  %v855 = vunpack.c.l.b16 %v171
  %v856 = vunpack.c.h.b16 %v171
  %v857 = vunpack.c.l.b16 %v172
  %v858 = vunpack.c.h.b16 %v172
  %v859 = vunpack.c.l.b16 %v173
  %v860 = vunpack.c.h.b16 %v173
  %v861 = vunpack.c.l.b16 %v174
  %v862 = vunpack.c.h.b16 %v174
  %v863 = vunpack.c.l.b16 %v175
  %v864 = vunpack.c.h.b16 %v175
  %v865 = vunpack.c.l.b16 %v176
  %v866 = vunpack.c.h.b16 %v176
  %v867 = vunpack.c.l.b16 %v177
  %v868 = vunpack.c.h.b16 %v177
  %v869 = vunpack.c.l.b16 %v178
  %v870 = vunpack.c.h.b16 %v178
  %v871 = vunpack.c.l.b16 %v179
  %v872 = vunpack.c.h.b16 %v179
  %v873 = vunpack.c.l.b16 %v180
  %v874 = vunpack.c.h.b16 %v180
  %v875 = vunpack.c.l.b16 %v181
  %v876 = vunpack.c.h.b16 %v181
  %v877 = vunpack.c.l.b16 %v182
  %v878 = vunpack.c.h.b16 %v182
  %v879 = vunpack.c.l.b16 %v183
  %v880 = vunpack.c.h.b16 %v183
  %v881 = vunpack.c.l.b16 %v184
  %v882 = vunpack.c.h.b16 %v184
  %v883 = vunpack.c.l.b16 %v185
  %v884 = vunpack.c.h.b16 %v185
  %v885 = vunpack.c.l.b16 %v186
  %v886 = vunpack.c.h.b16 %v186
  %v887 = vunpack.c.l.b16 %v187
  %v888 = vunpack.c.h.b16 %v187
  %v889 = vunpack.c.l.b16 %v188
  %v890 = vunpack.c.h.b16 %v188
  %v891 = vunpack.c.l.b16 %v189
  %v892 = vunpack.c.h.b16 %v189
  %v893 = vunpack.c.l.b16 %v190
  %v894 = vunpack.c.h.b16 %v190
  %v895 = vunpack.c.l.b16 %v191
  %v896 = vunpack.c.h.b16 %v191
  %v897 = vunpack.c.l.b16 %v192
  %v898 = vunpack.c.h.b16 %v192
  %v899 = vunpack.c.l.b16 %v193
  %v900 = vunpack.c.h.b16 %v193
  %v901 = vunpack.c.l.b16 %v194
  %v902 = vunpack.c.h.b16 %v194
  %v903 = vunpack.c.l.b16 %v195
  %v904 = vunpack.c.h.b16 %v195
  %v905 = vunpack.c.l.b16 %v196
  %v906 = vunpack.c.h.b16 %v196
  %v907 = vunpack.c.l.b16 %v197
  %v908 = vunpack.c.h.b16 %v197
  %v909 = vunpack.c.l.b16 %v198
  %v910 = vunpack.c.h.b16 %v198
  %v911 = vunpack.c.l.b16 %v199
  %v912 = vunpack.c.h.b16 %v199
  %v913 = vunpack.c.l.b16 %v200
  %v914 = vunpack.c.h.b16 %v200
  %v915 = vunpack.c.l.b16 %v201
  %v916 = vunpack.c.h.b16 %v201
  %v917 = vunpack.c.l.b16 %v202
  %v918 = vunpack.c.h.b16 %v202
  %v919 = vunpack.c.l.b16 %v203
  %v920 = vunpack.c.h.b16 %v203
  %v921 = vunpack.c.l.b16 %v204
  %v922 = vunpack.c.h.b16 %v204
  %v923 = vunpack.c.l.b16 %v205
  %v924 = vunpack.c.h.b16 %v205
  %v925 = vunpack.c.l.b16 %v206
  %v926 = vunpack.c.h.b16 %v206
  %v927 = vunpack.c.l.b16 %v207
  %v928 = vunpack.c.h.b16 %v207
  %v929 = vunpack.c.l.b16 %v208
  %v930 = vunpack.c.h.b16 %v208
  %v931 = vunpack.c.l.b16 %v209
  %v932 = vunpack.c.h.b16 %v209
  %v933 = vunpack.c.l.b16 %v210
  %v934 = vunpack.c.h.b16 %v210
  %v935 = vunpack.c.l.b16 %v211
  %v936 = vunpack.c.h.b16 %v211
  %v937 = vunpack.c.l.b16 %v212
  %v938 = vunpack.c.h.b16 %v212
  %v939 = vunpack.c.l.b16 %v213
  %v940 = vunpack.c.h.b16 %v213
  %v941 = vunpack.c.l.b16 %v214
  %v942 = vunpack.c.h.b16 %v214
  %v943 = vunpack.c.l.b16 %v215
  %v944 = vunpack.c.h.b16 %v215
  %v945 = vunpack.c.l.b16 %v216
  %v946 = vunpack.c.h.b16 %v216
  %v947 = vunpack.c.l.b16 %v217
  %v948 = vunpack.c.h.b16 %v217
  %v949 = vunpack.c.l.b16 %v218
  %v950 = vunpack.c.h.b16 %v218
  %v951 = vunpack.c.l.b16 %v219
  %v952 = vunpack.c.h.b16 %v219
  %v953 = vunpack.c.l.b16 %v220
  %v954 = vunpack.c.h.b16 %v220
  %v955 = vunpack.c.l.b16 %v221
  %v956 = vunpack.c.h.b16 %v221
  %v957 = vunpack.c.l.b16 %v222
  %v958 = vunpack.c.h.b16 %v222
  %v959 = vunpack.c.l.b16 %v223
  %v960 = vunpack.c.h.b16 %v223
  %v961 = vunpack.c.l.b16 %v224
  %v962 = vunpack.c.h.b16 %v224
  %v963 = vunpack.c.l.b16 %v225
  %v964 = vunpack.c.h.b16 %v225
  %v965 = vunpack.c.l.b16 %v226
  %v966 = vunpack.c.h.b16 %v226
  %v967 = vunpack.c.l.b16 %v227
  %v968 = vunpack.c.h.b16 %v227
  %v969 = vunpack.c.l.b16 %v228
  %v970 = vunpack.c.h.b16 %v228
  %v971 = vunpack.c.l.b16 %v229
  %v972 = vunpack.c.h.b16 %v229
  %v973 = vunpack.c.l.b16 %v230
  %v974 = vunpack.c.h.b16 %v230
  %v975 = vunpack.c.l.b16 %v231
  %v976 = vunpack.c.h.b16 %v231
  %v977 = vunpack.c.l.b16 %v232
  %v978 = vunpack.c.h.b16 %v232
  %v979 = vunpack.c.l.b16 %v233
  %v980 = vunpack.c.h.b16 %v233
  %v981 = vunpack.c.l.b16 %v234
  %v982 = vunpack.c.h.b16 %v234
  %v983 = vunpack.c.l.b16 %v235
  %v984 = vunpack.c.h.b16 %v235
  %v985 = vunpack.c.l.b16 %v236
  %v986 = vunpack.c.h.b16 %v236
  %v987 = vunpack.c.l.b16 %v237
  %v988 = vunpack.c.h.b16 %v237
  %v989 = vunpack.c.l.b16 %v238
  %v990 = vunpack.c.h.b16 %v238
  %v991 = vunpack.c.l.b16 %v239
  %v992 = vunpack.c.h.b16 %v239
  %v993 = vunpack.c.l.b16 %v240
  %v994 = vunpack.c.h.b16 %v240
  %v995 = vunpack.c.l.b16 %v241
  %v996 = vunpack.c.h.b16 %v241
  %v997 = vunpack.c.l.b16 %v242
  %v998 = vunpack.c.h.b16 %v242
  %v999 = vunpack.c.l.b16 %v243
  %v1000 = vunpack.c.h.b16 %v243
  %v1001 = vunpack.c.l.b16 %v244
  %v1002 = vunpack.c.h.b16 %v244
  %v1003 = vunpack.c.l.b16 %v245
  %v1004 = vunpack.c.h.b16 %v245
  %v1005 = vunpack.c.l.b16 %v246
  %v1006 = vunpack.c.h.b16 %v246
  %v1007 = vunpack.c.l.b16 %v247
  %v1008 = vunpack.c.h.b16 %v247
  %v1009 = vunpack.c.l.b16 %v248
  %v1010 = vunpack.c.h.b16 %v248
  %v1011 = vunpack.c.l.b16 %v249
  %v1012 = vunpack.c.h.b16 %v249
  %v1013 = vunpack.c.l.b16 %v250
  %v1014 = vunpack.c.h.b16 %v250
  %v1015 = vunpack.c.l.b16 %v251
  %v1016 = vunpack.c.h.b16 %v251
  %v1017 = vunpack.c.l.b16 %v252
  %v1018 = vunpack.c.h.b16 %v252
  %v1019 = vunpack.c.l.b16 %v253
  %v1020 = vunpack.c.h.b16 %v253
  %v1021 = vunpack.c.l.b16 %v254
  %v1022 = vunpack.c.h.b16 %v254
  %v1023 = vunpack.c.l.b16 %v255
  %v1024 = vunpack.c.h.b16 %v255
  %v1025 = vunpack.c.l.b16 %v256
  %v1026 = vunpack.c.h.b16 %v256
  %v1027 = vunpack.c.l.b16 %v257
  %v1028 = vunpack.c.h.b16 %v257
  %v1029 = vunpack.c.l.b16 %v258
  %v1030 = vunpack.c.h.b16 %v258
  %v1031 = vunpack.c.l.b16 %v259
  %v1032 = vunpack.c.h.b16 %v259
  %v1033 = vunpack.c.l.b16 %v260
  %v1034 = vunpack.c.h.b16 %v260
  %v1035 = vunpack.c.l.b16 %v261
  %v1036 = vunpack.c.h.b16 %v261
  %v1037 = vunpack.c.l.b16 %v262
  %v1038 = vunpack.c.h.b16 %v262
  %v1039 = vunpack.c.l.b16 %v263
  %v1040 = vunpack.c.h.b16 %v263
  %v1041 = vunpack.c.l.b16 %v264
  %v1042 = vunpack.c.h.b16 %v264
  %v1043 = vunpack.c.l.b16 %v265
  %v1044 = vunpack.c.h.b16 %v265
  %v1045 = vunpack.c.l.b16 %v266
  %v1046 = vunpack.c.h.b16 %v266
  %v1047 = vunpack.c.l.b16 %v267
  %v1048 = vunpack.c.h.b16 %v267
  %v1049 = vunpack.c.l.b16 %v268
  %v1050 = vunpack.c.h.b16 %v268
  %v1051 = vunpack.c.l.b16 %v269
  %v1052 = vunpack.c.h.b16 %v269
  %v1053 = vunpack.c.l.b16 %v270
  %v1054 = vunpack.c.h.b16 %v270
  %v1055 = vunpack.c.l.b16 %v271
  %v1056 = vunpack.c.h.b16 %v271
  %v1057 = vunpack.c.l.b16 %v272
  %v1058 = vunpack.c.h.b16 %v272
  %v1059 = vunpack.c.l.b16 %v273
  %v1060 = vunpack.c.h.b16 %v273
  %v1061 = vunpack.c.l.b16 %v274
  %v1062 = vunpack.c.h.b16 %v274
  %v1063 = vunpack.c.l.b16 %v275
  %v1064 = vunpack.c.h.b16 %v275
  %v1065 = vunpack.c.l.b16 %v276
  %v1066 = vunpack.c.h.b16 %v276
  %v1067 = vunpack.c.l.b16 %v277
  %v1068 = vunpack.c.h.b16 %v277
  %v1069 = vunpack.c.l.b16 %v278
  %v1070 = vunpack.c.h.b16 %v278
  %v1071 = vunpack.c.l.b16 %v279
  %v1072 = vunpack.c.h.b16 %v279
  %v1073 = vunpack.c.l.b16 %v280
  %v1074 = vunpack.c.h.b16 %v280
  %v1075 = vunpack.c.l.b16 %v281
  %v1076 = vunpack.c.h.b16 %v281
  %v1077 = vunpack.c.l.b16 %v282
  %v1078 = vunpack.c.h.b16 %v282
  %v1079 = vpack.c.b16 %v571, %v567
  %v1080 = vpack.c.b16 %v572, %v568
  %v1081 = vpack.c.b16 %v573, %v569
  %v1082 = vpack.c.b16 %v574, %v570
  %v1083 = vpack.c.b16 %v579, %v575
  %v1084 = vpack.c.b16 %v580, %v576
  %v1085 = vpack.c.b16 %v581, %v577
  %v1086 = vpack.c.b16 %v582, %v578
  %v1087 = vpack.c.b16 %v587, %v583
  %v1088 = vpack.c.b16 %v588, %v584
  %v1089 = vpack.c.b16 %v589, %v585
  %v1090 = vpack.c.b16 %v590, %v586
  %v1091 = vpack.c.b16 %v595, %v591
  %v1092 = vpack.c.b16 %v596, %v592
  %v1093 = vpack.c.b16 %v597, %v593
  %v1094 = vpack.c.b16 %v598, %v594
  %v1095 = vpack.c.b16 %v603, %v599
  %v1096 = vpack.c.b16 %v604, %v600
  %v1097 = vpack.c.b16 %v605, %v601
  %v1098 = vpack.c.b16 %v606, %v602
  %v1099 = vpack.c.b16 %v611, %v607
  %v1100 = vpack.c.b16 %v612, %v608
  %v1101 = vpack.c.b16 %v613, %v609
  %v1102 = vpack.c.b16 %v614, %v610
  %v1103 = vpack.c.b16 %v619, %v615
  %v1104 = vpack.c.b16 %v620, %v616
  %v1105 = vpack.c.b16 %v621, %v617
  %v1106 = vpack.c.b16 %v622, %v618
  %v1107 = vpack.c.b16 %v627, %v623
  %v1108 = vpack.c.b16 %v628, %v624
  %v1109 = vpack.c.b16 %v629, %v625
  %v1110 = vpack.c.b16 %v630, %v626
  %v1111 = vpack.c.b16 %v635, %v631
  %v1112 = vpack.c.b16 %v636, %v632
  %v1113 = vpack.c.b16 %v637, %v633
  %v1114 = vpack.c.b16 %v638, %v634
  %v1115 = vpack.c.b16 %v643, %v639
  %v1116 = vpack.c.b16 %v644, %v640
  %v1117 = vpack.c.b16 %v645, %v641
  %v1118 = vpack.c.b16 %v646, %v642
  %v1119 = vpack.c.b16 %v651, %v647
  %v1120 = vpack.c.b16 %v652, %v648
  %v1121 = vpack.c.b16 %v653, %v649
  %v1122 = vpack.c.b16 %v654, %v650
  %v1123 = vpack.c.b16 %v659, %v655
  %v1124 = vpack.c.b16 %v660, %v656
  %v1125 = vpack.c.b16 %v661, %v657
  %v1126 = vpack.c.b16 %v662, %v658
  %v1127 = vpack.c.b16 %v667, %v663
  %v1128 = vpack.c.b16 %v668, %v664
  %v1129 = vpack.c.b16 %v669, %v665
  %v1130 = vpack.c.b16 %v670, %v666
  %v1131 = vpack.c.b16 %v675, %v671
  %v1132 = vpack.c.b16 %v676, %v672
  %v1133 = vpack.c.b16 %v677, %v673
  %v1134 = vpack.c.b16 %v678, %v674
  %v1135 = vpack.c.b16 %v683, %v679
  %v1136 = vpack.c.b16 %v684, %v680
  %v1137 = vpack.c.b16 %v685, %v681
  %v1138 = vpack.c.b16 %v686, %v682
  %v1139 = vpack.c.b16 %v691, %v687
  %v1140 = vpack.c.b16 %v692, %v688
  %v1141 = vpack.c.b16 %v693, %v689
  %v1142 = vpack.c.b16 %v694, %v690
  %v1143 = vpack.c.b16 %v699, %v695
  %v1144 = vpack.c.b16 %v700, %v696
  %v1145 = vpack.c.b16 %v701, %v697
  %v1146 = vpack.c.b16 %v702, %v698
  %v1147 = vpack.c.b16 %v707, %v703
  %v1148 = vpack.c.b16 %v708, %v704
  %v1149 = vpack.c.b16 %v709, %v705
  %v1150 = vpack.c.b16 %v710, %v706
  %v1151 = vpack.c.b16 %v715, %v711
  %v1152 = vpack.c.b16 %v716, %v712
  %v1153 = vpack.c.b16 %v717, %v713
  %v1154 = vpack.c.b16 %v718, %v714
  %v1155 = vpack.c.b16 %v723, %v719
  %v1156 = vpack.c.b16 %v724, %v720
  %v1157 = vpack.c.b16 %v725, %v721
  %v1158 = vpack.c.b16 %v726, %v722
  %v1159 = vpack.c.b16 %v731, %v727
  %v1160 = vpack.c.b16 %v732, %v728
  %v1161 = vpack.c.b16 %v733, %v729
  %v1162 = vpack.c.b16 %v734, %v730
  %v1163 = vpack.c.b16 %v739, %v735
  %v1164 = vpack.c.b16 %v740, %v736
  %v1165 = vpack.c.b16 %v741, %v737
  %v1166 = vpack.c.b16 %v742, %v738
  %v1167 = vpack.c.b16 %v747, %v743
  %v1168 = vpack.c.b16 %v748, %v744
  %v1169 = vpack.c.b16 %v749, %v745
  %v1170 = vpack.c.b16 %v750, %v746
  %v1171 = vpack.c.b16 %v755, %v751
  %v1172 = vpack.c.b16 %v756, %v752
  %v1173 = vpack.c.b16 %v757, %v753
  %v1174 = vpack.c.b16 %v758, %v754
  %v1175 = vpack.c.b16 %v763, %v759
  %v1176 = vpack.c.b16 %v764, %v760
  %v1177 = vpack.c.b16 %v765, %v761
  %v1178 = vpack.c.b16 %v766, %v762
  %v1179 = vpack.c.b16 %v771, %v767
  %v1180 = vpack.c.b16 %v772, %v768
  %v1181 = vpack.c.b16 %v773, %v769
  %v1182 = vpack.c.b16 %v774, %v770
  %v1183 = vpack.c.b16 %v779, %v775
  %v1184 = vpack.c.b16 %v780, %v776
  %v1185 = vpack.c.b16 %v781, %v777
  %v1186 = vpack.c.b16 %v782, %v778
  %v1187 = vpack.c.b16 %v787, %v783
  %v1188 = vpack.c.b16 %v788, %v784
  %v1189 = vpack.c.b16 %v789, %v785
  %v1190 = vpack.c.b16 %v790, %v786
  %v1191 = vpack.c.b16 %v795, %v791
  %v1192 = vpack.c.b16 %v796, %v792
  %v1193 = vpack.c.b16 %v797, %v793
  %v1194 = vpack.c.b16 %v798, %v794
  %v1195 = vpack.c.b16 %v803, %v799
  %v1196 = vpack.c.b16 %v804, %v800
  %v1197 = vpack.c.b16 %v805, %v801
  %v1198 = vpack.c.b16 %v806, %v802
  %v1199 = vpack.c.b16 %v811, %v807
  %v1200 = vpack.c.b16 %v812, %v808
  %v1201 = vpack.c.b16 %v813, %v809
  %v1202 = vpack.c.b16 %v814, %v810
  %v1203 = vpack.c.b16 %v819, %v815
  %v1204 = vpack.c.b16 %v820, %v816
  %v1205 = vpack.c.b16 %v821, %v817
  %v1206 = vpack.c.b16 %v822, %v818
  %v1207 = vpack.c.b16 %v827, %v823
  %v1208 = vpack.c.b16 %v828, %v824
  %v1209 = vpack.c.b16 %v829, %v825
  %v1210 = vpack.c.b16 %v830, %v826
  %v1211 = vpack.c.b16 %v835, %v831
  %v1212 = vpack.c.b16 %v836, %v832
  %v1213 = vpack.c.b16 %v837, %v833
  %v1214 = vpack.c.b16 %v838, %v834
  %v1215 = vpack.c.b16 %v843, %v839
  %v1216 = vpack.c.b16 %v844, %v840
  %v1217 = vpack.c.b16 %v845, %v841
  %v1218 = vpack.c.b16 %v846, %v842
  %v1219 = vpack.c.b16 %v851, %v847
  %v1220 = vpack.c.b16 %v852, %v848
  %v1221 = vpack.c.b16 %v853, %v849
  %v1222 = vpack.c.b16 %v854, %v850
  %v1223 = vpack.c.b16 %v859, %v855
  %v1224 = vpack.c.b16 %v860, %v856
  %v1225 = vpack.c.b16 %v861, %v857
  %v1226 = vpack.c.b16 %v862, %v858
  %v1227 = vpack.c.b16 %v867, %v863
  %v1228 = vpack.c.b16 %v868, %v864
  %v1229 = vpack.c.b16 %v869, %v865
  %v1230 = vpack.c.b16 %v870, %v866
  %v1231 = vpack.c.b16 %v875, %v871
  %v1232 = vpack.c.b16 %v876, %v872
  %v1233 = vpack.c.b16 %v877, %v873
  %v1234 = vpack.c.b16 %v878, %v874
  %v1235 = vpack.c.b16 %v883, %v879
  %v1236 = vpack.c.b16 %v884, %v880
  %v1237 = vpack.c.b16 %v885, %v881
  %v1238 = vpack.c.b16 %v886, %v882
  %v1239 = vpack.c.b16 %v891, %v887
  %v1240 = vpack.c.b16 %v892, %v888
  %v1241 = vpack.c.b16 %v893, %v889
  %v1242 = vpack.c.b16 %v894, %v890
  %v1243 = vpack.c.b16 %v899, %v895
  %v1244 = vpack.c.b16 %v900, %v896
  %v1245 = vpack.c.b16 %v901, %v897
  %v1246 = vpack.c.b16 %v902, %v898
  %v1247 = vpack.c.b16 %v907, %v903
  %v1248 = vpack.c.b16 %v908, %v904
  %v1249 = vpack.c.b16 %v909, %v905
  %v1250 = vpack.c.b16 %v910, %v906
  %v1251 = vpack.c.b16 %v915, %v911
  %v1252 = vpack.c.b16 %v916, %v912
  %v1253 = vpack.c.b16 %v917, %v913
  %v1254 = vpack.c.b16 %v918, %v914
  %v1255 = vpack.c.b16 %v923, %v919
  %v1256 = vpack.c.b16 %v924, %v920
  %v1257 = vpack.c.b16 %v925, %v921
  %v1258 = vpack.c.b16 %v926, %v922
  %v1259 = vpack.c.b16 %v931, %v927
  %v1260 = vpack.c.b16 %v932, %v928
  %v1261 = vpack.c.b16 %v933, %v929
  %v1262 = vpack.c.b16 %v934, %v930
  %v1263 = vpack.c.b16 %v939, %v935
  %v1264 = vpack.c.b16 %v940, %v936
  %v1265 = vpack.c.b16 %v941, %v937
  %v1266 = vpack.c.b16 %v942, %v938
  %v1267 = vpack.c.b16 %v947, %v943
  %v1268 = vpack.c.b16 %v948, %v944
  %v1269 = vpack.c.b16 %v949, %v945
  %v1270 = vpack.c.b16 %v950, %v946
  %v1271 = vpack.c.b16 %v955, %v951
  %v1272 = vpack.c.b16 %v956, %v952
  %v1273 = vpack.c.b16 %v957, %v953
  %v1274 = vpack.c.b16 %v958, %v954
  %v1275 = vpack.c.b16 %v963, %v959
  %v1276 = vpack.c.b16 %v964, %v960
  %v1277 = vpack.c.b16 %v965, %v961
  %v1278 = vpack.c.b16 %v966, %v962
  %v1279 = vpack.c.b16 %v971, %v967
  %v1280 = vpack.c.b16 %v972, %v968
  %v1281 = vpack.c.b16 %v973, %v969
  %v1282 = vpack.c.b16 %v974, %v970
  %v1283 = vpack.c.b16 %v979, %v975
  %v1284 = vpack.c.b16 %v980, %v976
  %v1285 = vpack.c.b16 %v981, %v977
  %v1286 = vpack.c.b16 %v982, %v978
  %v1287 = vpack.c.b16 %v987, %v983
  %v1288 = vpack.c.b16 %v988, %v984
  %v1289 = vpack.c.b16 %v989, %v985
  %v1290 = vpack.c.b16 %v990, %v986
  %v1291 = vpack.c.b16 %v995, %v991
  %v1292 = vpack.c.b16 %v996, %v992
  %v1293 = vpack.c.b16 %v997, %v993
  %v1294 = vpack.c.b16 %v998, %v994
  %v1295 = vpack.c.b16 %v1003, %v999
  %v1296 = vpack.c.b16 %v1004, %v1000
  %v1297 = vpack.c.b16 %v1005, %v1001
  %v1298 = vpack.c.b16 %v1006, %v1002
  %v1299 = vpack.c.b16 %v1011, %v1007
  %v1300 = vpack.c.b16 %v1012, %v1008
  %v1301 = vpack.c.b16 %v1013, %v1009
  %v1302 = vpack.c.b16 %v1014, %v1010
  %v1303 = vpack.c.b16 %v1019, %v1015
  %v1304 = vpack.c.b16 %v1020, %v1016
  %v1305 = vpack.c.b16 %v1021, %v1017
  %v1306 = vpack.c.b16 %v1022, %v1018
  %v1307 = vpack.c.b16 %v1027, %v1023
  %v1308 = vpack.c.b16 %v1028, %v1024
  %v1309 = vpack.c.b16 %v1029, %v1025
  %v1310 = vpack.c.b16 %v1030, %v1026
  %v1311 = vpack.c.b16 %v1035, %v1031
  %v1312 = vpack.c.b16 %v1036, %v1032
  %v1313 = vpack.c.b16 %v1037, %v1033
  %v1314 = vpack.c.b16 %v1038, %v1034
  %v1315 = vpack.c.b16 %v1043, %v1039
  %v1316 = vpack.c.b16 %v1044, %v1040
  %v1317 = vpack.c.b16 %v1045, %v1041
  %v1318 = vpack.c.b16 %v1046, %v1042
  %v1319 = vpack.c.b16 %v1051, %v1047
  %v1320 = vpack.c.b16 %v1052, %v1048
  %v1321 = vpack.c.b16 %v1053, %v1049
  %v1322 = vpack.c.b16 %v1054, %v1050
  %v1323 = vpack.c.b16 %v1059, %v1055
  %v1324 = vpack.c.b16 %v1060, %v1056
  %v1325 = vpack.c.b16 %v1061, %v1057
  %v1326 = vpack.c.b16 %v1062, %v1058
  %v1327 = vpack.c.b16 %v1067, %v1063
  %v1328 = vpack.c.b16 %v1068, %v1064
  %v1329 = vpack.c.b16 %v1069, %v1065
  %v1330 = vpack.c.b16 %v1070, %v1066
  %v1331 = vpack.c.b16 %v1075, %v1071
  %v1332 = vpack.c.b16 %v1076, %v1072
  %v1333 = vpack.c.b16 %v1077, %v1073
  %v1334 = vpack.c.b16 %v1078, %v1074
  %1591 = vmatpush.bf16.msra.mxu0 %v1107
  %1592 = vmatpush.bf16.msra.mxu0 %v1103
  %1593 = vmatpush.bf16.msra.mxu0 %v1099
  %1594 = vmatpush.bf16.msra.mxu0 %v1095
  %1595 = vmatpush.bf16.msra.mxu0 %v1091
  %1596 = vmatpush.bf16.msra.mxu0 %v1087
  %1597 = vmatpush.bf16.msra.mxu0 %v1083
  %1598 = vmatpush.bf16.msra.mxu0 %v1079
  %1599 = vmatmul.bf16.gmra.mxu0 %v295
  %v1600 = vpop.f32.mrf.mxu0
  %v1601 = vadd.f32 %v285, %v1600
  %v1602 = vpop.f32.mrf.mxu0
  %1603 = vdwg.mxu0
  %1604 = vmatpush.bf16.msra.mxu0 %v1139
  %1605 = vmatpush.bf16.msra.mxu0 %v1135
  %1606 = vmatpush.bf16.msra.mxu0 %v1131
  %1607 = vmatpush.bf16.msra.mxu0 %v1127
  %1608 = vmatpush.bf16.msra.mxu0 %v1123
  %1609 = vmatpush.bf16.msra.mxu0 %v1119
  %1610 = vmatpush.bf16.msra.mxu0 %v1115
  %1611 = vmatpush.bf16.msra.mxu0 %v1111
  %1612 = vmatmul.bf16.gmra.mxu0 %v296
  %v1613 = vpop.f32.mrf.mxu0
  %v1614 = vadd.f32 %v1601, %v1613
  %v1615 = vpop.f32.mrf.mxu0
  %1616 = vdwg.mxu0
  %1617 = vmatpush.bf16.msra.mxu0 %v1171
  %1618 = vmatpush.bf16.msra.mxu0 %v1167
  %1619 = vmatpush.bf16.msra.mxu0 %v1163
  %1620 = vmatpush.bf16.msra.mxu0 %v1159
  %1621 = vmatpush.bf16.msra.mxu0 %v1155
  %1622 = vmatpush.bf16.msra.mxu0 %v1151
  %1623 = vmatpush.bf16.msra.mxu0 %v1147
  %1624 = vmatpush.bf16.msra.mxu0 %v1143
  %1625 = vmatmul.bf16.gmra.mxu0 %v297
  %v1626 = vpop.f32.mrf.mxu0
  %v1627 = vadd.f32 %v1614, %v1626
  %v1628 = vpop.f32.mrf.mxu0
  %1629 = vdwg.mxu0
  %1630 = vmatpush.bf16.msra.mxu0 %v1203
  %1631 = vmatpush.bf16.msra.mxu0 %v1199
  %1632 = vmatpush.bf16.msra.mxu0 %v1195
  %1633 = vmatpush.bf16.msra.mxu0 %v1191
  %1634 = vmatpush.bf16.msra.mxu0 %v1187
  %1635 = vmatpush.bf16.msra.mxu0 %v1183
  %1636 = vmatpush.bf16.msra.mxu0 %v1179
  %1637 = vmatpush.bf16.msra.mxu0 %v1175
  %1638 = vmatmul.bf16.gmra.mxu0 %v298
  %v1639 = vpop.f32.mrf.mxu0
  %v1640 = vadd.f32 %v1627, %v1639
  %v1641 = vpop.f32.mrf.mxu0
  %1642 = vdwg.mxu0
  %1643 = vmatpush.bf16.msra.mxu0 %v1235
  %1644 = vmatpush.bf16.msra.mxu0 %v1231
  %1645 = vmatpush.bf16.msra.mxu0 %v1227
  %1646 = vmatpush.bf16.msra.mxu0 %v1223
  %1647 = vmatpush.bf16.msra.mxu0 %v1219
  %1648 = vmatpush.bf16.msra.mxu0 %v1215
  %1649 = vmatpush.bf16.msra.mxu0 %v1211
  %1650 = vmatpush.bf16.msra.mxu0 %v1207
  %1651 = vmatmul.bf16.gmra.mxu0 %v299
  %v1652 = vpop.f32.mrf.mxu0
  %v1653 = vadd.f32 %v1640, %v1652
  %v1654 = vpop.f32.mrf.mxu0
  %1655 = vdwg.mxu0
  %1656 = vmatpush.bf16.msra.mxu0 %v1267
  %1657 = vmatpush.bf16.msra.mxu0 %v1263
  %1658 = vmatpush.bf16.msra.mxu0 %v1259
  %1659 = vmatpush.bf16.msra.mxu0 %v1255
  %1660 = vmatpush.bf16.msra.mxu0 %v1251
  %1661 = vmatpush.bf16.msra.mxu0 %v1247
  %1662 = vmatpush.bf16.msra.mxu0 %v1243
  %1663 = vmatpush.bf16.msra.mxu0 %v1239
  %1664 = vmatmul.bf16.gmra.mxu0 %v300
  %v1665 = vpop.f32.mrf.mxu0
  %v1666 = vadd.f32 %v1653, %v1665
  %v1667 = vpop.f32.mrf.mxu0
  %1668 = vdwg.mxu0
  %1669 = vmatpush.bf16.msra.mxu0 %v1299
  %1670 = vmatpush.bf16.msra.mxu0 %v1295
  %1671 = vmatpush.bf16.msra.mxu0 %v1291
  %1672 = vmatpush.bf16.msra.mxu0 %v1287
  %1673 = vmatpush.bf16.msra.mxu0 %v1283
  %1674 = vmatpush.bf16.msra.mxu0 %v1279
  %1675 = vmatpush.bf16.msra.mxu0 %v1275
  %1676 = vmatpush.bf16.msra.mxu0 %v1271
  %1677 = vmatmul.bf16.gmra.mxu0 %v301
  %v1678 = vpop.f32.mrf.mxu0
  %v1679 = vadd.f32 %v1666, %v1678
  %v1680 = vpop.f32.mrf.mxu0
  %1681 = vdwg.mxu0
  %1682 = vmatpush.bf16.msra.mxu0 %v1331
  %1683 = vmatpush.bf16.msra.mxu0 %v1327
  %1684 = vmatpush.bf16.msra.mxu0 %v1323
  %1685 = vmatpush.bf16.msra.mxu0 %v1319
  %1686 = vmatpush.bf16.msra.mxu0 %v1315
  %1687 = vmatpush.bf16.msra.mxu0 %v1311
  %1688 = vmatpush.bf16.msra.mxu0 %v1307
  %1689 = vmatpush.bf16.msra.mxu0 %v1303
  %1690 = vmatmul.bf16.gmra.mxu0 %v302
  %v1691 = vpop.f32.mrf.mxu0
  %v1692 = vadd.f32 %v1679, %v1691
  %v1693 = vpop.f32.mrf.mxu0
  %1694 = vdwg.mxu0
  %1695 = vmatpush.bf16.msra.mxu0 %v1108
  %1696 = vmatpush.bf16.msra.mxu0 %v1104
  %1697 = vmatpush.bf16.msra.mxu0 %v1100
  %1698 = vmatpush.bf16.msra.mxu0 %v1096
  %1699 = vmatpush.bf16.msra.mxu0 %v1092
  %1700 = vmatpush.bf16.msra.mxu0 %v1088
  %1701 = vmatpush.bf16.msra.mxu0 %v1084
  %1702 = vmatpush.bf16.msra.mxu0 %v1080
  %1703 = vmatmul.bf16.gmra.mxu0 %v295
  %v1704 = vpop.f32.mrf.mxu0
  %v1705 = vadd.f32 %v286, %v1704
  %v1706 = vpop.f32.mrf.mxu0
  %1707 = vdwg.mxu0
  %1708 = vmatpush.bf16.msra.mxu0 %v1140
  %1709 = vmatpush.bf16.msra.mxu0 %v1136
  %1710 = vmatpush.bf16.msra.mxu0 %v1132
  %1711 = vmatpush.bf16.msra.mxu0 %v1128
  %1712 = vmatpush.bf16.msra.mxu0 %v1124
  %1713 = vmatpush.bf16.msra.mxu0 %v1120
  %1714 = vmatpush.bf16.msra.mxu0 %v1116
  %1715 = vmatpush.bf16.msra.mxu0 %v1112
  %1716 = vmatmul.bf16.gmra.mxu0 %v296
  %v1717 = vpop.f32.mrf.mxu0
  %v1718 = vadd.f32 %v1705, %v1717
  %v1719 = vpop.f32.mrf.mxu0
  %1720 = vdwg.mxu0
  %1721 = vmatpush.bf16.msra.mxu0 %v1172
  %1722 = vmatpush.bf16.msra.mxu0 %v1168
  %1723 = vmatpush.bf16.msra.mxu0 %v1164
  %1724 = vmatpush.bf16.msra.mxu0 %v1160
  %1725 = vmatpush.bf16.msra.mxu0 %v1156
  %1726 = vmatpush.bf16.msra.mxu0 %v1152
  %1727 = vmatpush.bf16.msra.mxu0 %v1148
  %1728 = vmatpush.bf16.msra.mxu0 %v1144
  %1729 = vmatmul.bf16.gmra.mxu0 %v297
  %v1730 = vpop.f32.mrf.mxu0
  %v1731 = vadd.f32 %v1718, %v1730
  %v1732 = vpop.f32.mrf.mxu0
  %1733 = vdwg.mxu0
  %1734 = vmatpush.bf16.msra.mxu0 %v1204
  %1735 = vmatpush.bf16.msra.mxu0 %v1200
  %1736 = vmatpush.bf16.msra.mxu0 %v1196
  %1737 = vmatpush.bf16.msra.mxu0 %v1192
  %1738 = vmatpush.bf16.msra.mxu0 %v1188
  %1739 = vmatpush.bf16.msra.mxu0 %v1184
  %1740 = vmatpush.bf16.msra.mxu0 %v1180
  %1741 = vmatpush.bf16.msra.mxu0 %v1176
  %1742 = vmatmul.bf16.gmra.mxu0 %v298
  %v1743 = vpop.f32.mrf.mxu0
  %v1744 = vadd.f32 %v1731, %v1743
  %v1745 = vpop.f32.mrf.mxu0
  %1746 = vdwg.mxu0
  %1747 = vmatpush.bf16.msra.mxu0 %v1236
  %1748 = vmatpush.bf16.msra.mxu0 %v1232
  %1749 = vmatpush.bf16.msra.mxu0 %v1228
  %1750 = vmatpush.bf16.msra.mxu0 %v1224
  %1751 = vmatpush.bf16.msra.mxu0 %v1220
  %1752 = vmatpush.bf16.msra.mxu0 %v1216
  %1753 = vmatpush.bf16.msra.mxu0 %v1212
  %1754 = vmatpush.bf16.msra.mxu0 %v1208
  %1755 = vmatmul.bf16.gmra.mxu0 %v299
  %v1756 = vpop.f32.mrf.mxu0
  %v1757 = vadd.f32 %v1744, %v1756
  %v1758 = vpop.f32.mrf.mxu0
  %1759 = vdwg.mxu0
  %1760 = vmatpush.bf16.msra.mxu0 %v1268
  %1761 = vmatpush.bf16.msra.mxu0 %v1264
  %1762 = vmatpush.bf16.msra.mxu0 %v1260
  %1763 = vmatpush.bf16.msra.mxu0 %v1256
  %1764 = vmatpush.bf16.msra.mxu0 %v1252
  %1765 = vmatpush.bf16.msra.mxu0 %v1248
  %1766 = vmatpush.bf16.msra.mxu0 %v1244
  %1767 = vmatpush.bf16.msra.mxu0 %v1240
  %1768 = vmatmul.bf16.gmra.mxu0 %v300
  %v1769 = vpop.f32.mrf.mxu0
  %v1770 = vadd.f32 %v1757, %v1769
  %v1771 = vpop.f32.mrf.mxu0
  %1772 = vdwg.mxu0
  %1773 = vmatpush.bf16.msra.mxu0 %v1300
  %1774 = vmatpush.bf16.msra.mxu0 %v1296
  %1775 = vmatpush.bf16.msra.mxu0 %v1292
  %1776 = vmatpush.bf16.msra.mxu0 %v1288
  %1777 = vmatpush.bf16.msra.mxu0 %v1284
  %1778 = vmatpush.bf16.msra.mxu0 %v1280
  %1779 = vmatpush.bf16.msra.mxu0 %v1276
  %1780 = vmatpush.bf16.msra.mxu0 %v1272
  %1781 = vmatmul.bf16.gmra.mxu0 %v301
  %v1782 = vpop.f32.mrf.mxu0
  %v1783 = vadd.f32 %v1770, %v1782
  %v1784 = vpop.f32.mrf.mxu0
  %1785 = vdwg.mxu0
  %1786 = vmatpush.bf16.msra.mxu0 %v1332
  %1787 = vmatpush.bf16.msra.mxu0 %v1328
  %1788 = vmatpush.bf16.msra.mxu0 %v1324
  %1789 = vmatpush.bf16.msra.mxu0 %v1320
  %1790 = vmatpush.bf16.msra.mxu0 %v1316
  %1791 = vmatpush.bf16.msra.mxu0 %v1312
  %1792 = vmatpush.bf16.msra.mxu0 %v1308
  %1793 = vmatpush.bf16.msra.mxu0 %v1304
  %1794 = vmatmul.bf16.gmra.mxu0 %v302
  %v1795 = vpop.f32.mrf.mxu0
  %v1796 = vadd.f32 %v1783, %v1795
  %v1797 = vpop.f32.mrf.mxu0
  %1798 = vdwg.mxu0
  %1799 = vmatpush.bf16.msra.mxu0 %v1109
  %1800 = vmatpush.bf16.msra.mxu0 %v1105
  %1801 = vmatpush.bf16.msra.mxu0 %v1101
  %1802 = vmatpush.bf16.msra.mxu0 %v1097
  %1803 = vmatpush.bf16.msra.mxu0 %v1093
  %1804 = vmatpush.bf16.msra.mxu0 %v1089
  %1805 = vmatpush.bf16.msra.mxu0 %v1085
  %1806 = vmatpush.bf16.msra.mxu0 %v1081
  %1807 = vmatmul.bf16.gmra.mxu0 %v295
  %v1808 = vpop.f32.mrf.mxu0
  %v1809 = vadd.f32 %v287, %v1808
  %v1810 = vpop.f32.mrf.mxu0
  %1811 = vdwg.mxu0
  %1812 = vmatpush.bf16.msra.mxu0 %v1141
  %1813 = vmatpush.bf16.msra.mxu0 %v1137
  %1814 = vmatpush.bf16.msra.mxu0 %v1133
  %1815 = vmatpush.bf16.msra.mxu0 %v1129
  %1816 = vmatpush.bf16.msra.mxu0 %v1125
  %1817 = vmatpush.bf16.msra.mxu0 %v1121
  %1818 = vmatpush.bf16.msra.mxu0 %v1117
  %1819 = vmatpush.bf16.msra.mxu0 %v1113
  %1820 = vmatmul.bf16.gmra.mxu0 %v296
  %v1821 = vpop.f32.mrf.mxu0
  %v1822 = vadd.f32 %v1809, %v1821
  %v1823 = vpop.f32.mrf.mxu0
  %1824 = vdwg.mxu0
  %1825 = vmatpush.bf16.msra.mxu0 %v1173
  %1826 = vmatpush.bf16.msra.mxu0 %v1169
  %1827 = vmatpush.bf16.msra.mxu0 %v1165
  %1828 = vmatpush.bf16.msra.mxu0 %v1161
  %1829 = vmatpush.bf16.msra.mxu0 %v1157
  %1830 = vmatpush.bf16.msra.mxu0 %v1153
  %1831 = vmatpush.bf16.msra.mxu0 %v1149
  %1832 = vmatpush.bf16.msra.mxu0 %v1145
  %1833 = vmatmul.bf16.gmra.mxu0 %v297
  %v1834 = vpop.f32.mrf.mxu0
  %v1835 = vadd.f32 %v1822, %v1834
  %v1836 = vpop.f32.mrf.mxu0
  %1837 = vdwg.mxu0
  %1838 = vmatpush.bf16.msra.mxu0 %v1205
  %1839 = vmatpush.bf16.msra.mxu0 %v1201
  %1840 = vmatpush.bf16.msra.mxu0 %v1197
  %1841 = vmatpush.bf16.msra.mxu0 %v1193
  %1842 = vmatpush.bf16.msra.mxu0 %v1189
  %1843 = vmatpush.bf16.msra.mxu0 %v1185
  %1844 = vmatpush.bf16.msra.mxu0 %v1181
  %1845 = vmatpush.bf16.msra.mxu0 %v1177
  %1846 = vmatmul.bf16.gmra.mxu0 %v298
  %v1847 = vpop.f32.mrf.mxu0
  %v1848 = vadd.f32 %v1835, %v1847
  %v1849 = vpop.f32.mrf.mxu0
  %1850 = vdwg.mxu0
  %1851 = vmatpush.bf16.msra.mxu0 %v1237
  %1852 = vmatpush.bf16.msra.mxu0 %v1233
  %1853 = vmatpush.bf16.msra.mxu0 %v1229
  %1854 = vmatpush.bf16.msra.mxu0 %v1225
  %1855 = vmatpush.bf16.msra.mxu0 %v1221
  %1856 = vmatpush.bf16.msra.mxu0 %v1217
  %1857 = vmatpush.bf16.msra.mxu0 %v1213
  %1858 = vmatpush.bf16.msra.mxu0 %v1209
  %1859 = vmatmul.bf16.gmra.mxu0 %v299
  %v1860 = vpop.f32.mrf.mxu0
  %v1861 = vadd.f32 %v1848, %v1860
  %v1862 = vpop.f32.mrf.mxu0
  %1863 = vdwg.mxu0
  %1864 = vmatpush.bf16.msra.mxu0 %v1269
  %1865 = vmatpush.bf16.msra.mxu0 %v1265
  %1866 = vmatpush.bf16.msra.mxu0 %v1261
  %1867 = vmatpush.bf16.msra.mxu0 %v1257
  %1868 = vmatpush.bf16.msra.mxu0 %v1253
  %1869 = vmatpush.bf16.msra.mxu0 %v1249
  %1870 = vmatpush.bf16.msra.mxu0 %v1245
  %1871 = vmatpush.bf16.msra.mxu0 %v1241
  %1872 = vmatmul.bf16.gmra.mxu0 %v300
  %v1873 = vpop.f32.mrf.mxu0
  %v1874 = vadd.f32 %v1861, %v1873
  %v1875 = vpop.f32.mrf.mxu0
  %1876 = vdwg.mxu0
  %1877 = vmatpush.bf16.msra.mxu0 %v1301
  %1878 = vmatpush.bf16.msra.mxu0 %v1297
  %1879 = vmatpush.bf16.msra.mxu0 %v1293
  %1880 = vmatpush.bf16.msra.mxu0 %v1289
  %1881 = vmatpush.bf16.msra.mxu0 %v1285
  %1882 = vmatpush.bf16.msra.mxu0 %v1281
  %1883 = vmatpush.bf16.msra.mxu0 %v1277
  %1884 = vmatpush.bf16.msra.mxu0 %v1273
  %1885 = vmatmul.bf16.gmra.mxu0 %v301
  %v1886 = vpop.f32.mrf.mxu0
  %v1887 = vadd.f32 %v1874, %v1886
  %v1888 = vpop.f32.mrf.mxu0
  %1889 = vdwg.mxu0
  %1890 = vmatpush.bf16.msra.mxu0 %v1333
  %1891 = vmatpush.bf16.msra.mxu0 %v1329
  %1892 = vmatpush.bf16.msra.mxu0 %v1325
  %1893 = vmatpush.bf16.msra.mxu0 %v1321
  %1894 = vmatpush.bf16.msra.mxu0 %v1317
  %1895 = vmatpush.bf16.msra.mxu0 %v1313
  %1896 = vmatpush.bf16.msra.mxu0 %v1309
  %1897 = vmatpush.bf16.msra.mxu0 %v1305
  %1898 = vmatmul.bf16.gmra.mxu0 %v302
  %v1899 = vpop.f32.mrf.mxu0
  %v1900 = vadd.f32 %v1887, %v1899
  %v1901 = vpop.f32.mrf.mxu0
  %1902 = vdwg.mxu0
  %1903 = vmatpush.bf16.msra.mxu0 %v1110
  %1904 = vmatpush.bf16.msra.mxu0 %v1106
  %1905 = vmatpush.bf16.msra.mxu0 %v1102
  %1906 = vmatpush.bf16.msra.mxu0 %v1098
  %1907 = vmatpush.bf16.msra.mxu0 %v1094
  %1908 = vmatpush.bf16.msra.mxu0 %v1090
  %1909 = vmatpush.bf16.msra.mxu0 %v1086
  %1910 = vmatpush.bf16.msra.mxu0 %v1082
  %1911 = vmatmul.bf16.gmra.mxu0 %v295
  %v1912 = vpop.f32.mrf.mxu0
  %v1913 = vadd.f32 %v288, %v1912
  %v1914 = vpop.f32.mrf.mxu0
  %1915 = vdwg.mxu0
  %1916 = vmatpush.bf16.msra.mxu0 %v1142
  %1917 = vmatpush.bf16.msra.mxu0 %v1138
  %1918 = vmatpush.bf16.msra.mxu0 %v1134
  %1919 = vmatpush.bf16.msra.mxu0 %v1130
  %1920 = vmatpush.bf16.msra.mxu0 %v1126
  %1921 = vmatpush.bf16.msra.mxu0 %v1122
  %1922 = vmatpush.bf16.msra.mxu0 %v1118
  %1923 = vmatpush.bf16.msra.mxu0 %v1114
  %1924 = vmatmul.bf16.gmra.mxu0 %v296
  %v1925 = vpop.f32.mrf.mxu0
  %v1926 = vadd.f32 %v1913, %v1925
  %v1927 = vpop.f32.mrf.mxu0
  %1928 = vdwg.mxu0
  %1929 = vmatpush.bf16.msra.mxu0 %v1174
  %1930 = vmatpush.bf16.msra.mxu0 %v1170
  %1931 = vmatpush.bf16.msra.mxu0 %v1166
  %1932 = vmatpush.bf16.msra.mxu0 %v1162
  %1933 = vmatpush.bf16.msra.mxu0 %v1158
  %1934 = vmatpush.bf16.msra.mxu0 %v1154
  %1935 = vmatpush.bf16.msra.mxu0 %v1150
  %1936 = vmatpush.bf16.msra.mxu0 %v1146
  %1937 = vmatmul.bf16.gmra.mxu0 %v297
  %v1938 = vpop.f32.mrf.mxu0
  %v1939 = vadd.f32 %v1926, %v1938
  %v1940 = vpop.f32.mrf.mxu0
  %1941 = vdwg.mxu0
  %1942 = vmatpush.bf16.msra.mxu0 %v1206
  %1943 = vmatpush.bf16.msra.mxu0 %v1202
  %1944 = vmatpush.bf16.msra.mxu0 %v1198
  %1945 = vmatpush.bf16.msra.mxu0 %v1194
  %1946 = vmatpush.bf16.msra.mxu0 %v1190
  %1947 = vmatpush.bf16.msra.mxu0 %v1186
  %1948 = vmatpush.bf16.msra.mxu0 %v1182
  %1949 = vmatpush.bf16.msra.mxu0 %v1178
  %1950 = vmatmul.bf16.gmra.mxu0 %v298
  %v1951 = vpop.f32.mrf.mxu0
  %v1952 = vadd.f32 %v1939, %v1951
  %v1953 = vpop.f32.mrf.mxu0
  %1954 = vdwg.mxu0
  %1955 = vmatpush.bf16.msra.mxu0 %v1238
  %1956 = vmatpush.bf16.msra.mxu0 %v1234
  %1957 = vmatpush.bf16.msra.mxu0 %v1230
  %1958 = vmatpush.bf16.msra.mxu0 %v1226
  %1959 = vmatpush.bf16.msra.mxu0 %v1222
  %1960 = vmatpush.bf16.msra.mxu0 %v1218
  %1961 = vmatpush.bf16.msra.mxu0 %v1214
  %1962 = vmatpush.bf16.msra.mxu0 %v1210
  %1963 = vmatmul.bf16.gmra.mxu0 %v299
  %v1964 = vpop.f32.mrf.mxu0
  %v1965 = vadd.f32 %v1952, %v1964
  %v1966 = vpop.f32.mrf.mxu0
  %1967 = vdwg.mxu0
  %1968 = vmatpush.bf16.msra.mxu0 %v1270
  %1969 = vmatpush.bf16.msra.mxu0 %v1266
  %1970 = vmatpush.bf16.msra.mxu0 %v1262
  %1971 = vmatpush.bf16.msra.mxu0 %v1258
  %1972 = vmatpush.bf16.msra.mxu0 %v1254
  %1973 = vmatpush.bf16.msra.mxu0 %v1250
  %1974 = vmatpush.bf16.msra.mxu0 %v1246
  %1975 = vmatpush.bf16.msra.mxu0 %v1242
  %1976 = vmatmul.bf16.gmra.mxu0 %v300
  %v1977 = vpop.f32.mrf.mxu0
  %v1978 = vadd.f32 %v1965, %v1977
  %v1979 = vpop.f32.mrf.mxu0
  %1980 = vdwg.mxu0
  %1981 = vmatpush.bf16.msra.mxu0 %v1302
  %1982 = vmatpush.bf16.msra.mxu0 %v1298
  %1983 = vmatpush.bf16.msra.mxu0 %v1294
  %1984 = vmatpush.bf16.msra.mxu0 %v1290
  %1985 = vmatpush.bf16.msra.mxu0 %v1286
  %1986 = vmatpush.bf16.msra.mxu0 %v1282
  %1987 = vmatpush.bf16.msra.mxu0 %v1278
  %1988 = vmatpush.bf16.msra.mxu0 %v1274
  %1989 = vmatmul.bf16.gmra.mxu0 %v301
  %v1990 = vpop.f32.mrf.mxu0
  %v1991 = vadd.f32 %v1978, %v1990
  %v1992 = vpop.f32.mrf.mxu0
  %1993 = vdwg.mxu0
  %1994 = vmatpush.bf16.msra.mxu0 %v1334
  %1995 = vmatpush.bf16.msra.mxu0 %v1330
  %1996 = vmatpush.bf16.msra.mxu0 %v1326
  %1997 = vmatpush.bf16.msra.mxu0 %v1322
  %1998 = vmatpush.bf16.msra.mxu0 %v1318
  %1999 = vmatpush.bf16.msra.mxu0 %v1314
  %2000 = vmatpush.bf16.msra.mxu0 %v1310
  %2001 = vmatpush.bf16.msra.mxu0 %v1306
  %2002 = vmatmul.bf16.gmra.mxu0 %v302
  %v2003 = vpop.f32.mrf.mxu0
  %v2004 = vadd.f32 %v1991, %v2003
  %v2005 = vpop.f32.mrf.mxu0
  %2006 = vdwg.mxu0
  %v2007 = vmax.f32 %v1692, 0.0
  %v2008 = vmax.f32 %v1796, 0.0
  %v2009 = vmax.f32 %v1900, 0.0
  %v2010 = vmax.f32 %v2004, 0.0
  %v2011 = vpack.c.bf16 %v2007, %v2007
  %v2012 = vpack.c.bf16 %v2008, %v2008
  %v2013 = vpack.c.bf16 %v2009, %v2009
  %v2014 = vpack.c.bf16 %v2010, %v2010
  %v2015 = vld [vmem:[%s3] sm:$0xf]
  %v2016 = vld [vmem:[%s3 + $0x4] sm:$0xf]
  %v2017 = vld [vmem:[%s3 + $0x8] sm:$0xf]
  %v2018 = vld [vmem:[%s3 + $0xc] sm:$0xf]
  %v2019 = vld [vmem:[%s3 + $0x10] sm:$0xf]
  %v2020 = vld [vmem:[%s3 + $0x14] sm:$0xf]
  %v2021 = vld [vmem:[%s3 + $0x18] sm:$0xf]
  %v2022 = vld [vmem:[%s3 + $0x1c] sm:$0xf]
  %v2023 = vld [vmem:[%s3 + $0x20] sm:$0xf]
  %v2024 = vld [vmem:[%s3 + $0x24] sm:$0xf]
  %v2025 = vld [vmem:[%s3 + $0x28] sm:$0xf]
  %v2026 = vld [vmem:[%s3 + $0x2c] sm:$0xf]
  %v2027 = vld [vmem:[%s3 + $0x30] sm:$0xf]
  %v2028 = vld [vmem:[%s3 + $0x34] sm:$0xf]
  %v2029 = vld [vmem:[%s3 + $0x38] sm:$0xf]
  %v2030 = vld [vmem:[%s3 + $0x3c] sm:$0xf]
  %v2031 = vld [vmem:[%s3 + $0x40] sm:$0xf]
  %v2032 = vld [vmem:[%s3 + $0x44] sm:$0xf]
  %v2033 = vld [vmem:[%s3 + $0x48] sm:$0xf]
  %v2034 = vld [vmem:[%s3 + $0x4c] sm:$0xf]
  %v2035 = vld [vmem:[%s3 + $0x50] sm:$0xf]
  %v2036 = vld [vmem:[%s3 + $0x54] sm:$0xf]
  %v2037 = vld [vmem:[%s3 + $0x58] sm:$0xf]
  %v2038 = vld [vmem:[%s3 + $0x5c] sm:$0xf]
  %v2039 = vld [vmem:[%s3 + $0x60] sm:$0xf]
  %v2040 = vld [vmem:[%s3 + $0x64] sm:$0xf]
  %v2041 = vld [vmem:[%s3 + $0x68] sm:$0xf]
  %v2042 = vld [vmem:[%s3 + $0x6c] sm:$0xf]
  %v2043 = vld [vmem:[%s3 + $0x70] sm:$0xf]
  %v2044 = vld [vmem:[%s3 + $0x74] sm:$0xf]
  %v2045 = vld [vmem:[%s3 + $0x78] sm:$0xf]
  %v2046 = vld [vmem:[%s3 + $0x7c] sm:$0xf]
  %v2047 = vld [vmem:[%s3 + $0x80] sm:$0xf]
  %v2048 = vld [vmem:[%s3 + $0x84] sm:$0xf]
  %v2049 = vld [vmem:[%s3 + $0x88] sm:$0xf]
  %v2050 = vld [vmem:[%s3 + $0x8c] sm:$0xf]
  %v2051 = vld [vmem:[%s3 + $0x90] sm:$0xf]
  %v2052 = vld [vmem:[%s3 + $0x94] sm:$0xf]
  %v2053 = vld [vmem:[%s3 + $0x98] sm:$0xf]
  %v2054 = vld [vmem:[%s3 + $0x9c] sm:$0xf]
  %v2055 = vld [vmem:[%s3 + $0xa0] sm:$0xf]
  %v2056 = vld [vmem:[%s3 + $0xa4] sm:$0xf]
  %v2057 = vld [vmem:[%s3 + $0xa8] sm:$0xf]
  %v2058 = vld [vmem:[%s3 + $0xac] sm:$0xf]
  %v2059 = vld [vmem:[%s3 + $0xb0] sm:$0xf]
  %v2060 = vld [vmem:[%s3 + $0xb4] sm:$0xf]
  %v2061 = vld [vmem:[%s3 + $0xb8] sm:$0xf]
  %v2062 = vld [vmem:[%s3 + $0xbc] sm:$0xf]
  %v2063 = vld [vmem:[%s3 + $0xc0] sm:$0xf]
  %v2064 = vld [vmem:[%s3 + $0xc4] sm:$0xf]
  %v2065 = vld [vmem:[%s3 + $0xc8] sm:$0xf]
  %v2066 = vld [vmem:[%s3 + $0xcc] sm:$0xf]
  %v2067 = vld [vmem:[%s3 + $0xd0] sm:$0xf]
  %v2068 = vld [vmem:[%s3 + $0xd4] sm:$0xf]
  %v2069 = vld [vmem:[%s3 + $0xd8] sm:$0xf]
  %v2070 = vld [vmem:[%s3 + $0xdc] sm:$0xf]
  %v2071 = vld [vmem:[%s3 + $0xe0] sm:$0xf]
  %v2072 = vld [vmem:[%s3 + $0xe4] sm:$0xf]
  %v2073 = vld [vmem:[%s3 + $0xe8] sm:$0xf]
  %v2074 = vld [vmem:[%s3 + $0xec] sm:$0xf]
  %v2075 = vld [vmem:[%s3 + $0xf0] sm:$0xf]
  %v2076 = vld [vmem:[%s3 + $0xf4] sm:$0xf]
  %v2077 = vld [vmem:[%s3 + $0xf8] sm:$0xf]
  %v2078 = vld [vmem:[%s3 + $0xfc] sm:$0xf]
  %v2079 = vld [vmem:[%s4] sm:$0x1]
  %v2081 = vperm.slane %v2079, 0
  %v2147 = vunpack.c.l.b16 %v2015
  %v2148 = vunpack.c.l.b16 %v2016
  %v2149 = vunpack.c.l.b16 %v2017
  %v2150 = vunpack.c.l.b16 %v2018
  %v2151 = vunpack.c.l.b16 %v2019
  %v2152 = vunpack.c.l.b16 %v2020
  %v2153 = vunpack.c.l.b16 %v2021
  %v2154 = vunpack.c.l.b16 %v2022
  %v2155 = vunpack.c.l.b16 %v2023
  %v2156 = vunpack.c.l.b16 %v2024
  %v2157 = vunpack.c.l.b16 %v2025
  %v2158 = vunpack.c.l.b16 %v2026
  %v2159 = vunpack.c.l.b16 %v2027
  %v2160 = vunpack.c.l.b16 %v2028
  %v2161 = vunpack.c.l.b16 %v2029
  %v2162 = vunpack.c.l.b16 %v2030
  %v2163 = vunpack.c.l.b16 %v2031
  %v2164 = vunpack.c.l.b16 %v2032
  %v2165 = vunpack.c.l.b16 %v2033
  %v2166 = vunpack.c.l.b16 %v2034
  %v2167 = vunpack.c.l.b16 %v2035
  %v2168 = vunpack.c.l.b16 %v2036
  %v2169 = vunpack.c.l.b16 %v2037
  %v2170 = vunpack.c.l.b16 %v2038
  %v2171 = vunpack.c.l.b16 %v2039
  %v2172 = vunpack.c.l.b16 %v2040
  %v2173 = vunpack.c.l.b16 %v2041
  %v2174 = vunpack.c.l.b16 %v2042
  %v2175 = vunpack.c.l.b16 %v2043
  %v2176 = vunpack.c.l.b16 %v2044
  %v2177 = vunpack.c.l.b16 %v2045
  %v2178 = vunpack.c.l.b16 %v2046
  %v2179 = vunpack.c.l.b16 %v2047
  %v2180 = vunpack.c.l.b16 %v2048
  %v2181 = vunpack.c.l.b16 %v2049
  %v2182 = vunpack.c.l.b16 %v2050
  %v2183 = vunpack.c.l.b16 %v2051
  %v2184 = vunpack.c.l.b16 %v2052
  %v2185 = vunpack.c.l.b16 %v2053
  %v2186 = vunpack.c.l.b16 %v2054
  %v2187 = vunpack.c.l.b16 %v2055
  %v2188 = vunpack.c.l.b16 %v2056
  %v2189 = vunpack.c.l.b16 %v2057
  %v2190 = vunpack.c.l.b16 %v2058
  %v2191 = vunpack.c.l.b16 %v2059
  %v2192 = vunpack.c.l.b16 %v2060
  %v2193 = vunpack.c.l.b16 %v2061
  %v2194 = vunpack.c.l.b16 %v2062
  %v2195 = vunpack.c.l.b16 %v2063
  %v2196 = vunpack.c.l.b16 %v2064
  %v2197 = vunpack.c.l.b16 %v2065
  %v2198 = vunpack.c.l.b16 %v2066
  %v2199 = vunpack.c.l.b16 %v2067
  %v2200 = vunpack.c.l.b16 %v2068
  %v2201 = vunpack.c.l.b16 %v2069
  %v2202 = vunpack.c.l.b16 %v2070
  %v2203 = vunpack.c.l.b16 %v2071
  %v2204 = vunpack.c.l.b16 %v2072
  %v2205 = vunpack.c.l.b16 %v2073
  %v2206 = vunpack.c.l.b16 %v2074
  %v2207 = vunpack.c.l.b16 %v2075
  %v2208 = vunpack.c.l.b16 %v2076
  %v2209 = vunpack.c.l.b16 %v2077
  %v2210 = vunpack.c.l.b16 %v2078
  %v2211 = vpack.c.b16 %v2148, %v2147
  %v2212 = vpack.c.b16 %v2150, %v2149
  %v2213 = vpack.c.b16 %v2152, %v2151
  %v2214 = vpack.c.b16 %v2154, %v2153
  %v2215 = vpack.c.b16 %v2156, %v2155
  %v2216 = vpack.c.b16 %v2158, %v2157
  %v2217 = vpack.c.b16 %v2160, %v2159
  %v2218 = vpack.c.b16 %v2162, %v2161
  %v2219 = vpack.c.b16 %v2164, %v2163
  %v2220 = vpack.c.b16 %v2166, %v2165
  %v2221 = vpack.c.b16 %v2168, %v2167
  %v2222 = vpack.c.b16 %v2170, %v2169
  %v2223 = vpack.c.b16 %v2172, %v2171
  %v2224 = vpack.c.b16 %v2174, %v2173
  %v2225 = vpack.c.b16 %v2176, %v2175
  %v2226 = vpack.c.b16 %v2178, %v2177
  %v2227 = vpack.c.b16 %v2180, %v2179
  %v2228 = vpack.c.b16 %v2182, %v2181
  %v2229 = vpack.c.b16 %v2184, %v2183
  %v2230 = vpack.c.b16 %v2186, %v2185
  %v2231 = vpack.c.b16 %v2188, %v2187
  %v2232 = vpack.c.b16 %v2190, %v2189
  %v2233 = vpack.c.b16 %v2192, %v2191
  %v2234 = vpack.c.b16 %v2194, %v2193
  %v2235 = vpack.c.b16 %v2196, %v2195
  %v2236 = vpack.c.b16 %v2198, %v2197
  %v2237 = vpack.c.b16 %v2200, %v2199
  %v2238 = vpack.c.b16 %v2202, %v2201
  %v2239 = vpack.c.b16 %v2204, %v2203
  %v2240 = vpack.c.b16 %v2206, %v2205
  %v2241 = vpack.c.b16 %v2208, %v2207
  %v2242 = vpack.c.b16 %v2210, %v2209
  %2275 = vmatpush.bf16.msra.mxu0 %v2218
  %2276 = vmatpush.bf16.msra.mxu0 %v2217
  %2277 = vmatpush.bf16.msra.mxu0 %v2216
  %2278 = vmatpush.bf16.msra.mxu0 %v2215
  %2279 = vmatpush.bf16.msra.mxu0 %v2214
  %2280 = vmatpush.bf16.msra.mxu0 %v2213
  %2281 = vmatpush.bf16.msra.mxu0 %v2212
  %2282 = vmatpush.bf16.msra.mxu0 %v2211
  %2283 = vmatmul.bf16.gmra.mxu0 %v2011
  %v2284 = vpop.f32.mrf.mxu0
  %v2285 = vadd.f32 %v2081, %v2284
  %v2286 = vpop.f32.mrf.mxu0
  %2287 = vdwg.mxu0
  %2288 = vmatpush.bf16.msra.mxu0 %v2226
  %2289 = vmatpush.bf16.msra.mxu0 %v2225
  %2290 = vmatpush.bf16.msra.mxu0 %v2224
  %2291 = vmatpush.bf16.msra.mxu0 %v2223
  %2292 = vmatpush.bf16.msra.mxu0 %v2222
  %2293 = vmatpush.bf16.msra.mxu0 %v2221
  %2294 = vmatpush.bf16.msra.mxu0 %v2220
  %2295 = vmatpush.bf16.msra.mxu0 %v2219
  %2296 = vmatmul.bf16.gmra.mxu0 %v2012
  %v2297 = vpop.f32.mrf.mxu0
  %v2298 = vadd.f32 %v2285, %v2297
  %v2299 = vpop.f32.mrf.mxu0
  %2300 = vdwg.mxu0
  %2301 = vmatpush.bf16.msra.mxu0 %v2234
  %2302 = vmatpush.bf16.msra.mxu0 %v2233
  %2303 = vmatpush.bf16.msra.mxu0 %v2232
  %2304 = vmatpush.bf16.msra.mxu0 %v2231
  %2305 = vmatpush.bf16.msra.mxu0 %v2230
  %2306 = vmatpush.bf16.msra.mxu0 %v2229
  %2307 = vmatpush.bf16.msra.mxu0 %v2228
  %2308 = vmatpush.bf16.msra.mxu0 %v2227
  %2309 = vmatmul.bf16.gmra.mxu0 %v2013
  %v2310 = vpop.f32.mrf.mxu0
  %v2311 = vadd.f32 %v2298, %v2310
  %v2312 = vpop.f32.mrf.mxu0
  %2313 = vdwg.mxu0
  %2314 = vmatpush.bf16.msra.mxu0 %v2242
  %2315 = vmatpush.bf16.msra.mxu0 %v2241
  %2316 = vmatpush.bf16.msra.mxu0 %v2240
  %2317 = vmatpush.bf16.msra.mxu0 %v2239
  %2318 = vmatpush.bf16.msra.mxu0 %v2238
  %2319 = vmatpush.bf16.msra.mxu0 %v2237
  %2320 = vmatpush.bf16.msra.mxu0 %v2236
  %2321 = vmatpush.bf16.msra.mxu0 %v2235
  %2322 = vmatmul.bf16.gmra.mxu0 %v2014
  %v2323 = vpop.f32.mrf.mxu0
  %v2324 = vadd.f32 %v2311, %v2323
  %v2325 = vpop.f32.mrf.mxu0
  %2326 = vdwg.mxu0
  %v2327 = vmax.f32 %v2324, 0.0
  %v2328 = vpack.c.bf16 %v2327, %v2327
  %v2329 = vld [vmem:[%s5] sm:$0xf]
  %v2330 = vld [vmem:[%s5 + $0x4] sm:$0xf]
  %v2331 = vld [vmem:[%s5 + $0x8] sm:$0xf]
  %v2332 = vld [vmem:[%s5 + $0xc] sm:$0xf]
  %v2333 = vld [vmem:[%s5 + $0x10] sm:$0xf]
  %v2334 = vld [vmem:[%s5 + $0x14] sm:$0xf]
  %v2335 = vld [vmem:[%s5 + $0x18] sm:$0xf]
  %v2336 = vld [vmem:[%s5 + $0x1c] sm:$0xf]
  %v2337 = vld [vmem:[%s5 + $0x20] sm:$0xf]
  %v2338 = vld [vmem:[%s5 + $0x24] sm:$0xf]
  %v2339 = vld [vmem:[%s5 + $0x28] sm:$0xf]
  %v2340 = vld [vmem:[%s5 + $0x2c] sm:$0xf]
  %v2341 = vld [vmem:[%s5 + $0x30] sm:$0xf]
  %v2342 = vld [vmem:[%s5 + $0x34] sm:$0xf]
  %v2343 = vld [vmem:[%s5 + $0x38] sm:$0xf]
  %v2344 = vld [vmem:[%s5 + $0x3c] sm:$0xf]
  %v2345 = vld [vmem:[%s6] sm:$0x1]
  %v2347 = vperm.slane %v2345, 0
  %v2365 = vunpack.c.l.b16 %v2329
  %v2366 = vunpack.c.l.b16 %v2330
  %v2367 = vunpack.c.l.b16 %v2331
  %v2368 = vunpack.c.l.b16 %v2332
  %v2369 = vunpack.c.l.b16 %v2333
  %v2370 = vunpack.c.l.b16 %v2334
  %v2371 = vunpack.c.l.b16 %v2335
  %v2372 = vunpack.c.l.b16 %v2336
  %v2373 = vunpack.c.l.b16 %v2337
  %v2374 = vunpack.c.l.b16 %v2338
  %v2375 = vunpack.c.l.b16 %v2339
  %v2376 = vunpack.c.l.b16 %v2340
  %v2377 = vunpack.c.l.b16 %v2341
  %v2378 = vunpack.c.l.b16 %v2342
  %v2379 = vunpack.c.l.b16 %v2343
  %v2380 = vunpack.c.l.b16 %v2344
  %v2381 = vpack.c.b16 %v2366, %v2365
  %v2382 = vpack.c.b16 %v2368, %v2367
  %v2383 = vpack.c.b16 %v2370, %v2369
  %v2384 = vpack.c.b16 %v2372, %v2371
  %v2385 = vpack.c.b16 %v2374, %v2373
  %v2386 = vpack.c.b16 %v2376, %v2375
  %v2387 = vpack.c.b16 %v2378, %v2377
  %v2388 = vpack.c.b16 %v2380, %v2379
  %2397 = vmatpush.bf16.msra.mxu0 %v2388
  %2398 = vmatpush.bf16.msra.mxu0 %v2387
  %2399 = vmatpush.bf16.msra.mxu0 %v2386
  %2400 = vmatpush.bf16.msra.mxu0 %v2385
  %2401 = vmatpush.bf16.msra.mxu0 %v2384
  %2402 = vmatpush.bf16.msra.mxu0 %v2383
  %2403 = vmatpush.bf16.msra.mxu0 %v2382
  %2404 = vmatpush.bf16.msra.mxu0 %v2381
  %2405 = vmatmul.bf16.gmra.mxu0 %v2328
  %v2406 = vpop.f32.mrf.mxu0
  %v2407 = vadd.f32 %v2347, %v2406
  %v2408 = vpop.f32.mrf.mxu0
  %2409 = vdwg.mxu0
  %vm2410 = vcmask 66560
  %2411 = vst.msk [vmem:[%s7] sm:$0x3] %vm2410, %v2407
  // Predicated region
  $region30: #{feature_transform_forward.6} parent=0 // pred_check
    _
  $region31: #{feature_transform_forward.6} parent=0 // pred_check_branch
    %2413 = sbr.rel (0) target = $region33
  $region32: #{feature_transform_forward.6} parent=0 // pred_region
    _
  $region33: #{feature_transform_forward.6} parent=0 // pred_fallthru
    _
  // Predicated region
  $region34: #{feature_transform_forward.6} parent=0 // pred_check
    _
  $region35: #{feature_transform_forward.6} parent=0 // pred_check_branch
    %2415 = sbr.rel (0) target = $region37
  $region36: #{feature_transform_forward.6} parent=0 // pred_region
    _
  $region37: #{feature_transform_forward.6} parent=0 // pred_fallthru
    _

// kernel: feature_transform_forward.7
$region0: #{feature_transform_forward.7}
  #allocation0 [shape = 'u32[]', space=smem, size = 0x4, offset = 0x4, fixed_abs, tag = 'smem constant byte address 0x4 - core index']
  #allocation1 [shape = 'u32[72,128]{1,0:T(1,128)}', space=vmem, size = 0x9000, scoped, tag = 'internal scratch']
  #allocation2 [shape = 'f32[8,1024]{1,0:T(8,128)}', space=vmem, size = 0x8000, scoped, tag = 'scratch operand']
  %s0 = inlined_call_operand.vmem [shape: bf16[2,64,3], index: 0, kind: input, shape index: {}]
  %s1 = inlined_call_operand.vmem [shape: bf16[2,3,64], index: 1, kind: input, shape index: {}]
  %s2 = inlined_call_operand.vmem [shape: f32[1,64], index: 2, kind: input, shape index: {}]
  %s3 = inlined_call_operand.vmem [shape: bf16[64,64], index: 3, kind: input, shape index: {}]
  %s4 = inlined_call_operand.vmem [shape: f32[1,64], index: 4, kind: input, shape index: {}]
  %s5 = inlined_call_operand.vmem [shape: bf16[64,128], index: 5, kind: input, shape index: {}]
  %s6 = inlined_call_operand.vmem [shape: f32[1,128], index: 6, kind: input, shape index: {}]
  %s7 = inlined_call_operand.vmem [shape: bf16[128,1024], index: 7, kind: input, shape index: {}]
  %s8 = inlined_call_operand.vmem [shape: f32[1,1024], index: 8, kind: input, shape index: {}]
  %s9 = inlined_call_operand.vmem [shape: f32[1,2,1,1024], index: 9, kind: output, shape index: {}]
  %s10 = sld [smem:[#allocation0]]
  $region77: #{feature_transform_forward.7} parent=0
    _
  %s12 = ssub.s32 1, %s10
  %s13 = scalar_select 0, %s12, %s10
  loop: start=0, step=1, limit=4
  $region2: #{feature_transform_forward.7} parent=0 // loop_pre_header
    _
  $region3: #{feature_transform_forward.7} parent=0 // loop_header
    %s15 = sphi 0, %s19
    %p16 = scmp.ge.s32.totalorder %s15, 4
    %s22 = sphi 0, %s41
    %s23 = sphi 0, %s37
    %s24 = sphi 0, %s33
    %s25 = sphi 0, %s22
    %s26 = sphi 0, %s23
    %s27 = sphi 0, %s24
    %s28 = sphi 0, %s25
    %s29 = sphi 0, %s26
    %s30 = sphi 0, %s27
    %s48 = sphi 0, %s50
    %s51 = sphi 0, %s48
    %s52 = sphi 0, %s51
    %s68 = sphi 0, %s52
    %s74 = sphi 0, %s76
    %s77 = sphi 0, %s74
    %s78 = sphi 0, %s77
    %s94 = sphi 0, %s78
    %s98 = sphi 0, %s98
    %s100 = sphi 0, %s98
    %s101 = sphi 0, %s100
    %s115 = sphi 0, %s101
    %s119 = sphi 0, %s119
    %s121 = sphi 0, %s119
    %s122 = sphi 0, %s121
    %s136 = sphi 0, %s122
    %s140 = sphi 0, %s140
    %s142 = sphi 0, %s140
    %s143 = sphi 0, %s142
    %s157 = sphi 0, %s143
    %s161 = sphi 0, %s161
    %s163 = sphi 0, %s161
    %s164 = sphi 0, %s163
    %s178 = sphi 0, %s164
    %s182 = sphi 0, %s182
    %s184 = sphi 0, %s182
    %s185 = sphi 0, %s184
    %s199 = sphi 0, %s185
    %s203 = sphi 0, %s203
    %s205 = sphi 0, %s203
    %s206 = sphi 0, %s205
    %s220 = sphi 0, %s206
    %s224 = sphi 0, %s224
    %s226 = sphi 0, %s224
    %s227 = sphi 0, %s226
    %s241 = sphi 0, %s227
    %s249 = sphi 0, %s251
    %s252 = sphi 0, %s249
    %s253 = sphi 0, %s252
    %s269 = sphi 0, %s253
  $region4: #{feature_transform_forward.7} parent=0 // loop_header_branch
    %18 = sbr.rel (%p16) target = $region8
  $region5: #{feature_transform_forward.7} parent=0 // loop_body
    %s20 = ssub.s32 %s15, 1
    %s21 = ssub.s32 %s15, 2
    %s31 = sadd.s32 1, %s24
    %p32 = scmp.ge.s32.totalorder %s31, 1
    %s33 = scalar_select %p32, 0, %s31
    %s34 = sadd.s32 1, %s23
    %s35 = scalar_select %p32, %s34, %s23
    %p36 = scmp.ge.s32.totalorder %s35, 2
    %s37 = scalar_select %p36, 0, %s35
    %s38 = sadd.s32 1, %s22
    %s39 = scalar_select %p36, %s38, %s22
    %p40 = scmp.ge.s32.totalorder %s39, 1
    %s41 = scalar_select %p40, 0, %s39
    %s42 = sadd.s32 %s22, %s24
    %s43 = sadd.s32 %s41, %s33
    %s44 = ssub.s32 %s23, %s37
    %s45 = ssub.s32 %s42, %s43
    %s46 = sor.u32 %s44, %s45
    %p47 = scmp.eq.s32.totalorder %s46, 0
    %s49 = sadd.s32 %s48, 1
    %s50 = scalar_select %p47, %s48, %s49
    %p53 = pneg %p47
    %p54 = scmp.eq.s32.totalorder %s15, 1
    %p55 = por %p53, %p54
    %p56 = scmp.ne.s32.totalorder %s48, %s51
    %p57 = scmp.eq.s32.totalorder %s15, 0
    %p58 = por %p56, %p57
    %p59 = scmp.ne.s32.totalorder %s48, %s51
    %p60 = scmp.eq.s32.totalorder %s20, 1
    %p61 = por %p59, %p60
    %p62 = scmp.ne.s32.totalorder %s51, %s52
    %p63 = scmp.eq.s32.totalorder %s20, 0
    %p64 = por %p62, %p63
    %p65 = scmp.ne.s32.totalorder %s51, %s52
    %p66 = scmp.eq.s32.totalorder %s21, 1
    %p67 = por %p65, %p66
    %p69 = scmp.ne.s32.totalorder %s52, %s68
    %p70 = scmp.eq.s32.totalorder %s21, 0
    %p71 = por %p69, %p70
    %s72 = ssub.s32 %s23, %s37
    %p73 = scmp.eq.s32.totalorder %s72, 0
    %s75 = sadd.s32 %s74, 1
    %s76 = scalar_select %p73, %s74, %s75
    %p79 = pneg %p73
    %p80 = scmp.eq.s32.totalorder %s15, 1
    %p81 = por %p79, %p80
    %p82 = scmp.ne.s32.totalorder %s74, %s77
    %p83 = scmp.eq.s32.totalorder %s15, 0
    %p84 = por %p82, %p83
    %p85 = scmp.ne.s32.totalorder %s74, %s77
    %p86 = scmp.eq.s32.totalorder %s20, 1
    %p87 = por %p85, %p86
    %p88 = scmp.ne.s32.totalorder %s77, %s78
    %p89 = scmp.eq.s32.totalorder %s20, 0
    %p90 = por %p88, %p89
    %p91 = scmp.ne.s32.totalorder %s77, %s78
    %p92 = scmp.eq.s32.totalorder %s21, 1
    %p93 = por %p91, %p92
    %p95 = scmp.ne.s32.totalorder %s78, %s94
    %p96 = scmp.eq.s32.totalorder %s21, 0
    %p97 = por %p95, %p96
    %s99 = sadd.s32 %s98, 1
    %p102 = scmp.eq.s32.totalorder %s15, 1
    %p103 = scmp.ne.s32.totalorder %s98, %s100
    %p104 = scmp.eq.s32.totalorder %s15, 0
    %p105 = por %p103, %p104
    %p106 = scmp.ne.s32.totalorder %s98, %s100
    %p107 = scmp.eq.s32.totalorder %s20, 1
    %p108 = por %p106, %p107
    %p109 = scmp.ne.s32.totalorder %s100, %s101
    %p110 = scmp.eq.s32.totalorder %s20, 0
    %p111 = por %p109, %p110
    %p112 = scmp.ne.s32.totalorder %s100, %s101
    %p113 = scmp.eq.s32.totalorder %s21, 1
    %p114 = por %p112, %p113
    %p116 = scmp.ne.s32.totalorder %s101, %s115
    %p117 = scmp.eq.s32.totalorder %s21, 0
    %p118 = por %p116, %p117
    %s120 = sadd.s32 %s119, 1
    %p123 = scmp.eq.s32.totalorder %s15, 1
    %p124 = scmp.ne.s32.totalorder %s119, %s121
    %p125 = scmp.eq.s32.totalorder %s15, 0
    %p126 = por %p124, %p125
    %p127 = scmp.ne.s32.totalorder %s119, %s121
    %p128 = scmp.eq.s32.totalorder %s20, 1
    %p129 = por %p127, %p128
    %p130 = scmp.ne.s32.totalorder %s121, %s122
    %p131 = scmp.eq.s32.totalorder %s20, 0
    %p132 = por %p130, %p131
    %p133 = scmp.ne.s32.totalorder %s121, %s122
    %p134 = scmp.eq.s32.totalorder %s21, 1
    %p135 = por %p133, %p134
    %p137 = scmp.ne.s32.totalorder %s122, %s136
    %p138 = scmp.eq.s32.totalorder %s21, 0
    %p139 = por %p137, %p138
    %s141 = sadd.s32 %s140, 1
    %p144 = scmp.eq.s32.totalorder %s15, 1
    %p145 = scmp.ne.s32.totalorder %s140, %s142
    %p146 = scmp.eq.s32.totalorder %s15, 0
    %p147 = por %p145, %p146
    %p148 = scmp.ne.s32.totalorder %s140, %s142
    %p149 = scmp.eq.s32.totalorder %s20, 1
    %p150 = por %p148, %p149
    %p151 = scmp.ne.s32.totalorder %s142, %s143
    %p152 = scmp.eq.s32.totalorder %s20, 0
    %p153 = por %p151, %p152
    %p154 = scmp.ne.s32.totalorder %s142, %s143
    %p155 = scmp.eq.s32.totalorder %s21, 1
    %p156 = por %p154, %p155
    %p158 = scmp.ne.s32.totalorder %s143, %s157
    %p159 = scmp.eq.s32.totalorder %s21, 0
    %p160 = por %p158, %p159
    %s162 = sadd.s32 %s161, 1
    %p165 = scmp.eq.s32.totalorder %s15, 1
    %p166 = scmp.ne.s32.totalorder %s161, %s163
    %p167 = scmp.eq.s32.totalorder %s15, 0
    %p168 = por %p166, %p167
    %p169 = scmp.ne.s32.totalorder %s161, %s163
    %p170 = scmp.eq.s32.totalorder %s20, 1
    %p171 = por %p169, %p170
    %p172 = scmp.ne.s32.totalorder %s163, %s164
    %p173 = scmp.eq.s32.totalorder %s20, 0
    %p174 = por %p172, %p173
    %p175 = scmp.ne.s32.totalorder %s163, %s164
    %p176 = scmp.eq.s32.totalorder %s21, 1
    %p177 = por %p175, %p176
    %p179 = scmp.ne.s32.totalorder %s164, %s178
    %p180 = scmp.eq.s32.totalorder %s21, 0
    %p181 = por %p179, %p180
    %s183 = sadd.s32 %s182, 1
    %p186 = scmp.eq.s32.totalorder %s15, 1
    %p187 = scmp.ne.s32.totalorder %s182, %s184
    %p188 = scmp.eq.s32.totalorder %s15, 0
    %p189 = por %p187, %p188
    %p190 = scmp.ne.s32.totalorder %s182, %s184
    %p191 = scmp.eq.s32.totalorder %s20, 1
    %p192 = por %p190, %p191
    %p193 = scmp.ne.s32.totalorder %s184, %s185
    %p194 = scmp.eq.s32.totalorder %s20, 0
    %p195 = por %p193, %p194
    %p196 = scmp.ne.s32.totalorder %s184, %s185
    %p197 = scmp.eq.s32.totalorder %s21, 1
    %p198 = por %p196, %p197
    %p200 = scmp.ne.s32.totalorder %s185, %s199
    %p201 = scmp.eq.s32.totalorder %s21, 0
    %p202 = por %p200, %p201
    %s204 = sadd.s32 %s203, 1
    %p207 = scmp.eq.s32.totalorder %s15, 1
    %p208 = scmp.ne.s32.totalorder %s203, %s205
    %p209 = scmp.eq.s32.totalorder %s15, 0
    %p210 = por %p208, %p209
    %p211 = scmp.ne.s32.totalorder %s203, %s205
    %p212 = scmp.eq.s32.totalorder %s20, 1
    %p213 = por %p211, %p212
    %p214 = scmp.ne.s32.totalorder %s205, %s206
    %p215 = scmp.eq.s32.totalorder %s20, 0
    %p216 = por %p214, %p215
    %p217 = scmp.ne.s32.totalorder %s205, %s206
    %p218 = scmp.eq.s32.totalorder %s21, 1
    %p219 = por %p217, %p218
    %p221 = scmp.ne.s32.totalorder %s206, %s220
    %p222 = scmp.eq.s32.totalorder %s21, 0
    %p223 = por %p221, %p222
    %s225 = sadd.s32 %s224, 1
    %p228 = scmp.eq.s32.totalorder %s15, 1
    %p229 = scmp.ne.s32.totalorder %s224, %s226
    %p230 = scmp.eq.s32.totalorder %s15, 0
    %p231 = por %p229, %p230
    %p232 = scmp.ne.s32.totalorder %s224, %s226
    %p233 = scmp.eq.s32.totalorder %s20, 1
    %p234 = por %p232, %p233
    %p235 = scmp.ne.s32.totalorder %s226, %s227
    %p236 = scmp.eq.s32.totalorder %s20, 0
    %p237 = por %p235, %p236
    %p238 = scmp.ne.s32.totalorder %s226, %s227
    %p239 = scmp.eq.s32.totalorder %s21, 1
    %p240 = por %p238, %p239
    %p242 = scmp.ne.s32.totalorder %s227, %s241
    %p243 = scmp.eq.s32.totalorder %s21, 0
    %p244 = por %p242, %p243
    %s245 = ssub.s32 %s22, %s41
    %s246 = ssub.s32 %s23, %s37
    %s247 = sor.u32 %s245, %s246
    %p248 = scmp.eq.s32.totalorder %s247, 0
    %s250 = sadd.s32 %s249, 1
    %s251 = scalar_select %p248, %s249, %s250
    %p254 = pneg %p248
    %p255 = scmp.eq.s32.totalorder %s15, 1
    %p256 = por %p254, %p255
    %p257 = scmp.ne.s32.totalorder %s249, %s252
    %p258 = scmp.eq.s32.totalorder %s15, 0
    %p259 = por %p257, %p258
    %p260 = scmp.ne.s32.totalorder %s249, %s252
    %p261 = scmp.eq.s32.totalorder %s20, 1
    %p262 = por %p260, %p261
    %p263 = scmp.ne.s32.totalorder %s252, %s253
    %p264 = scmp.eq.s32.totalorder %s20, 0
    %p265 = por %p263, %p264
    %p266 = scmp.ne.s32.totalorder %s252, %s253
    %p267 = scmp.eq.s32.totalorder %s21, 1
    %p268 = por %p266, %p267
    %p270 = scmp.ne.s32.totalorder %s253, %s269
    %p271 = scmp.eq.s32.totalorder %s21, 0
    %p272 = por %p270, %p271
    %p273 = scmp.le.s32.totalorder 1, %s15
    %p274 = scmp.lt.s32.totalorder %s15, 3
    %p275 = pnand %p273, %p274
    %p276 = pneg %p275
    // Predicated region
    $region9: #{feature_transform_forward.7} parent=5 // pred_check
      _
    $region10: #{feature_transform_forward.7} parent=5 // pred_check_branch
      %278 = sbr.rel (%p275) target = $region12
    $region11: #{feature_transform_forward.7} parent=5 // pred_region
      %s279 = ssub.s32 %s15, 1
      // Predicated region
      $region13: #{feature_transform_forward.7} parent=11 // pred_check
        %p280 = pneg %p111
      $region14: #{feature_transform_forward.7} parent=11 // pred_check_branch
        %282 = sbr.rel (%p280) target = $region16
      $region15: #{feature_transform_forward.7} parent=11 // pred_region
        _
      $region16: #{feature_transform_forward.7} parent=11 // pred_fallthru
        _
      // Predicated region
      $region17: #{feature_transform_forward.7} parent=11 // pred_check
        %p283 = pneg %p132
      $region18: #{feature_transform_forward.7} parent=11 // pred_check_branch
        %285 = sbr.rel (%p283) target = $region20
      $region19: #{feature_transform_forward.7} parent=11 // pred_region
        _
      $region20: #{feature_transform_forward.7} parent=11 // pred_fallthru
        _
      // Predicated region
      $region21: #{feature_transform_forward.7} parent=11 // pred_check
        %p286 = pneg %p153
      $region22: #{feature_transform_forward.7} parent=11 // pred_check_branch
        %288 = sbr.rel (%p286) target = $region24
      $region23: #{feature_transform_forward.7} parent=11 // pred_region
        _
      $region24: #{feature_transform_forward.7} parent=11 // pred_fallthru
        _
      // Predicated region
      $region25: #{feature_transform_forward.7} parent=11 // pred_check
        %p289 = pneg %p174
      $region26: #{feature_transform_forward.7} parent=11 // pred_check_branch
        %291 = sbr.rel (%p289) target = $region28
      $region27: #{feature_transform_forward.7} parent=11 // pred_region
        _
      $region28: #{feature_transform_forward.7} parent=11 // pred_fallthru
        _
      // Predicated region
      $region29: #{feature_transform_forward.7} parent=11 // pred_check
        %p292 = pneg %p195
      $region30: #{feature_transform_forward.7} parent=11 // pred_check_branch
        %294 = sbr.rel (%p292) target = $region32
      $region31: #{feature_transform_forward.7} parent=11 // pred_region
        _
      $region32: #{feature_transform_forward.7} parent=11 // pred_fallthru
        _
      // Predicated region
      $region33: #{feature_transform_forward.7} parent=11 // pred_check
        %p295 = pneg %p216
      $region34: #{feature_transform_forward.7} parent=11 // pred_check_branch
        %297 = sbr.rel (%p295) target = $region36
      $region35: #{feature_transform_forward.7} parent=11 // pred_region
        _
      $region36: #{feature_transform_forward.7} parent=11 // pred_fallthru
        _
      // Predicated region
      $region37: #{feature_transform_forward.7} parent=11 // pred_check
        %p298 = pneg %p237
      $region38: #{feature_transform_forward.7} parent=11 // pred_check_branch
        %300 = sbr.rel (%p298) target = $region40
      $region39: #{feature_transform_forward.7} parent=11 // pred_region
        _
      $region40: #{feature_transform_forward.7} parent=11 // pred_fallthru
        _
    $region12: #{feature_transform_forward.7} parent=5 // pred_fallthru
      _
    %p301 = scmp.lt.s32.totalorder %s15, 2
    // Predicated region
    $region41: #{feature_transform_forward.7} parent=5 // pred_check
      %p302 = pneg %p301
    $region42: #{feature_transform_forward.7} parent=5 // pred_check_branch
      %304 = sbr.rel (%p302) target = $region44
    $region43: #{feature_transform_forward.7} parent=5 // pred_region
      // Predicated region
      $region45: #{feature_transform_forward.7} parent=43 // pred_check
        %p305 = pneg %p58
      $region46: #{feature_transform_forward.7} parent=43 // pred_check_branch
        %307 = sbr.rel (%p305) target = $region48
      $region47: #{feature_transform_forward.7} parent=43 // pred_region
        %s308 = sadd.s32 %s22, %s24
        %s309 = smul.u32 8, %s308
        %p310 = scmp.lt.s32.totalorder %s23, 1
        %s311 = scalar_select %p310, %s23, 1
        %p312 = scmp.lt.s32.totalorder %s309, 7
        %s313 = scalar_select %p312, %s309, 7
        %s314 = smul.addr %s311, 8
        %s315 = sadd.s32 %s313, %s314
        %s316 = smul.addr %s315, 4
        %s317 = scalar_lea.vmem %s0, %s316
        %s318 = sadd.s32 %s22, %s24
        %s319 = smul.u32 8, %s318
      $region48: #{feature_transform_forward.7} parent=43 // pred_fallthru
        _
      // Predicated region
      $region49: #{feature_transform_forward.7} parent=43 // pred_check
        %p320 = pneg %p84
      $region50: #{feature_transform_forward.7} parent=43 // pred_check_branch
        %322 = sbr.rel (%p320) target = $region52
      $region51: #{feature_transform_forward.7} parent=43 // pred_region
        %p323 = scmp.lt.s32.totalorder %s23, 1
        %s324 = scalar_select %p323, %s23, 1
        %s325 = smul.addr %s324, 2
        %s326 = scalar_lea.vmem %s1, %s325
      $region52: #{feature_transform_forward.7} parent=43 // pred_fallthru
        _
    $region44: #{feature_transform_forward.7} parent=5 // pred_fallthru
      _
    %p327 = scmp.le.s32.totalorder 1, %s15
    %p328 = scmp.lt.s32.totalorder %s15, 3
    %p329 = pnand %p327, %p328
    %p330 = pneg %p329
    // Predicated region
    $region53: #{feature_transform_forward.7} parent=5 // pred_check
      _
    $region54: #{feature_transform_forward.7} parent=5 // pred_check_branch
      %332 = sbr.rel (%p329) target = $region56
    $region55: #{feature_transform_forward.7} parent=5 // pred_region
      %s333 = ssub.s32 %s15, 1
      %s334 = sadd.s32 %s25, %s27
      %s335 = smul.u32 8, %s334
      %p336 = scmp.lt.s32.totalorder %s26, 1
      %s337 = scalar_select %p336, %s26, 1
      %p338 = scmp.lt.s32.totalorder %s335, 7
      %s339 = scalar_select %p338, %s335, 7
      %s340 = smul.addr %s337, 8
      %s341 = sadd.s32 %s339, %s340
      %s342 = smul.addr %s341, 4
      %s343 = scalar_lea.vmem %s0, %s342
      %p344 = pneg %p64
      %p345 = pneg %p61
      %p346 = scmp.lt.s32.totalorder %s26, 1
      %s347 = scalar_select %p346, %s26, 1
      %s348 = smul.addr %s347, 2
      %s349 = scalar_lea.vmem %s1, %s348
      %p350 = pneg %p90
      %p351 = pneg %p87
      %p352 = pneg %p111
      %p353 = pneg %p108
      %p354 = pneg %p132
      %p355 = pneg %p129
      %p356 = pneg %p153
      %p357 = pneg %p150
      %p358 = pneg %p174
      %p359 = pneg %p171
      %p360 = pneg %p195
      %p361 = pneg %p192
      %p362 = pneg %p216
      %p363 = pneg %p213
      %p364 = pneg %p237
      %p365 = pneg %p234
      %p366 = pneg %p265
      %p367 = pneg %p262
      %p368 = scmp.lt.s32.totalorder %s25, 0
      %s369 = scalar_select %p368, %s25, 0
      %p370 = scmp.lt.s32.totalorder %s26, 1
      %s371 = scalar_select %p370, %s26, 1
      %s372 = smul.addr %s371, 8
      %s373 = smul.addr %s369, 16
      %s374 = sadd.s32 %s372, %s373
      %s375 = scalar_lea.vmem %s9, %s374
      %s376 = sadd.s32 %s25, %s27
      %s377 = smul.u32 8, %s376
      %p378 = scmp.lt.s32.totalorder %s26, 1
      %s379 = scalar_select %p378, %s26, 1
      %p380 = scmp.lt.s32.totalorder %s377, 7
      %s381 = scalar_select %p380, %s377, 7
      %s382 = smul.addr %s379, 8
      %s383 = sadd.s32 %s381, %s382
      %s384 = smul.addr %s383, 4
      %s385 = scalar_lea.vmem %s0, %s384
      %s386 = sadd.s32 %s25, %s27
      %s387 = smul.u32 8, %s386
      %p388 = scmp.lt.s32.totalorder %s26, 1
      %s389 = scalar_select %p388, %s26, 1
      %s390 = smul.addr %s389, 2
      %s391 = scalar_lea.vmem %s1, %s390
      %p392 = scmp.lt.s32.totalorder %s25, 0
      %s393 = scalar_select %p392, %s25, 0
      %p394 = scmp.lt.s32.totalorder %s26, 1
      %s395 = scalar_select %p394, %s26, 1
      %s396 = smul.addr %s395, 8
      %s397 = smul.addr %s393, 16
      %s398 = sadd.s32 %s396, %s397
      %s399 = scalar_lea.vmem %s9, %s398
      %p401 = scmp.eq.s32.totalorder %s27, 0
      // Predicated region
      $region57: #{feature_transform_forward.7} parent=55 // pred_check
        %p402 = pneg %p401
      $region58: #{feature_transform_forward.7} parent=55 // pred_check_branch
        %404 = sbr.rel (%p402) target = $region60
      $region59: #{feature_transform_forward.7} parent=55 // pred_region
        %405 = vst [vmem:[#allocation2] sm:$0xff] -inf
        %406 = vst [vmem:[#allocation2 + $0x8] sm:$0xff] -inf
        %407 = vst [vmem:[#allocation2 + $0x10] sm:$0xff] -inf
        %408 = vst [vmem:[#allocation2 + $0x18] sm:$0xff] -inf
        %409 = vst [vmem:[#allocation2 + $0x20] sm:$0xff] -inf
        %410 = vst [vmem:[#allocation2 + $0x28] sm:$0xff] -inf
        %411 = vst [vmem:[#allocation2 + $0x30] sm:$0xff] -inf
        %412 = vst [vmem:[#allocation2 + $0x38] sm:$0xff] -inf
      $region60: #{feature_transform_forward.7} parent=55 // pred_fallthru
        _
      %v413 = vld [vmem:[%s385] sm:$0xf]
      %v414 = vld [vmem:[%s385 + $0x4] sm:$0xf]
      %v415 = vld [vmem:[%s385 + $0x8] sm:$0xf]
      %v416 = vld [vmem:[%s385 + $0xc] sm:$0xf]
      %v417 = vld [vmem:[%s385 + $0x10] sm:$0xf]
      %v418 = vld [vmem:[%s385 + $0x14] sm:$0xf]
      %v419 = vld [vmem:[%s385 + $0x18] sm:$0xf]
      %v420 = vld [vmem:[%s385 + $0x1c] sm:$0xf]
      %v421 = vld [vmem:[%s391] sm:$0x3]
      %v422 = vld [vmem:[%s2] sm:$0x1]
      %v424 = vperm.slane %v422, 0
      %v434 = vunpack.c.l.b16 %v413
      %v435 = vunpack.c.l.b16 %v414
      %v436 = vunpack.c.l.b16 %v415
      %v437 = vunpack.c.l.b16 %v416
      %v438 = vunpack.c.l.b16 %v417
      %v439 = vunpack.c.l.b16 %v418
      %v440 = vunpack.c.l.b16 %v419
      %v441 = vunpack.c.l.b16 %v420
      %v442 = vpack.c.b16 %v435, %v434
      %v443 = vpack.c.b16 %v437, %v436
      %v444 = vpack.c.b16 %v439, %v438
      %v445 = vpack.c.b16 %v441, %v440
      %vm446 = vcmask 23552
      %v448 = vsel %vm446, %v442, 0
      %v451 = vsel %vm446, %v443, 0
      %v454 = vsel %vm446, %v444, 0
      %v457 = vsel %vm446, %v445, 0
      %vm459 = vcmask 1040384
      %vm460 = vcmask 1041408
      %v461 = vsel %vm459, 4294967295, 65535
      %v462 = vsel %vm460, %v461, 0
      %v464 = vand.u32 %v421, %v462
      %466 = vmatpush.bf16.msra.mxu0 0
      %467 = vmatpush.bf16.msra.mxu0 0
      %468 = vmatpush.bf16.msra.mxu0 0
      %469 = vmatpush.bf16.msra.mxu0 0
      %470 = vmatpush.bf16.msra.mxu0 0
      %471 = vmatpush.bf16.msra.mxu0 0
      %472 = vmatpush.bf16.msra.mxu0 0
      %473 = vmatpush.bf16.msra.mxu0 %v464
      %474 = vmatmul.bf16.gmra.mxu0 %v448
      %v475 = vpop.f32.mrf.mxu0
      %v476 = vadd.f32 %v424, %v475
      %v477 = vpop.f32.mrf.mxu0
      %v478 = vadd.f32 %v424, %v477
      %479 = vmatmul.bf16.gmra.mxu0 %v451
      %v480 = vpop.f32.mrf.mxu0
      %v481 = vadd.f32 %v424, %v480
      %v482 = vpop.f32.mrf.mxu0
      %v483 = vadd.f32 %v424, %v482
      %484 = vmatmul.bf16.gmra.mxu0 %v454
      %v485 = vpop.f32.mrf.mxu0
      %v486 = vadd.f32 %v424, %v485
      %v487 = vpop.f32.mrf.mxu0
      %v488 = vadd.f32 %v424, %v487
      %489 = vmatmul.bf16.gmra.mxu0 %v457
      %v490 = vpop.f32.mrf.mxu0
      %v491 = vadd.f32 %v424, %v490
      %v492 = vpop.f32.mrf.mxu0
      %v493 = vadd.f32 %v424, %v492
      %494 = vdwg.mxu0
      %v495 = vmax.f32 %v476, 0.0
      %v496 = vmax.f32 %v478, 0.0
      %v497 = vmax.f32 %v481, 0.0
      %v498 = vmax.f32 %v483, 0.0
      %v499 = vmax.f32 %v486, 0.0
      %v500 = vmax.f32 %v488, 0.0
      %v501 = vmax.f32 %v491, 0.0
      %v502 = vmax.f32 %v493, 0.0
      %v503 = vpack.c.bf16 %v496, %v495
      %v504 = vpack.c.bf16 %v498, %v497
      %v505 = vpack.c.bf16 %v500, %v499
      %v506 = vpack.c.bf16 %v502, %v501
      %v507 = vld [vmem:[%s3] sm:$0xf]
      %v508 = vld [vmem:[%s3 + $0x4] sm:$0xf]
      %v509 = vld [vmem:[%s3 + $0x8] sm:$0xf]
      %v510 = vld [vmem:[%s3 + $0xc] sm:$0xf]
      %v511 = vld [vmem:[%s3 + $0x10] sm:$0xf]
      %v512 = vld [vmem:[%s3 + $0x14] sm:$0xf]
      %v513 = vld [vmem:[%s3 + $0x18] sm:$0xf]
      %v514 = vld [vmem:[%s3 + $0x1c] sm:$0xf]
      %v515 = vld [vmem:[%s4] sm:$0x1]
      %v517 = vperm.slane %v515, 0
      %v527 = vunpack.c.l.b16 %v507
      %v528 = vunpack.c.l.b16 %v508
      %v529 = vunpack.c.l.b16 %v509
      %v530 = vunpack.c.l.b16 %v510
      %v531 = vunpack.c.l.b16 %v511
      %v532 = vunpack.c.l.b16 %v512
      %v533 = vunpack.c.l.b16 %v513
      %v534 = vunpack.c.l.b16 %v514
      %v535 = vpack.c.b16 %v528, %v527
      %v536 = vpack.c.b16 %v530, %v529
      %v537 = vpack.c.b16 %v532, %v531
      %v538 = vpack.c.b16 %v534, %v533
      %vm543 = vcmask 523264
      %v545 = vsel %vm543, %v503, 0
      %v548 = vsel %vm543, %v504, 0
      %v551 = vsel %vm543, %v505, 0
      %v554 = vsel %vm543, %v506, 0
      %556 = vmatpush.bf16.msra.mxu0 0
      %557 = vmatpush.bf16.msra.mxu0 0
      %558 = vmatpush.bf16.msra.mxu0 0
      %559 = vmatpush.bf16.msra.mxu0 0
      %560 = vmatpush.bf16.msra.mxu0 %v538
      %561 = vmatpush.bf16.msra.mxu0 %v537
      %562 = vmatpush.bf16.msra.mxu0 %v536
      %563 = vmatpush.bf16.msra.mxu0 %v535
      %564 = vmatmul.bf16.gmra.mxu0 %v545
      %v565 = vpop.f32.mrf.mxu0
      %v566 = vadd.f32 %v517, %v565
      %v567 = vpop.f32.mrf.mxu0
      %v568 = vadd.f32 %v517, %v567
      %569 = vmatmul.bf16.gmra.mxu0 %v548
      %v570 = vpop.f32.mrf.mxu0
      %v571 = vadd.f32 %v517, %v570
      %v572 = vpop.f32.mrf.mxu0
      %v573 = vadd.f32 %v517, %v572
      %574 = vmatmul.bf16.gmra.mxu0 %v551
      %v575 = vpop.f32.mrf.mxu0
      %v576 = vadd.f32 %v517, %v575
      %v577 = vpop.f32.mrf.mxu0
      %v578 = vadd.f32 %v517, %v577
      %579 = vmatmul.bf16.gmra.mxu0 %v554
      %v580 = vpop.f32.mrf.mxu0
      %v581 = vadd.f32 %v517, %v580
      %v582 = vpop.f32.mrf.mxu0
      %v583 = vadd.f32 %v517, %v582
      %584 = vdwg.mxu0
      %v585 = vmax.f32 %v566, 0.0
      %v586 = vmax.f32 %v568, 0.0
      %v587 = vmax.f32 %v571, 0.0
      %v588 = vmax.f32 %v573, 0.0
      %v589 = vmax.f32 %v576, 0.0
      %v590 = vmax.f32 %v578, 0.0
      %v591 = vmax.f32 %v581, 0.0
      %v592 = vmax.f32 %v583, 0.0
      %v593 = vpack.c.bf16 %v586, %v585
      %v594 = vpack.c.bf16 %v588, %v587
      %v595 = vpack.c.bf16 %v590, %v589
      %v596 = vpack.c.bf16 %v592, %v591
      %v597 = vld [vmem:[%s5] sm:$0xf]
      %v598 = vld [vmem:[%s5 + $0x4] sm:$0xf]
      %v599 = vld [vmem:[%s5 + $0x8] sm:$0xf]
      %v600 = vld [vmem:[%s5 + $0xc] sm:$0xf]
      %v601 = vld [vmem:[%s5 + $0x10] sm:$0xf]
      %v602 = vld [vmem:[%s5 + $0x14] sm:$0xf]
      %v603 = vld [vmem:[%s5 + $0x18] sm:$0xf]
      %v604 = vld [vmem:[%s5 + $0x1c] sm:$0xf]
      %v605 = vld [vmem:[%s6] sm:$0x1]
      %v607 = vperm.slane %v605, 0
      %v617 = vunpack.c.l.b16 %v597
      %v618 = vunpack.c.l.b16 %v598
      %v619 = vunpack.c.l.b16 %v599
      %v620 = vunpack.c.l.b16 %v600
      %v621 = vunpack.c.l.b16 %v601
      %v622 = vunpack.c.l.b16 %v602
      %v623 = vunpack.c.l.b16 %v603
      %v624 = vunpack.c.l.b16 %v604
      %v625 = vpack.c.b16 %v618, %v617
      %v626 = vpack.c.b16 %v620, %v619
      %v627 = vpack.c.b16 %v622, %v621
      %v628 = vpack.c.b16 %v624, %v623
      %v634 = vsel %vm543, %v593, 0
      %v637 = vsel %vm543, %v594, 0
      %v640 = vsel %vm543, %v595, 0
      %v643 = vsel %vm543, %v596, 0
      %645 = vmatpush.bf16.msra.mxu0 0
      %646 = vmatpush.bf16.msra.mxu0 0
      %647 = vmatpush.bf16.msra.mxu0 0
      %648 = vmatpush.bf16.msra.mxu0 0
      %649 = vmatpush.bf16.msra.mxu0 %v628
      %650 = vmatpush.bf16.msra.mxu0 %v627
      %651 = vmatpush.bf16.msra.mxu0 %v626
      %652 = vmatpush.bf16.msra.mxu0 %v625
      %653 = vmatmul.bf16.gmra.mxu0 %v634
      %v654 = vpop.f32.mrf.mxu0
      %v655 = vadd.f32 %v607, %v654
      %v656 = vpop.f32.mrf.mxu0
      %v657 = vadd.f32 %v607, %v656
      %658 = vmatmul.bf16.gmra.mxu0 %v637
      %v659 = vpop.f32.mrf.mxu0
      %v660 = vadd.f32 %v607, %v659
      %v661 = vpop.f32.mrf.mxu0
      %v662 = vadd.f32 %v607, %v661
      %663 = vmatmul.bf16.gmra.mxu0 %v640
      %v664 = vpop.f32.mrf.mxu0
      %v665 = vadd.f32 %v607, %v664
      %v666 = vpop.f32.mrf.mxu0
      %v667 = vadd.f32 %v607, %v666
      %668 = vmatmul.bf16.gmra.mxu0 %v643
      %v669 = vpop.f32.mrf.mxu0
      %v670 = vadd.f32 %v607, %v669
      %v671 = vpop.f32.mrf.mxu0
      %v672 = vadd.f32 %v607, %v671
      %673 = vdwg.mxu0
      %v674 = vmax.f32 %v655, 0.0
      %v675 = vmax.f32 %v657, 0.0
      %v676 = vmax.f32 %v660, 0.0
      %v677 = vmax.f32 %v662, 0.0
      %v678 = vmax.f32 %v665, 0.0
      %v679 = vmax.f32 %v667, 0.0
      %v680 = vmax.f32 %v670, 0.0
      %v681 = vmax.f32 %v672, 0.0
      %v682 = vpack.c.bf16 %v675, %v674
      %v683 = vpack.c.bf16 %v677, %v676
      %v684 = vpack.c.bf16 %v679, %v678
      %v685 = vpack.c.bf16 %v681, %v680
      %v686 = vld [vmem:[%s7] sm:$0xff]
      %v687 = vld [vmem:[%s7 + $0x8] sm:$0xff]
      %v688 = vld [vmem:[%s7 + $0x10] sm:$0xff]
      %v689 = vld [vmem:[%s7 + $0x18] sm:$0xff]
      %v690 = vld [vmem:[%s7 + $0x20] sm:$0xff]
      %v691 = vld [vmem:[%s7 + $0x28] sm:$0xff]
      %v692 = vld [vmem:[%s7 + $0x30] sm:$0xff]
      %v693 = vld [vmem:[%s7 + $0x38] sm:$0xff]
      %v694 = vld [vmem:[%s7 + $0x40] sm:$0xff]
      %v695 = vld [vmem:[%s7 + $0x48] sm:$0xff]
      %v696 = vld [vmem:[%s7 + $0x50] sm:$0xff]
      %v697 = vld [vmem:[%s7 + $0x58] sm:$0xff]
      %v698 = vld [vmem:[%s7 + $0x60] sm:$0xff]
      %v699 = vld [vmem:[%s7 + $0x68] sm:$0xff]
      %v700 = vld [vmem:[%s7 + $0x70] sm:$0xff]
      %v701 = vld [vmem:[%s7 + $0x78] sm:$0xff]
      %v702 = vld [vmem:[%s7 + $0x80] sm:$0xff]
      %v703 = vld [vmem:[%s7 + $0x88] sm:$0xff]
      %v704 = vld [vmem:[%s7 + $0x90] sm:$0xff]
      %v705 = vld [vmem:[%s7 + $0x98] sm:$0xff]
      %v706 = vld [vmem:[%s7 + $0xa0] sm:$0xff]
      %v707 = vld [vmem:[%s7 + $0xa8] sm:$0xff]
      %v708 = vld [vmem:[%s7 + $0xb0] sm:$0xff]
      %v709 = vld [vmem:[%s7 + $0xb8] sm:$0xff]
      %v710 = vld [vmem:[%s7 + $0xc0] sm:$0xff]
      %v711 = vld [vmem:[%s7 + $0xc8] sm:$0xff]
      %v712 = vld [vmem:[%s7 + $0xd0] sm:$0xff]
      %v713 = vld [vmem:[%s7 + $0xd8] sm:$0xff]
      %v714 = vld [vmem:[%s7 + $0xe0] sm:$0xff]
      %v715 = vld [vmem:[%s7 + $0xe8] sm:$0xff]
      %v716 = vld [vmem:[%s7 + $0xf0] sm:$0xff]
      %v717 = vld [vmem:[%s7 + $0xf8] sm:$0xff]
      %v718 = vld [vmem:[%s7 + $0x100] sm:$0xff]
      %v719 = vld [vmem:[%s7 + $0x108] sm:$0xff]
      %v720 = vld [vmem:[%s7 + $0x110] sm:$0xff]
      %v721 = vld [vmem:[%s7 + $0x118] sm:$0xff]
      %v722 = vld [vmem:[%s7 + $0x120] sm:$0xff]
      %v723 = vld [vmem:[%s7 + $0x128] sm:$0xff]
      %v724 = vld [vmem:[%s7 + $0x130] sm:$0xff]
      %v725 = vld [vmem:[%s7 + $0x138] sm:$0xff]
      %v726 = vld [vmem:[%s7 + $0x140] sm:$0xff]
      %v727 = vld [vmem:[%s7 + $0x148] sm:$0xff]
      %v728 = vld [vmem:[%s7 + $0x150] sm:$0xff]
      %v729 = vld [vmem:[%s7 + $0x158] sm:$0xff]
      %v730 = vld [vmem:[%s7 + $0x160] sm:$0xff]
      %v731 = vld [vmem:[%s7 + $0x168] sm:$0xff]
      %v732 = vld [vmem:[%s7 + $0x170] sm:$0xff]
      %v733 = vld [vmem:[%s7 + $0x178] sm:$0xff]
      %v734 = vld [vmem:[%s7 + $0x180] sm:$0xff]
      %v735 = vld [vmem:[%s7 + $0x188] sm:$0xff]
      %v736 = vld [vmem:[%s7 + $0x190] sm:$0xff]
      %v737 = vld [vmem:[%s7 + $0x198] sm:$0xff]
      %v738 = vld [vmem:[%s7 + $0x1a0] sm:$0xff]
      %v739 = vld [vmem:[%s7 + $0x1a8] sm:$0xff]
      %v740 = vld [vmem:[%s7 + $0x1b0] sm:$0xff]
      %v741 = vld [vmem:[%s7 + $0x1b8] sm:$0xff]
      %v742 = vld [vmem:[%s7 + $0x1c0] sm:$0xff]
      %v743 = vld [vmem:[%s7 + $0x1c8] sm:$0xff]
      %v744 = vld [vmem:[%s7 + $0x1d0] sm:$0xff]
      %v745 = vld [vmem:[%s7 + $0x1d8] sm:$0xff]
      %v746 = vld [vmem:[%s7 + $0x1e0] sm:$0xff]
      %v747 = vld [vmem:[%s7 + $0x1e8] sm:$0xff]
      %v748 = vld [vmem:[%s7 + $0x1f0] sm:$0xff]
      %v749 = vld [vmem:[%s7 + $0x1f8] sm:$0xff]
      %v814 = vunpack.c.l.b16 %v686
      %v815 = vunpack.c.h.b16 %v686
      %v816 = vunpack.c.l.b16 %v687
      %v817 = vunpack.c.h.b16 %v687
      %v818 = vunpack.c.l.b16 %v688
      %v819 = vunpack.c.h.b16 %v688
      %v820 = vunpack.c.l.b16 %v689
      %v821 = vunpack.c.h.b16 %v689
      %v822 = vunpack.c.l.b16 %v690
      %v823 = vunpack.c.h.b16 %v690
      %v824 = vunpack.c.l.b16 %v691
      %v825 = vunpack.c.h.b16 %v691
      %v826 = vunpack.c.l.b16 %v692
      %v827 = vunpack.c.h.b16 %v692
      %v828 = vunpack.c.l.b16 %v693
      %v829 = vunpack.c.h.b16 %v693
      %v830 = vunpack.c.l.b16 %v694
      %v831 = vunpack.c.h.b16 %v694
      %v832 = vunpack.c.l.b16 %v695
      %v833 = vunpack.c.h.b16 %v695
      %v834 = vunpack.c.l.b16 %v696
      %v835 = vunpack.c.h.b16 %v696
      %v836 = vunpack.c.l.b16 %v697
      %v837 = vunpack.c.h.b16 %v697
      %v838 = vunpack.c.l.b16 %v698
      %v839 = vunpack.c.h.b16 %v698
      %v840 = vunpack.c.l.b16 %v699
      %v841 = vunpack.c.h.b16 %v699
      %v842 = vunpack.c.l.b16 %v700
      %v843 = vunpack.c.h.b16 %v700
      %v844 = vunpack.c.l.b16 %v701
      %v845 = vunpack.c.h.b16 %v701
      %v846 = vunpack.c.l.b16 %v702
      %v847 = vunpack.c.h.b16 %v702
      %v848 = vunpack.c.l.b16 %v703
      %v849 = vunpack.c.h.b16 %v703
      %v850 = vunpack.c.l.b16 %v704
      %v851 = vunpack.c.h.b16 %v704
      %v852 = vunpack.c.l.b16 %v705
      %v853 = vunpack.c.h.b16 %v705
      %v854 = vunpack.c.l.b16 %v706
      %v855 = vunpack.c.h.b16 %v706
      %v856 = vunpack.c.l.b16 %v707
      %v857 = vunpack.c.h.b16 %v707
      %v858 = vunpack.c.l.b16 %v708
      %v859 = vunpack.c.h.b16 %v708
      %v860 = vunpack.c.l.b16 %v709
      %v861 = vunpack.c.h.b16 %v709
      %v862 = vunpack.c.l.b16 %v710
      %v863 = vunpack.c.h.b16 %v710
      %v864 = vunpack.c.l.b16 %v711
      %v865 = vunpack.c.h.b16 %v711
      %v866 = vunpack.c.l.b16 %v712
      %v867 = vunpack.c.h.b16 %v712
      %v868 = vunpack.c.l.b16 %v713
      %v869 = vunpack.c.h.b16 %v713
      %v870 = vunpack.c.l.b16 %v714
      %v871 = vunpack.c.h.b16 %v714
      %v872 = vunpack.c.l.b16 %v715
      %v873 = vunpack.c.h.b16 %v715
      %v874 = vunpack.c.l.b16 %v716
      %v875 = vunpack.c.h.b16 %v716
      %v876 = vunpack.c.l.b16 %v717
      %v877 = vunpack.c.h.b16 %v717
      %v878 = vunpack.c.l.b16 %v718
      %v879 = vunpack.c.h.b16 %v718
      %v880 = vunpack.c.l.b16 %v719
      %v881 = vunpack.c.h.b16 %v719
      %v882 = vunpack.c.l.b16 %v720
      %v883 = vunpack.c.h.b16 %v720
      %v884 = vunpack.c.l.b16 %v721
      %v885 = vunpack.c.h.b16 %v721
      %v886 = vunpack.c.l.b16 %v722
      %v887 = vunpack.c.h.b16 %v722
      %v888 = vunpack.c.l.b16 %v723
      %v889 = vunpack.c.h.b16 %v723
      %v890 = vunpack.c.l.b16 %v724
      %v891 = vunpack.c.h.b16 %v724
      %v892 = vunpack.c.l.b16 %v725
      %v893 = vunpack.c.h.b16 %v725
      %v894 = vunpack.c.l.b16 %v726
      %v895 = vunpack.c.h.b16 %v726
      %v896 = vunpack.c.l.b16 %v727
      %v897 = vunpack.c.h.b16 %v727
      %v898 = vunpack.c.l.b16 %v728
      %v899 = vunpack.c.h.b16 %v728
      %v900 = vunpack.c.l.b16 %v729
      %v901 = vunpack.c.h.b16 %v729
      %v902 = vunpack.c.l.b16 %v730
      %v903 = vunpack.c.h.b16 %v730
      %v904 = vunpack.c.l.b16 %v731
      %v905 = vunpack.c.h.b16 %v731
      %v906 = vunpack.c.l.b16 %v732
      %v907 = vunpack.c.h.b16 %v732
      %v908 = vunpack.c.l.b16 %v733
      %v909 = vunpack.c.h.b16 %v733
      %v910 = vunpack.c.l.b16 %v734
      %v911 = vunpack.c.h.b16 %v734
      %v912 = vunpack.c.l.b16 %v735
      %v913 = vunpack.c.h.b16 %v735
      %v914 = vunpack.c.l.b16 %v736
      %v915 = vunpack.c.h.b16 %v736
      %v916 = vunpack.c.l.b16 %v737
      %v917 = vunpack.c.h.b16 %v737
      %v918 = vunpack.c.l.b16 %v738
      %v919 = vunpack.c.h.b16 %v738
      %v920 = vunpack.c.l.b16 %v739
      %v921 = vunpack.c.h.b16 %v739
      %v922 = vunpack.c.l.b16 %v740
      %v923 = vunpack.c.h.b16 %v740
      %v924 = vunpack.c.l.b16 %v741
      %v925 = vunpack.c.h.b16 %v741
      %v926 = vunpack.c.l.b16 %v742
      %v927 = vunpack.c.h.b16 %v742
      %v928 = vunpack.c.l.b16 %v743
      %v929 = vunpack.c.h.b16 %v743
      %v930 = vunpack.c.l.b16 %v744
      %v931 = vunpack.c.h.b16 %v744
      %v932 = vunpack.c.l.b16 %v745
      %v933 = vunpack.c.h.b16 %v745
      %v934 = vunpack.c.l.b16 %v746
      %v935 = vunpack.c.h.b16 %v746
      %v936 = vunpack.c.l.b16 %v747
      %v937 = vunpack.c.h.b16 %v747
      %v938 = vunpack.c.l.b16 %v748
      %v939 = vunpack.c.h.b16 %v748
      %v940 = vunpack.c.l.b16 %v749
      %v941 = vunpack.c.h.b16 %v749
      %v942 = vpack.c.b16 %v822, %v814
      %v943 = vpack.c.b16 %v823, %v815
      %v944 = vpack.c.b16 %v824, %v816
      %v945 = vpack.c.b16 %v825, %v817
      %v946 = vpack.c.b16 %v826, %v818
      %v947 = vpack.c.b16 %v827, %v819
      %v948 = vpack.c.b16 %v828, %v820
      %v949 = vpack.c.b16 %v829, %v821
      %v950 = vpack.c.b16 %v838, %v830
      %v951 = vpack.c.b16 %v839, %v831
      %v952 = vpack.c.b16 %v840, %v832
      %v953 = vpack.c.b16 %v841, %v833
      %v954 = vpack.c.b16 %v842, %v834
      %v955 = vpack.c.b16 %v843, %v835
      %v956 = vpack.c.b16 %v844, %v836
      %v957 = vpack.c.b16 %v845, %v837
      %v958 = vpack.c.b16 %v854, %v846
      %v959 = vpack.c.b16 %v855, %v847
      %v960 = vpack.c.b16 %v856, %v848
      %v961 = vpack.c.b16 %v857, %v849
      %v962 = vpack.c.b16 %v858, %v850
      %v963 = vpack.c.b16 %v859, %v851
      %v964 = vpack.c.b16 %v860, %v852
      %v965 = vpack.c.b16 %v861, %v853
      %v966 = vpack.c.b16 %v870, %v862
      %v967 = vpack.c.b16 %v871, %v863
      %v968 = vpack.c.b16 %v872, %v864
      %v969 = vpack.c.b16 %v873, %v865
      %v970 = vpack.c.b16 %v874, %v866
      %v971 = vpack.c.b16 %v875, %v867
      %v972 = vpack.c.b16 %v876, %v868
      %v973 = vpack.c.b16 %v877, %v869
      %v974 = vpack.c.b16 %v886, %v878
      %v975 = vpack.c.b16 %v887, %v879
      %v976 = vpack.c.b16 %v888, %v880
      %v977 = vpack.c.b16 %v889, %v881
      %v978 = vpack.c.b16 %v890, %v882
      %v979 = vpack.c.b16 %v891, %v883
      %v980 = vpack.c.b16 %v892, %v884
      %v981 = vpack.c.b16 %v893, %v885
      %v982 = vpack.c.b16 %v902, %v894
      %v983 = vpack.c.b16 %v903, %v895
      %v984 = vpack.c.b16 %v904, %v896
      %v985 = vpack.c.b16 %v905, %v897
      %v986 = vpack.c.b16 %v906, %v898
      %v987 = vpack.c.b16 %v907, %v899
      %v988 = vpack.c.b16 %v908, %v900
      %v989 = vpack.c.b16 %v909, %v901
      %v990 = vpack.c.b16 %v918, %v910
      %v991 = vpack.c.b16 %v919, %v911
      %v992 = vpack.c.b16 %v920, %v912
      %v993 = vpack.c.b16 %v921, %v913
      %v994 = vpack.c.b16 %v922, %v914
      %v995 = vpack.c.b16 %v923, %v915
      %v996 = vpack.c.b16 %v924, %v916
      %v997 = vpack.c.b16 %v925, %v917
      %v998 = vpack.c.b16 %v934, %v926
      %v999 = vpack.c.b16 %v935, %v927
      %v1000 = vpack.c.b16 %v936, %v928
      %v1001 = vpack.c.b16 %v937, %v929
      %v1002 = vpack.c.b16 %v938, %v930
      %v1003 = vpack.c.b16 %v939, %v931
      %v1004 = vpack.c.b16 %v940, %v932
      %v1005 = vpack.c.b16 %v941, %v933
      %1070 = vmatpush.bf16.msra.mxu0 %v998
      %1071 = vmatpush.bf16.msra.mxu0 %v990
      %1072 = vmatpush.bf16.msra.mxu0 %v982
      %1073 = vmatpush.bf16.msra.mxu0 %v974
      %1074 = vmatpush.bf16.msra.mxu0 %v966
      %1075 = vmatpush.bf16.msra.mxu0 %v958
      %1076 = vmatpush.bf16.msra.mxu0 %v950
      %1077 = vmatpush.bf16.msra.mxu0 %v942
      %1078 = vmatmul.bf16.gmra.mxu0 %v682
      %v1079 = vpop.f32.mrf.mxu0
      %v1080 = vadd.f32 0.0, %v1079
      %v1081 = vpop.f32.mrf.mxu0
      %v1082 = vadd.f32 0.0, %v1081
      %1083 = vmatmul.bf16.gmra.mxu0 %v683
      %v1084 = vpop.f32.mrf.mxu0
      %v1085 = vadd.f32 0.0, %v1084
      %v1086 = vpop.f32.mrf.mxu0
      %v1087 = vadd.f32 0.0, %v1086
      %1088 = vmatmul.bf16.gmra.mxu0 %v684
      %v1089 = vpop.f32.mrf.mxu0
      %v1090 = vadd.f32 0.0, %v1089
      %v1091 = vpop.f32.mrf.mxu0
      %v1092 = vadd.f32 0.0, %v1091
      %1093 = vmatmul.bf16.gmra.mxu0 %v685
      %v1094 = vpop.f32.mrf.mxu0
      %v1095 = vadd.f32 0.0, %v1094
      %v1096 = vpop.f32.mrf.mxu0
      %v1097 = vadd.f32 0.0, %v1096
      %1098 = vdwg.mxu0
      %1099 = vmatpush.bf16.msra.mxu0 %v999
      %1100 = vmatpush.bf16.msra.mxu0 %v991
      %1101 = vmatpush.bf16.msra.mxu0 %v983
      %1102 = vmatpush.bf16.msra.mxu0 %v975
      %1103 = vmatpush.bf16.msra.mxu0 %v967
      %1104 = vmatpush.bf16.msra.mxu0 %v959
      %1105 = vmatpush.bf16.msra.mxu0 %v951
      %1106 = vmatpush.bf16.msra.mxu0 %v943
      %1107 = vmatmul.bf16.gmra.mxu0 %v682
      %v1108 = vpop.f32.mrf.mxu0
      %v1109 = vadd.f32 0.0, %v1108
      %v1110 = vpop.f32.mrf.mxu0
      %v1111 = vadd.f32 0.0, %v1110
      %1112 = vmatmul.bf16.gmra.mxu0 %v683
      %v1113 = vpop.f32.mrf.mxu0
      %v1114 = vadd.f32 0.0, %v1113
      %v1115 = vpop.f32.mrf.mxu0
      %v1116 = vadd.f32 0.0, %v1115
      %1117 = vmatmul.bf16.gmra.mxu0 %v684
      %v1118 = vpop.f32.mrf.mxu0
      %v1119 = vadd.f32 0.0, %v1118
      %v1120 = vpop.f32.mrf.mxu0
      %v1121 = vadd.f32 0.0, %v1120
      %1122 = vmatmul.bf16.gmra.mxu0 %v685
      %v1123 = vpop.f32.mrf.mxu0
      %v1124 = vadd.f32 0.0, %v1123
      %v1125 = vpop.f32.mrf.mxu0
      %v1126 = vadd.f32 0.0, %v1125
      %1127 = vdwg.mxu0
      %1128 = vmatpush.bf16.msra.mxu0 %v1000
      %1129 = vmatpush.bf16.msra.mxu0 %v992
      %1130 = vmatpush.bf16.msra.mxu0 %v984
      %1131 = vmatpush.bf16.msra.mxu0 %v976
      %1132 = vmatpush.bf16.msra.mxu0 %v968
      %1133 = vmatpush.bf16.msra.mxu0 %v960
      %1134 = vmatpush.bf16.msra.mxu0 %v952
      %1135 = vmatpush.bf16.msra.mxu0 %v944
      %1136 = vmatmul.bf16.gmra.mxu0 %v682
      %v1137 = vpop.f32.mrf.mxu0
      %v1138 = vadd.f32 0.0, %v1137
      %v1139 = vpop.f32.mrf.mxu0
      %v1140 = vadd.f32 0.0, %v1139
      %1141 = vmatmul.bf16.gmra.mxu0 %v683
      %v1142 = vpop.f32.mrf.mxu0
      %v1143 = vadd.f32 0.0, %v1142
      %v1144 = vpop.f32.mrf.mxu0
      %v1145 = vadd.f32 0.0, %v1144
      %1146 = vmatmul.bf16.gmra.mxu0 %v684
      %v1147 = vpop.f32.mrf.mxu0
      %v1148 = vadd.f32 0.0, %v1147
      %v1149 = vpop.f32.mrf.mxu0
      %v1150 = vadd.f32 0.0, %v1149
      %1151 = vmatmul.bf16.gmra.mxu0 %v685
      %v1152 = vpop.f32.mrf.mxu0
      %v1153 = vadd.f32 0.0, %v1152
      %v1154 = vpop.f32.mrf.mxu0
      %v1155 = vadd.f32 0.0, %v1154
      %1156 = vdwg.mxu0
      %1157 = vmatpush.bf16.msra.mxu0 %v1001
      %1158 = vmatpush.bf16.msra.mxu0 %v993
      %1159 = vmatpush.bf16.msra.mxu0 %v985
      %1160 = vmatpush.bf16.msra.mxu0 %v977
      %1161 = vmatpush.bf16.msra.mxu0 %v969
      %1162 = vmatpush.bf16.msra.mxu0 %v961
      %1163 = vmatpush.bf16.msra.mxu0 %v953
      %1164 = vmatpush.bf16.msra.mxu0 %v945
      %1165 = vmatmul.bf16.gmra.mxu0 %v682
      %v1166 = vpop.f32.mrf.mxu0
      %v1167 = vadd.f32 0.0, %v1166
      %v1168 = vpop.f32.mrf.mxu0
      %v1169 = vadd.f32 0.0, %v1168
      %1170 = vmatmul.bf16.gmra.mxu0 %v683
      %v1171 = vpop.f32.mrf.mxu0
      %v1172 = vadd.f32 0.0, %v1171
      %v1173 = vpop.f32.mrf.mxu0
      %v1174 = vadd.f32 0.0, %v1173
      %1175 = vmatmul.bf16.gmra.mxu0 %v684
      %v1176 = vpop.f32.mrf.mxu0
      %v1177 = vadd.f32 0.0, %v1176
      %v1178 = vpop.f32.mrf.mxu0
      %v1179 = vadd.f32 0.0, %v1178
      %1180 = vmatmul.bf16.gmra.mxu0 %v685
      %v1181 = vpop.f32.mrf.mxu0
      %v1182 = vadd.f32 0.0, %v1181
      %v1183 = vpop.f32.mrf.mxu0
      %v1184 = vadd.f32 0.0, %v1183
      %1185 = vdwg.mxu0
      %1186 = vmatpush.bf16.msra.mxu0 %v1002
      %1187 = vmatpush.bf16.msra.mxu0 %v994
      %1188 = vmatpush.bf16.msra.mxu0 %v986
      %1189 = vmatpush.bf16.msra.mxu0 %v978
      %1190 = vmatpush.bf16.msra.mxu0 %v970
      %1191 = vmatpush.bf16.msra.mxu0 %v962
      %1192 = vmatpush.bf16.msra.mxu0 %v954
      %1193 = vmatpush.bf16.msra.mxu0 %v946
      %1194 = vmatmul.bf16.gmra.mxu0 %v682
      %v1195 = vpop.f32.mrf.mxu0
      %v1196 = vadd.f32 0.0, %v1195
      %v1197 = vpop.f32.mrf.mxu0
      %v1198 = vadd.f32 0.0, %v1197
      %1199 = vmatmul.bf16.gmra.mxu0 %v683
      %v1200 = vpop.f32.mrf.mxu0
      %v1201 = vadd.f32 0.0, %v1200
      %v1202 = vpop.f32.mrf.mxu0
      %v1203 = vadd.f32 0.0, %v1202
      %1204 = vmatmul.bf16.gmra.mxu0 %v684
      %v1205 = vpop.f32.mrf.mxu0
      %v1206 = vadd.f32 0.0, %v1205
      %v1207 = vpop.f32.mrf.mxu0
      %v1208 = vadd.f32 0.0, %v1207
      %1209 = vmatmul.bf16.gmra.mxu0 %v685
      %v1210 = vpop.f32.mrf.mxu0
      %v1211 = vadd.f32 0.0, %v1210
      %v1212 = vpop.f32.mrf.mxu0
      %v1213 = vadd.f32 0.0, %v1212
      %1214 = vdwg.mxu0
      %1215 = vmatpush.bf16.msra.mxu0 %v1003
      %1216 = vmatpush.bf16.msra.mxu0 %v995
      %1217 = vmatpush.bf16.msra.mxu0 %v987
      %1218 = vmatpush.bf16.msra.mxu0 %v979
      %1219 = vmatpush.bf16.msra.mxu0 %v971
      %1220 = vmatpush.bf16.msra.mxu0 %v963
      %1221 = vmatpush.bf16.msra.mxu0 %v955
      %1222 = vmatpush.bf16.msra.mxu0 %v947
      %1223 = vmatmul.bf16.gmra.mxu0 %v682
      %v1224 = vpop.f32.mrf.mxu0
      %v1225 = vadd.f32 0.0, %v1224
      %v1226 = vpop.f32.mrf.mxu0
      %v1227 = vadd.f32 0.0, %v1226
      %1228 = vmatmul.bf16.gmra.mxu0 %v683
      %v1229 = vpop.f32.mrf.mxu0
      %v1230 = vadd.f32 0.0, %v1229
      %v1231 = vpop.f32.mrf.mxu0
      %v1232 = vadd.f32 0.0, %v1231
      %1233 = vmatmul.bf16.gmra.mxu0 %v684
      %v1234 = vpop.f32.mrf.mxu0
      %v1235 = vadd.f32 0.0, %v1234
      %v1236 = vpop.f32.mrf.mxu0
      %v1237 = vadd.f32 0.0, %v1236
      %1238 = vmatmul.bf16.gmra.mxu0 %v685
      %v1239 = vpop.f32.mrf.mxu0
      %v1240 = vadd.f32 0.0, %v1239
      %v1241 = vpop.f32.mrf.mxu0
      %v1242 = vadd.f32 0.0, %v1241
      %1243 = vdwg.mxu0
      %1244 = vmatpush.bf16.msra.mxu0 %v1004
      %1245 = vmatpush.bf16.msra.mxu0 %v996
      %1246 = vmatpush.bf16.msra.mxu0 %v988
      %1247 = vmatpush.bf16.msra.mxu0 %v980
      %1248 = vmatpush.bf16.msra.mxu0 %v972
      %1249 = vmatpush.bf16.msra.mxu0 %v964
      %1250 = vmatpush.bf16.msra.mxu0 %v956
      %1251 = vmatpush.bf16.msra.mxu0 %v948
      %1252 = vmatmul.bf16.gmra.mxu0 %v682
      %v1253 = vpop.f32.mrf.mxu0
      %v1254 = vadd.f32 0.0, %v1253
      %v1255 = vpop.f32.mrf.mxu0
      %v1256 = vadd.f32 0.0, %v1255
      %1257 = vmatmul.bf16.gmra.mxu0 %v683
      %v1258 = vpop.f32.mrf.mxu0
      %v1259 = vadd.f32 0.0, %v1258
      %v1260 = vpop.f32.mrf.mxu0
      %v1261 = vadd.f32 0.0, %v1260
      %1262 = vmatmul.bf16.gmra.mxu0 %v684
      %v1263 = vpop.f32.mrf.mxu0
      %v1264 = vadd.f32 0.0, %v1263
      %v1265 = vpop.f32.mrf.mxu0
      %v1266 = vadd.f32 0.0, %v1265
      %1267 = vmatmul.bf16.gmra.mxu0 %v685
      %v1268 = vpop.f32.mrf.mxu0
      %v1269 = vadd.f32 0.0, %v1268
      %v1270 = vpop.f32.mrf.mxu0
      %v1271 = vadd.f32 0.0, %v1270
      %1272 = vdwg.mxu0
      %1273 = vmatpush.bf16.msra.mxu0 %v1005
      %1274 = vmatpush.bf16.msra.mxu0 %v997
      %1275 = vmatpush.bf16.msra.mxu0 %v989
      %1276 = vmatpush.bf16.msra.mxu0 %v981
      %1277 = vmatpush.bf16.msra.mxu0 %v973
      %1278 = vmatpush.bf16.msra.mxu0 %v965
      %1279 = vmatpush.bf16.msra.mxu0 %v957
      %1280 = vmatpush.bf16.msra.mxu0 %v949
      %1281 = vmatmul.bf16.gmra.mxu0 %v682
      %v1282 = vpop.f32.mrf.mxu0
      %v1283 = vadd.f32 0.0, %v1282
      %v1284 = vpop.f32.mrf.mxu0
      %v1285 = vadd.f32 0.0, %v1284
      %1286 = vmatmul.bf16.gmra.mxu0 %v683
      %v1287 = vpop.f32.mrf.mxu0
      %v1288 = vadd.f32 0.0, %v1287
      %v1289 = vpop.f32.mrf.mxu0
      %v1290 = vadd.f32 0.0, %v1289
      %1291 = vmatmul.bf16.gmra.mxu0 %v684
      %v1292 = vpop.f32.mrf.mxu0
      %v1293 = vadd.f32 0.0, %v1292
      %v1294 = vpop.f32.mrf.mxu0
      %v1295 = vadd.f32 0.0, %v1294
      %1296 = vmatmul.bf16.gmra.mxu0 %v685
      %v1297 = vpop.f32.mrf.mxu0
      %v1298 = vadd.f32 0.0, %v1297
      %v1299 = vpop.f32.mrf.mxu0
      %v1300 = vadd.f32 0.0, %v1299
      %1301 = vdwg.mxu0
      %v1302 = vmax.f32 %v1080, %v1082
      %v1303 = vmax.f32 %v1302, %v1085
      %v1304 = vmax.f32 %v1303, %v1087
      %v1305 = vmax.f32 %v1304, %v1090
      %v1306 = vmax.f32 %v1305, %v1092
      %v1307 = vmax.f32 %v1306, %v1095
      %v1308 = vmax.f32 %v1307, %v1097
      %v1309 = vmax.f32 %v1109, %v1111
      %v1310 = vmax.f32 %v1309, %v1114
      %v1311 = vmax.f32 %v1310, %v1116
      %v1312 = vmax.f32 %v1311, %v1119
      %v1313 = vmax.f32 %v1312, %v1121
      %v1314 = vmax.f32 %v1313, %v1124
      %v1315 = vmax.f32 %v1314, %v1126
      %v1316 = vmax.f32 %v1138, %v1140
      %v1317 = vmax.f32 %v1316, %v1143
      %v1318 = vmax.f32 %v1317, %v1145
      %v1319 = vmax.f32 %v1318, %v1148
      %v1320 = vmax.f32 %v1319, %v1150
      %v1321 = vmax.f32 %v1320, %v1153
      %v1322 = vmax.f32 %v1321, %v1155
      %v1323 = vmax.f32 %v1167, %v1169
      %v1324 = vmax.f32 %v1323, %v1172
      %v1325 = vmax.f32 %v1324, %v1174
      %v1326 = vmax.f32 %v1325, %v1177
      %v1327 = vmax.f32 %v1326, %v1179
      %v1328 = vmax.f32 %v1327, %v1182
      %v1329 = vmax.f32 %v1328, %v1184
      %v1330 = vmax.f32 %v1196, %v1198
      %v1331 = vmax.f32 %v1330, %v1201
      %v1332 = vmax.f32 %v1331, %v1203
      %v1333 = vmax.f32 %v1332, %v1206
      %v1334 = vmax.f32 %v1333, %v1208
      %v1335 = vmax.f32 %v1334, %v1211
      %v1336 = vmax.f32 %v1335, %v1213
      %v1337 = vmax.f32 %v1225, %v1227
      %v1338 = vmax.f32 %v1337, %v1230
      %v1339 = vmax.f32 %v1338, %v1232
      %v1340 = vmax.f32 %v1339, %v1235
      %v1341 = vmax.f32 %v1340, %v1237
      %v1342 = vmax.f32 %v1341, %v1240
      %v1343 = vmax.f32 %v1342, %v1242
      %v1344 = vmax.f32 %v1254, %v1256
      %v1345 = vmax.f32 %v1344, %v1259
      %v1346 = vmax.f32 %v1345, %v1261
      %v1347 = vmax.f32 %v1346, %v1264
      %v1348 = vmax.f32 %v1347, %v1266
      %v1349 = vmax.f32 %v1348, %v1269
      %v1350 = vmax.f32 %v1349, %v1271
      %v1351 = vmax.f32 %v1283, %v1285
      %v1352 = vmax.f32 %v1351, %v1288
      %v1353 = vmax.f32 %v1352, %v1290
      %v1354 = vmax.f32 %v1353, %v1293
      %v1355 = vmax.f32 %v1354, %v1295
      %v1356 = vmax.f32 %v1355, %v1298
      %v1357 = vmax.f32 %v1356, %v1300
      %v1358 = vld [vmem:[#allocation2] sm:$0xff]
      %v1359 = vld [vmem:[#allocation2 + $0x8] sm:$0xff]
      %v1360 = vld [vmem:[#allocation2 + $0x10] sm:$0xff]
      %v1361 = vld [vmem:[#allocation2 + $0x18] sm:$0xff]
      %v1362 = vld [vmem:[#allocation2 + $0x20] sm:$0xff]
      %v1363 = vld [vmem:[#allocation2 + $0x28] sm:$0xff]
      %v1364 = vld [vmem:[#allocation2 + $0x30] sm:$0xff]
      %v1365 = vld [vmem:[#allocation2 + $0x38] sm:$0xff]
      %v1366 = vmax.f32 %v1358, %v1308
      %v1367 = vmax.f32 %v1359, %v1315
      %v1368 = vmax.f32 %v1360, %v1322
      %v1369 = vmax.f32 %v1361, %v1329
      %v1370 = vmax.f32 %v1362, %v1336
      %v1371 = vmax.f32 %v1363, %v1343
      %v1372 = vmax.f32 %v1364, %v1350
      %v1373 = vmax.f32 %v1365, %v1357
      %1374 = vst [vmem:[#allocation2] sm:$0xff] %v1366
      %1375 = vst [vmem:[#allocation2 + $0x8] sm:$0xff] %v1367
      %1376 = vst [vmem:[#allocation2 + $0x10] sm:$0xff] %v1368
      %1377 = vst [vmem:[#allocation2 + $0x18] sm:$0xff] %v1369
      %1378 = vst [vmem:[#allocation2 + $0x20] sm:$0xff] %v1370
      %1379 = vst [vmem:[#allocation2 + $0x28] sm:$0xff] %v1371
      %1380 = vst [vmem:[#allocation2 + $0x30] sm:$0xff] %v1372
      %1381 = vst [vmem:[#allocation2 + $0x38] sm:$0xff] %v1373
      // Predicated region
      $region61: #{feature_transform_forward.7} parent=55 // pred_check
        %p1382 = pneg %p401
      $region62: #{feature_transform_forward.7} parent=55 // pred_check_branch
        %1384 = sbr.rel (%p1382) target = $region64
      $region63: #{feature_transform_forward.7} parent=55 // pred_region
        %v1385 = vld [vmem:[%s8] sm:$0xff]
        %v1386 = vld [vmem:[#allocation2] sm:$0xff]
        %v1387 = vld [vmem:[#allocation2 + $0x8] sm:$0xff]
        %v1388 = vld [vmem:[#allocation2 + $0x10] sm:$0xff]
        %v1389 = vld [vmem:[#allocation2 + $0x18] sm:$0xff]
        %v1390 = vld [vmem:[#allocation2 + $0x20] sm:$0xff]
        %v1391 = vld [vmem:[#allocation2 + $0x28] sm:$0xff]
        %v1392 = vld [vmem:[#allocation2 + $0x30] sm:$0xff]
        %v1393 = vld [vmem:[#allocation2 + $0x38] sm:$0xff]
        %v1394 = vrot.slane %v1386, 4
        %v1395 = vmax.f32 %v1386, %v1394
        %v1396 = vrot.slane %v1395, 2
        %v1397 = vmax.f32 %v1395, %v1396
        %v1398 = vrot.slane %v1397, 1
        %v1399 = vmax.f32 %v1397, %v1398
        %v1400 = vrot.slane %v1387, 4
        %v1401 = vmax.f32 %v1387, %v1400
        %v1402 = vrot.slane %v1401, 2
        %v1403 = vmax.f32 %v1401, %v1402
        %v1404 = vrot.slane %v1403, 1
        %v1405 = vmax.f32 %v1403, %v1404
        %v1406 = vrot.slane %v1388, 4
        %v1407 = vmax.f32 %v1388, %v1406
        %v1408 = vrot.slane %v1407, 2
        %v1409 = vmax.f32 %v1407, %v1408
        %v1410 = vrot.slane %v1409, 1
        %v1411 = vmax.f32 %v1409, %v1410
        %v1412 = vrot.slane %v1389, 4
        %v1413 = vmax.f32 %v1389, %v1412
        %v1414 = vrot.slane %v1413, 2
        %v1415 = vmax.f32 %v1413, %v1414
        %v1416 = vrot.slane %v1415, 1
        %v1417 = vmax.f32 %v1415, %v1416
        %v1418 = vrot.slane %v1390, 4
        %v1419 = vmax.f32 %v1390, %v1418
        %v1420 = vrot.slane %v1419, 2
        %v1421 = vmax.f32 %v1419, %v1420
        %v1422 = vrot.slane %v1421, 1
        %v1423 = vmax.f32 %v1421, %v1422
        %v1424 = vrot.slane %v1391, 4
        %v1425 = vmax.f32 %v1391, %v1424
        %v1426 = vrot.slane %v1425, 2
        %v1427 = vmax.f32 %v1425, %v1426
        %v1428 = vrot.slane %v1427, 1
        %v1429 = vmax.f32 %v1427, %v1428
        %v1430 = vrot.slane %v1392, 4
        %v1431 = vmax.f32 %v1392, %v1430
        %v1432 = vrot.slane %v1431, 2
        %v1433 = vmax.f32 %v1431, %v1432
        %v1434 = vrot.slane %v1433, 1
        %v1435 = vmax.f32 %v1433, %v1434
        %v1436 = vrot.slane %v1393, 4
        %v1437 = vmax.f32 %v1393, %v1436
        %v1438 = vrot.slane %v1437, 2
        %v1439 = vmax.f32 %v1437, %v1438
        %v1440 = vrot.slane %v1439, 1
        %v1441 = vmax.f32 %v1439, %v1440
        %v1443 = vperm.slane %v1385, 0
        %v1444 = vperm.slane %v1385, 1
        %v1445 = vperm.slane %v1385, 2
        %v1446 = vperm.slane %v1385, 3
        %v1447 = vperm.slane %v1385, 4
        %v1448 = vperm.slane %v1385, 5
        %v1449 = vperm.slane %v1385, 6
        %v1450 = vperm.slane %v1385, 7
        %v1459 = vadd.f32 %v1399, %v1443
        %v1460 = vadd.f32 %v1405, %v1444
        %v1461 = vadd.f32 %v1411, %v1445
        %v1462 = vadd.f32 %v1417, %v1446
        %v1463 = vadd.f32 %v1423, %v1447
        %v1464 = vadd.f32 %v1429, %v1448
        %v1465 = vadd.f32 %v1435, %v1449
        %v1466 = vadd.f32 %v1441, %v1450
        %v1467 = vmax.f32 %v1459, 0.0
        %v1468 = vmax.f32 %v1460, 0.0
        %v1469 = vmax.f32 %v1461, 0.0
        %v1470 = vmax.f32 %v1462, 0.0
        %v1471 = vmax.f32 %v1463, 0.0
        %v1472 = vmax.f32 %v1464, 0.0
        %v1473 = vmax.f32 %v1465, 0.0
        %v1474 = vmax.f32 %v1466, 0.0
        %v1483 = vrot.slane %v1468, 7
        %v1484 = vrot.slane %v1469, 6
        %v1485 = vrot.slane %v1470, 5
        %v1486 = vrot.slane %v1471, 4
        %v1487 = vrot.slane %v1472, 3
        %v1488 = vrot.slane %v1473, 2
        %v1489 = vrot.slane %v1474, 1
        %v1490 = vsel %vm459, %v1467, %v1483
        %vm1491 = vcmask 1042434
        %v1492 = vsel %vm1491, %v1484, %v1485
        %v1493 = vsel %vm460, %v1490, %v1492
        %vm1494 = vcmask 1044484
        %v1495 = vsel %vm1494, %v1486, %v1487
        %vm1496 = vcmask 1046534
        %v1497 = vsel %vm1496, %v1488, %v1489
        %vm1498 = vcmask 1045508
        %v1499 = vsel %vm1498, %v1495, %v1497
        %vm1500 = vcmask 1043456
        %v1501 = vsel %vm1500, %v1493, %v1499
        %1503 = vst [vmem:[%s399] sm:$0xff] %v1501
      $region64: #{feature_transform_forward.7} parent=55 // pred_fallthru
        _
      %p1504 = scmp.lt.s32.totalorder %s25, 0
      %s1505 = scalar_select %p1504, %s25, 0
      %p1506 = scmp.lt.s32.totalorder %s26, 1
      %s1507 = scalar_select %p1506, %s26, 1
      %s1508 = smul.addr %s1507, 8
      %s1509 = smul.addr %s1505, 16
      %s1510 = sadd.s32 %s1508, %s1509
      %s1511 = scalar_lea.vmem %s9, %s1510
      // Predicated region
      $region65: #{feature_transform_forward.7} parent=55 // pred_check
        %p1512 = pneg %p262
      $region66: #{feature_transform_forward.7} parent=55 // pred_check_branch
        %1514 = sbr.rel (%p1512) target = $region68
      $region67: #{feature_transform_forward.7} parent=55 // pred_region
        _
      $region68: #{feature_transform_forward.7} parent=55 // pred_fallthru
        _
    $region56: #{feature_transform_forward.7} parent=5 // pred_fallthru
      _
    %p1515 = scmp.le.s32.totalorder 2, %s15
    // Predicated region
    $region69: #{feature_transform_forward.7} parent=5 // pred_check
      %p1516 = pneg %p1515
    $region70: #{feature_transform_forward.7} parent=5 // pred_check_branch
      %1518 = sbr.rel (%p1516) target = $region72
    $region71: #{feature_transform_forward.7} parent=5 // pred_region
      %s1519 = ssub.s32 %s15, 2
      // Predicated region
      $region73: #{feature_transform_forward.7} parent=71 // pred_check
        %p1520 = pneg %p268
      $region74: #{feature_transform_forward.7} parent=71 // pred_check_branch
        %1522 = sbr.rel (%p1520) target = $region76
      $region75: #{feature_transform_forward.7} parent=71 // pred_region
        %p1523 = scmp.lt.s32.totalorder %s28, 0
        %s1524 = scalar_select %p1523, %s28, 0
        %p1525 = scmp.lt.s32.totalorder %s29, 1
        %s1526 = scalar_select %p1525, %s29, 1
        %s1527 = smul.addr %s1526, 8
        %s1528 = smul.addr %s1524, 16
        %s1529 = sadd.s32 %s1527, %s1528
        %s1530 = scalar_lea.vmem %s9, %s1529
      $region76: #{feature_transform_forward.7} parent=71 // pred_fallthru
        _
    $region72: #{feature_transform_forward.7} parent=5 // pred_fallthru
      _
  $region6: #{feature_transform_forward.7} parent=0 // loop_footer
    %s19 = sadd.s32 1, %s15
  $region7: #{feature_transform_forward.7} parent=0 // loop_footer_branch
    %14 = sbr.rel target = $region3
  $region8: #{feature_transform_forward.7} parent=0 // loop_exit
    _

// kernel: feature_transform_forward.9
$region0: #{feature_transform_forward.9}
  #allocation0 [shape = 'u32[]', space=smem, size = 0x4, offset = 0x4, fixed_abs, tag = 'smem constant byte address 0x4 - core index']
  #allocation1 [shape = 'u32[72,128]{1,0:T(1,128)}', space=vmem, size = 0x9000, scoped, tag = 'internal scratch']
  #allocation2 [shape = 'f32[8,1024]{1,0:T(8,128)}', space=vmem, size = 0x8000, scoped, tag = 'scratch operand']
  %s0 = inlined_call_operand.vmem [shape: bf16[2,64,3], index: 0, kind: input, shape index: {}]
  %s1 = inlined_call_operand.vmem [shape: bf16[2,3,64], index: 1, kind: input, shape index: {}]
  %s2 = inlined_call_operand.vmem [shape: f32[1,64], index: 2, kind: input, shape index: {}]
  %s3 = inlined_call_operand.vmem [shape: bf16[2,64,128], index: 3, kind: input, shape index: {}]
  %s4 = inlined_call_operand.vmem [shape: f32[1,128], index: 4, kind: input, shape index: {}]
  %s5 = inlined_call_operand.vmem [shape: bf16[128,1024], index: 5, kind: input, shape index: {}]
  %s6 = inlined_call_operand.vmem [shape: f32[1,1024], index: 6, kind: input, shape index: {}]
  %s7 = inlined_call_operand.vmem [shape: f32[1,2,1,1024], index: 7, kind: output, shape index: {}]
  %s8 = sld [smem:[#allocation0]]
  $region69: #{feature_transform_forward.9} parent=0
    _
  %s10 = ssub.s32 1, %s8
  %s11 = scalar_select 0, %s10, %s8
  loop: start=0, step=1, limit=4
  $region2: #{feature_transform_forward.9} parent=0 // loop_pre_header
    _
  $region3: #{feature_transform_forward.9} parent=0 // loop_header
    %s13 = sphi 0, %s17
    %p14 = scmp.ge.s32.totalorder %s13, 4
    %s20 = sphi 0, %s39
    %s21 = sphi 0, %s35
    %s22 = sphi 0, %s31
    %s23 = sphi 0, %s20
    %s24 = sphi 0, %s21
    %s25 = sphi 0, %s22
    %s26 = sphi 0, %s23
    %s27 = sphi 0, %s24
    %s28 = sphi 0, %s25
    %s46 = sphi 0, %s48
    %s49 = sphi 0, %s46
    %s50 = sphi 0, %s49
    %s66 = sphi 0, %s50
    %s72 = sphi 0, %s74
    %s75 = sphi 0, %s72
    %s76 = sphi 0, %s75
    %s92 = sphi 0, %s76
    %s96 = sphi 0, %s96
    %s98 = sphi 0, %s96
    %s99 = sphi 0, %s98
    %s113 = sphi 0, %s99
    %s119 = sphi 0, %s121
    %s122 = sphi 0, %s119
    %s123 = sphi 0, %s122
    %s139 = sphi 0, %s123
    %s143 = sphi 0, %s143
    %s145 = sphi 0, %s143
    %s146 = sphi 0, %s145
    %s160 = sphi 0, %s146
    %s164 = sphi 0, %s164
    %s166 = sphi 0, %s164
    %s167 = sphi 0, %s166
    %s181 = sphi 0, %s167
    %s185 = sphi 0, %s185
    %s187 = sphi 0, %s185
    %s188 = sphi 0, %s187
    %s202 = sphi 0, %s188
    %s210 = sphi 0, %s212
    %s213 = sphi 0, %s210
    %s214 = sphi 0, %s213
    %s230 = sphi 0, %s214
  $region4: #{feature_transform_forward.9} parent=0 // loop_header_branch
    %16 = sbr.rel (%p14) target = $region8
  $region5: #{feature_transform_forward.9} parent=0 // loop_body
    %s18 = ssub.s32 %s13, 1
    %s19 = ssub.s32 %s13, 2
    %s29 = sadd.s32 1, %s22
    %p30 = scmp.ge.s32.totalorder %s29, 1
    %s31 = scalar_select %p30, 0, %s29
    %s32 = sadd.s32 1, %s21
    %s33 = scalar_select %p30, %s32, %s21
    %p34 = scmp.ge.s32.totalorder %s33, 2
    %s35 = scalar_select %p34, 0, %s33
    %s36 = sadd.s32 1, %s20
    %s37 = scalar_select %p34, %s36, %s20
    %p38 = scmp.ge.s32.totalorder %s37, 1
    %s39 = scalar_select %p38, 0, %s37
    %s40 = sadd.s32 %s20, %s22
    %s41 = sadd.s32 %s39, %s31
    %s42 = ssub.s32 %s21, %s35
    %s43 = ssub.s32 %s40, %s41
    %s44 = sor.u32 %s42, %s43
    %p45 = scmp.eq.s32.totalorder %s44, 0
    %s47 = sadd.s32 %s46, 1
    %s48 = scalar_select %p45, %s46, %s47
    %p51 = pneg %p45
    %p52 = scmp.eq.s32.totalorder %s13, 1
    %p53 = por %p51, %p52
    %p54 = scmp.ne.s32.totalorder %s46, %s49
    %p55 = scmp.eq.s32.totalorder %s13, 0
    %p56 = por %p54, %p55
    %p57 = scmp.ne.s32.totalorder %s46, %s49
    %p58 = scmp.eq.s32.totalorder %s18, 1
    %p59 = por %p57, %p58
    %p60 = scmp.ne.s32.totalorder %s49, %s50
    %p61 = scmp.eq.s32.totalorder %s18, 0
    %p62 = por %p60, %p61
    %p63 = scmp.ne.s32.totalorder %s49, %s50
    %p64 = scmp.eq.s32.totalorder %s19, 1
    %p65 = por %p63, %p64
    %p67 = scmp.ne.s32.totalorder %s50, %s66
    %p68 = scmp.eq.s32.totalorder %s19, 0
    %p69 = por %p67, %p68
    %s70 = ssub.s32 %s21, %s35
    %p71 = scmp.eq.s32.totalorder %s70, 0
    %s73 = sadd.s32 %s72, 1
    %s74 = scalar_select %p71, %s72, %s73
    %p77 = pneg %p71
    %p78 = scmp.eq.s32.totalorder %s13, 1
    %p79 = por %p77, %p78
    %p80 = scmp.ne.s32.totalorder %s72, %s75
    %p81 = scmp.eq.s32.totalorder %s13, 0
    %p82 = por %p80, %p81
    %p83 = scmp.ne.s32.totalorder %s72, %s75
    %p84 = scmp.eq.s32.totalorder %s18, 1
    %p85 = por %p83, %p84
    %p86 = scmp.ne.s32.totalorder %s75, %s76
    %p87 = scmp.eq.s32.totalorder %s18, 0
    %p88 = por %p86, %p87
    %p89 = scmp.ne.s32.totalorder %s75, %s76
    %p90 = scmp.eq.s32.totalorder %s19, 1
    %p91 = por %p89, %p90
    %p93 = scmp.ne.s32.totalorder %s76, %s92
    %p94 = scmp.eq.s32.totalorder %s19, 0
    %p95 = por %p93, %p94
    %s97 = sadd.s32 %s96, 1
    %p100 = scmp.eq.s32.totalorder %s13, 1
    %p101 = scmp.ne.s32.totalorder %s96, %s98
    %p102 = scmp.eq.s32.totalorder %s13, 0
    %p103 = por %p101, %p102
    %p104 = scmp.ne.s32.totalorder %s96, %s98
    %p105 = scmp.eq.s32.totalorder %s18, 1
    %p106 = por %p104, %p105
    %p107 = scmp.ne.s32.totalorder %s98, %s99
    %p108 = scmp.eq.s32.totalorder %s18, 0
    %p109 = por %p107, %p108
    %p110 = scmp.ne.s32.totalorder %s98, %s99
    %p111 = scmp.eq.s32.totalorder %s19, 1
    %p112 = por %p110, %p111
    %p114 = scmp.ne.s32.totalorder %s99, %s113
    %p115 = scmp.eq.s32.totalorder %s19, 0
    %p116 = por %p114, %p115
    %s117 = ssub.s32 %s21, %s35
    %p118 = scmp.eq.s32.totalorder %s117, 0
    %s120 = sadd.s32 %s119, 1
    %s121 = scalar_select %p118, %s119, %s120
    %p124 = pneg %p118
    %p125 = scmp.eq.s32.totalorder %s13, 1
    %p126 = por %p124, %p125
    %p127 = scmp.ne.s32.totalorder %s119, %s122
    %p128 = scmp.eq.s32.totalorder %s13, 0
    %p129 = por %p127, %p128
    %p130 = scmp.ne.s32.totalorder %s119, %s122
    %p131 = scmp.eq.s32.totalorder %s18, 1
    %p132 = por %p130, %p131
    %p133 = scmp.ne.s32.totalorder %s122, %s123
    %p134 = scmp.eq.s32.totalorder %s18, 0
    %p135 = por %p133, %p134
    %p136 = scmp.ne.s32.totalorder %s122, %s123
    %p137 = scmp.eq.s32.totalorder %s19, 1
    %p138 = por %p136, %p137
    %p140 = scmp.ne.s32.totalorder %s123, %s139
    %p141 = scmp.eq.s32.totalorder %s19, 0
    %p142 = por %p140, %p141
    %s144 = sadd.s32 %s143, 1
    %p147 = scmp.eq.s32.totalorder %s13, 1
    %p148 = scmp.ne.s32.totalorder %s143, %s145
    %p149 = scmp.eq.s32.totalorder %s13, 0
    %p150 = por %p148, %p149
    %p151 = scmp.ne.s32.totalorder %s143, %s145
    %p152 = scmp.eq.s32.totalorder %s18, 1
    %p153 = por %p151, %p152
    %p154 = scmp.ne.s32.totalorder %s145, %s146
    %p155 = scmp.eq.s32.totalorder %s18, 0
    %p156 = por %p154, %p155
    %p157 = scmp.ne.s32.totalorder %s145, %s146
    %p158 = scmp.eq.s32.totalorder %s19, 1
    %p159 = por %p157, %p158
    %p161 = scmp.ne.s32.totalorder %s146, %s160
    %p162 = scmp.eq.s32.totalorder %s19, 0
    %p163 = por %p161, %p162
    %s165 = sadd.s32 %s164, 1
    %p168 = scmp.eq.s32.totalorder %s13, 1
    %p169 = scmp.ne.s32.totalorder %s164, %s166
    %p170 = scmp.eq.s32.totalorder %s13, 0
    %p171 = por %p169, %p170
    %p172 = scmp.ne.s32.totalorder %s164, %s166
    %p173 = scmp.eq.s32.totalorder %s18, 1
    %p174 = por %p172, %p173
    %p175 = scmp.ne.s32.totalorder %s166, %s167
    %p176 = scmp.eq.s32.totalorder %s18, 0
    %p177 = por %p175, %p176
    %p178 = scmp.ne.s32.totalorder %s166, %s167
    %p179 = scmp.eq.s32.totalorder %s19, 1
    %p180 = por %p178, %p179
    %p182 = scmp.ne.s32.totalorder %s167, %s181
    %p183 = scmp.eq.s32.totalorder %s19, 0
    %p184 = por %p182, %p183
    %s186 = sadd.s32 %s185, 1
    %p189 = scmp.eq.s32.totalorder %s13, 1
    %p190 = scmp.ne.s32.totalorder %s185, %s187
    %p191 = scmp.eq.s32.totalorder %s13, 0
    %p192 = por %p190, %p191
    %p193 = scmp.ne.s32.totalorder %s185, %s187
    %p194 = scmp.eq.s32.totalorder %s18, 1
    %p195 = por %p193, %p194
    %p196 = scmp.ne.s32.totalorder %s187, %s188
    %p197 = scmp.eq.s32.totalorder %s18, 0
    %p198 = por %p196, %p197
    %p199 = scmp.ne.s32.totalorder %s187, %s188
    %p200 = scmp.eq.s32.totalorder %s19, 1
    %p201 = por %p199, %p200
    %p203 = scmp.ne.s32.totalorder %s188, %s202
    %p204 = scmp.eq.s32.totalorder %s19, 0
    %p205 = por %p203, %p204
    %s206 = ssub.s32 %s20, %s39
    %s207 = ssub.s32 %s21, %s35
    %s208 = sor.u32 %s206, %s207
    %p209 = scmp.eq.s32.totalorder %s208, 0
    %s211 = sadd.s32 %s210, 1
    %s212 = scalar_select %p209, %s210, %s211
    %p215 = pneg %p209
    %p216 = scmp.eq.s32.totalorder %s13, 1
    %p217 = por %p215, %p216
    %p218 = scmp.ne.s32.totalorder %s210, %s213
    %p219 = scmp.eq.s32.totalorder %s13, 0
    %p220 = por %p218, %p219
    %p221 = scmp.ne.s32.totalorder %s210, %s213
    %p222 = scmp.eq.s32.totalorder %s18, 1
    %p223 = por %p221, %p222
    %p224 = scmp.ne.s32.totalorder %s213, %s214
    %p225 = scmp.eq.s32.totalorder %s18, 0
    %p226 = por %p224, %p225
    %p227 = scmp.ne.s32.totalorder %s213, %s214
    %p228 = scmp.eq.s32.totalorder %s19, 1
    %p229 = por %p227, %p228
    %p231 = scmp.ne.s32.totalorder %s214, %s230
    %p232 = scmp.eq.s32.totalorder %s19, 0
    %p233 = por %p231, %p232
    %p234 = scmp.le.s32.totalorder 1, %s13
    %p235 = scmp.lt.s32.totalorder %s13, 3
    %p236 = pnand %p234, %p235
    %p237 = pneg %p236
    // Predicated region
    $region9: #{feature_transform_forward.9} parent=5 // pred_check
      _
    $region10: #{feature_transform_forward.9} parent=5 // pred_check_branch
      %239 = sbr.rel (%p236) target = $region12
    $region11: #{feature_transform_forward.9} parent=5 // pred_region
      %s240 = ssub.s32 %s13, 1
      // Predicated region
      $region13: #{feature_transform_forward.9} parent=11 // pred_check
        %p241 = pneg %p109
      $region14: #{feature_transform_forward.9} parent=11 // pred_check_branch
        %243 = sbr.rel (%p241) target = $region16
      $region15: #{feature_transform_forward.9} parent=11 // pred_region
        _
      $region16: #{feature_transform_forward.9} parent=11 // pred_fallthru
        _
      // Predicated region
      $region17: #{feature_transform_forward.9} parent=11 // pred_check
        %p244 = pneg %p156
      $region18: #{feature_transform_forward.9} parent=11 // pred_check_branch
        %246 = sbr.rel (%p244) target = $region20
      $region19: #{feature_transform_forward.9} parent=11 // pred_region
        _
      $region20: #{feature_transform_forward.9} parent=11 // pred_fallthru
        _
      // Predicated region
      $region21: #{feature_transform_forward.9} parent=11 // pred_check
        %p247 = pneg %p177
      $region22: #{feature_transform_forward.9} parent=11 // pred_check_branch
        %249 = sbr.rel (%p247) target = $region24
      $region23: #{feature_transform_forward.9} parent=11 // pred_region
        _
      $region24: #{feature_transform_forward.9} parent=11 // pred_fallthru
        _
      // Predicated region
      $region25: #{feature_transform_forward.9} parent=11 // pred_check
        %p250 = pneg %p198
      $region26: #{feature_transform_forward.9} parent=11 // pred_check_branch
        %252 = sbr.rel (%p250) target = $region28
      $region27: #{feature_transform_forward.9} parent=11 // pred_region
        _
      $region28: #{feature_transform_forward.9} parent=11 // pred_fallthru
        _
    $region12: #{feature_transform_forward.9} parent=5 // pred_fallthru
      _
    %p253 = scmp.lt.s32.totalorder %s13, 2
    // Predicated region
    $region29: #{feature_transform_forward.9} parent=5 // pred_check
      %p254 = pneg %p253
    $region30: #{feature_transform_forward.9} parent=5 // pred_check_branch
      %256 = sbr.rel (%p254) target = $region32
    $region31: #{feature_transform_forward.9} parent=5 // pred_region
      // Predicated region
      $region33: #{feature_transform_forward.9} parent=31 // pred_check
        %p257 = pneg %p56
      $region34: #{feature_transform_forward.9} parent=31 // pred_check_branch
        %259 = sbr.rel (%p257) target = $region36
      $region35: #{feature_transform_forward.9} parent=31 // pred_region
        %s260 = sadd.s32 %s20, %s22
        %s261 = smul.u32 8, %s260
        %p262 = scmp.lt.s32.totalorder %s21, 1
        %s263 = scalar_select %p262, %s21, 1
        %p264 = scmp.lt.s32.totalorder %s261, 7
        %s265 = scalar_select %p264, %s261, 7
        %s266 = smul.addr %s263, 8
        %s267 = sadd.s32 %s265, %s266
        %s268 = smul.addr %s267, 4
        %s269 = scalar_lea.vmem %s0, %s268
        %s270 = sadd.s32 %s20, %s22
        %s271 = smul.u32 8, %s270
      $region36: #{feature_transform_forward.9} parent=31 // pred_fallthru
        _
      // Predicated region
      $region37: #{feature_transform_forward.9} parent=31 // pred_check
        %p272 = pneg %p82
      $region38: #{feature_transform_forward.9} parent=31 // pred_check_branch
        %274 = sbr.rel (%p272) target = $region40
      $region39: #{feature_transform_forward.9} parent=31 // pred_region
        %p275 = scmp.lt.s32.totalorder %s21, 1
        %s276 = scalar_select %p275, %s21, 1
        %s277 = smul.addr %s276, 2
        %s278 = scalar_lea.vmem %s1, %s277
      $region40: #{feature_transform_forward.9} parent=31 // pred_fallthru
        _
      // Predicated region
      $region41: #{feature_transform_forward.9} parent=31 // pred_check
        %p279 = pneg %p129
      $region42: #{feature_transform_forward.9} parent=31 // pred_check_branch
        %281 = sbr.rel (%p279) target = $region44
      $region43: #{feature_transform_forward.9} parent=31 // pred_region
        %p282 = scmp.lt.s32.totalorder %s21, 1
        %s283 = scalar_select %p282, %s21, 1
        %s284 = smul.addr %s283, 8
        %s285 = smul.addr %s284, 4
        %s286 = scalar_lea.vmem %s3, %s285
      $region44: #{feature_transform_forward.9} parent=31 // pred_fallthru
        _
    $region32: #{feature_transform_forward.9} parent=5 // pred_fallthru
      _
    %p287 = scmp.le.s32.totalorder 1, %s13
    %p288 = scmp.lt.s32.totalorder %s13, 3
    %p289 = pnand %p287, %p288
    %p290 = pneg %p289
    // Predicated region
    $region45: #{feature_transform_forward.9} parent=5 // pred_check
      _
    $region46: #{feature_transform_forward.9} parent=5 // pred_check_branch
      %292 = sbr.rel (%p289) target = $region48
    $region47: #{feature_transform_forward.9} parent=5 // pred_region
      %s293 = ssub.s32 %s13, 1
      %s294 = sadd.s32 %s23, %s25
      %s295 = smul.u32 8, %s294
      %p296 = scmp.lt.s32.totalorder %s24, 1
      %s297 = scalar_select %p296, %s24, 1
      %p298 = scmp.lt.s32.totalorder %s295, 7
      %s299 = scalar_select %p298, %s295, 7
      %s300 = smul.addr %s297, 8
      %s301 = sadd.s32 %s299, %s300
      %s302 = smul.addr %s301, 4
      %s303 = scalar_lea.vmem %s0, %s302
      %p304 = pneg %p62
      %p305 = pneg %p59
      %p306 = scmp.lt.s32.totalorder %s24, 1
      %s307 = scalar_select %p306, %s24, 1
      %s308 = smul.addr %s307, 2
      %s309 = scalar_lea.vmem %s1, %s308
      %p310 = pneg %p88
      %p311 = pneg %p85
      %p312 = pneg %p109
      %p313 = pneg %p106
      %p314 = scmp.lt.s32.totalorder %s24, 1
      %s315 = scalar_select %p314, %s24, 1
      %s316 = smul.addr %s315, 8
      %s317 = smul.addr %s316, 4
      %s318 = scalar_lea.vmem %s3, %s317
      %p319 = pneg %p135
      %p320 = pneg %p132
      %p321 = pneg %p156
      %p322 = pneg %p153
      %p323 = pneg %p177
      %p324 = pneg %p174
      %p325 = pneg %p198
      %p326 = pneg %p195
      %p327 = pneg %p226
      %p328 = pneg %p223
      %p329 = scmp.lt.s32.totalorder %s23, 0
      %s330 = scalar_select %p329, %s23, 0
      %p331 = scmp.lt.s32.totalorder %s24, 1
      %s332 = scalar_select %p331, %s24, 1
      %s333 = smul.addr %s332, 8
      %s334 = smul.addr %s330, 16
      %s335 = sadd.s32 %s333, %s334
      %s336 = scalar_lea.vmem %s7, %s335
      %s337 = sadd.s32 %s23, %s25
      %s338 = smul.u32 8, %s337
      %p339 = scmp.lt.s32.totalorder %s24, 1
      %s340 = scalar_select %p339, %s24, 1
      %p341 = scmp.lt.s32.totalorder %s338, 7
      %s342 = scalar_select %p341, %s338, 7
      %s343 = smul.addr %s340, 8
      %s344 = sadd.s32 %s342, %s343
      %s345 = smul.addr %s344, 4
      %s346 = scalar_lea.vmem %s0, %s345
      %s347 = sadd.s32 %s23, %s25
      %s348 = smul.u32 8, %s347
      %p349 = scmp.lt.s32.totalorder %s24, 1
      %s350 = scalar_select %p349, %s24, 1
      %s351 = smul.addr %s350, 2
      %s352 = scalar_lea.vmem %s1, %s351
      %p353 = scmp.lt.s32.totalorder %s24, 1
      %s354 = scalar_select %p353, %s24, 1
      %s355 = smul.addr %s354, 8
      %s356 = smul.addr %s355, 4
      %s357 = scalar_lea.vmem %s3, %s356
      %p358 = scmp.lt.s32.totalorder %s23, 0
      %s359 = scalar_select %p358, %s23, 0
      %p360 = scmp.lt.s32.totalorder %s24, 1
      %s361 = scalar_select %p360, %s24, 1
      %s362 = smul.addr %s361, 8
      %s363 = smul.addr %s359, 16
      %s364 = sadd.s32 %s362, %s363
      %s365 = scalar_lea.vmem %s7, %s364
      %p367 = scmp.eq.s32.totalorder %s25, 0
      // Predicated region
      $region49: #{feature_transform_forward.9} parent=47 // pred_check
        %p368 = pneg %p367
      $region50: #{feature_transform_forward.9} parent=47 // pred_check_branch
        %370 = sbr.rel (%p368) target = $region52
      $region51: #{feature_transform_forward.9} parent=47 // pred_region
        %371 = vst [vmem:[#allocation2] sm:$0xff] -inf
        %372 = vst [vmem:[#allocation2 + $0x8] sm:$0xff] -inf
        %373 = vst [vmem:[#allocation2 + $0x10] sm:$0xff] -inf
        %374 = vst [vmem:[#allocation2 + $0x18] sm:$0xff] -inf
        %375 = vst [vmem:[#allocation2 + $0x20] sm:$0xff] -inf
        %376 = vst [vmem:[#allocation2 + $0x28] sm:$0xff] -inf
        %377 = vst [vmem:[#allocation2 + $0x30] sm:$0xff] -inf
        %378 = vst [vmem:[#allocation2 + $0x38] sm:$0xff] -inf
      $region52: #{feature_transform_forward.9} parent=47 // pred_fallthru
        _
      %v379 = vld [vmem:[%s346] sm:$0xf]
      %v380 = vld [vmem:[%s346 + $0x4] sm:$0xf]
      %v381 = vld [vmem:[%s346 + $0x8] sm:$0xf]
      %v382 = vld [vmem:[%s346 + $0xc] sm:$0xf]
      %v383 = vld [vmem:[%s346 + $0x10] sm:$0xf]
      %v384 = vld [vmem:[%s346 + $0x14] sm:$0xf]
      %v385 = vld [vmem:[%s346 + $0x18] sm:$0xf]
      %v386 = vld [vmem:[%s346 + $0x1c] sm:$0xf]
      %v387 = vld [vmem:[%s352] sm:$0x3]
      %v388 = vld [vmem:[%s2] sm:$0x1]
      %v390 = vperm.slane %v388, 0
      %v400 = vunpack.c.l.b16 %v379
      %v401 = vunpack.c.l.b16 %v380
      %v402 = vunpack.c.l.b16 %v381
      %v403 = vunpack.c.l.b16 %v382
      %v404 = vunpack.c.l.b16 %v383
      %v405 = vunpack.c.l.b16 %v384
      %v406 = vunpack.c.l.b16 %v385
      %v407 = vunpack.c.l.b16 %v386
      %v408 = vpack.c.b16 %v401, %v400
      %v409 = vpack.c.b16 %v403, %v402
      %v410 = vpack.c.b16 %v405, %v404
      %v411 = vpack.c.b16 %v407, %v406
      %vm412 = vcmask 23552
      %v414 = vsel %vm412, %v408, 0
      %v417 = vsel %vm412, %v409, 0
      %v420 = vsel %vm412, %v410, 0
      %v423 = vsel %vm412, %v411, 0
      %vm425 = vcmask 1040384
      %vm426 = vcmask 1041408
      %v427 = vsel %vm425, 4294967295, 65535
      %v428 = vsel %vm426, %v427, 0
      %v430 = vand.u32 %v387, %v428
      %432 = vmatpush.bf16.msra.mxu0 0
      %433 = vmatpush.bf16.msra.mxu0 0
      %434 = vmatpush.bf16.msra.mxu0 0
      %435 = vmatpush.bf16.msra.mxu0 0
      %436 = vmatpush.bf16.msra.mxu0 0
      %437 = vmatpush.bf16.msra.mxu0 0
      %438 = vmatpush.bf16.msra.mxu0 0
      %439 = vmatpush.bf16.msra.mxu0 %v430
      %440 = vmatmul.bf16.gmra.mxu0 %v414
      %v441 = vpop.f32.mrf.mxu0
      %v442 = vadd.f32 %v390, %v441
      %v443 = vpop.f32.mrf.mxu0
      %v444 = vadd.f32 %v390, %v443
      %445 = vmatmul.bf16.gmra.mxu0 %v417
      %v446 = vpop.f32.mrf.mxu0
      %v447 = vadd.f32 %v390, %v446
      %v448 = vpop.f32.mrf.mxu0
      %v449 = vadd.f32 %v390, %v448
      %450 = vmatmul.bf16.gmra.mxu0 %v420
      %v451 = vpop.f32.mrf.mxu0
      %v452 = vadd.f32 %v390, %v451
      %v453 = vpop.f32.mrf.mxu0
      %v454 = vadd.f32 %v390, %v453
      %455 = vmatmul.bf16.gmra.mxu0 %v423
      %v456 = vpop.f32.mrf.mxu0
      %v457 = vadd.f32 %v390, %v456
      %v458 = vpop.f32.mrf.mxu0
      %v459 = vadd.f32 %v390, %v458
      %460 = vdwg.mxu0
      %v461 = vmax.f32 %v442, 0.0
      %v462 = vmax.f32 %v444, 0.0
      %v463 = vmax.f32 %v447, 0.0
      %v464 = vmax.f32 %v449, 0.0
      %v465 = vmax.f32 %v452, 0.0
      %v466 = vmax.f32 %v454, 0.0
      %v467 = vmax.f32 %v457, 0.0
      %v468 = vmax.f32 %v459, 0.0
      %v469 = vpack.c.bf16 %v462, %v461
      %v470 = vpack.c.bf16 %v464, %v463
      %v471 = vpack.c.bf16 %v466, %v465
      %v472 = vpack.c.bf16 %v468, %v467
      %v473 = vld [vmem:[%s357] sm:$0xf]
      %v474 = vld [vmem:[%s357 + $0x4] sm:$0xf]
      %v475 = vld [vmem:[%s357 + $0x8] sm:$0xf]
      %v476 = vld [vmem:[%s357 + $0xc] sm:$0xf]
      %v477 = vld [vmem:[%s357 + $0x10] sm:$0xf]
      %v478 = vld [vmem:[%s357 + $0x14] sm:$0xf]
      %v479 = vld [vmem:[%s357 + $0x18] sm:$0xf]
      %v480 = vld [vmem:[%s357 + $0x1c] sm:$0xf]
      %v481 = vld [vmem:[%s4] sm:$0x1]
      %v483 = vperm.slane %v481, 0
      %v493 = vunpack.c.l.b16 %v473
      %v494 = vunpack.c.l.b16 %v474
      %v495 = vunpack.c.l.b16 %v475
      %v496 = vunpack.c.l.b16 %v476
      %v497 = vunpack.c.l.b16 %v477
      %v498 = vunpack.c.l.b16 %v478
      %v499 = vunpack.c.l.b16 %v479
      %v500 = vunpack.c.l.b16 %v480
      %v501 = vpack.c.b16 %v494, %v493
      %v502 = vpack.c.b16 %v496, %v495
      %v503 = vpack.c.b16 %v498, %v497
      %v504 = vpack.c.b16 %v500, %v499
      %vm509 = vcmask 523264
      %v511 = vsel %vm509, %v469, 0
      %v514 = vsel %vm509, %v470, 0
      %v517 = vsel %vm509, %v471, 0
      %v520 = vsel %vm509, %v472, 0
      %522 = vmatpush.bf16.msra.mxu0 0
      %523 = vmatpush.bf16.msra.mxu0 0
      %524 = vmatpush.bf16.msra.mxu0 0
      %525 = vmatpush.bf16.msra.mxu0 0
      %526 = vmatpush.bf16.msra.mxu0 %v504
      %527 = vmatpush.bf16.msra.mxu0 %v503
      %528 = vmatpush.bf16.msra.mxu0 %v502
      %529 = vmatpush.bf16.msra.mxu0 %v501
      %530 = vmatmul.bf16.gmra.mxu0 %v511
      %v531 = vpop.f32.mrf.mxu0
      %v532 = vadd.f32 %v483, %v531
      %v533 = vpop.f32.mrf.mxu0
      %v534 = vadd.f32 %v483, %v533
      %535 = vmatmul.bf16.gmra.mxu0 %v514
      %v536 = vpop.f32.mrf.mxu0
      %v537 = vadd.f32 %v483, %v536
      %v538 = vpop.f32.mrf.mxu0
      %v539 = vadd.f32 %v483, %v538
      %540 = vmatmul.bf16.gmra.mxu0 %v517
      %v541 = vpop.f32.mrf.mxu0
      %v542 = vadd.f32 %v483, %v541
      %v543 = vpop.f32.mrf.mxu0
      %v544 = vadd.f32 %v483, %v543
      %545 = vmatmul.bf16.gmra.mxu0 %v520
      %v546 = vpop.f32.mrf.mxu0
      %v547 = vadd.f32 %v483, %v546
      %v548 = vpop.f32.mrf.mxu0
      %v549 = vadd.f32 %v483, %v548
      %550 = vdwg.mxu0
      %v551 = vmax.f32 %v532, 0.0
      %v552 = vmax.f32 %v534, 0.0
      %v553 = vmax.f32 %v537, 0.0
      %v554 = vmax.f32 %v539, 0.0
      %v555 = vmax.f32 %v542, 0.0
      %v556 = vmax.f32 %v544, 0.0
      %v557 = vmax.f32 %v547, 0.0
      %v558 = vmax.f32 %v549, 0.0
      %v559 = vpack.c.bf16 %v552, %v551
      %v560 = vpack.c.bf16 %v554, %v553
      %v561 = vpack.c.bf16 %v556, %v555
      %v562 = vpack.c.bf16 %v558, %v557
      %v563 = vld [vmem:[%s5] sm:$0xff]
      %v564 = vld [vmem:[%s5 + $0x8] sm:$0xff]
      %v565 = vld [vmem:[%s5 + $0x10] sm:$0xff]
      %v566 = vld [vmem:[%s5 + $0x18] sm:$0xff]
      %v567 = vld [vmem:[%s5 + $0x20] sm:$0xff]
      %v568 = vld [vmem:[%s5 + $0x28] sm:$0xff]
      %v569 = vld [vmem:[%s5 + $0x30] sm:$0xff]
      %v570 = vld [vmem:[%s5 + $0x38] sm:$0xff]
      %v571 = vld [vmem:[%s5 + $0x40] sm:$0xff]
      %v572 = vld [vmem:[%s5 + $0x48] sm:$0xff]
      %v573 = vld [vmem:[%s5 + $0x50] sm:$0xff]
      %v574 = vld [vmem:[%s5 + $0x58] sm:$0xff]
      %v575 = vld [vmem:[%s5 + $0x60] sm:$0xff]
      %v576 = vld [vmem:[%s5 + $0x68] sm:$0xff]
      %v577 = vld [vmem:[%s5 + $0x70] sm:$0xff]
      %v578 = vld [vmem:[%s5 + $0x78] sm:$0xff]
      %v579 = vld [vmem:[%s5 + $0x80] sm:$0xff]
      %v580 = vld [vmem:[%s5 + $0x88] sm:$0xff]
      %v581 = vld [vmem:[%s5 + $0x90] sm:$0xff]
      %v582 = vld [vmem:[%s5 + $0x98] sm:$0xff]
      %v583 = vld [vmem:[%s5 + $0xa0] sm:$0xff]
      %v584 = vld [vmem:[%s5 + $0xa8] sm:$0xff]
      %v585 = vld [vmem:[%s5 + $0xb0] sm:$0xff]
      %v586 = vld [vmem:[%s5 + $0xb8] sm:$0xff]
      %v587 = vld [vmem:[%s5 + $0xc0] sm:$0xff]
      %v588 = vld [vmem:[%s5 + $0xc8] sm:$0xff]
      %v589 = vld [vmem:[%s5 + $0xd0] sm:$0xff]
      %v590 = vld [vmem:[%s5 + $0xd8] sm:$0xff]
      %v591 = vld [vmem:[%s5 + $0xe0] sm:$0xff]
      %v592 = vld [vmem:[%s5 + $0xe8] sm:$0xff]
      %v593 = vld [vmem:[%s5 + $0xf0] sm:$0xff]
      %v594 = vld [vmem:[%s5 + $0xf8] sm:$0xff]
      %v595 = vld [vmem:[%s5 + $0x100] sm:$0xff]
      %v596 = vld [vmem:[%s5 + $0x108] sm:$0xff]
      %v597 = vld [vmem:[%s5 + $0x110] sm:$0xff]
      %v598 = vld [vmem:[%s5 + $0x118] sm:$0xff]
      %v599 = vld [vmem:[%s5 + $0x120] sm:$0xff]
      %v600 = vld [vmem:[%s5 + $0x128] sm:$0xff]
      %v601 = vld [vmem:[%s5 + $0x130] sm:$0xff]
      %v602 = vld [vmem:[%s5 + $0x138] sm:$0xff]
      %v603 = vld [vmem:[%s5 + $0x140] sm:$0xff]
      %v604 = vld [vmem:[%s5 + $0x148] sm:$0xff]
      %v605 = vld [vmem:[%s5 + $0x150] sm:$0xff]
      %v606 = vld [vmem:[%s5 + $0x158] sm:$0xff]
      %v607 = vld [vmem:[%s5 + $0x160] sm:$0xff]
      %v608 = vld [vmem:[%s5 + $0x168] sm:$0xff]
      %v609 = vld [vmem:[%s5 + $0x170] sm:$0xff]
      %v610 = vld [vmem:[%s5 + $0x178] sm:$0xff]
      %v611 = vld [vmem:[%s5 + $0x180] sm:$0xff]
      %v612 = vld [vmem:[%s5 + $0x188] sm:$0xff]
      %v613 = vld [vmem:[%s5 + $0x190] sm:$0xff]
      %v614 = vld [vmem:[%s5 + $0x198] sm:$0xff]
      %v615 = vld [vmem:[%s5 + $0x1a0] sm:$0xff]
      %v616 = vld [vmem:[%s5 + $0x1a8] sm:$0xff]
      %v617 = vld [vmem:[%s5 + $0x1b0] sm:$0xff]
      %v618 = vld [vmem:[%s5 + $0x1b8] sm:$0xff]
      %v619 = vld [vmem:[%s5 + $0x1c0] sm:$0xff]
      %v620 = vld [vmem:[%s5 + $0x1c8] sm:$0xff]
      %v621 = vld [vmem:[%s5 + $0x1d0] sm:$0xff]
      %v622 = vld [vmem:[%s5 + $0x1d8] sm:$0xff]
      %v623 = vld [vmem:[%s5 + $0x1e0] sm:$0xff]
      %v624 = vld [vmem:[%s5 + $0x1e8] sm:$0xff]
      %v625 = vld [vmem:[%s5 + $0x1f0] sm:$0xff]
      %v626 = vld [vmem:[%s5 + $0x1f8] sm:$0xff]
      %v691 = vunpack.c.l.b16 %v563
      %v692 = vunpack.c.h.b16 %v563
      %v693 = vunpack.c.l.b16 %v564
      %v694 = vunpack.c.h.b16 %v564
      %v695 = vunpack.c.l.b16 %v565
      %v696 = vunpack.c.h.b16 %v565
      %v697 = vunpack.c.l.b16 %v566
      %v698 = vunpack.c.h.b16 %v566
      %v699 = vunpack.c.l.b16 %v567
      %v700 = vunpack.c.h.b16 %v567
      %v701 = vunpack.c.l.b16 %v568
      %v702 = vunpack.c.h.b16 %v568
      %v703 = vunpack.c.l.b16 %v569
      %v704 = vunpack.c.h.b16 %v569
      %v705 = vunpack.c.l.b16 %v570
      %v706 = vunpack.c.h.b16 %v570
      %v707 = vunpack.c.l.b16 %v571
      %v708 = vunpack.c.h.b16 %v571
      %v709 = vunpack.c.l.b16 %v572
      %v710 = vunpack.c.h.b16 %v572
      %v711 = vunpack.c.l.b16 %v573
      %v712 = vunpack.c.h.b16 %v573
      %v713 = vunpack.c.l.b16 %v574
      %v714 = vunpack.c.h.b16 %v574
      %v715 = vunpack.c.l.b16 %v575
      %v716 = vunpack.c.h.b16 %v575
      %v717 = vunpack.c.l.b16 %v576
      %v718 = vunpack.c.h.b16 %v576
      %v719 = vunpack.c.l.b16 %v577
      %v720 = vunpack.c.h.b16 %v577
      %v721 = vunpack.c.l.b16 %v578
      %v722 = vunpack.c.h.b16 %v578
      %v723 = vunpack.c.l.b16 %v579
      %v724 = vunpack.c.h.b16 %v579
      %v725 = vunpack.c.l.b16 %v580
      %v726 = vunpack.c.h.b16 %v580
      %v727 = vunpack.c.l.b16 %v581
      %v728 = vunpack.c.h.b16 %v581
      %v729 = vunpack.c.l.b16 %v582
      %v730 = vunpack.c.h.b16 %v582
      %v731 = vunpack.c.l.b16 %v583
      %v732 = vunpack.c.h.b16 %v583
      %v733 = vunpack.c.l.b16 %v584
      %v734 = vunpack.c.h.b16 %v584
      %v735 = vunpack.c.l.b16 %v585
      %v736 = vunpack.c.h.b16 %v585
      %v737 = vunpack.c.l.b16 %v586
      %v738 = vunpack.c.h.b16 %v586
      %v739 = vunpack.c.l.b16 %v587
      %v740 = vunpack.c.h.b16 %v587
      %v741 = vunpack.c.l.b16 %v588
      %v742 = vunpack.c.h.b16 %v588
      %v743 = vunpack.c.l.b16 %v589
      %v744 = vunpack.c.h.b16 %v589
      %v745 = vunpack.c.l.b16 %v590
      %v746 = vunpack.c.h.b16 %v590
      %v747 = vunpack.c.l.b16 %v591
      %v748 = vunpack.c.h.b16 %v591
      %v749 = vunpack.c.l.b16 %v592
      %v750 = vunpack.c.h.b16 %v592
      %v751 = vunpack.c.l.b16 %v593
      %v752 = vunpack.c.h.b16 %v593
      %v753 = vunpack.c.l.b16 %v594
      %v754 = vunpack.c.h.b16 %v594
      %v755 = vunpack.c.l.b16 %v595
      %v756 = vunpack.c.h.b16 %v595
      %v757 = vunpack.c.l.b16 %v596
      %v758 = vunpack.c.h.b16 %v596
      %v759 = vunpack.c.l.b16 %v597
      %v760 = vunpack.c.h.b16 %v597
      %v761 = vunpack.c.l.b16 %v598
      %v762 = vunpack.c.h.b16 %v598
      %v763 = vunpack.c.l.b16 %v599
      %v764 = vunpack.c.h.b16 %v599
      %v765 = vunpack.c.l.b16 %v600
      %v766 = vunpack.c.h.b16 %v600
      %v767 = vunpack.c.l.b16 %v601
      %v768 = vunpack.c.h.b16 %v601
      %v769 = vunpack.c.l.b16 %v602
      %v770 = vunpack.c.h.b16 %v602
      %v771 = vunpack.c.l.b16 %v603
      %v772 = vunpack.c.h.b16 %v603
      %v773 = vunpack.c.l.b16 %v604
      %v774 = vunpack.c.h.b16 %v604
      %v775 = vunpack.c.l.b16 %v605
      %v776 = vunpack.c.h.b16 %v605
      %v777 = vunpack.c.l.b16 %v606
      %v778 = vunpack.c.h.b16 %v606
      %v779 = vunpack.c.l.b16 %v607
      %v780 = vunpack.c.h.b16 %v607
      %v781 = vunpack.c.l.b16 %v608
      %v782 = vunpack.c.h.b16 %v608
      %v783 = vunpack.c.l.b16 %v609
      %v784 = vunpack.c.h.b16 %v609
      %v785 = vunpack.c.l.b16 %v610
      %v786 = vunpack.c.h.b16 %v610
      %v787 = vunpack.c.l.b16 %v611
      %v788 = vunpack.c.h.b16 %v611
      %v789 = vunpack.c.l.b16 %v612
      %v790 = vunpack.c.h.b16 %v612
      %v791 = vunpack.c.l.b16 %v613
      %v792 = vunpack.c.h.b16 %v613
      %v793 = vunpack.c.l.b16 %v614
      %v794 = vunpack.c.h.b16 %v614
      %v795 = vunpack.c.l.b16 %v615
      %v796 = vunpack.c.h.b16 %v615
      %v797 = vunpack.c.l.b16 %v616
      %v798 = vunpack.c.h.b16 %v616
      %v799 = vunpack.c.l.b16 %v617
      %v800 = vunpack.c.h.b16 %v617
      %v801 = vunpack.c.l.b16 %v618
      %v802 = vunpack.c.h.b16 %v618
      %v803 = vunpack.c.l.b16 %v619
      %v804 = vunpack.c.h.b16 %v619
      %v805 = vunpack.c.l.b16 %v620
      %v806 = vunpack.c.h.b16 %v620
      %v807 = vunpack.c.l.b16 %v621
      %v808 = vunpack.c.h.b16 %v621
      %v809 = vunpack.c.l.b16 %v622
      %v810 = vunpack.c.h.b16 %v622
      %v811 = vunpack.c.l.b16 %v623
      %v812 = vunpack.c.h.b16 %v623
      %v813 = vunpack.c.l.b16 %v624
      %v814 = vunpack.c.h.b16 %v624
      %v815 = vunpack.c.l.b16 %v625
      %v816 = vunpack.c.h.b16 %v625
      %v817 = vunpack.c.l.b16 %v626
      %v818 = vunpack.c.h.b16 %v626
      %v819 = vpack.c.b16 %v699, %v691
      %v820 = vpack.c.b16 %v700, %v692
      %v821 = vpack.c.b16 %v701, %v693
      %v822 = vpack.c.b16 %v702, %v694
      %v823 = vpack.c.b16 %v703, %v695
      %v824 = vpack.c.b16 %v704, %v696
      %v825 = vpack.c.b16 %v705, %v697
      %v826 = vpack.c.b16 %v706, %v698
      %v827 = vpack.c.b16 %v715, %v707
      %v828 = vpack.c.b16 %v716, %v708
      %v829 = vpack.c.b16 %v717, %v709
      %v830 = vpack.c.b16 %v718, %v710
      %v831 = vpack.c.b16 %v719, %v711
      %v832 = vpack.c.b16 %v720, %v712
      %v833 = vpack.c.b16 %v721, %v713
      %v834 = vpack.c.b16 %v722, %v714
      %v835 = vpack.c.b16 %v731, %v723
      %v836 = vpack.c.b16 %v732, %v724
      %v837 = vpack.c.b16 %v733, %v725
      %v838 = vpack.c.b16 %v734, %v726
      %v839 = vpack.c.b16 %v735, %v727
      %v840 = vpack.c.b16 %v736, %v728
      %v841 = vpack.c.b16 %v737, %v729
      %v842 = vpack.c.b16 %v738, %v730
      %v843 = vpack.c.b16 %v747, %v739
      %v844 = vpack.c.b16 %v748, %v740
      %v845 = vpack.c.b16 %v749, %v741
      %v846 = vpack.c.b16 %v750, %v742
      %v847 = vpack.c.b16 %v751, %v743
      %v848 = vpack.c.b16 %v752, %v744
      %v849 = vpack.c.b16 %v753, %v745
      %v850 = vpack.c.b16 %v754, %v746
      %v851 = vpack.c.b16 %v763, %v755
      %v852 = vpack.c.b16 %v764, %v756
      %v853 = vpack.c.b16 %v765, %v757
      %v854 = vpack.c.b16 %v766, %v758
      %v855 = vpack.c.b16 %v767, %v759
      %v856 = vpack.c.b16 %v768, %v760
      %v857 = vpack.c.b16 %v769, %v761
      %v858 = vpack.c.b16 %v770, %v762
      %v859 = vpack.c.b16 %v779, %v771
      %v860 = vpack.c.b16 %v780, %v772
      %v861 = vpack.c.b16 %v781, %v773
      %v862 = vpack.c.b16 %v782, %v774
      %v863 = vpack.c.b16 %v783, %v775
      %v864 = vpack.c.b16 %v784, %v776
      %v865 = vpack.c.b16 %v785, %v777
      %v866 = vpack.c.b16 %v786, %v778
      %v867 = vpack.c.b16 %v795, %v787
      %v868 = vpack.c.b16 %v796, %v788
      %v869 = vpack.c.b16 %v797, %v789
      %v870 = vpack.c.b16 %v798, %v790
      %v871 = vpack.c.b16 %v799, %v791
      %v872 = vpack.c.b16 %v800, %v792
      %v873 = vpack.c.b16 %v801, %v793
      %v874 = vpack.c.b16 %v802, %v794
      %v875 = vpack.c.b16 %v811, %v803
      %v876 = vpack.c.b16 %v812, %v804
      %v877 = vpack.c.b16 %v813, %v805
      %v878 = vpack.c.b16 %v814, %v806
      %v879 = vpack.c.b16 %v815, %v807
      %v880 = vpack.c.b16 %v816, %v808
      %v881 = vpack.c.b16 %v817, %v809
      %v882 = vpack.c.b16 %v818, %v810
      %947 = vmatpush.bf16.msra.mxu0 %v875
      %948 = vmatpush.bf16.msra.mxu0 %v867
      %949 = vmatpush.bf16.msra.mxu0 %v859
      %950 = vmatpush.bf16.msra.mxu0 %v851
      %951 = vmatpush.bf16.msra.mxu0 %v843
      %952 = vmatpush.bf16.msra.mxu0 %v835
      %953 = vmatpush.bf16.msra.mxu0 %v827
      %954 = vmatpush.bf16.msra.mxu0 %v819
      %955 = vmatmul.bf16.gmra.mxu0 %v559
      %v956 = vpop.f32.mrf.mxu0
      %v957 = vadd.f32 0.0, %v956
      %v958 = vpop.f32.mrf.mxu0
      %v959 = vadd.f32 0.0, %v958
      %960 = vmatmul.bf16.gmra.mxu0 %v560
      %v961 = vpop.f32.mrf.mxu0
      %v962 = vadd.f32 0.0, %v961
      %v963 = vpop.f32.mrf.mxu0
      %v964 = vadd.f32 0.0, %v963
      %965 = vmatmul.bf16.gmra.mxu0 %v561
      %v966 = vpop.f32.mrf.mxu0
      %v967 = vadd.f32 0.0, %v966
      %v968 = vpop.f32.mrf.mxu0
      %v969 = vadd.f32 0.0, %v968
      %970 = vmatmul.bf16.gmra.mxu0 %v562
      %v971 = vpop.f32.mrf.mxu0
      %v972 = vadd.f32 0.0, %v971
      %v973 = vpop.f32.mrf.mxu0
      %v974 = vadd.f32 0.0, %v973
      %975 = vdwg.mxu0
      %976 = vmatpush.bf16.msra.mxu0 %v876
      %977 = vmatpush.bf16.msra.mxu0 %v868
      %978 = vmatpush.bf16.msra.mxu0 %v860
      %979 = vmatpush.bf16.msra.mxu0 %v852
      %980 = vmatpush.bf16.msra.mxu0 %v844
      %981 = vmatpush.bf16.msra.mxu0 %v836
      %982 = vmatpush.bf16.msra.mxu0 %v828
      %983 = vmatpush.bf16.msra.mxu0 %v820
      %984 = vmatmul.bf16.gmra.mxu0 %v559
      %v985 = vpop.f32.mrf.mxu0
      %v986 = vadd.f32 0.0, %v985
      %v987 = vpop.f32.mrf.mxu0
      %v988 = vadd.f32 0.0, %v987
      %989 = vmatmul.bf16.gmra.mxu0 %v560
      %v990 = vpop.f32.mrf.mxu0
      %v991 = vadd.f32 0.0, %v990
      %v992 = vpop.f32.mrf.mxu0
      %v993 = vadd.f32 0.0, %v992
      %994 = vmatmul.bf16.gmra.mxu0 %v561
      %v995 = vpop.f32.mrf.mxu0
      %v996 = vadd.f32 0.0, %v995
      %v997 = vpop.f32.mrf.mxu0
      %v998 = vadd.f32 0.0, %v997
      %999 = vmatmul.bf16.gmra.mxu0 %v562
      %v1000 = vpop.f32.mrf.mxu0
      %v1001 = vadd.f32 0.0, %v1000
      %v1002 = vpop.f32.mrf.mxu0
      %v1003 = vadd.f32 0.0, %v1002
      %1004 = vdwg.mxu0
      %1005 = vmatpush.bf16.msra.mxu0 %v877
      %1006 = vmatpush.bf16.msra.mxu0 %v869
      %1007 = vmatpush.bf16.msra.mxu0 %v861
      %1008 = vmatpush.bf16.msra.mxu0 %v853
      %1009 = vmatpush.bf16.msra.mxu0 %v845
      %1010 = vmatpush.bf16.msra.mxu0 %v837
      %1011 = vmatpush.bf16.msra.mxu0 %v829
      %1012 = vmatpush.bf16.msra.mxu0 %v821
      %1013 = vmatmul.bf16.gmra.mxu0 %v559
      %v1014 = vpop.f32.mrf.mxu0
      %v1015 = vadd.f32 0.0, %v1014
      %v1016 = vpop.f32.mrf.mxu0
      %v1017 = vadd.f32 0.0, %v1016
      %1018 = vmatmul.bf16.gmra.mxu0 %v560
      %v1019 = vpop.f32.mrf.mxu0
      %v1020 = vadd.f32 0.0, %v1019
      %v1021 = vpop.f32.mrf.mxu0
      %v1022 = vadd.f32 0.0, %v1021
      %1023 = vmatmul.bf16.gmra.mxu0 %v561
      %v1024 = vpop.f32.mrf.mxu0
      %v1025 = vadd.f32 0.0, %v1024
      %v1026 = vpop.f32.mrf.mxu0
      %v1027 = vadd.f32 0.0, %v1026
      %1028 = vmatmul.bf16.gmra.mxu0 %v562
      %v1029 = vpop.f32.mrf.mxu0
      %v1030 = vadd.f32 0.0, %v1029
      %v1031 = vpop.f32.mrf.mxu0
      %v1032 = vadd.f32 0.0, %v1031
      %1033 = vdwg.mxu0
      %1034 = vmatpush.bf16.msra.mxu0 %v878
      %1035 = vmatpush.bf16.msra.mxu0 %v870
      %1036 = vmatpush.bf16.msra.mxu0 %v862
      %1037 = vmatpush.bf16.msra.mxu0 %v854
      %1038 = vmatpush.bf16.msra.mxu0 %v846
      %1039 = vmatpush.bf16.msra.mxu0 %v838
      %1040 = vmatpush.bf16.msra.mxu0 %v830
      %1041 = vmatpush.bf16.msra.mxu0 %v822
      %1042 = vmatmul.bf16.gmra.mxu0 %v559
      %v1043 = vpop.f32.mrf.mxu0
      %v1044 = vadd.f32 0.0, %v1043
      %v1045 = vpop.f32.mrf.mxu0
      %v1046 = vadd.f32 0.0, %v1045
      %1047 = vmatmul.bf16.gmra.mxu0 %v560
      %v1048 = vpop.f32.mrf.mxu0
      %v1049 = vadd.f32 0.0, %v1048
      %v1050 = vpop.f32.mrf.mxu0
      %v1051 = vadd.f32 0.0, %v1050
      %1052 = vmatmul.bf16.gmra.mxu0 %v561
      %v1053 = vpop.f32.mrf.mxu0
      %v1054 = vadd.f32 0.0, %v1053
      %v1055 = vpop.f32.mrf.mxu0
      %v1056 = vadd.f32 0.0, %v1055
      %1057 = vmatmul.bf16.gmra.mxu0 %v562
      %v1058 = vpop.f32.mrf.mxu0
      %v1059 = vadd.f32 0.0, %v1058
      %v1060 = vpop.f32.mrf.mxu0
      %v1061 = vadd.f32 0.0, %v1060
      %1062 = vdwg.mxu0
      %1063 = vmatpush.bf16.msra.mxu0 %v879
      %1064 = vmatpush.bf16.msra.mxu0 %v871
      %1065 = vmatpush.bf16.msra.mxu0 %v863
      %1066 = vmatpush.bf16.msra.mxu0 %v855
      %1067 = vmatpush.bf16.msra.mxu0 %v847
      %1068 = vmatpush.bf16.msra.mxu0 %v839
      %1069 = vmatpush.bf16.msra.mxu0 %v831
      %1070 = vmatpush.bf16.msra.mxu0 %v823
      %1071 = vmatmul.bf16.gmra.mxu0 %v559
      %v1072 = vpop.f32.mrf.mxu0
      %v1073 = vadd.f32 0.0, %v1072
      %v1074 = vpop.f32.mrf.mxu0
      %v1075 = vadd.f32 0.0, %v1074
      %1076 = vmatmul.bf16.gmra.mxu0 %v560
      %v1077 = vpop.f32.mrf.mxu0
      %v1078 = vadd.f32 0.0, %v1077
      %v1079 = vpop.f32.mrf.mxu0
      %v1080 = vadd.f32 0.0, %v1079
      %1081 = vmatmul.bf16.gmra.mxu0 %v561
      %v1082 = vpop.f32.mrf.mxu0
      %v1083 = vadd.f32 0.0, %v1082
      %v1084 = vpop.f32.mrf.mxu0
      %v1085 = vadd.f32 0.0, %v1084
      %1086 = vmatmul.bf16.gmra.mxu0 %v562
      %v1087 = vpop.f32.mrf.mxu0
      %v1088 = vadd.f32 0.0, %v1087
      %v1089 = vpop.f32.mrf.mxu0
      %v1090 = vadd.f32 0.0, %v1089
      %1091 = vdwg.mxu0
      %1092 = vmatpush.bf16.msra.mxu0 %v880
      %1093 = vmatpush.bf16.msra.mxu0 %v872
      %1094 = vmatpush.bf16.msra.mxu0 %v864
      %1095 = vmatpush.bf16.msra.mxu0 %v856
      %1096 = vmatpush.bf16.msra.mxu0 %v848
      %1097 = vmatpush.bf16.msra.mxu0 %v840
      %1098 = vmatpush.bf16.msra.mxu0 %v832
      %1099 = vmatpush.bf16.msra.mxu0 %v824
      %1100 = vmatmul.bf16.gmra.mxu0 %v559
      %v1101 = vpop.f32.mrf.mxu0
      %v1102 = vadd.f32 0.0, %v1101
      %v1103 = vpop.f32.mrf.mxu0
      %v1104 = vadd.f32 0.0, %v1103
      %1105 = vmatmul.bf16.gmra.mxu0 %v560
      %v1106 = vpop.f32.mrf.mxu0
      %v1107 = vadd.f32 0.0, %v1106
      %v1108 = vpop.f32.mrf.mxu0
      %v1109 = vadd.f32 0.0, %v1108
      %1110 = vmatmul.bf16.gmra.mxu0 %v561
      %v1111 = vpop.f32.mrf.mxu0
      %v1112 = vadd.f32 0.0, %v1111
      %v1113 = vpop.f32.mrf.mxu0
      %v1114 = vadd.f32 0.0, %v1113
      %1115 = vmatmul.bf16.gmra.mxu0 %v562
      %v1116 = vpop.f32.mrf.mxu0
      %v1117 = vadd.f32 0.0, %v1116
      %v1118 = vpop.f32.mrf.mxu0
      %v1119 = vadd.f32 0.0, %v1118
      %1120 = vdwg.mxu0
      %1121 = vmatpush.bf16.msra.mxu0 %v881
      %1122 = vmatpush.bf16.msra.mxu0 %v873
      %1123 = vmatpush.bf16.msra.mxu0 %v865
      %1124 = vmatpush.bf16.msra.mxu0 %v857
      %1125 = vmatpush.bf16.msra.mxu0 %v849
      %1126 = vmatpush.bf16.msra.mxu0 %v841
      %1127 = vmatpush.bf16.msra.mxu0 %v833
      %1128 = vmatpush.bf16.msra.mxu0 %v825
      %1129 = vmatmul.bf16.gmra.mxu0 %v559
      %v1130 = vpop.f32.mrf.mxu0
      %v1131 = vadd.f32 0.0, %v1130
      %v1132 = vpop.f32.mrf.mxu0
      %v1133 = vadd.f32 0.0, %v1132
      %1134 = vmatmul.bf16.gmra.mxu0 %v560
      %v1135 = vpop.f32.mrf.mxu0
      %v1136 = vadd.f32 0.0, %v1135
      %v1137 = vpop.f32.mrf.mxu0
      %v1138 = vadd.f32 0.0, %v1137
      %1139 = vmatmul.bf16.gmra.mxu0 %v561
      %v1140 = vpop.f32.mrf.mxu0
      %v1141 = vadd.f32 0.0, %v1140
      %v1142 = vpop.f32.mrf.mxu0
      %v1143 = vadd.f32 0.0, %v1142
      %1144 = vmatmul.bf16.gmra.mxu0 %v562
      %v1145 = vpop.f32.mrf.mxu0
      %v1146 = vadd.f32 0.0, %v1145
      %v1147 = vpop.f32.mrf.mxu0
      %v1148 = vadd.f32 0.0, %v1147
      %1149 = vdwg.mxu0
      %1150 = vmatpush.bf16.msra.mxu0 %v882
      %1151 = vmatpush.bf16.msra.mxu0 %v874
      %1152 = vmatpush.bf16.msra.mxu0 %v866
      %1153 = vmatpush.bf16.msra.mxu0 %v858
      %1154 = vmatpush.bf16.msra.mxu0 %v850
      %1155 = vmatpush.bf16.msra.mxu0 %v842
      %1156 = vmatpush.bf16.msra.mxu0 %v834
      %1157 = vmatpush.bf16.msra.mxu0 %v826
      %1158 = vmatmul.bf16.gmra.mxu0 %v559
      %v1159 = vpop.f32.mrf.mxu0
      %v1160 = vadd.f32 0.0, %v1159
      %v1161 = vpop.f32.mrf.mxu0
      %v1162 = vadd.f32 0.0, %v1161
      %1163 = vmatmul.bf16.gmra.mxu0 %v560
      %v1164 = vpop.f32.mrf.mxu0
      %v1165 = vadd.f32 0.0, %v1164
      %v1166 = vpop.f32.mrf.mxu0
      %v1167 = vadd.f32 0.0, %v1166
      %1168 = vmatmul.bf16.gmra.mxu0 %v561
      %v1169 = vpop.f32.mrf.mxu0
      %v1170 = vadd.f32 0.0, %v1169
      %v1171 = vpop.f32.mrf.mxu0
      %v1172 = vadd.f32 0.0, %v1171
      %1173 = vmatmul.bf16.gmra.mxu0 %v562
      %v1174 = vpop.f32.mrf.mxu0
      %v1175 = vadd.f32 0.0, %v1174
      %v1176 = vpop.f32.mrf.mxu0
      %v1177 = vadd.f32 0.0, %v1176
      %1178 = vdwg.mxu0
      %v1179 = vmax.f32 %v957, %v959
      %v1180 = vmax.f32 %v1179, %v962
      %v1181 = vmax.f32 %v1180, %v964
      %v1182 = vmax.f32 %v1181, %v967
      %v1183 = vmax.f32 %v1182, %v969
      %v1184 = vmax.f32 %v1183, %v972
      %v1185 = vmax.f32 %v1184, %v974
      %v1186 = vmax.f32 %v986, %v988
      %v1187 = vmax.f32 %v1186, %v991
      %v1188 = vmax.f32 %v1187, %v993
      %v1189 = vmax.f32 %v1188, %v996
      %v1190 = vmax.f32 %v1189, %v998
      %v1191 = vmax.f32 %v1190, %v1001
      %v1192 = vmax.f32 %v1191, %v1003
      %v1193 = vmax.f32 %v1015, %v1017
      %v1194 = vmax.f32 %v1193, %v1020
      %v1195 = vmax.f32 %v1194, %v1022
      %v1196 = vmax.f32 %v1195, %v1025
      %v1197 = vmax.f32 %v1196, %v1027
      %v1198 = vmax.f32 %v1197, %v1030
      %v1199 = vmax.f32 %v1198, %v1032
      %v1200 = vmax.f32 %v1044, %v1046
      %v1201 = vmax.f32 %v1200, %v1049
      %v1202 = vmax.f32 %v1201, %v1051
      %v1203 = vmax.f32 %v1202, %v1054
      %v1204 = vmax.f32 %v1203, %v1056
      %v1205 = vmax.f32 %v1204, %v1059
      %v1206 = vmax.f32 %v1205, %v1061
      %v1207 = vmax.f32 %v1073, %v1075
      %v1208 = vmax.f32 %v1207, %v1078
      %v1209 = vmax.f32 %v1208, %v1080
      %v1210 = vmax.f32 %v1209, %v1083
      %v1211 = vmax.f32 %v1210, %v1085
      %v1212 = vmax.f32 %v1211, %v1088
      %v1213 = vmax.f32 %v1212, %v1090
      %v1214 = vmax.f32 %v1102, %v1104
      %v1215 = vmax.f32 %v1214, %v1107
      %v1216 = vmax.f32 %v1215, %v1109
      %v1217 = vmax.f32 %v1216, %v1112
      %v1218 = vmax.f32 %v1217, %v1114
      %v1219 = vmax.f32 %v1218, %v1117
      %v1220 = vmax.f32 %v1219, %v1119
      %v1221 = vmax.f32 %v1131, %v1133
      %v1222 = vmax.f32 %v1221, %v1136
      %v1223 = vmax.f32 %v1222, %v1138
      %v1224 = vmax.f32 %v1223, %v1141
      %v1225 = vmax.f32 %v1224, %v1143
      %v1226 = vmax.f32 %v1225, %v1146
      %v1227 = vmax.f32 %v1226, %v1148
      %v1228 = vmax.f32 %v1160, %v1162
      %v1229 = vmax.f32 %v1228, %v1165
      %v1230 = vmax.f32 %v1229, %v1167
      %v1231 = vmax.f32 %v1230, %v1170
      %v1232 = vmax.f32 %v1231, %v1172
      %v1233 = vmax.f32 %v1232, %v1175
      %v1234 = vmax.f32 %v1233, %v1177
      %v1235 = vld [vmem:[#allocation2] sm:$0xff]
      %v1236 = vld [vmem:[#allocation2 + $0x8] sm:$0xff]
      %v1237 = vld [vmem:[#allocation2 + $0x10] sm:$0xff]
      %v1238 = vld [vmem:[#allocation2 + $0x18] sm:$0xff]
      %v1239 = vld [vmem:[#allocation2 + $0x20] sm:$0xff]
      %v1240 = vld [vmem:[#allocation2 + $0x28] sm:$0xff]
      %v1241 = vld [vmem:[#allocation2 + $0x30] sm:$0xff]
      %v1242 = vld [vmem:[#allocation2 + $0x38] sm:$0xff]
      %v1243 = vmax.f32 %v1235, %v1185
      %v1244 = vmax.f32 %v1236, %v1192
      %v1245 = vmax.f32 %v1237, %v1199
      %v1246 = vmax.f32 %v1238, %v1206
      %v1247 = vmax.f32 %v1239, %v1213
      %v1248 = vmax.f32 %v1240, %v1220
      %v1249 = vmax.f32 %v1241, %v1227
      %v1250 = vmax.f32 %v1242, %v1234
      %1251 = vst [vmem:[#allocation2] sm:$0xff] %v1243
      %1252 = vst [vmem:[#allocation2 + $0x8] sm:$0xff] %v1244
      %1253 = vst [vmem:[#allocation2 + $0x10] sm:$0xff] %v1245
      %1254 = vst [vmem:[#allocation2 + $0x18] sm:$0xff] %v1246
      %1255 = vst [vmem:[#allocation2 + $0x20] sm:$0xff] %v1247
      %1256 = vst [vmem:[#allocation2 + $0x28] sm:$0xff] %v1248
      %1257 = vst [vmem:[#allocation2 + $0x30] sm:$0xff] %v1249
      %1258 = vst [vmem:[#allocation2 + $0x38] sm:$0xff] %v1250
      // Predicated region
      $region53: #{feature_transform_forward.9} parent=47 // pred_check
        %p1259 = pneg %p367
      $region54: #{feature_transform_forward.9} parent=47 // pred_check_branch
        %1261 = sbr.rel (%p1259) target = $region56
      $region55: #{feature_transform_forward.9} parent=47 // pred_region
        %v1262 = vld [vmem:[%s6] sm:$0xff]
        %v1263 = vld [vmem:[#allocation2] sm:$0xff]
        %v1264 = vld [vmem:[#allocation2 + $0x8] sm:$0xff]
        %v1265 = vld [vmem:[#allocation2 + $0x10] sm:$0xff]
        %v1266 = vld [vmem:[#allocation2 + $0x18] sm:$0xff]
        %v1267 = vld [vmem:[#allocation2 + $0x20] sm:$0xff]
        %v1268 = vld [vmem:[#allocation2 + $0x28] sm:$0xff]
        %v1269 = vld [vmem:[#allocation2 + $0x30] sm:$0xff]
        %v1270 = vld [vmem:[#allocation2 + $0x38] sm:$0xff]
        %v1271 = vrot.slane %v1263, 4
        %v1272 = vmax.f32 %v1263, %v1271
        %v1273 = vrot.slane %v1272, 2
        %v1274 = vmax.f32 %v1272, %v1273
        %v1275 = vrot.slane %v1274, 1
        %v1276 = vmax.f32 %v1274, %v1275
        %v1277 = vrot.slane %v1264, 4
        %v1278 = vmax.f32 %v1264, %v1277
        %v1279 = vrot.slane %v1278, 2
        %v1280 = vmax.f32 %v1278, %v1279
        %v1281 = vrot.slane %v1280, 1
        %v1282 = vmax.f32 %v1280, %v1281
        %v1283 = vrot.slane %v1265, 4
        %v1284 = vmax.f32 %v1265, %v1283
        %v1285 = vrot.slane %v1284, 2
        %v1286 = vmax.f32 %v1284, %v1285
        %v1287 = vrot.slane %v1286, 1
        %v1288 = vmax.f32 %v1286, %v1287
        %v1289 = vrot.slane %v1266, 4
        %v1290 = vmax.f32 %v1266, %v1289
        %v1291 = vrot.slane %v1290, 2
        %v1292 = vmax.f32 %v1290, %v1291
        %v1293 = vrot.slane %v1292, 1
        %v1294 = vmax.f32 %v1292, %v1293
        %v1295 = vrot.slane %v1267, 4
        %v1296 = vmax.f32 %v1267, %v1295
        %v1297 = vrot.slane %v1296, 2
        %v1298 = vmax.f32 %v1296, %v1297
        %v1299 = vrot.slane %v1298, 1
        %v1300 = vmax.f32 %v1298, %v1299
        %v1301 = vrot.slane %v1268, 4
        %v1302 = vmax.f32 %v1268, %v1301
        %v1303 = vrot.slane %v1302, 2
        %v1304 = vmax.f32 %v1302, %v1303
        %v1305 = vrot.slane %v1304, 1
        %v1306 = vmax.f32 %v1304, %v1305
        %v1307 = vrot.slane %v1269, 4
        %v1308 = vmax.f32 %v1269, %v1307
        %v1309 = vrot.slane %v1308, 2
        %v1310 = vmax.f32 %v1308, %v1309
        %v1311 = vrot.slane %v1310, 1
        %v1312 = vmax.f32 %v1310, %v1311
        %v1313 = vrot.slane %v1270, 4
        %v1314 = vmax.f32 %v1270, %v1313
        %v1315 = vrot.slane %v1314, 2
        %v1316 = vmax.f32 %v1314, %v1315
        %v1317 = vrot.slane %v1316, 1
        %v1318 = vmax.f32 %v1316, %v1317
        %v1320 = vperm.slane %v1262, 0
        %v1321 = vperm.slane %v1262, 1
        %v1322 = vperm.slane %v1262, 2
        %v1323 = vperm.slane %v1262, 3
        %v1324 = vperm.slane %v1262, 4
        %v1325 = vperm.slane %v1262, 5
        %v1326 = vperm.slane %v1262, 6
        %v1327 = vperm.slane %v1262, 7
        %v1336 = vadd.f32 %v1276, %v1320
        %v1337 = vadd.f32 %v1282, %v1321
        %v1338 = vadd.f32 %v1288, %v1322
        %v1339 = vadd.f32 %v1294, %v1323
        %v1340 = vadd.f32 %v1300, %v1324
        %v1341 = vadd.f32 %v1306, %v1325
        %v1342 = vadd.f32 %v1312, %v1326
        %v1343 = vadd.f32 %v1318, %v1327
        %v1344 = vmax.f32 %v1336, 0.0
        %v1345 = vmax.f32 %v1337, 0.0
        %v1346 = vmax.f32 %v1338, 0.0
        %v1347 = vmax.f32 %v1339, 0.0
        %v1348 = vmax.f32 %v1340, 0.0
        %v1349 = vmax.f32 %v1341, 0.0
        %v1350 = vmax.f32 %v1342, 0.0
        %v1351 = vmax.f32 %v1343, 0.0
        %v1360 = vrot.slane %v1345, 7
        %v1361 = vrot.slane %v1346, 6
        %v1362 = vrot.slane %v1347, 5
        %v1363 = vrot.slane %v1348, 4
        %v1364 = vrot.slane %v1349, 3
        %v1365 = vrot.slane %v1350, 2
        %v1366 = vrot.slane %v1351, 1
        %v1367 = vsel %vm425, %v1344, %v1360
        %vm1368 = vcmask 1042434
        %v1369 = vsel %vm1368, %v1361, %v1362
        %v1370 = vsel %vm426, %v1367, %v1369
        %vm1371 = vcmask 1044484
        %v1372 = vsel %vm1371, %v1363, %v1364
        %vm1373 = vcmask 1046534
        %v1374 = vsel %vm1373, %v1365, %v1366
        %vm1375 = vcmask 1045508
        %v1376 = vsel %vm1375, %v1372, %v1374
        %vm1377 = vcmask 1043456
        %v1378 = vsel %vm1377, %v1370, %v1376
        %1380 = vst [vmem:[%s365] sm:$0xff] %v1378
      $region56: #{feature_transform_forward.9} parent=47 // pred_fallthru
        _
      %p1381 = scmp.lt.s32.totalorder %s23, 0
      %s1382 = scalar_select %p1381, %s23, 0
      %p1383 = scmp.lt.s32.totalorder %s24, 1
      %s1384 = scalar_select %p1383, %s24, 1
      %s1385 = smul.addr %s1384, 8
      %s1386 = smul.addr %s1382, 16
      %s1387 = sadd.s32 %s1385, %s1386
      %s1388 = scalar_lea.vmem %s7, %s1387
      // Predicated region
      $region57: #{feature_transform_forward.9} parent=47 // pred_check
        %p1389 = pneg %p223
      $region58: #{feature_transform_forward.9} parent=47 // pred_check_branch
        %1391 = sbr.rel (%p1389) target = $region60
      $region59: #{feature_transform_forward.9} parent=47 // pred_region
        _
      $region60: #{feature_transform_forward.9} parent=47 // pred_fallthru
        _
    $region48: #{feature_transform_forward.9} parent=5 // pred_fallthru
      _
    %p1392 = scmp.le.s32.totalorder 2, %s13
    // Predicated region
    $region61: #{feature_transform_forward.9} parent=5 // pred_check
      %p1393 = pneg %p1392
    $region62: #{feature_transform_forward.9} parent=5 // pred_check_branch
      %1395 = sbr.rel (%p1393) target = $region64
    $region63: #{feature_transform_forward.9} parent=5 // pred_region
      %s1396 = ssub.s32 %s13, 2
      // Predicated region
      $region65: #{feature_transform_forward.9} parent=63 // pred_check
        %p1397 = pneg %p229
      $region66: #{feature_transform_forward.9} parent=63 // pred_check_branch
        %1399 = sbr.rel (%p1397) target = $region68
      $region67: #{feature_transform_forward.9} parent=63 // pred_region
        %p1400 = scmp.lt.s32.totalorder %s26, 0
        %s1401 = scalar_select %p1400, %s26, 0
        %p1402 = scmp.lt.s32.totalorder %s27, 1
        %s1403 = scalar_select %p1402, %s27, 1
        %s1404 = smul.addr %s1403, 8
        %s1405 = smul.addr %s1401, 16
        %s1406 = sadd.s32 %s1404, %s1405
        %s1407 = scalar_lea.vmem %s7, %s1406
      $region68: #{feature_transform_forward.9} parent=63 // pred_fallthru
        _
    $region64: #{feature_transform_forward.9} parent=5 // pred_fallthru
      _
  $region6: #{feature_transform_forward.9} parent=0 // loop_footer
    %s17 = sadd.s32 1, %s13
  $region7: #{feature_transform_forward.9} parent=0 // loop_footer_branch
    %12 = sbr.rel target = $region3
  $region8: #{feature_transform_forward.9} parent=0 // loop_exit
    _

// kernel: feature_transform_forward.8
$region0: #{feature_transform_forward.8}
  #allocation0 [shape = 'u32[]', space=smem, size = 0x4, offset = 0x4, fixed_abs, tag = 'smem constant byte address 0x4 - core index']
  #allocation1 [shape = 'u32[72,128]{1,0:T(1,128)}', space=vmem, size = 0x9000, scoped, tag = 'internal scratch']
  %s0 = inlined_call_operand.vmem [shape: bf16[2,1024], index: 0, kind: input, shape index: {}]
  %s1 = inlined_call_operand.vmem [shape: bf16[1024,512], index: 1, kind: input, shape index: {}]
  %s2 = inlined_call_operand.vmem [shape: f32[1,512], index: 2, kind: input, shape index: {}]
  %s3 = inlined_call_operand.vmem [shape: bf16[512,128], index: 3, kind: input, shape index: {}]
  %s4 = inlined_call_operand.vmem [shape: f32[1,128], index: 4, kind: input, shape index: {}]
  %s5 = inlined_call_operand.vmem [shape: bf16[128,4096], index: 5, kind: input, shape index: {}]
  %s6 = inlined_call_operand.vmem [shape: f32[1,4096], index: 6, kind: input, shape index: {}]
  %s7 = inlined_call_operand.vmem [shape: f32[2,4096], index: 7, kind: output, shape index: {}]
  %s8 = sld [smem:[#allocation0]]
  $region38: #{feature_transform_forward.8} parent=0
    _
  %s10 = ssub.s32 1, %s8
  %s11 = scalar_select 0, %s10, %s8
  // Predicated region
  $region2: #{feature_transform_forward.8} parent=0 // pred_check
    _
  $region3: #{feature_transform_forward.8} parent=0 // pred_check_branch
    %13 = sbr.rel (0) target = $region5
  $region4: #{feature_transform_forward.8} parent=0 // pred_region
    _
  $region5: #{feature_transform_forward.8} parent=0 // pred_fallthru
    _
  // Predicated region
  $region6: #{feature_transform_forward.8} parent=0 // pred_check
    _
  $region7: #{feature_transform_forward.8} parent=0 // pred_check_branch
    %15 = sbr.rel (0) target = $region9
  $region8: #{feature_transform_forward.8} parent=0 // pred_region
    _
  $region9: #{feature_transform_forward.8} parent=0 // pred_fallthru
    _
  // Predicated region
  $region10: #{feature_transform_forward.8} parent=0 // pred_check
    _
  $region11: #{feature_transform_forward.8} parent=0 // pred_check_branch
    %17 = sbr.rel (0) target = $region13
  $region12: #{feature_transform_forward.8} parent=0 // pred_region
    _
  $region13: #{feature_transform_forward.8} parent=0 // pred_fallthru
    _
  // Predicated region
  $region14: #{feature_transform_forward.8} parent=0 // pred_check
    _
  $region15: #{feature_transform_forward.8} parent=0 // pred_check_branch
    %19 = sbr.rel (0) target = $region17
  $region16: #{feature_transform_forward.8} parent=0 // pred_region
    _
  $region17: #{feature_transform_forward.8} parent=0 // pred_fallthru
    _
  // Predicated region
  $region18: #{feature_transform_forward.8} parent=0 // pred_check
    _
  $region19: #{feature_transform_forward.8} parent=0 // pred_check_branch
    %21 = sbr.rel (0) target = $region21
  $region20: #{feature_transform_forward.8} parent=0 // pred_region
    _
  $region21: #{feature_transform_forward.8} parent=0 // pred_fallthru
    _
  // Predicated region
  $region22: #{feature_transform_forward.8} parent=0 // pred_check
    _
  $region23: #{feature_transform_forward.8} parent=0 // pred_check_branch
    %23 = sbr.rel (0) target = $region25
  $region24: #{feature_transform_forward.8} parent=0 // pred_region
    _
  $region25: #{feature_transform_forward.8} parent=0 // pred_fallthru
    _
  // Predicated region
  $region26: #{feature_transform_forward.8} parent=0 // pred_check
    _
  $region27: #{feature_transform_forward.8} parent=0 // pred_check_branch
    %25 = sbr.rel (0) target = $region29
  $region28: #{feature_transform_forward.8} parent=0 // pred_region
    _
  $region29: #{feature_transform_forward.8} parent=0 // pred_fallthru
    _
  %v26 = vld [vmem:[%s0] sm:$0xff]
  %v27 = vld [vmem:[%s1] sm:$0xff]
  %v28 = vld [vmem:[%s1 + $0x8] sm:$0xff]
  %v29 = vld [vmem:[%s1 + $0x10] sm:$0xff]
  %v30 = vld [vmem:[%s1 + $0x18] sm:$0xff]
  %v31 = vld [vmem:[%s1 + $0x20] sm:$0xff]
  %v32 = vld [vmem:[%s1 + $0x28] sm:$0xff]
  %v33 = vld [vmem:[%s1 + $0x30] sm:$0xff]
  %v34 = vld [vmem:[%s1 + $0x38] sm:$0xff]
  %v35 = vld [vmem:[%s1 + $0x40] sm:$0xff]
  %v36 = vld [vmem:[%s1 + $0x48] sm:$0xff]
  %v37 = vld [vmem:[%s1 + $0x50] sm:$0xff]
  %v38 = vld [vmem:[%s1 + $0x58] sm:$0xff]
  %v39 = vld [vmem:[%s1 + $0x60] sm:$0xff]
  %v40 = vld [vmem:[%s1 + $0x68] sm:$0xff]
  %v41 = vld [vmem:[%s1 + $0x70] sm:$0xff]
  %v42 = vld [vmem:[%s1 + $0x78] sm:$0xff]
  %v43 = vld [vmem:[%s1 + $0x80] sm:$0xff]
  %v44 = vld [vmem:[%s1 + $0x88] sm:$0xff]
  %v45 = vld [vmem:[%s1 + $0x90] sm:$0xff]
  %v46 = vld [vmem:[%s1 + $0x98] sm:$0xff]
  %v47 = vld [vmem:[%s1 + $0xa0] sm:$0xff]
  %v48 = vld [vmem:[%s1 + $0xa8] sm:$0xff]
  %v49 = vld [vmem:[%s1 + $0xb0] sm:$0xff]
  %v50 = vld [vmem:[%s1 + $0xb8] sm:$0xff]
  %v51 = vld [vmem:[%s1 + $0xc0] sm:$0xff]
  %v52 = vld [vmem:[%s1 + $0xc8] sm:$0xff]
  %v53 = vld [vmem:[%s1 + $0xd0] sm:$0xff]
  %v54 = vld [vmem:[%s1 + $0xd8] sm:$0xff]
  %v55 = vld [vmem:[%s1 + $0xe0] sm:$0xff]
  %v56 = vld [vmem:[%s1 + $0xe8] sm:$0xff]
  %v57 = vld [vmem:[%s1 + $0xf0] sm:$0xff]
  %v58 = vld [vmem:[%s1 + $0xf8] sm:$0xff]
  %v59 = vld [vmem:[%s1 + $0x100] sm:$0xff]
  %v60 = vld [vmem:[%s1 + $0x108] sm:$0xff]
  %v61 = vld [vmem:[%s1 + $0x110] sm:$0xff]
  %v62 = vld [vmem:[%s1 + $0x118] sm:$0xff]
  %v63 = vld [vmem:[%s1 + $0x120] sm:$0xff]
  %v64 = vld [vmem:[%s1 + $0x128] sm:$0xff]
  %v65 = vld [vmem:[%s1 + $0x130] sm:$0xff]
  %v66 = vld [vmem:[%s1 + $0x138] sm:$0xff]
  %v67 = vld [vmem:[%s1 + $0x140] sm:$0xff]
  %v68 = vld [vmem:[%s1 + $0x148] sm:$0xff]
  %v69 = vld [vmem:[%s1 + $0x150] sm:$0xff]
  %v70 = vld [vmem:[%s1 + $0x158] sm:$0xff]
  %v71 = vld [vmem:[%s1 + $0x160] sm:$0xff]
  %v72 = vld [vmem:[%s1 + $0x168] sm:$0xff]
  %v73 = vld [vmem:[%s1 + $0x170] sm:$0xff]
  %v74 = vld [vmem:[%s1 + $0x178] sm:$0xff]
  %v75 = vld [vmem:[%s1 + $0x180] sm:$0xff]
  %v76 = vld [vmem:[%s1 + $0x188] sm:$0xff]
  %v77 = vld [vmem:[%s1 + $0x190] sm:$0xff]
  %v78 = vld [vmem:[%s1 + $0x198] sm:$0xff]
  %v79 = vld [vmem:[%s1 + $0x1a0] sm:$0xff]
  %v80 = vld [vmem:[%s1 + $0x1a8] sm:$0xff]
  %v81 = vld [vmem:[%s1 + $0x1b0] sm:$0xff]
  %v82 = vld [vmem:[%s1 + $0x1b8] sm:$0xff]
  %v83 = vld [vmem:[%s1 + $0x1c0] sm:$0xff]
  %v84 = vld [vmem:[%s1 + $0x1c8] sm:$0xff]
  %v85 = vld [vmem:[%s1 + $0x1d0] sm:$0xff]
  %v86 = vld [vmem:[%s1 + $0x1d8] sm:$0xff]
  %v87 = vld [vmem:[%s1 + $0x1e0] sm:$0xff]
  %v88 = vld [vmem:[%s1 + $0x1e8] sm:$0xff]
  %v89 = vld [vmem:[%s1 + $0x1f0] sm:$0xff]
  %v90 = vld [vmem:[%s1 + $0x1f8] sm:$0xff]
  %v91 = vld [vmem:[%s1 + $0x200] sm:$0xff]
  %v92 = vld [vmem:[%s1 + $0x208] sm:$0xff]
  %v93 = vld [vmem:[%s1 + $0x210] sm:$0xff]
  %v94 = vld [vmem:[%s1 + $0x218] sm:$0xff]
  %v95 = vld [vmem:[%s1 + $0x220] sm:$0xff]
  %v96 = vld [vmem:[%s1 + $0x228] sm:$0xff]
  %v97 = vld [vmem:[%s1 + $0x230] sm:$0xff]
  %v98 = vld [vmem:[%s1 + $0x238] sm:$0xff]
  %v99 = vld [vmem:[%s1 + $0x240] sm:$0xff]
  %v100 = vld [vmem:[%s1 + $0x248] sm:$0xff]
  %v101 = vld [vmem:[%s1 + $0x250] sm:$0xff]
  %v102 = vld [vmem:[%s1 + $0x258] sm:$0xff]
  %v103 = vld [vmem:[%s1 + $0x260] sm:$0xff]
  %v104 = vld [vmem:[%s1 + $0x268] sm:$0xff]
  %v105 = vld [vmem:[%s1 + $0x270] sm:$0xff]
  %v106 = vld [vmem:[%s1 + $0x278] sm:$0xff]
  %v107 = vld [vmem:[%s1 + $0x280] sm:$0xff]
  %v108 = vld [vmem:[%s1 + $0x288] sm:$0xff]
  %v109 = vld [vmem:[%s1 + $0x290] sm:$0xff]
  %v110 = vld [vmem:[%s1 + $0x298] sm:$0xff]
  %v111 = vld [vmem:[%s1 + $0x2a0] sm:$0xff]
  %v112 = vld [vmem:[%s1 + $0x2a8] sm:$0xff]
  %v113 = vld [vmem:[%s1 + $0x2b0] sm:$0xff]
  %v114 = vld [vmem:[%s1 + $0x2b8] sm:$0xff]
  %v115 = vld [vmem:[%s1 + $0x2c0] sm:$0xff]
  %v116 = vld [vmem:[%s1 + $0x2c8] sm:$0xff]
  %v117 = vld [vmem:[%s1 + $0x2d0] sm:$0xff]
  %v118 = vld [vmem:[%s1 + $0x2d8] sm:$0xff]
  %v119 = vld [vmem:[%s1 + $0x2e0] sm:$0xff]
  %v120 = vld [vmem:[%s1 + $0x2e8] sm:$0xff]
  %v121 = vld [vmem:[%s1 + $0x2f0] sm:$0xff]
  %v122 = vld [vmem:[%s1 + $0x2f8] sm:$0xff]
  %v123 = vld [vmem:[%s1 + $0x300] sm:$0xff]
  %v124 = vld [vmem:[%s1 + $0x308] sm:$0xff]
  %v125 = vld [vmem:[%s1 + $0x310] sm:$0xff]
  %v126 = vld [vmem:[%s1 + $0x318] sm:$0xff]
  %v127 = vld [vmem:[%s1 + $0x320] sm:$0xff]
  %v128 = vld [vmem:[%s1 + $0x328] sm:$0xff]
  %v129 = vld [vmem:[%s1 + $0x330] sm:$0xff]
  %v130 = vld [vmem:[%s1 + $0x338] sm:$0xff]
  %v131 = vld [vmem:[%s1 + $0x340] sm:$0xff]
  %v132 = vld [vmem:[%s1 + $0x348] sm:$0xff]
  %v133 = vld [vmem:[%s1 + $0x350] sm:$0xff]
  %v134 = vld [vmem:[%s1 + $0x358] sm:$0xff]
  %v135 = vld [vmem:[%s1 + $0x360] sm:$0xff]
  %v136 = vld [vmem:[%s1 + $0x368] sm:$0xff]
  %v137 = vld [vmem:[%s1 + $0x370] sm:$0xff]
  %v138 = vld [vmem:[%s1 + $0x378] sm:$0xff]
  %v139 = vld [vmem:[%s1 + $0x380] sm:$0xff]
  %v140 = vld [vmem:[%s1 + $0x388] sm:$0xff]
  %v141 = vld [vmem:[%s1 + $0x390] sm:$0xff]
  %v142 = vld [vmem:[%s1 + $0x398] sm:$0xff]
  %v143 = vld [vmem:[%s1 + $0x3a0] sm:$0xff]
  %v144 = vld [vmem:[%s1 + $0x3a8] sm:$0xff]
  %v145 = vld [vmem:[%s1 + $0x3b0] sm:$0xff]
  %v146 = vld [vmem:[%s1 + $0x3b8] sm:$0xff]
  %v147 = vld [vmem:[%s1 + $0x3c0] sm:$0xff]
  %v148 = vld [vmem:[%s1 + $0x3c8] sm:$0xff]
  %v149 = vld [vmem:[%s1 + $0x3d0] sm:$0xff]
  %v150 = vld [vmem:[%s1 + $0x3d8] sm:$0xff]
  %v151 = vld [vmem:[%s1 + $0x3e0] sm:$0xff]
  %v152 = vld [vmem:[%s1 + $0x3e8] sm:$0xff]
  %v153 = vld [vmem:[%s1 + $0x3f0] sm:$0xff]
  %v154 = vld [vmem:[%s1 + $0x3f8] sm:$0xff]
  %v155 = vld [vmem:[%s1 + $0x400] sm:$0xff]
  %v156 = vld [vmem:[%s1 + $0x408] sm:$0xff]
  %v157 = vld [vmem:[%s1 + $0x410] sm:$0xff]
  %v158 = vld [vmem:[%s1 + $0x418] sm:$0xff]
  %v159 = vld [vmem:[%s1 + $0x420] sm:$0xff]
  %v160 = vld [vmem:[%s1 + $0x428] sm:$0xff]
  %v161 = vld [vmem:[%s1 + $0x430] sm:$0xff]
  %v162 = vld [vmem:[%s1 + $0x438] sm:$0xff]
  %v163 = vld [vmem:[%s1 + $0x440] sm:$0xff]
  %v164 = vld [vmem:[%s1 + $0x448] sm:$0xff]
  %v165 = vld [vmem:[%s1 + $0x450] sm:$0xff]
  %v166 = vld [vmem:[%s1 + $0x458] sm:$0xff]
  %v167 = vld [vmem:[%s1 + $0x460] sm:$0xff]
  %v168 = vld [vmem:[%s1 + $0x468] sm:$0xff]
  %v169 = vld [vmem:[%s1 + $0x470] sm:$0xff]
  %v170 = vld [vmem:[%s1 + $0x478] sm:$0xff]
  %v171 = vld [vmem:[%s1 + $0x480] sm:$0xff]
  %v172 = vld [vmem:[%s1 + $0x488] sm:$0xff]
  %v173 = vld [vmem:[%s1 + $0x490] sm:$0xff]
  %v174 = vld [vmem:[%s1 + $0x498] sm:$0xff]
  %v175 = vld [vmem:[%s1 + $0x4a0] sm:$0xff]
  %v176 = vld [vmem:[%s1 + $0x4a8] sm:$0xff]
  %v177 = vld [vmem:[%s1 + $0x4b0] sm:$0xff]
  %v178 = vld [vmem:[%s1 + $0x4b8] sm:$0xff]
  %v179 = vld [vmem:[%s1 + $0x4c0] sm:$0xff]
  %v180 = vld [vmem:[%s1 + $0x4c8] sm:$0xff]
  %v181 = vld [vmem:[%s1 + $0x4d0] sm:$0xff]
  %v182 = vld [vmem:[%s1 + $0x4d8] sm:$0xff]
  %v183 = vld [vmem:[%s1 + $0x4e0] sm:$0xff]
  %v184 = vld [vmem:[%s1 + $0x4e8] sm:$0xff]
  %v185 = vld [vmem:[%s1 + $0x4f0] sm:$0xff]
  %v186 = vld [vmem:[%s1 + $0x4f8] sm:$0xff]
  %v187 = vld [vmem:[%s1 + $0x500] sm:$0xff]
  %v188 = vld [vmem:[%s1 + $0x508] sm:$0xff]
  %v189 = vld [vmem:[%s1 + $0x510] sm:$0xff]
  %v190 = vld [vmem:[%s1 + $0x518] sm:$0xff]
  %v191 = vld [vmem:[%s1 + $0x520] sm:$0xff]
  %v192 = vld [vmem:[%s1 + $0x528] sm:$0xff]
  %v193 = vld [vmem:[%s1 + $0x530] sm:$0xff]
  %v194 = vld [vmem:[%s1 + $0x538] sm:$0xff]
  %v195 = vld [vmem:[%s1 + $0x540] sm:$0xff]
  %v196 = vld [vmem:[%s1 + $0x548] sm:$0xff]
  %v197 = vld [vmem:[%s1 + $0x550] sm:$0xff]
  %v198 = vld [vmem:[%s1 + $0x558] sm:$0xff]
  %v199 = vld [vmem:[%s1 + $0x560] sm:$0xff]
  %v200 = vld [vmem:[%s1 + $0x568] sm:$0xff]
  %v201 = vld [vmem:[%s1 + $0x570] sm:$0xff]
  %v202 = vld [vmem:[%s1 + $0x578] sm:$0xff]
  %v203 = vld [vmem:[%s1 + $0x580] sm:$0xff]
  %v204 = vld [vmem:[%s1 + $0x588] sm:$0xff]
  %v205 = vld [vmem:[%s1 + $0x590] sm:$0xff]
  %v206 = vld [vmem:[%s1 + $0x598] sm:$0xff]
  %v207 = vld [vmem:[%s1 + $0x5a0] sm:$0xff]
  %v208 = vld [vmem:[%s1 + $0x5a8] sm:$0xff]
  %v209 = vld [vmem:[%s1 + $0x5b0] sm:$0xff]
  %v210 = vld [vmem:[%s1 + $0x5b8] sm:$0xff]
  %v211 = vld [vmem:[%s1 + $0x5c0] sm:$0xff]
  %v212 = vld [vmem:[%s1 + $0x5c8] sm:$0xff]
  %v213 = vld [vmem:[%s1 + $0x5d0] sm:$0xff]
  %v214 = vld [vmem:[%s1 + $0x5d8] sm:$0xff]
  %v215 = vld [vmem:[%s1 + $0x5e0] sm:$0xff]
  %v216 = vld [vmem:[%s1 + $0x5e8] sm:$0xff]
  %v217 = vld [vmem:[%s1 + $0x5f0] sm:$0xff]
  %v218 = vld [vmem:[%s1 + $0x5f8] sm:$0xff]
  %v219 = vld [vmem:[%s1 + $0x600] sm:$0xff]
  %v220 = vld [vmem:[%s1 + $0x608] sm:$0xff]
  %v221 = vld [vmem:[%s1 + $0x610] sm:$0xff]
  %v222 = vld [vmem:[%s1 + $0x618] sm:$0xff]
  %v223 = vld [vmem:[%s1 + $0x620] sm:$0xff]
  %v224 = vld [vmem:[%s1 + $0x628] sm:$0xff]
  %v225 = vld [vmem:[%s1 + $0x630] sm:$0xff]
  %v226 = vld [vmem:[%s1 + $0x638] sm:$0xff]
  %v227 = vld [vmem:[%s1 + $0x640] sm:$0xff]
  %v228 = vld [vmem:[%s1 + $0x648] sm:$0xff]
  %v229 = vld [vmem:[%s1 + $0x650] sm:$0xff]
  %v230 = vld [vmem:[%s1 + $0x658] sm:$0xff]
  %v231 = vld [vmem:[%s1 + $0x660] sm:$0xff]
  %v232 = vld [vmem:[%s1 + $0x668] sm:$0xff]
  %v233 = vld [vmem:[%s1 + $0x670] sm:$0xff]
  %v234 = vld [vmem:[%s1 + $0x678] sm:$0xff]
  %v235 = vld [vmem:[%s1 + $0x680] sm:$0xff]
  %v236 = vld [vmem:[%s1 + $0x688] sm:$0xff]
  %v237 = vld [vmem:[%s1 + $0x690] sm:$0xff]
  %v238 = vld [vmem:[%s1 + $0x698] sm:$0xff]
  %v239 = vld [vmem:[%s1 + $0x6a0] sm:$0xff]
  %v240 = vld [vmem:[%s1 + $0x6a8] sm:$0xff]
  %v241 = vld [vmem:[%s1 + $0x6b0] sm:$0xff]
  %v242 = vld [vmem:[%s1 + $0x6b8] sm:$0xff]
  %v243 = vld [vmem:[%s1 + $0x6c0] sm:$0xff]
  %v244 = vld [vmem:[%s1 + $0x6c8] sm:$0xff]
  %v245 = vld [vmem:[%s1 + $0x6d0] sm:$0xff]
  %v246 = vld [vmem:[%s1 + $0x6d8] sm:$0xff]
  %v247 = vld [vmem:[%s1 + $0x6e0] sm:$0xff]
  %v248 = vld [vmem:[%s1 + $0x6e8] sm:$0xff]
  %v249 = vld [vmem:[%s1 + $0x6f0] sm:$0xff]
  %v250 = vld [vmem:[%s1 + $0x6f8] sm:$0xff]
  %v251 = vld [vmem:[%s1 + $0x700] sm:$0xff]
  %v252 = vld [vmem:[%s1 + $0x708] sm:$0xff]
  %v253 = vld [vmem:[%s1 + $0x710] sm:$0xff]
  %v254 = vld [vmem:[%s1 + $0x718] sm:$0xff]
  %v255 = vld [vmem:[%s1 + $0x720] sm:$0xff]
  %v256 = vld [vmem:[%s1 + $0x728] sm:$0xff]
  %v257 = vld [vmem:[%s1 + $0x730] sm:$0xff]
  %v258 = vld [vmem:[%s1 + $0x738] sm:$0xff]
  %v259 = vld [vmem:[%s1 + $0x740] sm:$0xff]
  %v260 = vld [vmem:[%s1 + $0x748] sm:$0xff]
  %v261 = vld [vmem:[%s1 + $0x750] sm:$0xff]
  %v262 = vld [vmem:[%s1 + $0x758] sm:$0xff]
  %v263 = vld [vmem:[%s1 + $0x760] sm:$0xff]
  %v264 = vld [vmem:[%s1 + $0x768] sm:$0xff]
  %v265 = vld [vmem:[%s1 + $0x770] sm:$0xff]
  %v266 = vld [vmem:[%s1 + $0x778] sm:$0xff]
  %v267 = vld [vmem:[%s1 + $0x780] sm:$0xff]
  %v268 = vld [vmem:[%s1 + $0x788] sm:$0xff]
  %v269 = vld [vmem:[%s1 + $0x790] sm:$0xff]
  %v270 = vld [vmem:[%s1 + $0x798] sm:$0xff]
  %v271 = vld [vmem:[%s1 + $0x7a0] sm:$0xff]
  %v272 = vld [vmem:[%s1 + $0x7a8] sm:$0xff]
  %v273 = vld [vmem:[%s1 + $0x7b0] sm:$0xff]
  %v274 = vld [vmem:[%s1 + $0x7b8] sm:$0xff]
  %v275 = vld [vmem:[%s1 + $0x7c0] sm:$0xff]
  %v276 = vld [vmem:[%s1 + $0x7c8] sm:$0xff]
  %v277 = vld [vmem:[%s1 + $0x7d0] sm:$0xff]
  %v278 = vld [vmem:[%s1 + $0x7d8] sm:$0xff]
  %v279 = vld [vmem:[%s1 + $0x7e0] sm:$0xff]
  %v280 = vld [vmem:[%s1 + $0x7e8] sm:$0xff]
  %v281 = vld [vmem:[%s1 + $0x7f0] sm:$0xff]
  %v282 = vld [vmem:[%s1 + $0x7f8] sm:$0xff]
  %v283 = vld [vmem:[%s2] sm:$0xf]
  %v285 = vperm.slane %v283, 0
  %v286 = vperm.slane %v283, 1
  %v287 = vperm.slane %v283, 2
  %v288 = vperm.slane %v283, 3
  %294 = vst [vmem:[#allocation1] ss:$9 sm:$0xff] %v26
  %v295 = vld [vmem:[#allocation1] sm:$0xff]
  %v296 = vld [vmem:[#allocation1 + $0x9] sm:$0xff]
  %v297 = vld [vmem:[#allocation1 + $0x12] sm:$0xff]
  %v298 = vld [vmem:[#allocation1 + $0x1b] sm:$0xff]
  %v299 = vld [vmem:[#allocation1 + $0x24] sm:$0xff]
  %v300 = vld [vmem:[#allocation1 + $0x2d] sm:$0xff]
  %v301 = vld [vmem:[#allocation1 + $0x36] sm:$0xff]
  %v302 = vld [vmem:[#allocation1 + $0x3f] sm:$0xff]
  %v567 = vunpack.c.l.b16 %v27
  %v568 = vunpack.c.h.b16 %v27
  %v569 = vunpack.c.l.b16 %v28
  %v570 = vunpack.c.h.b16 %v28
  %v571 = vunpack.c.l.b16 %v29
  %v572 = vunpack.c.h.b16 %v29
  %v573 = vunpack.c.l.b16 %v30
  %v574 = vunpack.c.h.b16 %v30
  %v575 = vunpack.c.l.b16 %v31
  %v576 = vunpack.c.h.b16 %v31
  %v577 = vunpack.c.l.b16 %v32
  %v578 = vunpack.c.h.b16 %v32
  %v579 = vunpack.c.l.b16 %v33
  %v580 = vunpack.c.h.b16 %v33
  %v581 = vunpack.c.l.b16 %v34
  %v582 = vunpack.c.h.b16 %v34
  %v583 = vunpack.c.l.b16 %v35
  %v584 = vunpack.c.h.b16 %v35
  %v585 = vunpack.c.l.b16 %v36
  %v586 = vunpack.c.h.b16 %v36
  %v587 = vunpack.c.l.b16 %v37
  %v588 = vunpack.c.h.b16 %v37
  %v589 = vunpack.c.l.b16 %v38
  %v590 = vunpack.c.h.b16 %v38
  %v591 = vunpack.c.l.b16 %v39
  %v592 = vunpack.c.h.b16 %v39
  %v593 = vunpack.c.l.b16 %v40
  %v594 = vunpack.c.h.b16 %v40
  %v595 = vunpack.c.l.b16 %v41
  %v596 = vunpack.c.h.b16 %v41
  %v597 = vunpack.c.l.b16 %v42
  %v598 = vunpack.c.h.b16 %v42
  %v599 = vunpack.c.l.b16 %v43
  %v600 = vunpack.c.h.b16 %v43
  %v601 = vunpack.c.l.b16 %v44
  %v602 = vunpack.c.h.b16 %v44
  %v603 = vunpack.c.l.b16 %v45
  %v604 = vunpack.c.h.b16 %v45
  %v605 = vunpack.c.l.b16 %v46
  %v606 = vunpack.c.h.b16 %v46
  %v607 = vunpack.c.l.b16 %v47
  %v608 = vunpack.c.h.b16 %v47
  %v609 = vunpack.c.l.b16 %v48
  %v610 = vunpack.c.h.b16 %v48
  %v611 = vunpack.c.l.b16 %v49
  %v612 = vunpack.c.h.b16 %v49
  %v613 = vunpack.c.l.b16 %v50
  %v614 = vunpack.c.h.b16 %v50
  %v615 = vunpack.c.l.b16 %v51
  %v616 = vunpack.c.h.b16 %v51
  %v617 = vunpack.c.l.b16 %v52
  %v618 = vunpack.c.h.b16 %v52
  %v619 = vunpack.c.l.b16 %v53
  %v620 = vunpack.c.h.b16 %v53
  %v621 = vunpack.c.l.b16 %v54
  %v622 = vunpack.c.h.b16 %v54
  %v623 = vunpack.c.l.b16 %v55
  %v624 = vunpack.c.h.b16 %v55
  %v625 = vunpack.c.l.b16 %v56
  %v626 = vunpack.c.h.b16 %v56
  %v627 = vunpack.c.l.b16 %v57
  %v628 = vunpack.c.h.b16 %v57
  %v629 = vunpack.c.l.b16 %v58
  %v630 = vunpack.c.h.b16 %v58
  %v631 = vunpack.c.l.b16 %v59
  %v632 = vunpack.c.h.b16 %v59
  %v633 = vunpack.c.l.b16 %v60
  %v634 = vunpack.c.h.b16 %v60
  %v635 = vunpack.c.l.b16 %v61
  %v636 = vunpack.c.h.b16 %v61
  %v637 = vunpack.c.l.b16 %v62
  %v638 = vunpack.c.h.b16 %v62
  %v639 = vunpack.c.l.b16 %v63
  %v640 = vunpack.c.h.b16 %v63
  %v641 = vunpack.c.l.b16 %v64
  %v642 = vunpack.c.h.b16 %v64
  %v643 = vunpack.c.l.b16 %v65
  %v644 = vunpack.c.h.b16 %v65
  %v645 = vunpack.c.l.b16 %v66
  %v646 = vunpack.c.h.b16 %v66
  %v647 = vunpack.c.l.b16 %v67
  %v648 = vunpack.c.h.b16 %v67
  %v649 = vunpack.c.l.b16 %v68
  %v650 = vunpack.c.h.b16 %v68
  %v651 = vunpack.c.l.b16 %v69
  %v652 = vunpack.c.h.b16 %v69
  %v653 = vunpack.c.l.b16 %v70
  %v654 = vunpack.c.h.b16 %v70
  %v655 = vunpack.c.l.b16 %v71
  %v656 = vunpack.c.h.b16 %v71
  %v657 = vunpack.c.l.b16 %v72
  %v658 = vunpack.c.h.b16 %v72
  %v659 = vunpack.c.l.b16 %v73
  %v660 = vunpack.c.h.b16 %v73
  %v661 = vunpack.c.l.b16 %v74
  %v662 = vunpack.c.h.b16 %v74
  %v663 = vunpack.c.l.b16 %v75
  %v664 = vunpack.c.h.b16 %v75
  %v665 = vunpack.c.l.b16 %v76
  %v666 = vunpack.c.h.b16 %v76
  %v667 = vunpack.c.l.b16 %v77
  %v668 = vunpack.c.h.b16 %v77
  %v669 = vunpack.c.l.b16 %v78
  %v670 = vunpack.c.h.b16 %v78
  %v671 = vunpack.c.l.b16 %v79
  %v672 = vunpack.c.h.b16 %v79
  %v673 = vunpack.c.l.b16 %v80
  %v674 = vunpack.c.h.b16 %v80
  %v675 = vunpack.c.l.b16 %v81
  %v676 = vunpack.c.h.b16 %v81
  %v677 = vunpack.c.l.b16 %v82
  %v678 = vunpack.c.h.b16 %v82
  %v679 = vunpack.c.l.b16 %v83
  %v680 = vunpack.c.h.b16 %v83
  %v681 = vunpack.c.l.b16 %v84
  %v682 = vunpack.c.h.b16 %v84
  %v683 = vunpack.c.l.b16 %v85
  %v684 = vunpack.c.h.b16 %v85
  %v685 = vunpack.c.l.b16 %v86
  %v686 = vunpack.c.h.b16 %v86
  %v687 = vunpack.c.l.b16 %v87
  %v688 = vunpack.c.h.b16 %v87
  %v689 = vunpack.c.l.b16 %v88
  %v690 = vunpack.c.h.b16 %v88
  %v691 = vunpack.c.l.b16 %v89
  %v692 = vunpack.c.h.b16 %v89
  %v693 = vunpack.c.l.b16 %v90
  %v694 = vunpack.c.h.b16 %v90
  %v695 = vunpack.c.l.b16 %v91
  %v696 = vunpack.c.h.b16 %v91
  %v697 = vunpack.c.l.b16 %v92
  %v698 = vunpack.c.h.b16 %v92
  %v699 = vunpack.c.l.b16 %v93
  %v700 = vunpack.c.h.b16 %v93
  %v701 = vunpack.c.l.b16 %v94
  %v702 = vunpack.c.h.b16 %v94
  %v703 = vunpack.c.l.b16 %v95
  %v704 = vunpack.c.h.b16 %v95
  %v705 = vunpack.c.l.b16 %v96
  %v706 = vunpack.c.h.b16 %v96
  %v707 = vunpack.c.l.b16 %v97
  %v708 = vunpack.c.h.b16 %v97
  %v709 = vunpack.c.l.b16 %v98
  %v710 = vunpack.c.h.b16 %v98
  %v711 = vunpack.c.l.b16 %v99
  %v712 = vunpack.c.h.b16 %v99
  %v713 = vunpack.c.l.b16 %v100
  %v714 = vunpack.c.h.b16 %v100
  %v715 = vunpack.c.l.b16 %v101
  %v716 = vunpack.c.h.b16 %v101
  %v717 = vunpack.c.l.b16 %v102
  %v718 = vunpack.c.h.b16 %v102
  %v719 = vunpack.c.l.b16 %v103
  %v720 = vunpack.c.h.b16 %v103
  %v721 = vunpack.c.l.b16 %v104
  %v722 = vunpack.c.h.b16 %v104
  %v723 = vunpack.c.l.b16 %v105
  %v724 = vunpack.c.h.b16 %v105
  %v725 = vunpack.c.l.b16 %v106
  %v726 = vunpack.c.h.b16 %v106
  %v727 = vunpack.c.l.b16 %v107
  %v728 = vunpack.c.h.b16 %v107
  %v729 = vunpack.c.l.b16 %v108
  %v730 = vunpack.c.h.b16 %v108
  %v731 = vunpack.c.l.b16 %v109
  %v732 = vunpack.c.h.b16 %v109
  %v733 = vunpack.c.l.b16 %v110
  %v734 = vunpack.c.h.b16 %v110
  %v735 = vunpack.c.l.b16 %v111
  %v736 = vunpack.c.h.b16 %v111
  %v737 = vunpack.c.l.b16 %v112
  %v738 = vunpack.c.h.b16 %v112
  %v739 = vunpack.c.l.b16 %v113
  %v740 = vunpack.c.h.b16 %v113
  %v741 = vunpack.c.l.b16 %v114
  %v742 = vunpack.c.h.b16 %v114
  %v743 = vunpack.c.l.b16 %v115
  %v744 = vunpack.c.h.b16 %v115
  %v745 = vunpack.c.l.b16 %v116
  %v746 = vunpack.c.h.b16 %v116
  %v747 = vunpack.c.l.b16 %v117
  %v748 = vunpack.c.h.b16 %v117
  %v749 = vunpack.c.l.b16 %v118
  %v750 = vunpack.c.h.b16 %v118
  %v751 = vunpack.c.l.b16 %v119
  %v752 = vunpack.c.h.b16 %v119
  %v753 = vunpack.c.l.b16 %v120
  %v754 = vunpack.c.h.b16 %v120
  %v755 = vunpack.c.l.b16 %v121
  %v756 = vunpack.c.h.b16 %v121
  %v757 = vunpack.c.l.b16 %v122
  %v758 = vunpack.c.h.b16 %v122
  %v759 = vunpack.c.l.b16 %v123
  %v760 = vunpack.c.h.b16 %v123
  %v761 = vunpack.c.l.b16 %v124
  %v762 = vunpack.c.h.b16 %v124
  %v763 = vunpack.c.l.b16 %v125
  %v764 = vunpack.c.h.b16 %v125
  %v765 = vunpack.c.l.b16 %v126
  %v766 = vunpack.c.h.b16 %v126
  %v767 = vunpack.c.l.b16 %v127
  %v768 = vunpack.c.h.b16 %v127
  %v769 = vunpack.c.l.b16 %v128
  %v770 = vunpack.c.h.b16 %v128
  %v771 = vunpack.c.l.b16 %v129
  %v772 = vunpack.c.h.b16 %v129
  %v773 = vunpack.c.l.b16 %v130
  %v774 = vunpack.c.h.b16 %v130
  %v775 = vunpack.c.l.b16 %v131
  %v776 = vunpack.c.h.b16 %v131
  %v777 = vunpack.c.l.b16 %v132
  %v778 = vunpack.c.h.b16 %v132
  %v779 = vunpack.c.l.b16 %v133
  %v780 = vunpack.c.h.b16 %v133
  %v781 = vunpack.c.l.b16 %v134
  %v782 = vunpack.c.h.b16 %v134
  %v783 = vunpack.c.l.b16 %v135
  %v784 = vunpack.c.h.b16 %v135
  %v785 = vunpack.c.l.b16 %v136
  %v786 = vunpack.c.h.b16 %v136
  %v787 = vunpack.c.l.b16 %v137
  %v788 = vunpack.c.h.b16 %v137
  %v789 = vunpack.c.l.b16 %v138
  %v790 = vunpack.c.h.b16 %v138
  %v791 = vunpack.c.l.b16 %v139
  %v792 = vunpack.c.h.b16 %v139
  %v793 = vunpack.c.l.b16 %v140
  %v794 = vunpack.c.h.b16 %v140
  %v795 = vunpack.c.l.b16 %v141
  %v796 = vunpack.c.h.b16 %v141
  %v797 = vunpack.c.l.b16 %v142
  %v798 = vunpack.c.h.b16 %v142
  %v799 = vunpack.c.l.b16 %v143
  %v800 = vunpack.c.h.b16 %v143
  %v801 = vunpack.c.l.b16 %v144
  %v802 = vunpack.c.h.b16 %v144
  %v803 = vunpack.c.l.b16 %v145
  %v804 = vunpack.c.h.b16 %v145
  %v805 = vunpack.c.l.b16 %v146
  %v806 = vunpack.c.h.b16 %v146
  %v807 = vunpack.c.l.b16 %v147
  %v808 = vunpack.c.h.b16 %v147
  %v809 = vunpack.c.l.b16 %v148
  %v810 = vunpack.c.h.b16 %v148
  %v811 = vunpack.c.l.b16 %v149
  %v812 = vunpack.c.h.b16 %v149
  %v813 = vunpack.c.l.b16 %v150
  %v814 = vunpack.c.h.b16 %v150
  %v815 = vunpack.c.l.b16 %v151
  %v816 = vunpack.c.h.b16 %v151
  %v817 = vunpack.c.l.b16 %v152
  %v818 = vunpack.c.h.b16 %v152
  %v819 = vunpack.c.l.b16 %v153
  %v820 = vunpack.c.h.b16 %v153
  %v821 = vunpack.c.l.b16 %v154
  %v822 = vunpack.c.h.b16 %v154
  %v823 = vunpack.c.l.b16 %v155
  %v824 = vunpack.c.h.b16 %v155
  %v825 = vunpack.c.l.b16 %v156
  %v826 = vunpack.c.h.b16 %v156
  %v827 = vunpack.c.l.b16 %v157
  %v828 = vunpack.c.h.b16 %v157
  %v829 = vunpack.c.l.b16 %v158
  %v830 = vunpack.c.h.b16 %v158
  %v831 = vunpack.c.l.b16 %v159
  %v832 = vunpack.c.h.b16 %v159
  %v833 = vunpack.c.l.b16 %v160
  %v834 = vunpack.c.h.b16 %v160
  %v835 = vunpack.c.l.b16 %v161
  %v836 = vunpack.c.h.b16 %v161
  %v837 = vunpack.c.l.b16 %v162
  %v838 = vunpack.c.h.b16 %v162
  %v839 = vunpack.c.l.b16 %v163
  %v840 = vunpack.c.h.b16 %v163
  %v841 = vunpack.c.l.b16 %v164
  %v842 = vunpack.c.h.b16 %v164
  %v843 = vunpack.c.l.b16 %v165
  %v844 = vunpack.c.h.b16 %v165
  %v845 = vunpack.c.l.b16 %v166
  %v846 = vunpack.c.h.b16 %v166
  %v847 = vunpack.c.l.b16 %v167
  %v848 = vunpack.c.h.b16 %v167
  %v849 = vunpack.c.l.b16 %v168
  %v850 = vunpack.c.h.b16 %v168
  %v851 = vunpack.c.l.b16 %v169
  %v852 = vunpack.c.h.b16 %v169
  %v853 = vunpack.c.l.b16 %v170
  %v854 = vunpack.c.h.b16 %v170
  %v855 = vunpack.c.l.b16 %v171
  %v856 = vunpack.c.h.b16 %v171
  %v857 = vunpack.c.l.b16 %v172
  %v858 = vunpack.c.h.b16 %v172
  %v859 = vunpack.c.l.b16 %v173
  %v860 = vunpack.c.h.b16 %v173
  %v861 = vunpack.c.l.b16 %v174
  %v862 = vunpack.c.h.b16 %v174
  %v863 = vunpack.c.l.b16 %v175
  %v864 = vunpack.c.h.b16 %v175
  %v865 = vunpack.c.l.b16 %v176
  %v866 = vunpack.c.h.b16 %v176
  %v867 = vunpack.c.l.b16 %v177
  %v868 = vunpack.c.h.b16 %v177
  %v869 = vunpack.c.l.b16 %v178
  %v870 = vunpack.c.h.b16 %v178
  %v871 = vunpack.c.l.b16 %v179
  %v872 = vunpack.c.h.b16 %v179
  %v873 = vunpack.c.l.b16 %v180
  %v874 = vunpack.c.h.b16 %v180
  %v875 = vunpack.c.l.b16 %v181
  %v876 = vunpack.c.h.b16 %v181
  %v877 = vunpack.c.l.b16 %v182
  %v878 = vunpack.c.h.b16 %v182
  %v879 = vunpack.c.l.b16 %v183
  %v880 = vunpack.c.h.b16 %v183
  %v881 = vunpack.c.l.b16 %v184
  %v882 = vunpack.c.h.b16 %v184
  %v883 = vunpack.c.l.b16 %v185
  %v884 = vunpack.c.h.b16 %v185
  %v885 = vunpack.c.l.b16 %v186
  %v886 = vunpack.c.h.b16 %v186
  %v887 = vunpack.c.l.b16 %v187
  %v888 = vunpack.c.h.b16 %v187
  %v889 = vunpack.c.l.b16 %v188
  %v890 = vunpack.c.h.b16 %v188
  %v891 = vunpack.c.l.b16 %v189
  %v892 = vunpack.c.h.b16 %v189
  %v893 = vunpack.c.l.b16 %v190
  %v894 = vunpack.c.h.b16 %v190
  %v895 = vunpack.c.l.b16 %v191
  %v896 = vunpack.c.h.b16 %v191
  %v897 = vunpack.c.l.b16 %v192
  %v898 = vunpack.c.h.b16 %v192
  %v899 = vunpack.c.l.b16 %v193
  %v900 = vunpack.c.h.b16 %v193
  %v901 = vunpack.c.l.b16 %v194
  %v902 = vunpack.c.h.b16 %v194
  %v903 = vunpack.c.l.b16 %v195
  %v904 = vunpack.c.h.b16 %v195
  %v905 = vunpack.c.l.b16 %v196
  %v906 = vunpack.c.h.b16 %v196
  %v907 = vunpack.c.l.b16 %v197
  %v908 = vunpack.c.h.b16 %v197
  %v909 = vunpack.c.l.b16 %v198
  %v910 = vunpack.c.h.b16 %v198
  %v911 = vunpack.c.l.b16 %v199
  %v912 = vunpack.c.h.b16 %v199
  %v913 = vunpack.c.l.b16 %v200
  %v914 = vunpack.c.h.b16 %v200
  %v915 = vunpack.c.l.b16 %v201
  %v916 = vunpack.c.h.b16 %v201
  %v917 = vunpack.c.l.b16 %v202
  %v918 = vunpack.c.h.b16 %v202
  %v919 = vunpack.c.l.b16 %v203
  %v920 = vunpack.c.h.b16 %v203
  %v921 = vunpack.c.l.b16 %v204
  %v922 = vunpack.c.h.b16 %v204
  %v923 = vunpack.c.l.b16 %v205
  %v924 = vunpack.c.h.b16 %v205
  %v925 = vunpack.c.l.b16 %v206
  %v926 = vunpack.c.h.b16 %v206
  %v927 = vunpack.c.l.b16 %v207
  %v928 = vunpack.c.h.b16 %v207
  %v929 = vunpack.c.l.b16 %v208
  %v930 = vunpack.c.h.b16 %v208
  %v931 = vunpack.c.l.b16 %v209
  %v932 = vunpack.c.h.b16 %v209
  %v933 = vunpack.c.l.b16 %v210
  %v934 = vunpack.c.h.b16 %v210
  %v935 = vunpack.c.l.b16 %v211
  %v936 = vunpack.c.h.b16 %v211
  %v937 = vunpack.c.l.b16 %v212
  %v938 = vunpack.c.h.b16 %v212
  %v939 = vunpack.c.l.b16 %v213
  %v940 = vunpack.c.h.b16 %v213
  %v941 = vunpack.c.l.b16 %v214
  %v942 = vunpack.c.h.b16 %v214
  %v943 = vunpack.c.l.b16 %v215
  %v944 = vunpack.c.h.b16 %v215
  %v945 = vunpack.c.l.b16 %v216
  %v946 = vunpack.c.h.b16 %v216
  %v947 = vunpack.c.l.b16 %v217
  %v948 = vunpack.c.h.b16 %v217
  %v949 = vunpack.c.l.b16 %v218
  %v950 = vunpack.c.h.b16 %v218
  %v951 = vunpack.c.l.b16 %v219
  %v952 = vunpack.c.h.b16 %v219
  %v953 = vunpack.c.l.b16 %v220
  %v954 = vunpack.c.h.b16 %v220
  %v955 = vunpack.c.l.b16 %v221
  %v956 = vunpack.c.h.b16 %v221
  %v957 = vunpack.c.l.b16 %v222
  %v958 = vunpack.c.h.b16 %v222
  %v959 = vunpack.c.l.b16 %v223
  %v960 = vunpack.c.h.b16 %v223
  %v961 = vunpack.c.l.b16 %v224
  %v962 = vunpack.c.h.b16 %v224
  %v963 = vunpack.c.l.b16 %v225
  %v964 = vunpack.c.h.b16 %v225
  %v965 = vunpack.c.l.b16 %v226
  %v966 = vunpack.c.h.b16 %v226
  %v967 = vunpack.c.l.b16 %v227
  %v968 = vunpack.c.h.b16 %v227
  %v969 = vunpack.c.l.b16 %v228
  %v970 = vunpack.c.h.b16 %v228
  %v971 = vunpack.c.l.b16 %v229
  %v972 = vunpack.c.h.b16 %v229
  %v973 = vunpack.c.l.b16 %v230
  %v974 = vunpack.c.h.b16 %v230
  %v975 = vunpack.c.l.b16 %v231
  %v976 = vunpack.c.h.b16 %v231
  %v977 = vunpack.c.l.b16 %v232
  %v978 = vunpack.c.h.b16 %v232
  %v979 = vunpack.c.l.b16 %v233
  %v980 = vunpack.c.h.b16 %v233
  %v981 = vunpack.c.l.b16 %v234
  %v982 = vunpack.c.h.b16 %v234
  %v983 = vunpack.c.l.b16 %v235
  %v984 = vunpack.c.h.b16 %v235
  %v985 = vunpack.c.l.b16 %v236
  %v986 = vunpack.c.h.b16 %v236
  %v987 = vunpack.c.l.b16 %v237
  %v988 = vunpack.c.h.b16 %v237
  %v989 = vunpack.c.l.b16 %v238
  %v990 = vunpack.c.h.b16 %v238
  %v991 = vunpack.c.l.b16 %v239
  %v992 = vunpack.c.h.b16 %v239
  %v993 = vunpack.c.l.b16 %v240
  %v994 = vunpack.c.h.b16 %v240
  %v995 = vunpack.c.l.b16 %v241
  %v996 = vunpack.c.h.b16 %v241
  %v997 = vunpack.c.l.b16 %v242
  %v998 = vunpack.c.h.b16 %v242
  %v999 = vunpack.c.l.b16 %v243
  %v1000 = vunpack.c.h.b16 %v243
  %v1001 = vunpack.c.l.b16 %v244
  %v1002 = vunpack.c.h.b16 %v244
  %v1003 = vunpack.c.l.b16 %v245
  %v1004 = vunpack.c.h.b16 %v245
  %v1005 = vunpack.c.l.b16 %v246
  %v1006 = vunpack.c.h.b16 %v246
  %v1007 = vunpack.c.l.b16 %v247
  %v1008 = vunpack.c.h.b16 %v247
  %v1009 = vunpack.c.l.b16 %v248
  %v1010 = vunpack.c.h.b16 %v248
  %v1011 = vunpack.c.l.b16 %v249
  %v1012 = vunpack.c.h.b16 %v249
  %v1013 = vunpack.c.l.b16 %v250
  %v1014 = vunpack.c.h.b16 %v250
  %v1015 = vunpack.c.l.b16 %v251
  %v1016 = vunpack.c.h.b16 %v251
  %v1017 = vunpack.c.l.b16 %v252
  %v1018 = vunpack.c.h.b16 %v252
  %v1019 = vunpack.c.l.b16 %v253
  %v1020 = vunpack.c.h.b16 %v253
  %v1021 = vunpack.c.l.b16 %v254
  %v1022 = vunpack.c.h.b16 %v254
  %v1023 = vunpack.c.l.b16 %v255
  %v1024 = vunpack.c.h.b16 %v255
  %v1025 = vunpack.c.l.b16 %v256
  %v1026 = vunpack.c.h.b16 %v256
  %v1027 = vunpack.c.l.b16 %v257
  %v1028 = vunpack.c.h.b16 %v257
  %v1029 = vunpack.c.l.b16 %v258
  %v1030 = vunpack.c.h.b16 %v258
  %v1031 = vunpack.c.l.b16 %v259
  %v1032 = vunpack.c.h.b16 %v259
  %v1033 = vunpack.c.l.b16 %v260
  %v1034 = vunpack.c.h.b16 %v260
  %v1035 = vunpack.c.l.b16 %v261
  %v1036 = vunpack.c.h.b16 %v261
  %v1037 = vunpack.c.l.b16 %v262
  %v1038 = vunpack.c.h.b16 %v262
  %v1039 = vunpack.c.l.b16 %v263
  %v1040 = vunpack.c.h.b16 %v263
  %v1041 = vunpack.c.l.b16 %v264
  %v1042 = vunpack.c.h.b16 %v264
  %v1043 = vunpack.c.l.b16 %v265
  %v1044 = vunpack.c.h.b16 %v265
  %v1045 = vunpack.c.l.b16 %v266
  %v1046 = vunpack.c.h.b16 %v266
  %v1047 = vunpack.c.l.b16 %v267
  %v1048 = vunpack.c.h.b16 %v267
  %v1049 = vunpack.c.l.b16 %v268
  %v1050 = vunpack.c.h.b16 %v268
  %v1051 = vunpack.c.l.b16 %v269
  %v1052 = vunpack.c.h.b16 %v269
  %v1053 = vunpack.c.l.b16 %v270
  %v1054 = vunpack.c.h.b16 %v270
  %v1055 = vunpack.c.l.b16 %v271
  %v1056 = vunpack.c.h.b16 %v271
  %v1057 = vunpack.c.l.b16 %v272
  %v1058 = vunpack.c.h.b16 %v272
  %v1059 = vunpack.c.l.b16 %v273
  %v1060 = vunpack.c.h.b16 %v273
  %v1061 = vunpack.c.l.b16 %v274
  %v1062 = vunpack.c.h.b16 %v274
  %v1063 = vunpack.c.l.b16 %v275
  %v1064 = vunpack.c.h.b16 %v275
  %v1065 = vunpack.c.l.b16 %v276
  %v1066 = vunpack.c.h.b16 %v276
  %v1067 = vunpack.c.l.b16 %v277
  %v1068 = vunpack.c.h.b16 %v277
  %v1069 = vunpack.c.l.b16 %v278
  %v1070 = vunpack.c.h.b16 %v278
  %v1071 = vunpack.c.l.b16 %v279
  %v1072 = vunpack.c.h.b16 %v279
  %v1073 = vunpack.c.l.b16 %v280
  %v1074 = vunpack.c.h.b16 %v280
  %v1075 = vunpack.c.l.b16 %v281
  %v1076 = vunpack.c.h.b16 %v281
  %v1077 = vunpack.c.l.b16 %v282
  %v1078 = vunpack.c.h.b16 %v282
  %v1079 = vpack.c.b16 %v571, %v567
  %v1080 = vpack.c.b16 %v572, %v568
  %v1081 = vpack.c.b16 %v573, %v569
  %v1082 = vpack.c.b16 %v574, %v570
  %v1083 = vpack.c.b16 %v579, %v575
  %v1084 = vpack.c.b16 %v580, %v576
  %v1085 = vpack.c.b16 %v581, %v577
  %v1086 = vpack.c.b16 %v582, %v578
  %v1087 = vpack.c.b16 %v587, %v583
  %v1088 = vpack.c.b16 %v588, %v584
  %v1089 = vpack.c.b16 %v589, %v585
  %v1090 = vpack.c.b16 %v590, %v586
  %v1091 = vpack.c.b16 %v595, %v591
  %v1092 = vpack.c.b16 %v596, %v592
  %v1093 = vpack.c.b16 %v597, %v593
  %v1094 = vpack.c.b16 %v598, %v594
  %v1095 = vpack.c.b16 %v603, %v599
  %v1096 = vpack.c.b16 %v604, %v600
  %v1097 = vpack.c.b16 %v605, %v601
  %v1098 = vpack.c.b16 %v606, %v602
  %v1099 = vpack.c.b16 %v611, %v607
  %v1100 = vpack.c.b16 %v612, %v608
  %v1101 = vpack.c.b16 %v613, %v609
  %v1102 = vpack.c.b16 %v614, %v610
  %v1103 = vpack.c.b16 %v619, %v615
  %v1104 = vpack.c.b16 %v620, %v616
  %v1105 = vpack.c.b16 %v621, %v617
  %v1106 = vpack.c.b16 %v622, %v618
  %v1107 = vpack.c.b16 %v627, %v623
  %v1108 = vpack.c.b16 %v628, %v624
  %v1109 = vpack.c.b16 %v629, %v625
  %v1110 = vpack.c.b16 %v630, %v626
  %v1111 = vpack.c.b16 %v635, %v631
  %v1112 = vpack.c.b16 %v636, %v632
  %v1113 = vpack.c.b16 %v637, %v633
  %v1114 = vpack.c.b16 %v638, %v634
  %v1115 = vpack.c.b16 %v643, %v639
  %v1116 = vpack.c.b16 %v644, %v640
  %v1117 = vpack.c.b16 %v645, %v641
  %v1118 = vpack.c.b16 %v646, %v642
  %v1119 = vpack.c.b16 %v651, %v647
  %v1120 = vpack.c.b16 %v652, %v648
  %v1121 = vpack.c.b16 %v653, %v649
  %v1122 = vpack.c.b16 %v654, %v650
  %v1123 = vpack.c.b16 %v659, %v655
  %v1124 = vpack.c.b16 %v660, %v656
  %v1125 = vpack.c.b16 %v661, %v657
  %v1126 = vpack.c.b16 %v662, %v658
  %v1127 = vpack.c.b16 %v667, %v663
  %v1128 = vpack.c.b16 %v668, %v664
  %v1129 = vpack.c.b16 %v669, %v665
  %v1130 = vpack.c.b16 %v670, %v666
  %v1131 = vpack.c.b16 %v675, %v671
  %v1132 = vpack.c.b16 %v676, %v672
  %v1133 = vpack.c.b16 %v677, %v673
  %v1134 = vpack.c.b16 %v678, %v674
  %v1135 = vpack.c.b16 %v683, %v679
  %v1136 = vpack.c.b16 %v684, %v680
  %v1137 = vpack.c.b16 %v685, %v681
  %v1138 = vpack.c.b16 %v686, %v682
  %v1139 = vpack.c.b16 %v691, %v687
  %v1140 = vpack.c.b16 %v692, %v688
  %v1141 = vpack.c.b16 %v693, %v689
  %v1142 = vpack.c.b16 %v694, %v690
  %v1143 = vpack.c.b16 %v699, %v695
  %v1144 = vpack.c.b16 %v700, %v696
  %v1145 = vpack.c.b16 %v701, %v697
  %v1146 = vpack.c.b16 %v702, %v698
  %v1147 = vpack.c.b16 %v707, %v703
  %v1148 = vpack.c.b16 %v708, %v704
  %v1149 = vpack.c.b16 %v709, %v705
  %v1150 = vpack.c.b16 %v710, %v706
  %v1151 = vpack.c.b16 %v715, %v711
  %v1152 = vpack.c.b16 %v716, %v712
  %v1153 = vpack.c.b16 %v717, %v713
  %v1154 = vpack.c.b16 %v718, %v714
  %v1155 = vpack.c.b16 %v723, %v719
  %v1156 = vpack.c.b16 %v724, %v720
  %v1157 = vpack.c.b16 %v725, %v721
  %v1158 = vpack.c.b16 %v726, %v722
  %v1159 = vpack.c.b16 %v731, %v727
  %v1160 = vpack.c.b16 %v732, %v728
  %v1161 = vpack.c.b16 %v733, %v729
  %v1162 = vpack.c.b16 %v734, %v730
  %v1163 = vpack.c.b16 %v739, %v735
  %v1164 = vpack.c.b16 %v740, %v736
  %v1165 = vpack.c.b16 %v741, %v737
  %v1166 = vpack.c.b16 %v742, %v738
  %v1167 = vpack.c.b16 %v747, %v743
  %v1168 = vpack.c.b16 %v748, %v744
  %v1169 = vpack.c.b16 %v749, %v745
  %v1170 = vpack.c.b16 %v750, %v746
  %v1171 = vpack.c.b16 %v755, %v751
  %v1172 = vpack.c.b16 %v756, %v752
  %v1173 = vpack.c.b16 %v757, %v753
  %v1174 = vpack.c.b16 %v758, %v754
  %v1175 = vpack.c.b16 %v763, %v759
  %v1176 = vpack.c.b16 %v764, %v760
  %v1177 = vpack.c.b16 %v765, %v761
  %v1178 = vpack.c.b16 %v766, %v762
  %v1179 = vpack.c.b16 %v771, %v767
  %v1180 = vpack.c.b16 %v772, %v768
  %v1181 = vpack.c.b16 %v773, %v769
  %v1182 = vpack.c.b16 %v774, %v770
  %v1183 = vpack.c.b16 %v779, %v775
  %v1184 = vpack.c.b16 %v780, %v776
  %v1185 = vpack.c.b16 %v781, %v777
  %v1186 = vpack.c.b16 %v782, %v778
  %v1187 = vpack.c.b16 %v787, %v783
  %v1188 = vpack.c.b16 %v788, %v784
  %v1189 = vpack.c.b16 %v789, %v785
  %v1190 = vpack.c.b16 %v790, %v786
  %v1191 = vpack.c.b16 %v795, %v791
  %v1192 = vpack.c.b16 %v796, %v792
  %v1193 = vpack.c.b16 %v797, %v793
  %v1194 = vpack.c.b16 %v798, %v794
  %v1195 = vpack.c.b16 %v803, %v799
  %v1196 = vpack.c.b16 %v804, %v800
  %v1197 = vpack.c.b16 %v805, %v801
  %v1198 = vpack.c.b16 %v806, %v802
  %v1199 = vpack.c.b16 %v811, %v807
  %v1200 = vpack.c.b16 %v812, %v808
  %v1201 = vpack.c.b16 %v813, %v809
  %v1202 = vpack.c.b16 %v814, %v810
  %v1203 = vpack.c.b16 %v819, %v815
  %v1204 = vpack.c.b16 %v820, %v816
  %v1205 = vpack.c.b16 %v821, %v817
  %v1206 = vpack.c.b16 %v822, %v818
  %v1207 = vpack.c.b16 %v827, %v823
  %v1208 = vpack.c.b16 %v828, %v824
  %v1209 = vpack.c.b16 %v829, %v825
  %v1210 = vpack.c.b16 %v830, %v826
  %v1211 = vpack.c.b16 %v835, %v831
  %v1212 = vpack.c.b16 %v836, %v832
  %v1213 = vpack.c.b16 %v837, %v833
  %v1214 = vpack.c.b16 %v838, %v834
  %v1215 = vpack.c.b16 %v843, %v839
  %v1216 = vpack.c.b16 %v844, %v840
  %v1217 = vpack.c.b16 %v845, %v841
  %v1218 = vpack.c.b16 %v846, %v842
  %v1219 = vpack.c.b16 %v851, %v847
  %v1220 = vpack.c.b16 %v852, %v848
  %v1221 = vpack.c.b16 %v853, %v849
  %v1222 = vpack.c.b16 %v854, %v850
  %v1223 = vpack.c.b16 %v859, %v855
  %v1224 = vpack.c.b16 %v860, %v856
  %v1225 = vpack.c.b16 %v861, %v857
  %v1226 = vpack.c.b16 %v862, %v858
  %v1227 = vpack.c.b16 %v867, %v863
  %v1228 = vpack.c.b16 %v868, %v864
  %v1229 = vpack.c.b16 %v869, %v865
  %v1230 = vpack.c.b16 %v870, %v866
  %v1231 = vpack.c.b16 %v875, %v871
  %v1232 = vpack.c.b16 %v876, %v872
  %v1233 = vpack.c.b16 %v877, %v873
  %v1234 = vpack.c.b16 %v878, %v874
  %v1235 = vpack.c.b16 %v883, %v879
  %v1236 = vpack.c.b16 %v884, %v880
  %v1237 = vpack.c.b16 %v885, %v881
  %v1238 = vpack.c.b16 %v886, %v882
  %v1239 = vpack.c.b16 %v891, %v887
  %v1240 = vpack.c.b16 %v892, %v888
  %v1241 = vpack.c.b16 %v893, %v889
  %v1242 = vpack.c.b16 %v894, %v890
  %v1243 = vpack.c.b16 %v899, %v895
  %v1244 = vpack.c.b16 %v900, %v896
  %v1245 = vpack.c.b16 %v901, %v897
  %v1246 = vpack.c.b16 %v902, %v898
  %v1247 = vpack.c.b16 %v907, %v903
  %v1248 = vpack.c.b16 %v908, %v904
  %v1249 = vpack.c.b16 %v909, %v905
  %v1250 = vpack.c.b16 %v910, %v906
  %v1251 = vpack.c.b16 %v915, %v911
  %v1252 = vpack.c.b16 %v916, %v912
  %v1253 = vpack.c.b16 %v917, %v913
  %v1254 = vpack.c.b16 %v918, %v914
  %v1255 = vpack.c.b16 %v923, %v919
  %v1256 = vpack.c.b16 %v924, %v920
  %v1257 = vpack.c.b16 %v925, %v921
  %v1258 = vpack.c.b16 %v926, %v922
  %v1259 = vpack.c.b16 %v931, %v927
  %v1260 = vpack.c.b16 %v932, %v928
  %v1261 = vpack.c.b16 %v933, %v929
  %v1262 = vpack.c.b16 %v934, %v930
  %v1263 = vpack.c.b16 %v939, %v935
  %v1264 = vpack.c.b16 %v940, %v936
  %v1265 = vpack.c.b16 %v941, %v937
  %v1266 = vpack.c.b16 %v942, %v938
  %v1267 = vpack.c.b16 %v947, %v943
  %v1268 = vpack.c.b16 %v948, %v944
  %v1269 = vpack.c.b16 %v949, %v945
  %v1270 = vpack.c.b16 %v950, %v946
  %v1271 = vpack.c.b16 %v955, %v951
  %v1272 = vpack.c.b16 %v956, %v952
  %v1273 = vpack.c.b16 %v957, %v953
  %v1274 = vpack.c.b16 %v958, %v954
  %v1275 = vpack.c.b16 %v963, %v959
  %v1276 = vpack.c.b16 %v964, %v960
  %v1277 = vpack.c.b16 %v965, %v961
  %v1278 = vpack.c.b16 %v966, %v962
  %v1279 = vpack.c.b16 %v971, %v967
  %v1280 = vpack.c.b16 %v972, %v968
  %v1281 = vpack.c.b16 %v973, %v969
  %v1282 = vpack.c.b16 %v974, %v970
  %v1283 = vpack.c.b16 %v979, %v975
  %v1284 = vpack.c.b16 %v980, %v976
  %v1285 = vpack.c.b16 %v981, %v977
  %v1286 = vpack.c.b16 %v982, %v978
  %v1287 = vpack.c.b16 %v987, %v983
  %v1288 = vpack.c.b16 %v988, %v984
  %v1289 = vpack.c.b16 %v989, %v985
  %v1290 = vpack.c.b16 %v990, %v986
  %v1291 = vpack.c.b16 %v995, %v991
  %v1292 = vpack.c.b16 %v996, %v992
  %v1293 = vpack.c.b16 %v997, %v993
  %v1294 = vpack.c.b16 %v998, %v994
  %v1295 = vpack.c.b16 %v1003, %v999
  %v1296 = vpack.c.b16 %v1004, %v1000
  %v1297 = vpack.c.b16 %v1005, %v1001
  %v1298 = vpack.c.b16 %v1006, %v1002
  %v1299 = vpack.c.b16 %v1011, %v1007
  %v1300 = vpack.c.b16 %v1012, %v1008
  %v1301 = vpack.c.b16 %v1013, %v1009
  %v1302 = vpack.c.b16 %v1014, %v1010
  %v1303 = vpack.c.b16 %v1019, %v1015
  %v1304 = vpack.c.b16 %v1020, %v1016
  %v1305 = vpack.c.b16 %v1021, %v1017
  %v1306 = vpack.c.b16 %v1022, %v1018
  %v1307 = vpack.c.b16 %v1027, %v1023
  %v1308 = vpack.c.b16 %v1028, %v1024
  %v1309 = vpack.c.b16 %v1029, %v1025
  %v1310 = vpack.c.b16 %v1030, %v1026
  %v1311 = vpack.c.b16 %v1035, %v1031
  %v1312 = vpack.c.b16 %v1036, %v1032
  %v1313 = vpack.c.b16 %v1037, %v1033
  %v1314 = vpack.c.b16 %v1038, %v1034
  %v1315 = vpack.c.b16 %v1043, %v1039
  %v1316 = vpack.c.b16 %v1044, %v1040
  %v1317 = vpack.c.b16 %v1045, %v1041
  %v1318 = vpack.c.b16 %v1046, %v1042
  %v1319 = vpack.c.b16 %v1051, %v1047
  %v1320 = vpack.c.b16 %v1052, %v1048
  %v1321 = vpack.c.b16 %v1053, %v1049
  %v1322 = vpack.c.b16 %v1054, %v1050
  %v1323 = vpack.c.b16 %v1059, %v1055
  %v1324 = vpack.c.b16 %v1060, %v1056
  %v1325 = vpack.c.b16 %v1061, %v1057
  %v1326 = vpack.c.b16 %v1062, %v1058
  %v1327 = vpack.c.b16 %v1067, %v1063
  %v1328 = vpack.c.b16 %v1068, %v1064
  %v1329 = vpack.c.b16 %v1069, %v1065
  %v1330 = vpack.c.b16 %v1070, %v1066
  %v1331 = vpack.c.b16 %v1075, %v1071
  %v1332 = vpack.c.b16 %v1076, %v1072
  %v1333 = vpack.c.b16 %v1077, %v1073
  %v1334 = vpack.c.b16 %v1078, %v1074
  %1591 = vmatpush.bf16.msra.mxu0 %v1107
  %1592 = vmatpush.bf16.msra.mxu0 %v1103
  %1593 = vmatpush.bf16.msra.mxu0 %v1099
  %1594 = vmatpush.bf16.msra.mxu0 %v1095
  %1595 = vmatpush.bf16.msra.mxu0 %v1091
  %1596 = vmatpush.bf16.msra.mxu0 %v1087
  %1597 = vmatpush.bf16.msra.mxu0 %v1083
  %1598 = vmatpush.bf16.msra.mxu0 %v1079
  %1599 = vmatmul.bf16.gmra.mxu0 %v295
  %v1600 = vpop.f32.mrf.mxu0
  %v1601 = vadd.f32 %v285, %v1600
  %v1602 = vpop.f32.mrf.mxu0
  %1603 = vdwg.mxu0
  %1604 = vmatpush.bf16.msra.mxu0 %v1139
  %1605 = vmatpush.bf16.msra.mxu0 %v1135
  %1606 = vmatpush.bf16.msra.mxu0 %v1131
  %1607 = vmatpush.bf16.msra.mxu0 %v1127
  %1608 = vmatpush.bf16.msra.mxu0 %v1123
  %1609 = vmatpush.bf16.msra.mxu0 %v1119
  %1610 = vmatpush.bf16.msra.mxu0 %v1115
  %1611 = vmatpush.bf16.msra.mxu0 %v1111
  %1612 = vmatmul.bf16.gmra.mxu0 %v296
  %v1613 = vpop.f32.mrf.mxu0
  %v1614 = vadd.f32 %v1601, %v1613
  %v1615 = vpop.f32.mrf.mxu0
  %1616 = vdwg.mxu0
  %1617 = vmatpush.bf16.msra.mxu0 %v1171
  %1618 = vmatpush.bf16.msra.mxu0 %v1167
  %1619 = vmatpush.bf16.msra.mxu0 %v1163
  %1620 = vmatpush.bf16.msra.mxu0 %v1159
  %1621 = vmatpush.bf16.msra.mxu0 %v1155
  %1622 = vmatpush.bf16.msra.mxu0 %v1151
  %1623 = vmatpush.bf16.msra.mxu0 %v1147
  %1624 = vmatpush.bf16.msra.mxu0 %v1143
  %1625 = vmatmul.bf16.gmra.mxu0 %v297
  %v1626 = vpop.f32.mrf.mxu0
  %v1627 = vadd.f32 %v1614, %v1626
  %v1628 = vpop.f32.mrf.mxu0
  %1629 = vdwg.mxu0
  %1630 = vmatpush.bf16.msra.mxu0 %v1203
  %1631 = vmatpush.bf16.msra.mxu0 %v1199
  %1632 = vmatpush.bf16.msra.mxu0 %v1195
  %1633 = vmatpush.bf16.msra.mxu0 %v1191
  %1634 = vmatpush.bf16.msra.mxu0 %v1187
  %1635 = vmatpush.bf16.msra.mxu0 %v1183
  %1636 = vmatpush.bf16.msra.mxu0 %v1179
  %1637 = vmatpush.bf16.msra.mxu0 %v1175
  %1638 = vmatmul.bf16.gmra.mxu0 %v298
  %v1639 = vpop.f32.mrf.mxu0
  %v1640 = vadd.f32 %v1627, %v1639
  %v1641 = vpop.f32.mrf.mxu0
  %1642 = vdwg.mxu0
  %1643 = vmatpush.bf16.msra.mxu0 %v1235
  %1644 = vmatpush.bf16.msra.mxu0 %v1231
  %1645 = vmatpush.bf16.msra.mxu0 %v1227
  %1646 = vmatpush.bf16.msra.mxu0 %v1223
  %1647 = vmatpush.bf16.msra.mxu0 %v1219
  %1648 = vmatpush.bf16.msra.mxu0 %v1215
  %1649 = vmatpush.bf16.msra.mxu0 %v1211
  %1650 = vmatpush.bf16.msra.mxu0 %v1207
  %1651 = vmatmul.bf16.gmra.mxu0 %v299
  %v1652 = vpop.f32.mrf.mxu0
  %v1653 = vadd.f32 %v1640, %v1652
  %v1654 = vpop.f32.mrf.mxu0
  %1655 = vdwg.mxu0
  %1656 = vmatpush.bf16.msra.mxu0 %v1267
  %1657 = vmatpush.bf16.msra.mxu0 %v1263
  %1658 = vmatpush.bf16.msra.mxu0 %v1259
  %1659 = vmatpush.bf16.msra.mxu0 %v1255
  %1660 = vmatpush.bf16.msra.mxu0 %v1251
  %1661 = vmatpush.bf16.msra.mxu0 %v1247
  %1662 = vmatpush.bf16.msra.mxu0 %v1243
  %1663 = vmatpush.bf16.msra.mxu0 %v1239
  %1664 = vmatmul.bf16.gmra.mxu0 %v300
  %v1665 = vpop.f32.mrf.mxu0
  %v1666 = vadd.f32 %v1653, %v1665
  %v1667 = vpop.f32.mrf.mxu0
  %1668 = vdwg.mxu0
  %1669 = vmatpush.bf16.msra.mxu0 %v1299
  %1670 = vmatpush.bf16.msra.mxu0 %v1295
  %1671 = vmatpush.bf16.msra.mxu0 %v1291
  %1672 = vmatpush.bf16.msra.mxu0 %v1287
  %1673 = vmatpush.bf16.msra.mxu0 %v1283
  %1674 = vmatpush.bf16.msra.mxu0 %v1279
  %1675 = vmatpush.bf16.msra.mxu0 %v1275
  %1676 = vmatpush.bf16.msra.mxu0 %v1271
  %1677 = vmatmul.bf16.gmra.mxu0 %v301
  %v1678 = vpop.f32.mrf.mxu0
  %v1679 = vadd.f32 %v1666, %v1678
  %v1680 = vpop.f32.mrf.mxu0
  %1681 = vdwg.mxu0
  %1682 = vmatpush.bf16.msra.mxu0 %v1331
  %1683 = vmatpush.bf16.msra.mxu0 %v1327
  %1684 = vmatpush.bf16.msra.mxu0 %v1323
  %1685 = vmatpush.bf16.msra.mxu0 %v1319
  %1686 = vmatpush.bf16.msra.mxu0 %v1315
  %1687 = vmatpush.bf16.msra.mxu0 %v1311
  %1688 = vmatpush.bf16.msra.mxu0 %v1307
  %1689 = vmatpush.bf16.msra.mxu0 %v1303
  %1690 = vmatmul.bf16.gmra.mxu0 %v302
  %v1691 = vpop.f32.mrf.mxu0
  %v1692 = vadd.f32 %v1679, %v1691
  %v1693 = vpop.f32.mrf.mxu0
  %1694 = vdwg.mxu0
  %1695 = vmatpush.bf16.msra.mxu0 %v1108
  %1696 = vmatpush.bf16.msra.mxu0 %v1104
  %1697 = vmatpush.bf16.msra.mxu0 %v1100
  %1698 = vmatpush.bf16.msra.mxu0 %v1096
  %1699 = vmatpush.bf16.msra.mxu0 %v1092
  %1700 = vmatpush.bf16.msra.mxu0 %v1088
  %1701 = vmatpush.bf16.msra.mxu0 %v1084
  %1702 = vmatpush.bf16.msra.mxu0 %v1080
  %1703 = vmatmul.bf16.gmra.mxu0 %v295
  %v1704 = vpop.f32.mrf.mxu0
  %v1705 = vadd.f32 %v286, %v1704
  %v1706 = vpop.f32.mrf.mxu0
  %1707 = vdwg.mxu0
  %1708 = vmatpush.bf16.msra.mxu0 %v1140
  %1709 = vmatpush.bf16.msra.mxu0 %v1136
  %1710 = vmatpush.bf16.msra.mxu0 %v1132
  %1711 = vmatpush.bf16.msra.mxu0 %v1128
  %1712 = vmatpush.bf16.msra.mxu0 %v1124
  %1713 = vmatpush.bf16.msra.mxu0 %v1120
  %1714 = vmatpush.bf16.msra.mxu0 %v1116
  %1715 = vmatpush.bf16.msra.mxu0 %v1112
  %1716 = vmatmul.bf16.gmra.mxu0 %v296
  %v1717 = vpop.f32.mrf.mxu0
  %v1718 = vadd.f32 %v1705, %v1717
  %v1719 = vpop.f32.mrf.mxu0
  %1720 = vdwg.mxu0
  %1721 = vmatpush.bf16.msra.mxu0 %v1172
  %1722 = vmatpush.bf16.msra.mxu0 %v1168
  %1723 = vmatpush.bf16.msra.mxu0 %v1164
  %1724 = vmatpush.bf16.msra.mxu0 %v1160
  %1725 = vmatpush.bf16.msra.mxu0 %v1156
  %1726 = vmatpush.bf16.msra.mxu0 %v1152
  %1727 = vmatpush.bf16.msra.mxu0 %v1148
  %1728 = vmatpush.bf16.msra.mxu0 %v1144
  %1729 = vmatmul.bf16.gmra.mxu0 %v297
  %v1730 = vpop.f32.mrf.mxu0
  %v1731 = vadd.f32 %v1718, %v1730
  %v1732 = vpop.f32.mrf.mxu0
  %1733 = vdwg.mxu0
  %1734 = vmatpush.bf16.msra.mxu0 %v1204
  %1735 = vmatpush.bf16.msra.mxu0 %v1200
  %1736 = vmatpush.bf16.msra.mxu0 %v1196
  %1737 = vmatpush.bf16.msra.mxu0 %v1192
  %1738 = vmatpush.bf16.msra.mxu0 %v1188
  %1739 = vmatpush.bf16.msra.mxu0 %v1184
  %1740 = vmatpush.bf16.msra.mxu0 %v1180
  %1741 = vmatpush.bf16.msra.mxu0 %v1176
  %1742 = vmatmul.bf16.gmra.mxu0 %v298
  %v1743 = vpop.f32.mrf.mxu0
  %v1744 = vadd.f32 %v1731, %v1743
  %v1745 = vpop.f32.mrf.mxu0
  %1746 = vdwg.mxu0
  %1747 = vmatpush.bf16.msra.mxu0 %v1236
  %1748 = vmatpush.bf16.msra.mxu0 %v1232
  %1749 = vmatpush.bf16.msra.mxu0 %v1228
  %1750 = vmatpush.bf16.msra.mxu0 %v1224
  %1751 = vmatpush.bf16.msra.mxu0 %v1220
  %1752 = vmatpush.bf16.msra.mxu0 %v1216
  %1753 = vmatpush.bf16.msra.mxu0 %v1212
  %1754 = vmatpush.bf16.msra.mxu0 %v1208
  %1755 = vmatmul.bf16.gmra.mxu0 %v299
  %v1756 = vpop.f32.mrf.mxu0
  %v1757 = vadd.f32 %v1744, %v1756
  %v1758 = vpop.f32.mrf.mxu0
  %1759 = vdwg.mxu0
  %1760 = vmatpush.bf16.msra.mxu0 %v1268
  %1761 = vmatpush.bf16.msra.mxu0 %v1264
  %1762 = vmatpush.bf16.msra.mxu0 %v1260
  %1763 = vmatpush.bf16.msra.mxu0 %v1256
  %1764 = vmatpush.bf16.msra.mxu0 %v1252
  %1765 = vmatpush.bf16.msra.mxu0 %v1248
  %1766 = vmatpush.bf16.msra.mxu0 %v1244
  %1767 = vmatpush.bf16.msra.mxu0 %v1240
  %1768 = vmatmul.bf16.gmra.mxu0 %v300
  %v1769 = vpop.f32.mrf.mxu0
  %v1770 = vadd.f32 %v1757, %v1769
  %v1771 = vpop.f32.mrf.mxu0
  %1772 = vdwg.mxu0
  %1773 = vmatpush.bf16.msra.mxu0 %v1300
  %1774 = vmatpush.bf16.msra.mxu0 %v1296
  %1775 = vmatpush.bf16.msra.mxu0 %v1292
  %1776 = vmatpush.bf16.msra.mxu0 %v1288
  %1777 = vmatpush.bf16.msra.mxu0 %v1284
  %1778 = vmatpush.bf16.msra.mxu0 %v1280
  %1779 = vmatpush.bf16.msra.mxu0 %v1276
  %1780 = vmatpush.bf16.msra.mxu0 %v1272
  %1781 = vmatmul.bf16.gmra.mxu0 %v301
  %v1782 = vpop.f32.mrf.mxu0
  %v1783 = vadd.f32 %v1770, %v1782
  %v1784 = vpop.f32.mrf.mxu0
  %1785 = vdwg.mxu0
  %1786 = vmatpush.bf16.msra.mxu0 %v1332
  %1787 = vmatpush.bf16.msra.mxu0 %v1328
  %1788 = vmatpush.bf16.msra.mxu0 %v1324
  %1789 = vmatpush.bf16.msra.mxu0 %v1320
  %1790 = vmatpush.bf16.msra.mxu0 %v1316
  %1791 = vmatpush.bf16.msra.mxu0 %v1312
  %1792 = vmatpush.bf16.msra.mxu0 %v1308
  %1793 = vmatpush.bf16.msra.mxu0 %v1304
  %1794 = vmatmul.bf16.gmra.mxu0 %v302
  %v1795 = vpop.f32.mrf.mxu0
  %v1796 = vadd.f32 %v1783, %v1795
  %v1797 = vpop.f32.mrf.mxu0
  %1798 = vdwg.mxu0
  %1799 = vmatpush.bf16.msra.mxu0 %v1109
  %1800 = vmatpush.bf16.msra.mxu0 %v1105
  %1801 = vmatpush.bf16.msra.mxu0 %v1101
  %1802 = vmatpush.bf16.msra.mxu0 %v1097
  %1803 = vmatpush.bf16.msra.mxu0 %v1093
  %1804 = vmatpush.bf16.msra.mxu0 %v1089
  %1805 = vmatpush.bf16.msra.mxu0 %v1085
  %1806 = vmatpush.bf16.msra.mxu0 %v1081
  %1807 = vmatmul.bf16.gmra.mxu0 %v295
  %v1808 = vpop.f32.mrf.mxu0
  %v1809 = vadd.f32 %v287, %v1808
  %v1810 = vpop.f32.mrf.mxu0
  %1811 = vdwg.mxu0
  %1812 = vmatpush.bf16.msra.mxu0 %v1141
  %1813 = vmatpush.bf16.msra.mxu0 %v1137
  %1814 = vmatpush.bf16.msra.mxu0 %v1133
  %1815 = vmatpush.bf16.msra.mxu0 %v1129
  %1816 = vmatpush.bf16.msra.mxu0 %v1125
  %1817 = vmatpush.bf16.msra.mxu0 %v1121
  %1818 = vmatpush.bf16.msra.mxu0 %v1117
  %1819 = vmatpush.bf16.msra.mxu0 %v1113
  %1820 = vmatmul.bf16.gmra.mxu0 %v296
  %v1821 = vpop.f32.mrf.mxu0
  %v1822 = vadd.f32 %v1809, %v1821
  %v1823 = vpop.f32.mrf.mxu0
  %1824 = vdwg.mxu0
  %1825 = vmatpush.bf16.msra.mxu0 %v1173
  %1826 = vmatpush.bf16.msra.mxu0 %v1169
  %1827 = vmatpush.bf16.msra.mxu0 %v1165
  %1828 = vmatpush.bf16.msra.mxu0 %v1161
  %1829 = vmatpush.bf16.msra.mxu0 %v1157
  %1830 = vmatpush.bf16.msra.mxu0 %v1153
  %1831 = vmatpush.bf16.msra.mxu0 %v1149
  %1832 = vmatpush.bf16.msra.mxu0 %v1145
  %1833 = vmatmul.bf16.gmra.mxu0 %v297
  %v1834 = vpop.f32.mrf.mxu0
  %v1835 = vadd.f32 %v1822, %v1834
  %v1836 = vpop.f32.mrf.mxu0
  %1837 = vdwg.mxu0
  %1838 = vmatpush.bf16.msra.mxu0 %v1205
  %1839 = vmatpush.bf16.msra.mxu0 %v1201
  %1840 = vmatpush.bf16.msra.mxu0 %v1197
  %1841 = vmatpush.bf16.msra.mxu0 %v1193
  %1842 = vmatpush.bf16.msra.mxu0 %v1189
  %1843 = vmatpush.bf16.msra.mxu0 %v1185
  %1844 = vmatpush.bf16.msra.mxu0 %v1181
  %1845 = vmatpush.bf16.msra.mxu0 %v1177
  %1846 = vmatmul.bf16.gmra.mxu0 %v298
  %v1847 = vpop.f32.mrf.mxu0
  %v1848 = vadd.f32 %v1835, %v1847
  %v1849 = vpop.f32.mrf.mxu0
  %1850 = vdwg.mxu0
  %1851 = vmatpush.bf16.msra.mxu0 %v1237
  %1852 = vmatpush.bf16.msra.mxu0 %v1233
  %1853 = vmatpush.bf16.msra.mxu0 %v1229
  %1854 = vmatpush.bf16.msra.mxu0 %v1225
  %1855 = vmatpush.bf16.msra.mxu0 %v1221
  %1856 = vmatpush.bf16.msra.mxu0 %v1217
  %1857 = vmatpush.bf16.msra.mxu0 %v1213
  %1858 = vmatpush.bf16.msra.mxu0 %v1209
  %1859 = vmatmul.bf16.gmra.mxu0 %v299
  %v1860 = vpop.f32.mrf.mxu0
  %v1861 = vadd.f32 %v1848, %v1860
  %v1862 = vpop.f32.mrf.mxu0
  %1863 = vdwg.mxu0
  %1864 = vmatpush.bf16.msra.mxu0 %v1269
  %1865 = vmatpush.bf16.msra.mxu0 %v1265
  %1866 = vmatpush.bf16.msra.mxu0 %v1261
  %1867 = vmatpush.bf16.msra.mxu0 %v1257
  %1868 = vmatpush.bf16.msra.mxu0 %v1253
  %1869 = vmatpush.bf16.msra.mxu0 %v1249
  %1870 = vmatpush.bf16.msra.mxu0 %v1245
  %1871 = vmatpush.bf16.msra.mxu0 %v1241
  %1872 = vmatmul.bf16.gmra.mxu0 %v300
  %v1873 = vpop.f32.mrf.mxu0
  %v1874 = vadd.f32 %v1861, %v1873
  %v1875 = vpop.f32.mrf.mxu0
  %1876 = vdwg.mxu0
  %1877 = vmatpush.bf16.msra.mxu0 %v1301
  %1878 = vmatpush.bf16.msra.mxu0 %v1297
  %1879 = vmatpush.bf16.msra.mxu0 %v1293
  %1880 = vmatpush.bf16.msra.mxu0 %v1289
  %1881 = vmatpush.bf16.msra.mxu0 %v1285
  %1882 = vmatpush.bf16.msra.mxu0 %v1281
  %1883 = vmatpush.bf16.msra.mxu0 %v1277
  %1884 = vmatpush.bf16.msra.mxu0 %v1273
  %1885 = vmatmul.bf16.gmra.mxu0 %v301
  %v1886 = vpop.f32.mrf.mxu0
  %v1887 = vadd.f32 %v1874, %v1886
  %v1888 = vpop.f32.mrf.mxu0
  %1889 = vdwg.mxu0
  %1890 = vmatpush.bf16.msra.mxu0 %v1333
  %1891 = vmatpush.bf16.msra.mxu0 %v1329
  %1892 = vmatpush.bf16.msra.mxu0 %v1325
  %1893 = vmatpush.bf16.msra.mxu0 %v1321
  %1894 = vmatpush.bf16.msra.mxu0 %v1317
  %1895 = vmatpush.bf16.msra.mxu0 %v1313
  %1896 = vmatpush.bf16.msra.mxu0 %v1309
  %1897 = vmatpush.bf16.msra.mxu0 %v1305
  %1898 = vmatmul.bf16.gmra.mxu0 %v302
  %v1899 = vpop.f32.mrf.mxu0
  %v1900 = vadd.f32 %v1887, %v1899
  %v1901 = vpop.f32.mrf.mxu0
  %1902 = vdwg.mxu0
  %1903 = vmatpush.bf16.msra.mxu0 %v1110
  %1904 = vmatpush.bf16.msra.mxu0 %v1106
  %1905 = vmatpush.bf16.msra.mxu0 %v1102
  %1906 = vmatpush.bf16.msra.mxu0 %v1098
  %1907 = vmatpush.bf16.msra.mxu0 %v1094
  %1908 = vmatpush.bf16.msra.mxu0 %v1090
  %1909 = vmatpush.bf16.msra.mxu0 %v1086
  %1910 = vmatpush.bf16.msra.mxu0 %v1082
  %1911 = vmatmul.bf16.gmra.mxu0 %v295
  %v1912 = vpop.f32.mrf.mxu0
  %v1913 = vadd.f32 %v288, %v1912
  %v1914 = vpop.f32.mrf.mxu0
  %1915 = vdwg.mxu0
  %1916 = vmatpush.bf16.msra.mxu0 %v1142
  %1917 = vmatpush.bf16.msra.mxu0 %v1138
  %1918 = vmatpush.bf16.msra.mxu0 %v1134
  %1919 = vmatpush.bf16.msra.mxu0 %v1130
  %1920 = vmatpush.bf16.msra.mxu0 %v1126
  %1921 = vmatpush.bf16.msra.mxu0 %v1122
  %1922 = vmatpush.bf16.msra.mxu0 %v1118
  %1923 = vmatpush.bf16.msra.mxu0 %v1114
  %1924 = vmatmul.bf16.gmra.mxu0 %v296
  %v1925 = vpop.f32.mrf.mxu0
  %v1926 = vadd.f32 %v1913, %v1925
  %v1927 = vpop.f32.mrf.mxu0
  %1928 = vdwg.mxu0
  %1929 = vmatpush.bf16.msra.mxu0 %v1174
  %1930 = vmatpush.bf16.msra.mxu0 %v1170
  %1931 = vmatpush.bf16.msra.mxu0 %v1166
  %1932 = vmatpush.bf16.msra.mxu0 %v1162
  %1933 = vmatpush.bf16.msra.mxu0 %v1158
  %1934 = vmatpush.bf16.msra.mxu0 %v1154
  %1935 = vmatpush.bf16.msra.mxu0 %v1150
  %1936 = vmatpush.bf16.msra.mxu0 %v1146
  %1937 = vmatmul.bf16.gmra.mxu0 %v297
  %v1938 = vpop.f32.mrf.mxu0
  %v1939 = vadd.f32 %v1926, %v1938
  %v1940 = vpop.f32.mrf.mxu0
  %1941 = vdwg.mxu0
  %1942 = vmatpush.bf16.msra.mxu0 %v1206
  %1943 = vmatpush.bf16.msra.mxu0 %v1202
  %1944 = vmatpush.bf16.msra.mxu0 %v1198
  %1945 = vmatpush.bf16.msra.mxu0 %v1194
  %1946 = vmatpush.bf16.msra.mxu0 %v1190
  %1947 = vmatpush.bf16.msra.mxu0 %v1186
  %1948 = vmatpush.bf16.msra.mxu0 %v1182
  %1949 = vmatpush.bf16.msra.mxu0 %v1178
  %1950 = vmatmul.bf16.gmra.mxu0 %v298
  %v1951 = vpop.f32.mrf.mxu0
  %v1952 = vadd.f32 %v1939, %v1951
  %v1953 = vpop.f32.mrf.mxu0
  %1954 = vdwg.mxu0
  %1955 = vmatpush.bf16.msra.mxu0 %v1238
  %1956 = vmatpush.bf16.msra.mxu0 %v1234
  %1957 = vmatpush.bf16.msra.mxu0 %v1230
  %1958 = vmatpush.bf16.msra.mxu0 %v1226
  %1959 = vmatpush.bf16.msra.mxu0 %v1222
  %1960 = vmatpush.bf16.msra.mxu0 %v1218
  %1961 = vmatpush.bf16.msra.mxu0 %v1214
  %1962 = vmatpush.bf16.msra.mxu0 %v1210
  %1963 = vmatmul.bf16.gmra.mxu0 %v299
  %v1964 = vpop.f32.mrf.mxu0
  %v1965 = vadd.f32 %v1952, %v1964
  %v1966 = vpop.f32.mrf.mxu0
  %1967 = vdwg.mxu0
  %1968 = vmatpush.bf16.msra.mxu0 %v1270
  %1969 = vmatpush.bf16.msra.mxu0 %v1266
  %1970 = vmatpush.bf16.msra.mxu0 %v1262
  %1971 = vmatpush.bf16.msra.mxu0 %v1258
  %1972 = vmatpush.bf16.msra.mxu0 %v1254
  %1973 = vmatpush.bf16.msra.mxu0 %v1250
  %1974 = vmatpush.bf16.msra.mxu0 %v1246
  %1975 = vmatpush.bf16.msra.mxu0 %v1242
  %1976 = vmatmul.bf16.gmra.mxu0 %v300
  %v1977 = vpop.f32.mrf.mxu0
  %v1978 = vadd.f32 %v1965, %v1977
  %v1979 = vpop.f32.mrf.mxu0
  %1980 = vdwg.mxu0
  %1981 = vmatpush.bf16.msra.mxu0 %v1302
  %1982 = vmatpush.bf16.msra.mxu0 %v1298
  %1983 = vmatpush.bf16.msra.mxu0 %v1294
  %1984 = vmatpush.bf16.msra.mxu0 %v1290
  %1985 = vmatpush.bf16.msra.mxu0 %v1286
  %1986 = vmatpush.bf16.msra.mxu0 %v1282
  %1987 = vmatpush.bf16.msra.mxu0 %v1278
  %1988 = vmatpush.bf16.msra.mxu0 %v1274
  %1989 = vmatmul.bf16.gmra.mxu0 %v301
  %v1990 = vpop.f32.mrf.mxu0
  %v1991 = vadd.f32 %v1978, %v1990
  %v1992 = vpop.f32.mrf.mxu0
  %1993 = vdwg.mxu0
  %1994 = vmatpush.bf16.msra.mxu0 %v1334
  %1995 = vmatpush.bf16.msra.mxu0 %v1330
  %1996 = vmatpush.bf16.msra.mxu0 %v1326
  %1997 = vmatpush.bf16.msra.mxu0 %v1322
  %1998 = vmatpush.bf16.msra.mxu0 %v1318
  %1999 = vmatpush.bf16.msra.mxu0 %v1314
  %2000 = vmatpush.bf16.msra.mxu0 %v1310
  %2001 = vmatpush.bf16.msra.mxu0 %v1306
  %2002 = vmatmul.bf16.gmra.mxu0 %v302
  %v2003 = vpop.f32.mrf.mxu0
  %v2004 = vadd.f32 %v1991, %v2003
  %v2005 = vpop.f32.mrf.mxu0
  %2006 = vdwg.mxu0
  %v2007 = vmax.f32 %v1692, 0.0
  %v2008 = vmax.f32 %v1796, 0.0
  %v2009 = vmax.f32 %v1900, 0.0
  %v2010 = vmax.f32 %v2004, 0.0
  %v2011 = vpack.c.bf16 %v2007, %v2007
  %v2012 = vpack.c.bf16 %v2008, %v2008
  %v2013 = vpack.c.bf16 %v2009, %v2009
  %v2014 = vpack.c.bf16 %v2010, %v2010
  %v2015 = vld [vmem:[%s3] sm:$0xf]
  %v2016 = vld [vmem:[%s3 + $0x4] sm:$0xf]
  %v2017 = vld [vmem:[%s3 + $0x8] sm:$0xf]
  %v2018 = vld [vmem:[%s3 + $0xc] sm:$0xf]
  %v2019 = vld [vmem:[%s3 + $0x10] sm:$0xf]
  %v2020 = vld [vmem:[%s3 + $0x14] sm:$0xf]
  %v2021 = vld [vmem:[%s3 + $0x18] sm:$0xf]
  %v2022 = vld [vmem:[%s3 + $0x1c] sm:$0xf]
  %v2023 = vld [vmem:[%s3 + $0x20] sm:$0xf]
  %v2024 = vld [vmem:[%s3 + $0x24] sm:$0xf]
  %v2025 = vld [vmem:[%s3 + $0x28] sm:$0xf]
  %v2026 = vld [vmem:[%s3 + $0x2c] sm:$0xf]
  %v2027 = vld [vmem:[%s3 + $0x30] sm:$0xf]
  %v2028 = vld [vmem:[%s3 + $0x34] sm:$0xf]
  %v2029 = vld [vmem:[%s3 + $0x38] sm:$0xf]
  %v2030 = vld [vmem:[%s3 + $0x3c] sm:$0xf]
  %v2031 = vld [vmem:[%s3 + $0x40] sm:$0xf]
  %v2032 = vld [vmem:[%s3 + $0x44] sm:$0xf]
  %v2033 = vld [vmem:[%s3 + $0x48] sm:$0xf]
  %v2034 = vld [vmem:[%s3 + $0x4c] sm:$0xf]
  %v2035 = vld [vmem:[%s3 + $0x50] sm:$0xf]
  %v2036 = vld [vmem:[%s3 + $0x54] sm:$0xf]
  %v2037 = vld [vmem:[%s3 + $0x58] sm:$0xf]
  %v2038 = vld [vmem:[%s3 + $0x5c] sm:$0xf]
  %v2039 = vld [vmem:[%s3 + $0x60] sm:$0xf]
  %v2040 = vld [vmem:[%s3 + $0x64] sm:$0xf]
  %v2041 = vld [vmem:[%s3 + $0x68] sm:$0xf]
  %v2042 = vld [vmem:[%s3 + $0x6c] sm:$0xf]
  %v2043 = vld [vmem:[%s3 + $0x70] sm:$0xf]
  %v2044 = vld [vmem:[%s3 + $0x74] sm:$0xf]
  %v2045 = vld [vmem:[%s3 + $0x78] sm:$0xf]
  %v2046 = vld [vmem:[%s3 + $0x7c] sm:$0xf]
  %v2047 = vld [vmem:[%s3 + $0x80] sm:$0xf]
  %v2048 = vld [vmem:[%s3 + $0x84] sm:$0xf]
  %v2049 = vld [vmem:[%s3 + $0x88] sm:$0xf]
  %v2050 = vld [vmem:[%s3 + $0x8c] sm:$0xf]
  %v2051 = vld [vmem:[%s3 + $0x90] sm:$0xf]
  %v2052 = vld [vmem:[%s3 + $0x94] sm:$0xf]
  %v2053 = vld [vmem:[%s3 + $0x98] sm:$0xf]
  %v2054 = vld [vmem:[%s3 + $0x9c] sm:$0xf]
  %v2055 = vld [vmem:[%s3 + $0xa0] sm:$0xf]
  %v2056 = vld [vmem:[%s3 + $0xa4] sm:$0xf]
  %v2057 = vld [vmem:[%s3 + $0xa8] sm:$0xf]
  %v2058 = vld [vmem:[%s3 + $0xac] sm:$0xf]
  %v2059 = vld [vmem:[%s3 + $0xb0] sm:$0xf]
  %v2060 = vld [vmem:[%s3 + $0xb4] sm:$0xf]
  %v2061 = vld [vmem:[%s3 + $0xb8] sm:$0xf]
  %v2062 = vld [vmem:[%s3 + $0xbc] sm:$0xf]
  %v2063 = vld [vmem:[%s3 + $0xc0] sm:$0xf]
  %v2064 = vld [vmem:[%s3 + $0xc4] sm:$0xf]
  %v2065 = vld [vmem:[%s3 + $0xc8] sm:$0xf]
  %v2066 = vld [vmem:[%s3 + $0xcc] sm:$0xf]
  %v2067 = vld [vmem:[%s3 + $0xd0] sm:$0xf]
  %v2068 = vld [vmem:[%s3 + $0xd4] sm:$0xf]
  %v2069 = vld [vmem:[%s3 + $0xd8] sm:$0xf]
  %v2070 = vld [vmem:[%s3 + $0xdc] sm:$0xf]
  %v2071 = vld [vmem:[%s3 + $0xe0] sm:$0xf]
  %v2072 = vld [vmem:[%s3 + $0xe4] sm:$0xf]
  %v2073 = vld [vmem:[%s3 + $0xe8] sm:$0xf]
  %v2074 = vld [vmem:[%s3 + $0xec] sm:$0xf]
  %v2075 = vld [vmem:[%s3 + $0xf0] sm:$0xf]
  %v2076 = vld [vmem:[%s3 + $0xf4] sm:$0xf]
  %v2077 = vld [vmem:[%s3 + $0xf8] sm:$0xf]
  %v2078 = vld [vmem:[%s3 + $0xfc] sm:$0xf]
  %v2079 = vld [vmem:[%s4] sm:$0x1]
  %v2081 = vperm.slane %v2079, 0
  %v2147 = vunpack.c.l.b16 %v2015
  %v2148 = vunpack.c.l.b16 %v2016
  %v2149 = vunpack.c.l.b16 %v2017
  %v2150 = vunpack.c.l.b16 %v2018
  %v2151 = vunpack.c.l.b16 %v2019
  %v2152 = vunpack.c.l.b16 %v2020
  %v2153 = vunpack.c.l.b16 %v2021
  %v2154 = vunpack.c.l.b16 %v2022
  %v2155 = vunpack.c.l.b16 %v2023
  %v2156 = vunpack.c.l.b16 %v2024
  %v2157 = vunpack.c.l.b16 %v2025
  %v2158 = vunpack.c.l.b16 %v2026
  %v2159 = vunpack.c.l.b16 %v2027
  %v2160 = vunpack.c.l.b16 %v2028
  %v2161 = vunpack.c.l.b16 %v2029
  %v2162 = vunpack.c.l.b16 %v2030
  %v2163 = vunpack.c.l.b16 %v2031
  %v2164 = vunpack.c.l.b16 %v2032
  %v2165 = vunpack.c.l.b16 %v2033
  %v2166 = vunpack.c.l.b16 %v2034
  %v2167 = vunpack.c.l.b16 %v2035
  %v2168 = vunpack.c.l.b16 %v2036
  %v2169 = vunpack.c.l.b16 %v2037
  %v2170 = vunpack.c.l.b16 %v2038
  %v2171 = vunpack.c.l.b16 %v2039
  %v2172 = vunpack.c.l.b16 %v2040
  %v2173 = vunpack.c.l.b16 %v2041
  %v2174 = vunpack.c.l.b16 %v2042
  %v2175 = vunpack.c.l.b16 %v2043
  %v2176 = vunpack.c.l.b16 %v2044
  %v2177 = vunpack.c.l.b16 %v2045
  %v2178 = vunpack.c.l.b16 %v2046
  %v2179 = vunpack.c.l.b16 %v2047
  %v2180 = vunpack.c.l.b16 %v2048
  %v2181 = vunpack.c.l.b16 %v2049
  %v2182 = vunpack.c.l.b16 %v2050
  %v2183 = vunpack.c.l.b16 %v2051
  %v2184 = vunpack.c.l.b16 %v2052
  %v2185 = vunpack.c.l.b16 %v2053
  %v2186 = vunpack.c.l.b16 %v2054
  %v2187 = vunpack.c.l.b16 %v2055
  %v2188 = vunpack.c.l.b16 %v2056
  %v2189 = vunpack.c.l.b16 %v2057
  %v2190 = vunpack.c.l.b16 %v2058
  %v2191 = vunpack.c.l.b16 %v2059
  %v2192 = vunpack.c.l.b16 %v2060
  %v2193 = vunpack.c.l.b16 %v2061
  %v2194 = vunpack.c.l.b16 %v2062
  %v2195 = vunpack.c.l.b16 %v2063
  %v2196 = vunpack.c.l.b16 %v2064
  %v2197 = vunpack.c.l.b16 %v2065
  %v2198 = vunpack.c.l.b16 %v2066
  %v2199 = vunpack.c.l.b16 %v2067
  %v2200 = vunpack.c.l.b16 %v2068
  %v2201 = vunpack.c.l.b16 %v2069
  %v2202 = vunpack.c.l.b16 %v2070
  %v2203 = vunpack.c.l.b16 %v2071
  %v2204 = vunpack.c.l.b16 %v2072
  %v2205 = vunpack.c.l.b16 %v2073
  %v2206 = vunpack.c.l.b16 %v2074
  %v2207 = vunpack.c.l.b16 %v2075
  %v2208 = vunpack.c.l.b16 %v2076
  %v2209 = vunpack.c.l.b16 %v2077
  %v2210 = vunpack.c.l.b16 %v2078
  %v2211 = vpack.c.b16 %v2148, %v2147
  %v2212 = vpack.c.b16 %v2150, %v2149
  %v2213 = vpack.c.b16 %v2152, %v2151
  %v2214 = vpack.c.b16 %v2154, %v2153
  %v2215 = vpack.c.b16 %v2156, %v2155
  %v2216 = vpack.c.b16 %v2158, %v2157
  %v2217 = vpack.c.b16 %v2160, %v2159
  %v2218 = vpack.c.b16 %v2162, %v2161
  %v2219 = vpack.c.b16 %v2164, %v2163
  %v2220 = vpack.c.b16 %v2166, %v2165
  %v2221 = vpack.c.b16 %v2168, %v2167
  %v2222 = vpack.c.b16 %v2170, %v2169
  %v2223 = vpack.c.b16 %v2172, %v2171
  %v2224 = vpack.c.b16 %v2174, %v2173
  %v2225 = vpack.c.b16 %v2176, %v2175
  %v2226 = vpack.c.b16 %v2178, %v2177
  %v2227 = vpack.c.b16 %v2180, %v2179
  %v2228 = vpack.c.b16 %v2182, %v2181
  %v2229 = vpack.c.b16 %v2184, %v2183
  %v2230 = vpack.c.b16 %v2186, %v2185
  %v2231 = vpack.c.b16 %v2188, %v2187
  %v2232 = vpack.c.b16 %v2190, %v2189
  %v2233 = vpack.c.b16 %v2192, %v2191
  %v2234 = vpack.c.b16 %v2194, %v2193
  %v2235 = vpack.c.b16 %v2196, %v2195
  %v2236 = vpack.c.b16 %v2198, %v2197
  %v2237 = vpack.c.b16 %v2200, %v2199
  %v2238 = vpack.c.b16 %v2202, %v2201
  %v2239 = vpack.c.b16 %v2204, %v2203
  %v2240 = vpack.c.b16 %v2206, %v2205
  %v2241 = vpack.c.b16 %v2208, %v2207
  %v2242 = vpack.c.b16 %v2210, %v2209
  %2275 = vmatpush.bf16.msra.mxu0 %v2218
  %2276 = vmatpush.bf16.msra.mxu0 %v2217
  %2277 = vmatpush.bf16.msra.mxu0 %v2216
  %2278 = vmatpush.bf16.msra.mxu0 %v2215
  %2279 = vmatpush.bf16.msra.mxu0 %v2214
  %2280 = vmatpush.bf16.msra.mxu0 %v2213
  %2281 = vmatpush.bf16.msra.mxu0 %v2212
  %2282 = vmatpush.bf16.msra.mxu0 %v2211
  %2283 = vmatmul.bf16.gmra.mxu0 %v2011
  %v2284 = vpop.f32.mrf.mxu0
  %v2285 = vadd.f32 %v2081, %v2284
  %v2286 = vpop.f32.mrf.mxu0
  %2287 = vdwg.mxu0
  %2288 = vmatpush.bf16.msra.mxu0 %v2226
  %2289 = vmatpush.bf16.msra.mxu0 %v2225
  %2290 = vmatpush.bf16.msra.mxu0 %v2224
  %2291 = vmatpush.bf16.msra.mxu0 %v2223
  %2292 = vmatpush.bf16.msra.mxu0 %v2222
  %2293 = vmatpush.bf16.msra.mxu0 %v2221
  %2294 = vmatpush.bf16.msra.mxu0 %v2220
  %2295 = vmatpush.bf16.msra.mxu0 %v2219
  %2296 = vmatmul.bf16.gmra.mxu0 %v2012
  %v2297 = vpop.f32.mrf.mxu0
  %v2298 = vadd.f32 %v2285, %v2297
  %v2299 = vpop.f32.mrf.mxu0
  %2300 = vdwg.mxu0
  %2301 = vmatpush.bf16.msra.mxu0 %v2234
  %2302 = vmatpush.bf16.msra.mxu0 %v2233
  %2303 = vmatpush.bf16.msra.mxu0 %v2232
  %2304 = vmatpush.bf16.msra.mxu0 %v2231
  %2305 = vmatpush.bf16.msra.mxu0 %v2230
  %2306 = vmatpush.bf16.msra.mxu0 %v2229
  %2307 = vmatpush.bf16.msra.mxu0 %v2228
  %2308 = vmatpush.bf16.msra.mxu0 %v2227
  %2309 = vmatmul.bf16.gmra.mxu0 %v2013
  %v2310 = vpop.f32.mrf.mxu0
  %v2311 = vadd.f32 %v2298, %v2310
  %v2312 = vpop.f32.mrf.mxu0
  %2313 = vdwg.mxu0
  %2314 = vmatpush.bf16.msra.mxu0 %v2242
  %2315 = vmatpush.bf16.msra.mxu0 %v2241
  %2316 = vmatpush.bf16.msra.mxu0 %v2240
  %2317 = vmatpush.bf16.msra.mxu0 %v2239
  %2318 = vmatpush.bf16.msra.mxu0 %v2238
  %2319 = vmatpush.bf16.msra.mxu0 %v2237
  %2320 = vmatpush.bf16.msra.mxu0 %v2236
  %2321 = vmatpush.bf16.msra.mxu0 %v2235
  %2322 = vmatmul.bf16.gmra.mxu0 %v2014
  %v2323 = vpop.f32.mrf.mxu0
  %v2324 = vadd.f32 %v2311, %v2323
  %v2325 = vpop.f32.mrf.mxu0
  %2326 = vdwg.mxu0
  %v2327 = vmax.f32 %v2324, 0.0
  %v2328 = vpack.c.bf16 %v2327, %v2327
  %v2329 = vld [vmem:[%s5] sm:$0xff]
  %v2330 = vld [vmem:[%s5 + $0x8] sm:$0xff]
  %v2331 = vld [vmem:[%s5 + $0x10] sm:$0xff]
  %v2332 = vld [vmem:[%s5 + $0x18] sm:$0xff]
  %v2333 = vld [vmem:[%s5 + $0x20] sm:$0xff]
  %v2334 = vld [vmem:[%s5 + $0x28] sm:$0xff]
  %v2335 = vld [vmem:[%s5 + $0x30] sm:$0xff]
  %v2336 = vld [vmem:[%s5 + $0x38] sm:$0xff]
  %v2337 = vld [vmem:[%s5 + $0x40] sm:$0xff]
  %v2338 = vld [vmem:[%s5 + $0x48] sm:$0xff]
  %v2339 = vld [vmem:[%s5 + $0x50] sm:$0xff]
  %v2340 = vld [vmem:[%s5 + $0x58] sm:$0xff]
  %v2341 = vld [vmem:[%s5 + $0x60] sm:$0xff]
  %v2342 = vld [vmem:[%s5 + $0x68] sm:$0xff]
  %v2343 = vld [vmem:[%s5 + $0x70] sm:$0xff]
  %v2344 = vld [vmem:[%s5 + $0x78] sm:$0xff]
  %v2345 = vld [vmem:[%s5 + $0x80] sm:$0xff]
  %v2346 = vld [vmem:[%s5 + $0x88] sm:$0xff]
  %v2347 = vld [vmem:[%s5 + $0x90] sm:$0xff]
  %v2348 = vld [vmem:[%s5 + $0x98] sm:$0xff]
  %v2349 = vld [vmem:[%s5 + $0xa0] sm:$0xff]
  %v2350 = vld [vmem:[%s5 + $0xa8] sm:$0xff]
  %v2351 = vld [vmem:[%s5 + $0xb0] sm:$0xff]
  %v2352 = vld [vmem:[%s5 + $0xb8] sm:$0xff]
  %v2353 = vld [vmem:[%s5 + $0xc0] sm:$0xff]
  %v2354 = vld [vmem:[%s5 + $0xc8] sm:$0xff]
  %v2355 = vld [vmem:[%s5 + $0xd0] sm:$0xff]
  %v2356 = vld [vmem:[%s5 + $0xd8] sm:$0xff]
  %v2357 = vld [vmem:[%s5 + $0xe0] sm:$0xff]
  %v2358 = vld [vmem:[%s5 + $0xe8] sm:$0xff]
  %v2359 = vld [vmem:[%s5 + $0xf0] sm:$0xff]
  %v2360 = vld [vmem:[%s5 + $0xf8] sm:$0xff]
  %v2361 = vld [vmem:[%s5 + $0x100] sm:$0xff]
  %v2362 = vld [vmem:[%s5 + $0x108] sm:$0xff]
  %v2363 = vld [vmem:[%s5 + $0x110] sm:$0xff]
  %v2364 = vld [vmem:[%s5 + $0x118] sm:$0xff]
  %v2365 = vld [vmem:[%s5 + $0x120] sm:$0xff]
  %v2366 = vld [vmem:[%s5 + $0x128] sm:$0xff]
  %v2367 = vld [vmem:[%s5 + $0x130] sm:$0xff]
  %v2368 = vld [vmem:[%s5 + $0x138] sm:$0xff]
  %v2369 = vld [vmem:[%s5 + $0x140] sm:$0xff]
  %v2370 = vld [vmem:[%s5 + $0x148] sm:$0xff]
  %v2371 = vld [vmem:[%s5 + $0x150] sm:$0xff]
  %v2372 = vld [vmem:[%s5 + $0x158] sm:$0xff]
  %v2373 = vld [vmem:[%s5 + $0x160] sm:$0xff]
  %v2374 = vld [vmem:[%s5 + $0x168] sm:$0xff]
  %v2375 = vld [vmem:[%s5 + $0x170] sm:$0xff]
  %v2376 = vld [vmem:[%s5 + $0x178] sm:$0xff]
  %v2377 = vld [vmem:[%s5 + $0x180] sm:$0xff]
  %v2378 = vld [vmem:[%s5 + $0x188] sm:$0xff]
  %v2379 = vld [vmem:[%s5 + $0x190] sm:$0xff]
  %v2380 = vld [vmem:[%s5 + $0x198] sm:$0xff]
  %v2381 = vld [vmem:[%s5 + $0x1a0] sm:$0xff]
  %v2382 = vld [vmem:[%s5 + $0x1a8] sm:$0xff]
  %v2383 = vld [vmem:[%s5 + $0x1b0] sm:$0xff]
  %v2384 = vld [vmem:[%s5 + $0x1b8] sm:$0xff]
  %v2385 = vld [vmem:[%s5 + $0x1c0] sm:$0xff]
  %v2386 = vld [vmem:[%s5 + $0x1c8] sm:$0xff]
  %v2387 = vld [vmem:[%s5 + $0x1d0] sm:$0xff]
  %v2388 = vld [vmem:[%s5 + $0x1d8] sm:$0xff]
  %v2389 = vld [vmem:[%s5 + $0x1e0] sm:$0xff]
  %v2390 = vld [vmem:[%s5 + $0x1e8] sm:$0xff]
  %v2391 = vld [vmem:[%s5 + $0x1f0] sm:$0xff]
  %v2392 = vld [vmem:[%s5 + $0x1f8] sm:$0xff]
  %v2393 = vld [vmem:[%s5 + $0x200] sm:$0xff]
  %v2394 = vld [vmem:[%s5 + $0x208] sm:$0xff]
  %v2395 = vld [vmem:[%s5 + $0x210] sm:$0xff]
  %v2396 = vld [vmem:[%s5 + $0x218] sm:$0xff]
  %v2397 = vld [vmem:[%s5 + $0x220] sm:$0xff]
  %v2398 = vld [vmem:[%s5 + $0x228] sm:$0xff]
  %v2399 = vld [vmem:[%s5 + $0x230] sm:$0xff]
  %v2400 = vld [vmem:[%s5 + $0x238] sm:$0xff]
  %v2401 = vld [vmem:[%s5 + $0x240] sm:$0xff]
  %v2402 = vld [vmem:[%s5 + $0x248] sm:$0xff]
  %v2403 = vld [vmem:[%s5 + $0x250] sm:$0xff]
  %v2404 = vld [vmem:[%s5 + $0x258] sm:$0xff]
  %v2405 = vld [vmem:[%s5 + $0x260] sm:$0xff]
  %v2406 = vld [vmem:[%s5 + $0x268] sm:$0xff]
  %v2407 = vld [vmem:[%s5 + $0x270] sm:$0xff]
  %v2408 = vld [vmem:[%s5 + $0x278] sm:$0xff]
  %v2409 = vld [vmem:[%s5 + $0x280] sm:$0xff]
  %v2410 = vld [vmem:[%s5 + $0x288] sm:$0xff]
  %v2411 = vld [vmem:[%s5 + $0x290] sm:$0xff]
  %v2412 = vld [vmem:[%s5 + $0x298] sm:$0xff]
  %v2413 = vld [vmem:[%s5 + $0x2a0] sm:$0xff]
  %v2414 = vld [vmem:[%s5 + $0x2a8] sm:$0xff]
  %v2415 = vld [vmem:[%s5 + $0x2b0] sm:$0xff]
  %v2416 = vld [vmem:[%s5 + $0x2b8] sm:$0xff]
  %v2417 = vld [vmem:[%s5 + $0x2c0] sm:$0xff]
  %v2418 = vld [vmem:[%s5 + $0x2c8] sm:$0xff]
  %v2419 = vld [vmem:[%s5 + $0x2d0] sm:$0xff]
  %v2420 = vld [vmem:[%s5 + $0x2d8] sm:$0xff]
  %v2421 = vld [vmem:[%s5 + $0x2e0] sm:$0xff]
  %v2422 = vld [vmem:[%s5 + $0x2e8] sm:$0xff]
  %v2423 = vld [vmem:[%s5 + $0x2f0] sm:$0xff]
  %v2424 = vld [vmem:[%s5 + $0x2f8] sm:$0xff]
  %v2425 = vld [vmem:[%s5 + $0x300] sm:$0xff]
  %v2426 = vld [vmem:[%s5 + $0x308] sm:$0xff]
  %v2427 = vld [vmem:[%s5 + $0x310] sm:$0xff]
  %v2428 = vld [vmem:[%s5 + $0x318] sm:$0xff]
  %v2429 = vld [vmem:[%s5 + $0x320] sm:$0xff]
  %v2430 = vld [vmem:[%s5 + $0x328] sm:$0xff]
  %v2431 = vld [vmem:[%s5 + $0x330] sm:$0xff]
  %v2432 = vld [vmem:[%s5 + $0x338] sm:$0xff]
  %v2433 = vld [vmem:[%s5 + $0x340] sm:$0xff]
  %v2434 = vld [vmem:[%s5 + $0x348] sm:$0xff]
  %v2435 = vld [vmem:[%s5 + $0x350] sm:$0xff]
  %v2436 = vld [vmem:[%s5 + $0x358] sm:$0xff]
  %v2437 = vld [vmem:[%s5 + $0x360] sm:$0xff]
  %v2438 = vld [vmem:[%s5 + $0x368] sm:$0xff]
  %v2439 = vld [vmem:[%s5 + $0x370] sm:$0xff]
  %v2440 = vld [vmem:[%s5 + $0x378] sm:$0xff]
  %v2441 = vld [vmem:[%s5 + $0x380] sm:$0xff]
  %v2442 = vld [vmem:[%s5 + $0x388] sm:$0xff]
  %v2443 = vld [vmem:[%s5 + $0x390] sm:$0xff]
  %v2444 = vld [vmem:[%s5 + $0x398] sm:$0xff]
  %v2445 = vld [vmem:[%s5 + $0x3a0] sm:$0xff]
  %v2446 = vld [vmem:[%s5 + $0x3a8] sm:$0xff]
  %v2447 = vld [vmem:[%s5 + $0x3b0] sm:$0xff]
  %v2448 = vld [vmem:[%s5 + $0x3b8] sm:$0xff]
  %v2449 = vld [vmem:[%s5 + $0x3c0] sm:$0xff]
  %v2450 = vld [vmem:[%s5 + $0x3c8] sm:$0xff]
  %v2451 = vld [vmem:[%s5 + $0x3d0] sm:$0xff]
  %v2452 = vld [vmem:[%s5 + $0x3d8] sm:$0xff]
  %v2453 = vld [vmem:[%s5 + $0x3e0] sm:$0xff]
  %v2454 = vld [vmem:[%s5 + $0x3e8] sm:$0xff]
  %v2455 = vld [vmem:[%s5 + $0x3f0] sm:$0xff]
  %v2456 = vld [vmem:[%s5 + $0x3f8] sm:$0xff]
  %v2457 = vld [vmem:[%s5 + $0x400] sm:$0xff]
  %v2458 = vld [vmem:[%s5 + $0x408] sm:$0xff]
  %v2459 = vld [vmem:[%s5 + $0x410] sm:$0xff]
  %v2460 = vld [vmem:[%s5 + $0x418] sm:$0xff]
  %v2461 = vld [vmem:[%s5 + $0x420] sm:$0xff]
  %v2462 = vld [vmem:[%s5 + $0x428] sm:$0xff]
  %v2463 = vld [vmem:[%s5 + $0x430] sm:$0xff]
  %v2464 = vld [vmem:[%s5 + $0x438] sm:$0xff]
  %v2465 = vld [vmem:[%s5 + $0x440] sm:$0xff]
  %v2466 = vld [vmem:[%s5 + $0x448] sm:$0xff]
  %v2467 = vld [vmem:[%s5 + $0x450] sm:$0xff]
  %v2468 = vld [vmem:[%s5 + $0x458] sm:$0xff]
  %v2469 = vld [vmem:[%s5 + $0x460] sm:$0xff]
  %v2470 = vld [vmem:[%s5 + $0x468] sm:$0xff]
  %v2471 = vld [vmem:[%s5 + $0x470] sm:$0xff]
  %v2472 = vld [vmem:[%s5 + $0x478] sm:$0xff]
  %v2473 = vld [vmem:[%s5 + $0x480] sm:$0xff]
  %v2474 = vld [vmem:[%s5 + $0x488] sm:$0xff]
  %v2475 = vld [vmem:[%s5 + $0x490] sm:$0xff]
  %v2476 = vld [vmem:[%s5 + $0x498] sm:$0xff]
  %v2477 = vld [vmem:[%s5 + $0x4a0] sm:$0xff]
  %v2478 = vld [vmem:[%s5 + $0x4a8] sm:$0xff]
  %v2479 = vld [vmem:[%s5 + $0x4b0] sm:$0xff]
  %v2480 = vld [vmem:[%s5 + $0x4b8] sm:$0xff]
  %v2481 = vld [vmem:[%s5 + $0x4c0] sm:$0xff]
  %v2482 = vld [vmem:[%s5 + $0x4c8] sm:$0xff]
  %v2483 = vld [vmem:[%s5 + $0x4d0] sm:$0xff]
  %v2484 = vld [vmem:[%s5 + $0x4d8] sm:$0xff]
  %v2485 = vld [vmem:[%s5 + $0x4e0] sm:$0xff]
  %v2486 = vld [vmem:[%s5 + $0x4e8] sm:$0xff]
  %v2487 = vld [vmem:[%s5 + $0x4f0] sm:$0xff]
  %v2488 = vld [vmem:[%s5 + $0x4f8] sm:$0xff]
  %v2489 = vld [vmem:[%s5 + $0x500] sm:$0xff]
  %v2490 = vld [vmem:[%s5 + $0x508] sm:$0xff]
  %v2491 = vld [vmem:[%s5 + $0x510] sm:$0xff]
  %v2492 = vld [vmem:[%s5 + $0x518] sm:$0xff]
  %v2493 = vld [vmem:[%s5 + $0x520] sm:$0xff]
  %v2494 = vld [vmem:[%s5 + $0x528] sm:$0xff]
  %v2495 = vld [vmem:[%s5 + $0x530] sm:$0xff]
  %v2496 = vld [vmem:[%s5 + $0x538] sm:$0xff]
  %v2497 = vld [vmem:[%s5 + $0x540] sm:$0xff]
  %v2498 = vld [vmem:[%s5 + $0x548] sm:$0xff]
  %v2499 = vld [vmem:[%s5 + $0x550] sm:$0xff]
  %v2500 = vld [vmem:[%s5 + $0x558] sm:$0xff]
  %v2501 = vld [vmem:[%s5 + $0x560] sm:$0xff]
  %v2502 = vld [vmem:[%s5 + $0x568] sm:$0xff]
  %v2503 = vld [vmem:[%s5 + $0x570] sm:$0xff]
  %v2504 = vld [vmem:[%s5 + $0x578] sm:$0xff]
  %v2505 = vld [vmem:[%s5 + $0x580] sm:$0xff]
  %v2506 = vld [vmem:[%s5 + $0x588] sm:$0xff]
  %v2507 = vld [vmem:[%s5 + $0x590] sm:$0xff]
  %v2508 = vld [vmem:[%s5 + $0x598] sm:$0xff]
  %v2509 = vld [vmem:[%s5 + $0x5a0] sm:$0xff]
  %v2510 = vld [vmem:[%s5 + $0x5a8] sm:$0xff]
  %v2511 = vld [vmem:[%s5 + $0x5b0] sm:$0xff]
  %v2512 = vld [vmem:[%s5 + $0x5b8] sm:$0xff]
  %v2513 = vld [vmem:[%s5 + $0x5c0] sm:$0xff]
  %v2514 = vld [vmem:[%s5 + $0x5c8] sm:$0xff]
  %v2515 = vld [vmem:[%s5 + $0x5d0] sm:$0xff]
  %v2516 = vld [vmem:[%s5 + $0x5d8] sm:$0xff]
  %v2517 = vld [vmem:[%s5 + $0x5e0] sm:$0xff]
  %v2518 = vld [vmem:[%s5 + $0x5e8] sm:$0xff]
  %v2519 = vld [vmem:[%s5 + $0x5f0] sm:$0xff]
  %v2520 = vld [vmem:[%s5 + $0x5f8] sm:$0xff]
  %v2521 = vld [vmem:[%s5 + $0x600] sm:$0xff]
  %v2522 = vld [vmem:[%s5 + $0x608] sm:$0xff]
  %v2523 = vld [vmem:[%s5 + $0x610] sm:$0xff]
  %v2524 = vld [vmem:[%s5 + $0x618] sm:$0xff]
  %v2525 = vld [vmem:[%s5 + $0x620] sm:$0xff]
  %v2526 = vld [vmem:[%s5 + $0x628] sm:$0xff]
  %v2527 = vld [vmem:[%s5 + $0x630] sm:$0xff]
  %v2528 = vld [vmem:[%s5 + $0x638] sm:$0xff]
  %v2529 = vld [vmem:[%s5 + $0x640] sm:$0xff]
  %v2530 = vld [vmem:[%s5 + $0x648] sm:$0xff]
  %v2531 = vld [vmem:[%s5 + $0x650] sm:$0xff]
  %v2532 = vld [vmem:[%s5 + $0x658] sm:$0xff]
  %v2533 = vld [vmem:[%s5 + $0x660] sm:$0xff]
  %v2534 = vld [vmem:[%s5 + $0x668] sm:$0xff]
  %v2535 = vld [vmem:[%s5 + $0x670] sm:$0xff]
  %v2536 = vld [vmem:[%s5 + $0x678] sm:$0xff]
  %v2537 = vld [vmem:[%s5 + $0x680] sm:$0xff]
  %v2538 = vld [vmem:[%s5 + $0x688] sm:$0xff]
  %v2539 = vld [vmem:[%s5 + $0x690] sm:$0xff]
  %v2540 = vld [vmem:[%s5 + $0x698] sm:$0xff]
  %v2541 = vld [vmem:[%s5 + $0x6a0] sm:$0xff]
  %v2542 = vld [vmem:[%s5 + $0x6a8] sm:$0xff]
  %v2543 = vld [vmem:[%s5 + $0x6b0] sm:$0xff]
  %v2544 = vld [vmem:[%s5 + $0x6b8] sm:$0xff]
  %v2545 = vld [vmem:[%s5 + $0x6c0] sm:$0xff]
  %v2546 = vld [vmem:[%s5 + $0x6c8] sm:$0xff]
  %v2547 = vld [vmem:[%s5 + $0x6d0] sm:$0xff]
  %v2548 = vld [vmem:[%s5 + $0x6d8] sm:$0xff]
  %v2549 = vld [vmem:[%s5 + $0x6e0] sm:$0xff]
  %v2550 = vld [vmem:[%s5 + $0x6e8] sm:$0xff]
  %v2551 = vld [vmem:[%s5 + $0x6f0] sm:$0xff]
  %v2552 = vld [vmem:[%s5 + $0x6f8] sm:$0xff]
  %v2553 = vld [vmem:[%s5 + $0x700] sm:$0xff]
  %v2554 = vld [vmem:[%s5 + $0x708] sm:$0xff]
  %v2555 = vld [vmem:[%s5 + $0x710] sm:$0xff]
  %v2556 = vld [vmem:[%s5 + $0x718] sm:$0xff]
  %v2557 = vld [vmem:[%s5 + $0x720] sm:$0xff]
  %v2558 = vld [vmem:[%s5 + $0x728] sm:$0xff]
  %v2559 = vld [vmem:[%s5 + $0x730] sm:$0xff]
  %v2560 = vld [vmem:[%s5 + $0x738] sm:$0xff]
  %v2561 = vld [vmem:[%s5 + $0x740] sm:$0xff]
  %v2562 = vld [vmem:[%s5 + $0x748] sm:$0xff]
  %v2563 = vld [vmem:[%s5 + $0x750] sm:$0xff]
  %v2564 = vld [vmem:[%s5 + $0x758] sm:$0xff]
  %v2565 = vld [vmem:[%s5 + $0x760] sm:$0xff]
  %v2566 = vld [vmem:[%s5 + $0x768] sm:$0xff]
  %v2567 = vld [vmem:[%s5 + $0x770] sm:$0xff]
  %v2568 = vld [vmem:[%s5 + $0x778] sm:$0xff]
  %v2569 = vld [vmem:[%s5 + $0x780] sm:$0xff]
  %v2570 = vld [vmem:[%s5 + $0x788] sm:$0xff]
  %v2571 = vld [vmem:[%s5 + $0x790] sm:$0xff]
  %v2572 = vld [vmem:[%s5 + $0x798] sm:$0xff]
  %v2573 = vld [vmem:[%s5 + $0x7a0] sm:$0xff]
  %v2574 = vld [vmem:[%s5 + $0x7a8] sm:$0xff]
  %v2575 = vld [vmem:[%s5 + $0x7b0] sm:$0xff]
  %v2576 = vld [vmem:[%s5 + $0x7b8] sm:$0xff]
  %v2577 = vld [vmem:[%s5 + $0x7c0] sm:$0xff]
  %v2578 = vld [vmem:[%s5 + $0x7c8] sm:$0xff]
  %v2579 = vld [vmem:[%s5 + $0x7d0] sm:$0xff]
  %v2580 = vld [vmem:[%s5 + $0x7d8] sm:$0xff]
  %v2581 = vld [vmem:[%s5 + $0x7e0] sm:$0xff]
  %v2582 = vld [vmem:[%s5 + $0x7e8] sm:$0xff]
  %v2583 = vld [vmem:[%s5 + $0x7f0] sm:$0xff]
  %v2584 = vld [vmem:[%s5 + $0x7f8] sm:$0xff]
  %v2585 = vld [vmem:[%s6] sm:$0xff]
  %v2586 = vld [vmem:[%s6 + $0x8] sm:$0xff]
  %v2587 = vld [vmem:[%s6 + $0x10] sm:$0xff]
  %v2588 = vld [vmem:[%s6 + $0x18] sm:$0xff]
  %v2593 = vperm.slane %v2585, 0
  %v2594 = vperm.slane %v2585, 1
  %v2595 = vperm.slane %v2585, 2
  %v2596 = vperm.slane %v2585, 3
  %v2597 = vperm.slane %v2585, 4
  %v2598 = vperm.slane %v2585, 5
  %v2599 = vperm.slane %v2585, 6
  %v2600 = vperm.slane %v2585, 7
  %v2601 = vperm.slane %v2586, 0
  %v2602 = vperm.slane %v2586, 1
  %v2603 = vperm.slane %v2586, 2
  %v2604 = vperm.slane %v2586, 3
  %v2605 = vperm.slane %v2586, 4
  %v2606 = vperm.slane %v2586, 5
  %v2607 = vperm.slane %v2586, 6
  %v2608 = vperm.slane %v2586, 7
  %v2609 = vperm.slane %v2587, 0
  %v2610 = vperm.slane %v2587, 1
  %v2611 = vperm.slane %v2587, 2
  %v2612 = vperm.slane %v2587, 3
  %v2613 = vperm.slane %v2587, 4
  %v2614 = vperm.slane %v2587, 5
  %v2615 = vperm.slane %v2587, 6
  %v2616 = vperm.slane %v2587, 7
  %v2617 = vperm.slane %v2588, 0
  %v2618 = vperm.slane %v2588, 1
  %v2619 = vperm.slane %v2588, 2
  %v2620 = vperm.slane %v2588, 3
  %v2621 = vperm.slane %v2588, 4
  %v2622 = vperm.slane %v2588, 5
  %v2623 = vperm.slane %v2588, 6
  %v2624 = vperm.slane %v2588, 7
  %v2913 = vunpack.c.l.b16 %v2329
  %v2914 = vunpack.c.h.b16 %v2329
  %v2915 = vunpack.c.l.b16 %v2330
  %v2916 = vunpack.c.h.b16 %v2330
  %v2917 = vunpack.c.l.b16 %v2331
  %v2918 = vunpack.c.h.b16 %v2331
  %v2919 = vunpack.c.l.b16 %v2332
  %v2920 = vunpack.c.h.b16 %v2332
  %v2921 = vunpack.c.l.b16 %v2333
  %v2922 = vunpack.c.h.b16 %v2333
  %v2923 = vunpack.c.l.b16 %v2334
  %v2924 = vunpack.c.h.b16 %v2334
  %v2925 = vunpack.c.l.b16 %v2335
  %v2926 = vunpack.c.h.b16 %v2335
  %v2927 = vunpack.c.l.b16 %v2336
  %v2928 = vunpack.c.h.b16 %v2336
  %v2929 = vunpack.c.l.b16 %v2337
  %v2930 = vunpack.c.h.b16 %v2337
  %v2931 = vunpack.c.l.b16 %v2338
  %v2932 = vunpack.c.h.b16 %v2338
  %v2933 = vunpack.c.l.b16 %v2339
  %v2934 = vunpack.c.h.b16 %v2339
  %v2935 = vunpack.c.l.b16 %v2340
  %v2936 = vunpack.c.h.b16 %v2340
  %v2937 = vunpack.c.l.b16 %v2341
  %v2938 = vunpack.c.h.b16 %v2341
  %v2939 = vunpack.c.l.b16 %v2342
  %v2940 = vunpack.c.h.b16 %v2342
  %v2941 = vunpack.c.l.b16 %v2343
  %v2942 = vunpack.c.h.b16 %v2343
  %v2943 = vunpack.c.l.b16 %v2344
  %v2944 = vunpack.c.h.b16 %v2344
  %v2945 = vunpack.c.l.b16 %v2345
  %v2946 = vunpack.c.h.b16 %v2345
  %v2947 = vunpack.c.l.b16 %v2346
  %v2948 = vunpack.c.h.b16 %v2346
  %v2949 = vunpack.c.l.b16 %v2347
  %v2950 = vunpack.c.h.b16 %v2347
  %v2951 = vunpack.c.l.b16 %v2348
  %v2952 = vunpack.c.h.b16 %v2348
  %v2953 = vunpack.c.l.b16 %v2349
  %v2954 = vunpack.c.h.b16 %v2349
  %v2955 = vunpack.c.l.b16 %v2350
  %v2956 = vunpack.c.h.b16 %v2350
  %v2957 = vunpack.c.l.b16 %v2351
  %v2958 = vunpack.c.h.b16 %v2351
  %v2959 = vunpack.c.l.b16 %v2352
  %v2960 = vunpack.c.h.b16 %v2352
  %v2961 = vunpack.c.l.b16 %v2353
  %v2962 = vunpack.c.h.b16 %v2353
  %v2963 = vunpack.c.l.b16 %v2354
  %v2964 = vunpack.c.h.b16 %v2354
  %v2965 = vunpack.c.l.b16 %v2355
  %v2966 = vunpack.c.h.b16 %v2355
  %v2967 = vunpack.c.l.b16 %v2356
  %v2968 = vunpack.c.h.b16 %v2356
  %v2969 = vunpack.c.l.b16 %v2357
  %v2970 = vunpack.c.h.b16 %v2357
  %v2971 = vunpack.c.l.b16 %v2358
  %v2972 = vunpack.c.h.b16 %v2358
  %v2973 = vunpack.c.l.b16 %v2359
  %v2974 = vunpack.c.h.b16 %v2359
  %v2975 = vunpack.c.l.b16 %v2360
  %v2976 = vunpack.c.h.b16 %v2360
  %v2977 = vunpack.c.l.b16 %v2361
  %v2978 = vunpack.c.h.b16 %v2361
  %v2979 = vunpack.c.l.b16 %v2362
  %v2980 = vunpack.c.h.b16 %v2362
  %v2981 = vunpack.c.l.b16 %v2363
  %v2982 = vunpack.c.h.b16 %v2363
  %v2983 = vunpack.c.l.b16 %v2364
  %v2984 = vunpack.c.h.b16 %v2364
  %v2985 = vunpack.c.l.b16 %v2365
  %v2986 = vunpack.c.h.b16 %v2365
  %v2987 = vunpack.c.l.b16 %v2366
  %v2988 = vunpack.c.h.b16 %v2366
  %v2989 = vunpack.c.l.b16 %v2367
  %v2990 = vunpack.c.h.b16 %v2367
  %v2991 = vunpack.c.l.b16 %v2368
  %v2992 = vunpack.c.h.b16 %v2368
  %v2993 = vunpack.c.l.b16 %v2369
  %v2994 = vunpack.c.h.b16 %v2369
  %v2995 = vunpack.c.l.b16 %v2370
  %v2996 = vunpack.c.h.b16 %v2370
  %v2997 = vunpack.c.l.b16 %v2371
  %v2998 = vunpack.c.h.b16 %v2371
  %v2999 = vunpack.c.l.b16 %v2372
  %v3000 = vunpack.c.h.b16 %v2372
  %v3001 = vunpack.c.l.b16 %v2373
  %v3002 = vunpack.c.h.b16 %v2373
  %v3003 = vunpack.c.l.b16 %v2374
  %v3004 = vunpack.c.h.b16 %v2374
  %v3005 = vunpack.c.l.b16 %v2375
  %v3006 = vunpack.c.h.b16 %v2375
  %v3007 = vunpack.c.l.b16 %v2376
  %v3008 = vunpack.c.h.b16 %v2376
  %v3009 = vunpack.c.l.b16 %v2377
  %v3010 = vunpack.c.h.b16 %v2377
  %v3011 = vunpack.c.l.b16 %v2378
  %v3012 = vunpack.c.h.b16 %v2378
  %v3013 = vunpack.c.l.b16 %v2379
  %v3014 = vunpack.c.h.b16 %v2379
  %v3015 = vunpack.c.l.b16 %v2380
  %v3016 = vunpack.c.h.b16 %v2380
  %v3017 = vunpack.c.l.b16 %v2381
  %v3018 = vunpack.c.h.b16 %v2381
  %v3019 = vunpack.c.l.b16 %v2382
  %v3020 = vunpack.c.h.b16 %v2382
  %v3021 = vunpack.c.l.b16 %v2383
  %v3022 = vunpack.c.h.b16 %v2383
  %v3023 = vunpack.c.l.b16 %v2384
  %v3024 = vunpack.c.h.b16 %v2384
  %v3025 = vunpack.c.l.b16 %v2385
  %v3026 = vunpack.c.h.b16 %v2385
  %v3027 = vunpack.c.l.b16 %v2386
  %v3028 = vunpack.c.h.b16 %v2386
  %v3029 = vunpack.c.l.b16 %v2387
  %v3030 = vunpack.c.h.b16 %v2387
  %v3031 = vunpack.c.l.b16 %v2388
  %v3032 = vunpack.c.h.b16 %v2388
  %v3033 = vunpack.c.l.b16 %v2389
  %v3034 = vunpack.c.h.b16 %v2389
  %v3035 = vunpack.c.l.b16 %v2390
  %v3036 = vunpack.c.h.b16 %v2390
  %v3037 = vunpack.c.l.b16 %v2391
  %v3038 = vunpack.c.h.b16 %v2391
  %v3039 = vunpack.c.l.b16 %v2392
  %v3040 = vunpack.c.h.b16 %v2392
  %v3041 = vunpack.c.l.b16 %v2393
  %v3042 = vunpack.c.h.b16 %v2393
  %v3043 = vunpack.c.l.b16 %v2394
  %v3044 = vunpack.c.h.b16 %v2394
  %v3045 = vunpack.c.l.b16 %v2395
  %v3046 = vunpack.c.h.b16 %v2395
  %v3047 = vunpack.c.l.b16 %v2396
  %v3048 = vunpack.c.h.b16 %v2396
  %v3049 = vunpack.c.l.b16 %v2397
  %v3050 = vunpack.c.h.b16 %v2397
  %v3051 = vunpack.c.l.b16 %v2398
  %v3052 = vunpack.c.h.b16 %v2398
  %v3053 = vunpack.c.l.b16 %v2399
  %v3054 = vunpack.c.h.b16 %v2399
  %v3055 = vunpack.c.l.b16 %v2400
  %v3056 = vunpack.c.h.b16 %v2400
  %v3057 = vunpack.c.l.b16 %v2401
  %v3058 = vunpack.c.h.b16 %v2401
  %v3059 = vunpack.c.l.b16 %v2402
  %v3060 = vunpack.c.h.b16 %v2402
  %v3061 = vunpack.c.l.b16 %v2403
  %v3062 = vunpack.c.h.b16 %v2403
  %v3063 = vunpack.c.l.b16 %v2404
  %v3064 = vunpack.c.h.b16 %v2404
  %v3065 = vunpack.c.l.b16 %v2405
  %v3066 = vunpack.c.h.b16 %v2405
  %v3067 = vunpack.c.l.b16 %v2406
  %v3068 = vunpack.c.h.b16 %v2406
  %v3069 = vunpack.c.l.b16 %v2407
  %v3070 = vunpack.c.h.b16 %v2407
  %v3071 = vunpack.c.l.b16 %v2408
  %v3072 = vunpack.c.h.b16 %v2408
  %v3073 = vunpack.c.l.b16 %v2409
  %v3074 = vunpack.c.h.b16 %v2409
  %v3075 = vunpack.c.l.b16 %v2410
  %v3076 = vunpack.c.h.b16 %v2410
  %v3077 = vunpack.c.l.b16 %v2411
  %v3078 = vunpack.c.h.b16 %v2411
  %v3079 = vunpack.c.l.b16 %v2412
  %v3080 = vunpack.c.h.b16 %v2412
  %v3081 = vunpack.c.l.b16 %v2413
  %v3082 = vunpack.c.h.b16 %v2413
  %v3083 = vunpack.c.l.b16 %v2414
  %v3084 = vunpack.c.h.b16 %v2414
  %v3085 = vunpack.c.l.b16 %v2415
  %v3086 = vunpack.c.h.b16 %v2415
  %v3087 = vunpack.c.l.b16 %v2416
  %v3088 = vunpack.c.h.b16 %v2416
  %v3089 = vunpack.c.l.b16 %v2417
  %v3090 = vunpack.c.h.b16 %v2417
  %v3091 = vunpack.c.l.b16 %v2418
  %v3092 = vunpack.c.h.b16 %v2418
  %v3093 = vunpack.c.l.b16 %v2419
  %v3094 = vunpack.c.h.b16 %v2419
  %v3095 = vunpack.c.l.b16 %v2420
  %v3096 = vunpack.c.h.b16 %v2420
  %v3097 = vunpack.c.l.b16 %v2421
  %v3098 = vunpack.c.h.b16 %v2421
  %v3099 = vunpack.c.l.b16 %v2422
  %v3100 = vunpack.c.h.b16 %v2422
  %v3101 = vunpack.c.l.b16 %v2423
  %v3102 = vunpack.c.h.b16 %v2423
  %v3103 = vunpack.c.l.b16 %v2424
  %v3104 = vunpack.c.h.b16 %v2424
  %v3105 = vunpack.c.l.b16 %v2425
  %v3106 = vunpack.c.h.b16 %v2425
  %v3107 = vunpack.c.l.b16 %v2426
  %v3108 = vunpack.c.h.b16 %v2426
  %v3109 = vunpack.c.l.b16 %v2427
  %v3110 = vunpack.c.h.b16 %v2427
  %v3111 = vunpack.c.l.b16 %v2428
  %v3112 = vunpack.c.h.b16 %v2428
  %v3113 = vunpack.c.l.b16 %v2429
  %v3114 = vunpack.c.h.b16 %v2429
  %v3115 = vunpack.c.l.b16 %v2430
  %v3116 = vunpack.c.h.b16 %v2430
  %v3117 = vunpack.c.l.b16 %v2431
  %v3118 = vunpack.c.h.b16 %v2431
  %v3119 = vunpack.c.l.b16 %v2432
  %v3120 = vunpack.c.h.b16 %v2432
  %v3121 = vunpack.c.l.b16 %v2433
  %v3122 = vunpack.c.h.b16 %v2433
  %v3123 = vunpack.c.l.b16 %v2434
  %v3124 = vunpack.c.h.b16 %v2434
  %v3125 = vunpack.c.l.b16 %v2435
  %v3126 = vunpack.c.h.b16 %v2435
  %v3127 = vunpack.c.l.b16 %v2436
  %v3128 = vunpack.c.h.b16 %v2436
  %v3129 = vunpack.c.l.b16 %v2437
  %v3130 = vunpack.c.h.b16 %v2437
  %v3131 = vunpack.c.l.b16 %v2438
  %v3132 = vunpack.c.h.b16 %v2438
  %v3133 = vunpack.c.l.b16 %v2439
  %v3134 = vunpack.c.h.b16 %v2439
  %v3135 = vunpack.c.l.b16 %v2440
  %v3136 = vunpack.c.h.b16 %v2440
  %v3137 = vunpack.c.l.b16 %v2441
  %v3138 = vunpack.c.h.b16 %v2441
  %v3139 = vunpack.c.l.b16 %v2442
  %v3140 = vunpack.c.h.b16 %v2442
  %v3141 = vunpack.c.l.b16 %v2443
  %v3142 = vunpack.c.h.b16 %v2443
  %v3143 = vunpack.c.l.b16 %v2444
  %v3144 = vunpack.c.h.b16 %v2444
  %v3145 = vunpack.c.l.b16 %v2445
  %v3146 = vunpack.c.h.b16 %v2445
  %v3147 = vunpack.c.l.b16 %v2446
  %v3148 = vunpack.c.h.b16 %v2446
  %v3149 = vunpack.c.l.b16 %v2447
  %v3150 = vunpack.c.h.b16 %v2447
  %v3151 = vunpack.c.l.b16 %v2448
  %v3152 = vunpack.c.h.b16 %v2448
  %v3153 = vunpack.c.l.b16 %v2449
  %v3154 = vunpack.c.h.b16 %v2449
  %v3155 = vunpack.c.l.b16 %v2450
  %v3156 = vunpack.c.h.b16 %v2450
  %v3157 = vunpack.c.l.b16 %v2451
  %v3158 = vunpack.c.h.b16 %v2451
  %v3159 = vunpack.c.l.b16 %v2452
  %v3160 = vunpack.c.h.b16 %v2452
  %v3161 = vunpack.c.l.b16 %v2453
  %v3162 = vunpack.c.h.b16 %v2453
  %v3163 = vunpack.c.l.b16 %v2454
  %v3164 = vunpack.c.h.b16 %v2454
  %v3165 = vunpack.c.l.b16 %v2455
  %v3166 = vunpack.c.h.b16 %v2455
  %v3167 = vunpack.c.l.b16 %v2456
  %v3168 = vunpack.c.h.b16 %v2456
  %v3169 = vunpack.c.l.b16 %v2457
  %v3170 = vunpack.c.h.b16 %v2457
  %v3171 = vunpack.c.l.b16 %v2458
  %v3172 = vunpack.c.h.b16 %v2458
  %v3173 = vunpack.c.l.b16 %v2459
  %v3174 = vunpack.c.h.b16 %v2459
  %v3175 = vunpack.c.l.b16 %v2460
  %v3176 = vunpack.c.h.b16 %v2460
  %v3177 = vunpack.c.l.b16 %v2461
  %v3178 = vunpack.c.h.b16 %v2461
  %v3179 = vunpack.c.l.b16 %v2462
  %v3180 = vunpack.c.h.b16 %v2462
  %v3181 = vunpack.c.l.b16 %v2463
  %v3182 = vunpack.c.h.b16 %v2463
  %v3183 = vunpack.c.l.b16 %v2464
  %v3184 = vunpack.c.h.b16 %v2464
  %v3185 = vunpack.c.l.b16 %v2465
  %v3186 = vunpack.c.h.b16 %v2465
  %v3187 = vunpack.c.l.b16 %v2466
  %v3188 = vunpack.c.h.b16 %v2466
  %v3189 = vunpack.c.l.b16 %v2467
  %v3190 = vunpack.c.h.b16 %v2467
  %v3191 = vunpack.c.l.b16 %v2468
  %v3192 = vunpack.c.h.b16 %v2468
  %v3193 = vunpack.c.l.b16 %v2469
  %v3194 = vunpack.c.h.b16 %v2469
  %v3195 = vunpack.c.l.b16 %v2470
  %v3196 = vunpack.c.h.b16 %v2470
  %v3197 = vunpack.c.l.b16 %v2471
  %v3198 = vunpack.c.h.b16 %v2471
  %v3199 = vunpack.c.l.b16 %v2472
  %v3200 = vunpack.c.h.b16 %v2472
  %v3201 = vunpack.c.l.b16 %v2473
  %v3202 = vunpack.c.h.b16 %v2473
  %v3203 = vunpack.c.l.b16 %v2474
  %v3204 = vunpack.c.h.b16 %v2474
  %v3205 = vunpack.c.l.b16 %v2475
  %v3206 = vunpack.c.h.b16 %v2475
  %v3207 = vunpack.c.l.b16 %v2476
  %v3208 = vunpack.c.h.b16 %v2476
  %v3209 = vunpack.c.l.b16 %v2477
  %v3210 = vunpack.c.h.b16 %v2477
  %v3211 = vunpack.c.l.b16 %v2478
  %v3212 = vunpack.c.h.b16 %v2478
  %v3213 = vunpack.c.l.b16 %v2479
  %v3214 = vunpack.c.h.b16 %v2479
  %v3215 = vunpack.c.l.b16 %v2480
  %v3216 = vunpack.c.h.b16 %v2480
  %v3217 = vunpack.c.l.b16 %v2481
  %v3218 = vunpack.c.h.b16 %v2481
  %v3219 = vunpack.c.l.b16 %v2482
  %v3220 = vunpack.c.h.b16 %v2482
  %v3221 = vunpack.c.l.b16 %v2483
  %v3222 = vunpack.c.h.b16 %v2483
  %v3223 = vunpack.c.l.b16 %v2484
  %v3224 = vunpack.c.h.b16 %v2484
  %v3225 = vunpack.c.l.b16 %v2485
  %v3226 = vunpack.c.h.b16 %v2485
  %v3227 = vunpack.c.l.b16 %v2486
  %v3228 = vunpack.c.h.b16 %v2486
  %v3229 = vunpack.c.l.b16 %v2487
  %v3230 = vunpack.c.h.b16 %v2487
  %v3231 = vunpack.c.l.b16 %v2488
  %v3232 = vunpack.c.h.b16 %v2488
  %v3233 = vunpack.c.l.b16 %v2489
  %v3234 = vunpack.c.h.b16 %v2489
  %v3235 = vunpack.c.l.b16 %v2490
  %v3236 = vunpack.c.h.b16 %v2490
  %v3237 = vunpack.c.l.b16 %v2491
  %v3238 = vunpack.c.h.b16 %v2491
  %v3239 = vunpack.c.l.b16 %v2492
  %v3240 = vunpack.c.h.b16 %v2492
  %v3241 = vunpack.c.l.b16 %v2493
  %v3242 = vunpack.c.h.b16 %v2493
  %v3243 = vunpack.c.l.b16 %v2494
  %v3244 = vunpack.c.h.b16 %v2494
  %v3245 = vunpack.c.l.b16 %v2495
  %v3246 = vunpack.c.h.b16 %v2495
  %v3247 = vunpack.c.l.b16 %v2496
  %v3248 = vunpack.c.h.b16 %v2496
  %v3249 = vunpack.c.l.b16 %v2497
  %v3250 = vunpack.c.h.b16 %v2497
  %v3251 = vunpack.c.l.b16 %v2498
  %v3252 = vunpack.c.h.b16 %v2498
  %v3253 = vunpack.c.l.b16 %v2499
  %v3254 = vunpack.c.h.b16 %v2499
  %v3255 = vunpack.c.l.b16 %v2500
  %v3256 = vunpack.c.h.b16 %v2500
  %v3257 = vunpack.c.l.b16 %v2501
  %v3258 = vunpack.c.h.b16 %v2501
  %v3259 = vunpack.c.l.b16 %v2502
  %v3260 = vunpack.c.h.b16 %v2502
  %v3261 = vunpack.c.l.b16 %v2503
  %v3262 = vunpack.c.h.b16 %v2503
  %v3263 = vunpack.c.l.b16 %v2504
  %v3264 = vunpack.c.h.b16 %v2504
  %v3265 = vunpack.c.l.b16 %v2505
  %v3266 = vunpack.c.h.b16 %v2505
  %v3267 = vunpack.c.l.b16 %v2506
  %v3268 = vunpack.c.h.b16 %v2506
  %v3269 = vunpack.c.l.b16 %v2507
  %v3270 = vunpack.c.h.b16 %v2507
  %v3271 = vunpack.c.l.b16 %v2508
  %v3272 = vunpack.c.h.b16 %v2508
  %v3273 = vunpack.c.l.b16 %v2509
  %v3274 = vunpack.c.h.b16 %v2509
  %v3275 = vunpack.c.l.b16 %v2510
  %v3276 = vunpack.c.h.b16 %v2510
  %v3277 = vunpack.c.l.b16 %v2511
  %v3278 = vunpack.c.h.b16 %v2511
  %v3279 = vunpack.c.l.b16 %v2512
  %v3280 = vunpack.c.h.b16 %v2512
  %v3281 = vunpack.c.l.b16 %v2513
  %v3282 = vunpack.c.h.b16 %v2513
  %v3283 = vunpack.c.l.b16 %v2514
  %v3284 = vunpack.c.h.b16 %v2514
  %v3285 = vunpack.c.l.b16 %v2515
  %v3286 = vunpack.c.h.b16 %v2515
  %v3287 = vunpack.c.l.b16 %v2516
  %v3288 = vunpack.c.h.b16 %v2516
  %v3289 = vunpack.c.l.b16 %v2517
  %v3290 = vunpack.c.h.b16 %v2517
  %v3291 = vunpack.c.l.b16 %v2518
  %v3292 = vunpack.c.h.b16 %v2518
  %v3293 = vunpack.c.l.b16 %v2519
  %v3294 = vunpack.c.h.b16 %v2519
  %v3295 = vunpack.c.l.b16 %v2520
  %v3296 = vunpack.c.h.b16 %v2520
  %v3297 = vunpack.c.l.b16 %v2521
  %v3298 = vunpack.c.h.b16 %v2521
  %v3299 = vunpack.c.l.b16 %v2522
  %v3300 = vunpack.c.h.b16 %v2522
  %v3301 = vunpack.c.l.b16 %v2523
  %v3302 = vunpack.c.h.b16 %v2523
  %v3303 = vunpack.c.l.b16 %v2524
  %v3304 = vunpack.c.h.b16 %v2524
  %v3305 = vunpack.c.l.b16 %v2525
  %v3306 = vunpack.c.h.b16 %v2525
  %v3307 = vunpack.c.l.b16 %v2526
  %v3308 = vunpack.c.h.b16 %v2526
  %v3309 = vunpack.c.l.b16 %v2527
  %v3310 = vunpack.c.h.b16 %v2527
  %v3311 = vunpack.c.l.b16 %v2528
  %v3312 = vunpack.c.h.b16 %v2528
  %v3313 = vunpack.c.l.b16 %v2529
  %v3314 = vunpack.c.h.b16 %v2529
  %v3315 = vunpack.c.l.b16 %v2530
  %v3316 = vunpack.c.h.b16 %v2530
  %v3317 = vunpack.c.l.b16 %v2531
  %v3318 = vunpack.c.h.b16 %v2531
  %v3319 = vunpack.c.l.b16 %v2532
  %v3320 = vunpack.c.h.b16 %v2532
  %v3321 = vunpack.c.l.b16 %v2533
  %v3322 = vunpack.c.h.b16 %v2533
  %v3323 = vunpack.c.l.b16 %v2534
  %v3324 = vunpack.c.h.b16 %v2534
  %v3325 = vunpack.c.l.b16 %v2535
  %v3326 = vunpack.c.h.b16 %v2535
  %v3327 = vunpack.c.l.b16 %v2536
  %v3328 = vunpack.c.h.b16 %v2536
  %v3329 = vunpack.c.l.b16 %v2537
  %v3330 = vunpack.c.h.b16 %v2537
  %v3331 = vunpack.c.l.b16 %v2538
  %v3332 = vunpack.c.h.b16 %v2538
  %v3333 = vunpack.c.l.b16 %v2539
  %v3334 = vunpack.c.h.b16 %v2539
  %v3335 = vunpack.c.l.b16 %v2540
  %v3336 = vunpack.c.h.b16 %v2540
  %v3337 = vunpack.c.l.b16 %v2541
  %v3338 = vunpack.c.h.b16 %v2541
  %v3339 = vunpack.c.l.b16 %v2542
  %v3340 = vunpack.c.h.b16 %v2542
  %v3341 = vunpack.c.l.b16 %v2543
  %v3342 = vunpack.c.h.b16 %v2543
  %v3343 = vunpack.c.l.b16 %v2544
  %v3344 = vunpack.c.h.b16 %v2544
  %v3345 = vunpack.c.l.b16 %v2545
  %v3346 = vunpack.c.h.b16 %v2545
  %v3347 = vunpack.c.l.b16 %v2546
  %v3348 = vunpack.c.h.b16 %v2546
  %v3349 = vunpack.c.l.b16 %v2547
  %v3350 = vunpack.c.h.b16 %v2547
  %v3351 = vunpack.c.l.b16 %v2548
  %v3352 = vunpack.c.h.b16 %v2548
  %v3353 = vunpack.c.l.b16 %v2549
  %v3354 = vunpack.c.h.b16 %v2549
  %v3355 = vunpack.c.l.b16 %v2550
  %v3356 = vunpack.c.h.b16 %v2550
  %v3357 = vunpack.c.l.b16 %v2551
  %v3358 = vunpack.c.h.b16 %v2551
  %v3359 = vunpack.c.l.b16 %v2552
  %v3360 = vunpack.c.h.b16 %v2552
  %v3361 = vunpack.c.l.b16 %v2553
  %v3362 = vunpack.c.h.b16 %v2553
  %v3363 = vunpack.c.l.b16 %v2554
  %v3364 = vunpack.c.h.b16 %v2554
  %v3365 = vunpack.c.l.b16 %v2555
  %v3366 = vunpack.c.h.b16 %v2555
  %v3367 = vunpack.c.l.b16 %v2556
  %v3368 = vunpack.c.h.b16 %v2556
  %v3369 = vunpack.c.l.b16 %v2557
  %v3370 = vunpack.c.h.b16 %v2557
  %v3371 = vunpack.c.l.b16 %v2558
  %v3372 = vunpack.c.h.b16 %v2558
  %v3373 = vunpack.c.l.b16 %v2559
  %v3374 = vunpack.c.h.b16 %v2559
  %v3375 = vunpack.c.l.b16 %v2560
  %v3376 = vunpack.c.h.b16 %v2560
  %v3377 = vunpack.c.l.b16 %v2561
  %v3378 = vunpack.c.h.b16 %v2561
  %v3379 = vunpack.c.l.b16 %v2562
  %v3380 = vunpack.c.h.b16 %v2562
  %v3381 = vunpack.c.l.b16 %v2563
  %v3382 = vunpack.c.h.b16 %v2563
  %v3383 = vunpack.c.l.b16 %v2564
  %v3384 = vunpack.c.h.b16 %v2564
  %v3385 = vunpack.c.l.b16 %v2565
  %v3386 = vunpack.c.h.b16 %v2565
  %v3387 = vunpack.c.l.b16 %v2566
  %v3388 = vunpack.c.h.b16 %v2566
  %v3389 = vunpack.c.l.b16 %v2567
  %v3390 = vunpack.c.h.b16 %v2567
  %v3391 = vunpack.c.l.b16 %v2568
  %v3392 = vunpack.c.h.b16 %v2568
  %v3393 = vunpack.c.l.b16 %v2569
  %v3394 = vunpack.c.h.b16 %v2569
  %v3395 = vunpack.c.l.b16 %v2570
  %v3396 = vunpack.c.h.b16 %v2570
  %v3397 = vunpack.c.l.b16 %v2571
  %v3398 = vunpack.c.h.b16 %v2571
  %v3399 = vunpack.c.l.b16 %v2572
  %v3400 = vunpack.c.h.b16 %v2572
  %v3401 = vunpack.c.l.b16 %v2573
  %v3402 = vunpack.c.h.b16 %v2573
  %v3403 = vunpack.c.l.b16 %v2574
  %v3404 = vunpack.c.h.b16 %v2574
  %v3405 = vunpack.c.l.b16 %v2575
  %v3406 = vunpack.c.h.b16 %v2575
  %v3407 = vunpack.c.l.b16 %v2576
  %v3408 = vunpack.c.h.b16 %v2576
  %v3409 = vunpack.c.l.b16 %v2577
  %v3410 = vunpack.c.h.b16 %v2577
  %v3411 = vunpack.c.l.b16 %v2578
  %v3412 = vunpack.c.h.b16 %v2578
  %v3413 = vunpack.c.l.b16 %v2579
  %v3414 = vunpack.c.h.b16 %v2579
  %v3415 = vunpack.c.l.b16 %v2580
  %v3416 = vunpack.c.h.b16 %v2580
  %v3417 = vunpack.c.l.b16 %v2581
  %v3418 = vunpack.c.h.b16 %v2581
  %v3419 = vunpack.c.l.b16 %v2582
  %v3420 = vunpack.c.h.b16 %v2582
  %v3421 = vunpack.c.l.b16 %v2583
  %v3422 = vunpack.c.h.b16 %v2583
  %v3423 = vunpack.c.l.b16 %v2584
  %v3424 = vunpack.c.h.b16 %v2584
  %v3425 = vpack.c.b16 %v2945, %v2913
  %v3426 = vpack.c.b16 %v2946, %v2914
  %v3427 = vpack.c.b16 %v2947, %v2915
  %v3428 = vpack.c.b16 %v2948, %v2916
  %v3429 = vpack.c.b16 %v2949, %v2917
  %v3430 = vpack.c.b16 %v2950, %v2918
  %v3431 = vpack.c.b16 %v2951, %v2919
  %v3432 = vpack.c.b16 %v2952, %v2920
  %v3433 = vpack.c.b16 %v2953, %v2921
  %v3434 = vpack.c.b16 %v2954, %v2922
  %v3435 = vpack.c.b16 %v2955, %v2923
  %v3436 = vpack.c.b16 %v2956, %v2924
  %v3437 = vpack.c.b16 %v2957, %v2925
  %v3438 = vpack.c.b16 %v2958, %v2926
  %v3439 = vpack.c.b16 %v2959, %v2927
  %v3440 = vpack.c.b16 %v2960, %v2928
  %v3441 = vpack.c.b16 %v2961, %v2929
  %v3442 = vpack.c.b16 %v2962, %v2930
  %v3443 = vpack.c.b16 %v2963, %v2931
  %v3444 = vpack.c.b16 %v2964, %v2932
  %v3445 = vpack.c.b16 %v2965, %v2933
  %v3446 = vpack.c.b16 %v2966, %v2934
  %v3447 = vpack.c.b16 %v2967, %v2935
  %v3448 = vpack.c.b16 %v2968, %v2936
  %v3449 = vpack.c.b16 %v2969, %v2937
  %v3450 = vpack.c.b16 %v2970, %v2938
  %v3451 = vpack.c.b16 %v2971, %v2939
  %v3452 = vpack.c.b16 %v2972, %v2940
  %v3453 = vpack.c.b16 %v2973, %v2941
  %v3454 = vpack.c.b16 %v2974, %v2942
  %v3455 = vpack.c.b16 %v2975, %v2943
  %v3456 = vpack.c.b16 %v2976, %v2944
  %v3457 = vpack.c.b16 %v3009, %v2977
  %v3458 = vpack.c.b16 %v3010, %v2978
  %v3459 = vpack.c.b16 %v3011, %v2979
  %v3460 = vpack.c.b16 %v3012, %v2980
  %v3461 = vpack.c.b16 %v3013, %v2981
  %v3462 = vpack.c.b16 %v3014, %v2982
  %v3463 = vpack.c.b16 %v3015, %v2983
  %v3464 = vpack.c.b16 %v3016, %v2984
  %v3465 = vpack.c.b16 %v3017, %v2985
  %v3466 = vpack.c.b16 %v3018, %v2986
  %v3467 = vpack.c.b16 %v3019, %v2987
  %v3468 = vpack.c.b16 %v3020, %v2988
  %v3469 = vpack.c.b16 %v3021, %v2989
  %v3470 = vpack.c.b16 %v3022, %v2990
  %v3471 = vpack.c.b16 %v3023, %v2991
  %v3472 = vpack.c.b16 %v3024, %v2992
  %v3473 = vpack.c.b16 %v3025, %v2993
  %v3474 = vpack.c.b16 %v3026, %v2994
  %v3475 = vpack.c.b16 %v3027, %v2995
  %v3476 = vpack.c.b16 %v3028, %v2996
  %v3477 = vpack.c.b16 %v3029, %v2997
  %v3478 = vpack.c.b16 %v3030, %v2998
  %v3479 = vpack.c.b16 %v3031, %v2999
  %v3480 = vpack.c.b16 %v3032, %v3000
  %v3481 = vpack.c.b16 %v3033, %v3001
  %v3482 = vpack.c.b16 %v3034, %v3002
  %v3483 = vpack.c.b16 %v3035, %v3003
  %v3484 = vpack.c.b16 %v3036, %v3004
  %v3485 = vpack.c.b16 %v3037, %v3005
  %v3486 = vpack.c.b16 %v3038, %v3006
  %v3487 = vpack.c.b16 %v3039, %v3007
  %v3488 = vpack.c.b16 %v3040, %v3008
  %v3489 = vpack.c.b16 %v3073, %v3041
  %v3490 = vpack.c.b16 %v3074, %v3042
  %v3491 = vpack.c.b16 %v3075, %v3043
  %v3492 = vpack.c.b16 %v3076, %v3044
  %v3493 = vpack.c.b16 %v3077, %v3045
  %v3494 = vpack.c.b16 %v3078, %v3046
  %v3495 = vpack.c.b16 %v3079, %v3047
  %v3496 = vpack.c.b16 %v3080, %v3048
  %v3497 = vpack.c.b16 %v3081, %v3049
  %v3498 = vpack.c.b16 %v3082, %v3050
  %v3499 = vpack.c.b16 %v3083, %v3051
  %v3500 = vpack.c.b16 %v3084, %v3052
  %v3501 = vpack.c.b16 %v3085, %v3053
  %v3502 = vpack.c.b16 %v3086, %v3054
  %v3503 = vpack.c.b16 %v3087, %v3055
  %v3504 = vpack.c.b16 %v3088, %v3056
  %v3505 = vpack.c.b16 %v3089, %v3057
  %v3506 = vpack.c.b16 %v3090, %v3058
  %v3507 = vpack.c.b16 %v3091, %v3059
  %v3508 = vpack.c.b16 %v3092, %v3060
  %v3509 = vpack.c.b16 %v3093, %v3061
  %v3510 = vpack.c.b16 %v3094, %v3062
  %v3511 = vpack.c.b16 %v3095, %v3063
  %v3512 = vpack.c.b16 %v3096, %v3064
  %v3513 = vpack.c.b16 %v3097, %v3065
  %v3514 = vpack.c.b16 %v3098, %v3066
  %v3515 = vpack.c.b16 %v3099, %v3067
  %v3516 = vpack.c.b16 %v3100, %v3068
  %v3517 = vpack.c.b16 %v3101, %v3069
  %v3518 = vpack.c.b16 %v3102, %v3070
  %v3519 = vpack.c.b16 %v3103, %v3071
  %v3520 = vpack.c.b16 %v3104, %v3072
  %v3521 = vpack.c.b16 %v3137, %v3105
  %v3522 = vpack.c.b16 %v3138, %v3106
  %v3523 = vpack.c.b16 %v3139, %v3107
  %v3524 = vpack.c.b16 %v3140, %v3108
  %v3525 = vpack.c.b16 %v3141, %v3109
  %v3526 = vpack.c.b16 %v3142, %v3110
  %v3527 = vpack.c.b16 %v3143, %v3111
  %v3528 = vpack.c.b16 %v3144, %v3112
  %v3529 = vpack.c.b16 %v3145, %v3113
  %v3530 = vpack.c.b16 %v3146, %v3114
  %v3531 = vpack.c.b16 %v3147, %v3115
  %v3532 = vpack.c.b16 %v3148, %v3116
  %v3533 = vpack.c.b16 %v3149, %v3117
  %v3534 = vpack.c.b16 %v3150, %v3118
  %v3535 = vpack.c.b16 %v3151, %v3119
  %v3536 = vpack.c.b16 %v3152, %v3120
  %v3537 = vpack.c.b16 %v3153, %v3121
  %v3538 = vpack.c.b16 %v3154, %v3122
  %v3539 = vpack.c.b16 %v3155, %v3123
  %v3540 = vpack.c.b16 %v3156, %v3124
  %v3541 = vpack.c.b16 %v3157, %v3125
  %v3542 = vpack.c.b16 %v3158, %v3126
  %v3543 = vpack.c.b16 %v3159, %v3127
  %v3544 = vpack.c.b16 %v3160, %v3128
  %v3545 = vpack.c.b16 %v3161, %v3129
  %v3546 = vpack.c.b16 %v3162, %v3130
  %v3547 = vpack.c.b16 %v3163, %v3131
  %v3548 = vpack.c.b16 %v3164, %v3132
  %v3549 = vpack.c.b16 %v3165, %v3133
  %v3550 = vpack.c.b16 %v3166, %v3134
  %v3551 = vpack.c.b16 %v3167, %v3135
  %v3552 = vpack.c.b16 %v3168, %v3136
  %v3553 = vpack.c.b16 %v3201, %v3169
  %v3554 = vpack.c.b16 %v3202, %v3170
  %v3555 = vpack.c.b16 %v3203, %v3171
  %v3556 = vpack.c.b16 %v3204, %v3172
  %v3557 = vpack.c.b16 %v3205, %v3173
  %v3558 = vpack.c.b16 %v3206, %v3174
  %v3559 = vpack.c.b16 %v3207, %v3175
  %v3560 = vpack.c.b16 %v3208, %v3176
  %v3561 = vpack.c.b16 %v3209, %v3177
  %v3562 = vpack.c.b16 %v3210, %v3178
  %v3563 = vpack.c.b16 %v3211, %v3179
  %v3564 = vpack.c.b16 %v3212, %v3180
  %v3565 = vpack.c.b16 %v3213, %v3181
  %v3566 = vpack.c.b16 %v3214, %v3182
  %v3567 = vpack.c.b16 %v3215, %v3183
  %v3568 = vpack.c.b16 %v3216, %v3184
  %v3569 = vpack.c.b16 %v3217, %v3185
  %v3570 = vpack.c.b16 %v3218, %v3186
  %v3571 = vpack.c.b16 %v3219, %v3187
  %v3572 = vpack.c.b16 %v3220, %v3188
  %v3573 = vpack.c.b16 %v3221, %v3189
  %v3574 = vpack.c.b16 %v3222, %v3190
  %v3575 = vpack.c.b16 %v3223, %v3191
  %v3576 = vpack.c.b16 %v3224, %v3192
  %v3577 = vpack.c.b16 %v3225, %v3193
  %v3578 = vpack.c.b16 %v3226, %v3194
  %v3579 = vpack.c.b16 %v3227, %v3195
  %v3580 = vpack.c.b16 %v3228, %v3196
  %v3581 = vpack.c.b16 %v3229, %v3197
  %v3582 = vpack.c.b16 %v3230, %v3198
  %v3583 = vpack.c.b16 %v3231, %v3199
  %v3584 = vpack.c.b16 %v3232, %v3200
  %v3585 = vpack.c.b16 %v3265, %v3233
  %v3586 = vpack.c.b16 %v3266, %v3234
  %v3587 = vpack.c.b16 %v3267, %v3235
  %v3588 = vpack.c.b16 %v3268, %v3236
  %v3589 = vpack.c.b16 %v3269, %v3237
  %v3590 = vpack.c.b16 %v3270, %v3238
  %v3591 = vpack.c.b16 %v3271, %v3239
  %v3592 = vpack.c.b16 %v3272, %v3240
  %v3593 = vpack.c.b16 %v3273, %v3241
  %v3594 = vpack.c.b16 %v3274, %v3242
  %v3595 = vpack.c.b16 %v3275, %v3243
  %v3596 = vpack.c.b16 %v3276, %v3244
  %v3597 = vpack.c.b16 %v3277, %v3245
  %v3598 = vpack.c.b16 %v3278, %v3246
  %v3599 = vpack.c.b16 %v3279, %v3247
  %v3600 = vpack.c.b16 %v3280, %v3248
  %v3601 = vpack.c.b16 %v3281, %v3249
  %v3602 = vpack.c.b16 %v3282, %v3250
  %v3603 = vpack.c.b16 %v3283, %v3251
  %v3604 = vpack.c.b16 %v3284, %v3252
  %v3605 = vpack.c.b16 %v3285, %v3253
  %v3606 = vpack.c.b16 %v3286, %v3254
  %v3607 = vpack.c.b16 %v3287, %v3255
  %v3608 = vpack.c.b16 %v3288, %v3256
  %v3609 = vpack.c.b16 %v3289, %v3257
  %v3610 = vpack.c.b16 %v3290, %v3258
  %v3611 = vpack.c.b16 %v3291, %v3259
  %v3612 = vpack.c.b16 %v3292, %v3260
  %v3613 = vpack.c.b16 %v3293, %v3261
  %v3614 = vpack.c.b16 %v3294, %v3262
  %v3615 = vpack.c.b16 %v3295, %v3263
  %v3616 = vpack.c.b16 %v3296, %v3264
  %v3617 = vpack.c.b16 %v3329, %v3297
  %v3618 = vpack.c.b16 %v3330, %v3298
  %v3619 = vpack.c.b16 %v3331, %v3299
  %v3620 = vpack.c.b16 %v3332, %v3300
  %v3621 = vpack.c.b16 %v3333, %v3301
  %v3622 = vpack.c.b16 %v3334, %v3302
  %v3623 = vpack.c.b16 %v3335, %v3303
  %v3624 = vpack.c.b16 %v3336, %v3304
  %v3625 = vpack.c.b16 %v3337, %v3305
  %v3626 = vpack.c.b16 %v3338, %v3306
  %v3627 = vpack.c.b16 %v3339, %v3307
  %v3628 = vpack.c.b16 %v3340, %v3308
  %v3629 = vpack.c.b16 %v3341, %v3309
  %v3630 = vpack.c.b16 %v3342, %v3310
  %v3631 = vpack.c.b16 %v3343, %v3311
  %v3632 = vpack.c.b16 %v3344, %v3312
  %v3633 = vpack.c.b16 %v3345, %v3313
  %v3634 = vpack.c.b16 %v3346, %v3314
  %v3635 = vpack.c.b16 %v3347, %v3315
  %v3636 = vpack.c.b16 %v3348, %v3316
  %v3637 = vpack.c.b16 %v3349, %v3317
  %v3638 = vpack.c.b16 %v3350, %v3318
  %v3639 = vpack.c.b16 %v3351, %v3319
  %v3640 = vpack.c.b16 %v3352, %v3320
  %v3641 = vpack.c.b16 %v3353, %v3321
  %v3642 = vpack.c.b16 %v3354, %v3322
  %v3643 = vpack.c.b16 %v3355, %v3323
  %v3644 = vpack.c.b16 %v3356, %v3324
  %v3645 = vpack.c.b16 %v3357, %v3325
  %v3646 = vpack.c.b16 %v3358, %v3326
  %v3647 = vpack.c.b16 %v3359, %v3327
  %v3648 = vpack.c.b16 %v3360, %v3328
  %v3649 = vpack.c.b16 %v3393, %v3361
  %v3650 = vpack.c.b16 %v3394, %v3362
  %v3651 = vpack.c.b16 %v3395, %v3363
  %v3652 = vpack.c.b16 %v3396, %v3364
  %v3653 = vpack.c.b16 %v3397, %v3365
  %v3654 = vpack.c.b16 %v3398, %v3366
  %v3655 = vpack.c.b16 %v3399, %v3367
  %v3656 = vpack.c.b16 %v3400, %v3368
  %v3657 = vpack.c.b16 %v3401, %v3369
  %v3658 = vpack.c.b16 %v3402, %v3370
  %v3659 = vpack.c.b16 %v3403, %v3371
  %v3660 = vpack.c.b16 %v3404, %v3372
  %v3661 = vpack.c.b16 %v3405, %v3373
  %v3662 = vpack.c.b16 %v3406, %v3374
  %v3663 = vpack.c.b16 %v3407, %v3375
  %v3664 = vpack.c.b16 %v3408, %v3376
  %v3665 = vpack.c.b16 %v3409, %v3377
  %v3666 = vpack.c.b16 %v3410, %v3378
  %v3667 = vpack.c.b16 %v3411, %v3379
  %v3668 = vpack.c.b16 %v3412, %v3380
  %v3669 = vpack.c.b16 %v3413, %v3381
  %v3670 = vpack.c.b16 %v3414, %v3382
  %v3671 = vpack.c.b16 %v3415, %v3383
  %v3672 = vpack.c.b16 %v3416, %v3384
  %v3673 = vpack.c.b16 %v3417, %v3385
  %v3674 = vpack.c.b16 %v3418, %v3386
  %v3675 = vpack.c.b16 %v3419, %v3387
  %v3676 = vpack.c.b16 %v3420, %v3388
  %v3677 = vpack.c.b16 %v3421, %v3389
  %v3678 = vpack.c.b16 %v3422, %v3390
  %v3679 = vpack.c.b16 %v3423, %v3391
  %v3680 = vpack.c.b16 %v3424, %v3392
  %3937 = vmatpush.bf16.msra.mxu0 %v3649
  %3938 = vmatpush.bf16.msra.mxu0 %v3617
  %3939 = vmatpush.bf16.msra.mxu0 %v3585
  %3940 = vmatpush.bf16.msra.mxu0 %v3553
  %3941 = vmatpush.bf16.msra.mxu0 %v3521
  %3942 = vmatpush.bf16.msra.mxu0 %v3489
  %3943 = vmatpush.bf16.msra.mxu0 %v3457
  %3944 = vmatpush.bf16.msra.mxu0 %v3425
  %3945 = vmatmul.bf16.gmra.mxu0 %v2328
  %v3946 = vpop.f32.mrf.mxu0
  %v3947 = vadd.f32 %v2593, %v3946
  %v3948 = vpop.f32.mrf.mxu0
  %3949 = vdwg.mxu0
  %3950 = vmatpush.bf16.msra.mxu0 %v3650
  %3951 = vmatpush.bf16.msra.mxu0 %v3618
  %3952 = vmatpush.bf16.msra.mxu0 %v3586
  %3953 = vmatpush.bf16.msra.mxu0 %v3554
  %3954 = vmatpush.bf16.msra.mxu0 %v3522
  %3955 = vmatpush.bf16.msra.mxu0 %v3490
  %3956 = vmatpush.bf16.msra.mxu0 %v3458
  %3957 = vmatpush.bf16.msra.mxu0 %v3426
  %3958 = vmatmul.bf16.gmra.mxu0 %v2328
  %v3959 = vpop.f32.mrf.mxu0
  %v3960 = vadd.f32 %v2594, %v3959
  %v3961 = vpop.f32.mrf.mxu0
  %3962 = vdwg.mxu0
  %3963 = vmatpush.bf16.msra.mxu0 %v3651
  %3964 = vmatpush.bf16.msra.mxu0 %v3619
  %3965 = vmatpush.bf16.msra.mxu0 %v3587
  %3966 = vmatpush.bf16.msra.mxu0 %v3555
  %3967 = vmatpush.bf16.msra.mxu0 %v3523
  %3968 = vmatpush.bf16.msra.mxu0 %v3491
  %3969 = vmatpush.bf16.msra.mxu0 %v3459
  %3970 = vmatpush.bf16.msra.mxu0 %v3427
  %3971 = vmatmul.bf16.gmra.mxu0 %v2328
  %v3972 = vpop.f32.mrf.mxu0
  %v3973 = vadd.f32 %v2595, %v3972
  %v3974 = vpop.f32.mrf.mxu0
  %3975 = vdwg.mxu0
  %3976 = vmatpush.bf16.msra.mxu0 %v3652
  %3977 = vmatpush.bf16.msra.mxu0 %v3620
  %3978 = vmatpush.bf16.msra.mxu0 %v3588
  %3979 = vmatpush.bf16.msra.mxu0 %v3556
  %3980 = vmatpush.bf16.msra.mxu0 %v3524
  %3981 = vmatpush.bf16.msra.mxu0 %v3492
  %3982 = vmatpush.bf16.msra.mxu0 %v3460
  %3983 = vmatpush.bf16.msra.mxu0 %v3428
  %3984 = vmatmul.bf16.gmra.mxu0 %v2328
  %v3985 = vpop.f32.mrf.mxu0
  %v3986 = vadd.f32 %v2596, %v3985
  %v3987 = vpop.f32.mrf.mxu0
  %3988 = vdwg.mxu0
  %3989 = vmatpush.bf16.msra.mxu0 %v3653
  %3990 = vmatpush.bf16.msra.mxu0 %v3621
  %3991 = vmatpush.bf16.msra.mxu0 %v3589
  %3992 = vmatpush.bf16.msra.mxu0 %v3557
  %3993 = vmatpush.bf16.msra.mxu0 %v3525
  %3994 = vmatpush.bf16.msra.mxu0 %v3493
  %3995 = vmatpush.bf16.msra.mxu0 %v3461
  %3996 = vmatpush.bf16.msra.mxu0 %v3429
  %3997 = vmatmul.bf16.gmra.mxu0 %v2328
  %v3998 = vpop.f32.mrf.mxu0
  %v3999 = vadd.f32 %v2597, %v3998
  %v4000 = vpop.f32.mrf.mxu0
  %4001 = vdwg.mxu0
  %4002 = vmatpush.bf16.msra.mxu0 %v3654
  %4003 = vmatpush.bf16.msra.mxu0 %v3622
  %4004 = vmatpush.bf16.msra.mxu0 %v3590
  %4005 = vmatpush.bf16.msra.mxu0 %v3558
  %4006 = vmatpush.bf16.msra.mxu0 %v3526
  %4007 = vmatpush.bf16.msra.mxu0 %v3494
  %4008 = vmatpush.bf16.msra.mxu0 %v3462
  %4009 = vmatpush.bf16.msra.mxu0 %v3430
  %4010 = vmatmul.bf16.gmra.mxu0 %v2328
  %v4011 = vpop.f32.mrf.mxu0
  %v4012 = vadd.f32 %v2598, %v4011
  %v4013 = vpop.f32.mrf.mxu0
  %4014 = vdwg.mxu0
  %4015 = vmatpush.bf16.msra.mxu0 %v3655
  %4016 = vmatpush.bf16.msra.mxu0 %v3623
  %4017 = vmatpush.bf16.msra.mxu0 %v3591
  %4018 = vmatpush.bf16.msra.mxu0 %v3559
  %4019 = vmatpush.bf16.msra.mxu0 %v3527
  %4020 = vmatpush.bf16.msra.mxu0 %v3495
  %4021 = vmatpush.bf16.msra.mxu0 %v3463
  %4022 = vmatpush.bf16.msra.mxu0 %v3431
  %4023 = vmatmul.bf16.gmra.mxu0 %v2328
  %v4024 = vpop.f32.mrf.mxu0
  %v4025 = vadd.f32 %v2599, %v4024
  %v4026 = vpop.f32.mrf.mxu0
  %4027 = vdwg.mxu0
  %4028 = vmatpush.bf16.msra.mxu0 %v3656
  %4029 = vmatpush.bf16.msra.mxu0 %v3624
  %4030 = vmatpush.bf16.msra.mxu0 %v3592
  %4031 = vmatpush.bf16.msra.mxu0 %v3560
  %4032 = vmatpush.bf16.msra.mxu0 %v3528
  %4033 = vmatpush.bf16.msra.mxu0 %v3496
  %4034 = vmatpush.bf16.msra.mxu0 %v3464
  %4035 = vmatpush.bf16.msra.mxu0 %v3432
  %4036 = vmatmul.bf16.gmra.mxu0 %v2328
  %v4037 = vpop.f32.mrf.mxu0
  %v4038 = vadd.f32 %v2600, %v4037
  %v4039 = vpop.f32.mrf.mxu0
  %4040 = vdwg.mxu0
  %4041 = vmatpush.bf16.msra.mxu0 %v3657
  %4042 = vmatpush.bf16.msra.mxu0 %v3625
  %4043 = vmatpush.bf16.msra.mxu0 %v3593
  %4044 = vmatpush.bf16.msra.mxu0 %v3561
  %4045 = vmatpush.bf16.msra.mxu0 %v3529
  %4046 = vmatpush.bf16.msra.mxu0 %v3497
  %4047 = vmatpush.bf16.msra.mxu0 %v3465
  %4048 = vmatpush.bf16.msra.mxu0 %v3433
  %4049 = vmatmul.bf16.gmra.mxu0 %v2328
  %v4050 = vpop.f32.mrf.mxu0
  %v4051 = vadd.f32 %v2601, %v4050
  %v4052 = vpop.f32.mrf.mxu0
  %4053 = vdwg.mxu0
  %4054 = vmatpush.bf16.msra.mxu0 %v3658
  %4055 = vmatpush.bf16.msra.mxu0 %v3626
  %4056 = vmatpush.bf16.msra.mxu0 %v3594
  %4057 = vmatpush.bf16.msra.mxu0 %v3562
  %4058 = vmatpush.bf16.msra.mxu0 %v3530
  %4059 = vmatpush.bf16.msra.mxu0 %v3498
  %4060 = vmatpush.bf16.msra.mxu0 %v3466
  %4061 = vmatpush.bf16.msra.mxu0 %v3434
  %4062 = vmatmul.bf16.gmra.mxu0 %v2328
  %v4063 = vpop.f32.mrf.mxu0
  %v4064 = vadd.f32 %v2602, %v4063
  %v4065 = vpop.f32.mrf.mxu0
  %4066 = vdwg.mxu0
  %4067 = vmatpush.bf16.msra.mxu0 %v3659
  %4068 = vmatpush.bf16.msra.mxu0 %v3627
  %4069 = vmatpush.bf16.msra.mxu0 %v3595
  %4070 = vmatpush.bf16.msra.mxu0 %v3563
  %4071 = vmatpush.bf16.msra.mxu0 %v3531
  %4072 = vmatpush.bf16.msra.mxu0 %v3499
  %4073 = vmatpush.bf16.msra.mxu0 %v3467
  %4074 = vmatpush.bf16.msra.mxu0 %v3435
  %4075 = vmatmul.bf16.gmra.mxu0 %v2328
  %v4076 = vpop.f32.mrf.mxu0
  %v4077 = vadd.f32 %v2603, %v4076
  %v4078 = vpop.f32.mrf.mxu0
  %4079 = vdwg.mxu0
  %4080 = vmatpush.bf16.msra.mxu0 %v3660
  %4081 = vmatpush.bf16.msra.mxu0 %v3628
  %4082 = vmatpush.bf16.msra.mxu0 %v3596
  %4083 = vmatpush.bf16.msra.mxu0 %v3564
  %4084 = vmatpush.bf16.msra.mxu0 %v3532
  %4085 = vmatpush.bf16.msra.mxu0 %v3500
  %4086 = vmatpush.bf16.msra.mxu0 %v3468
  %4087 = vmatpush.bf16.msra.mxu0 %v3436
  %4088 = vmatmul.bf16.gmra.mxu0 %v2328
  %v4089 = vpop.f32.mrf.mxu0
  %v4090 = vadd.f32 %v2604, %v4089
  %v4091 = vpop.f32.mrf.mxu0
  %4092 = vdwg.mxu0
  %4093 = vmatpush.bf16.msra.mxu0 %v3661
  %4094 = vmatpush.bf16.msra.mxu0 %v3629
  %4095 = vmatpush.bf16.msra.mxu0 %v3597
  %4096 = vmatpush.bf16.msra.mxu0 %v3565
  %4097 = vmatpush.bf16.msra.mxu0 %v3533
  %4098 = vmatpush.bf16.msra.mxu0 %v3501
  %4099 = vmatpush.bf16.msra.mxu0 %v3469
  %4100 = vmatpush.bf16.msra.mxu0 %v3437
  %4101 = vmatmul.bf16.gmra.mxu0 %v2328
  %v4102 = vpop.f32.mrf.mxu0
  %v4103 = vadd.f32 %v2605, %v4102
  %v4104 = vpop.f32.mrf.mxu0
  %4105 = vdwg.mxu0
  %4106 = vmatpush.bf16.msra.mxu0 %v3662
  %4107 = vmatpush.bf16.msra.mxu0 %v3630
  %4108 = vmatpush.bf16.msra.mxu0 %v3598
  %4109 = vmatpush.bf16.msra.mxu0 %v3566
  %4110 = vmatpush.bf16.msra.mxu0 %v3534
  %4111 = vmatpush.bf16.msra.mxu0 %v3502
  %4112 = vmatpush.bf16.msra.mxu0 %v3470
  %4113 = vmatpush.bf16.msra.mxu0 %v3438
  %4114 = vmatmul.bf16.gmra.mxu0 %v2328
  %v4115 = vpop.f32.mrf.mxu0
  %v4116 = vadd.f32 %v2606, %v4115
  %v4117 = vpop.f32.mrf.mxu0
  %4118 = vdwg.mxu0
  %4119 = vmatpush.bf16.msra.mxu0 %v3663
  %4120 = vmatpush.bf16.msra.mxu0 %v3631
  %4121 = vmatpush.bf16.msra.mxu0 %v3599
  %4122 = vmatpush.bf16.msra.mxu0 %v3567
  %4123 = vmatpush.bf16.msra.mxu0 %v3535
  %4124 = vmatpush.bf16.msra.mxu0 %v3503
  %4125 = vmatpush.bf16.msra.mxu0 %v3471
  %4126 = vmatpush.bf16.msra.mxu0 %v3439
  %4127 = vmatmul.bf16.gmra.mxu0 %v2328
  %v4128 = vpop.f32.mrf.mxu0
  %v4129 = vadd.f32 %v2607, %v4128
  %v4130 = vpop.f32.mrf.mxu0
  %4131 = vdwg.mxu0
  %4132 = vmatpush.bf16.msra.mxu0 %v3664
  %4133 = vmatpush.bf16.msra.mxu0 %v3632
  %4134 = vmatpush.bf16.msra.mxu0 %v3600
  %4135 = vmatpush.bf16.msra.mxu0 %v3568
  %4136 = vmatpush.bf16.msra.mxu0 %v3536
  %4137 = vmatpush.bf16.msra.mxu0 %v3504
  %4138 = vmatpush.bf16.msra.mxu0 %v3472
  %4139 = vmatpush.bf16.msra.mxu0 %v3440
  %4140 = vmatmul.bf16.gmra.mxu0 %v2328
  %v4141 = vpop.f32.mrf.mxu0
  %v4142 = vadd.f32 %v2608, %v4141
  %v4143 = vpop.f32.mrf.mxu0
  %4144 = vdwg.mxu0
  %4145 = vmatpush.bf16.msra.mxu0 %v3665
  %4146 = vmatpush.bf16.msra.mxu0 %v3633
  %4147 = vmatpush.bf16.msra.mxu0 %v3601
  %4148 = vmatpush.bf16.msra.mxu0 %v3569
  %4149 = vmatpush.bf16.msra.mxu0 %v3537
  %4150 = vmatpush.bf16.msra.mxu0 %v3505
  %4151 = vmatpush.bf16.msra.mxu0 %v3473
  %4152 = vmatpush.bf16.msra.mxu0 %v3441
  %4153 = vmatmul.bf16.gmra.mxu0 %v2328
  %v4154 = vpop.f32.mrf.mxu0
  %v4155 = vadd.f32 %v2609, %v4154
  %v4156 = vpop.f32.mrf.mxu0
  %4157 = vdwg.mxu0
  %4158 = vmatpush.bf16.msra.mxu0 %v3666
  %4159 = vmatpush.bf16.msra.mxu0 %v3634
  %4160 = vmatpush.bf16.msra.mxu0 %v3602
  %4161 = vmatpush.bf16.msra.mxu0 %v3570
  %4162 = vmatpush.bf16.msra.mxu0 %v3538
  %4163 = vmatpush.bf16.msra.mxu0 %v3506
  %4164 = vmatpush.bf16.msra.mxu0 %v3474
  %4165 = vmatpush.bf16.msra.mxu0 %v3442
  %4166 = vmatmul.bf16.gmra.mxu0 %v2328
  %v4167 = vpop.f32.mrf.mxu0
  %v4168 = vadd.f32 %v2610, %v4167
  %v4169 = vpop.f32.mrf.mxu0
  %4170 = vdwg.mxu0
  %4171 = vmatpush.bf16.msra.mxu0 %v3667
  %4172 = vmatpush.bf16.msra.mxu0 %v3635
  %4173 = vmatpush.bf16.msra.mxu0 %v3603
  %4174 = vmatpush.bf16.msra.mxu0 %v3571
  %4175 = vmatpush.bf16.msra.mxu0 %v3539
  %4176 = vmatpush.bf16.msra.mxu0 %v3507
  %4177 = vmatpush.bf16.msra.mxu0 %v3475
  %4178 = vmatpush.bf16.msra.mxu0 %v3443
  %4179 = vmatmul.bf16.gmra.mxu0 %v2328
  %v4180 = vpop.f32.mrf.mxu0
  %v4181 = vadd.f32 %v2611, %v4180
  %v4182 = vpop.f32.mrf.mxu0
  %4183 = vdwg.mxu0
  %4184 = vmatpush.bf16.msra.mxu0 %v3668
  %4185 = vmatpush.bf16.msra.mxu0 %v3636
  %4186 = vmatpush.bf16.msra.mxu0 %v3604
  %4187 = vmatpush.bf16.msra.mxu0 %v3572
  %4188 = vmatpush.bf16.msra.mxu0 %v3540
  %4189 = vmatpush.bf16.msra.mxu0 %v3508
  %4190 = vmatpush.bf16.msra.mxu0 %v3476
  %4191 = vmatpush.bf16.msra.mxu0 %v3444
  %4192 = vmatmul.bf16.gmra.mxu0 %v2328
  %v4193 = vpop.f32.mrf.mxu0
  %v4194 = vadd.f32 %v2612, %v4193
  %v4195 = vpop.f32.mrf.mxu0
  %4196 = vdwg.mxu0
  %4197 = vmatpush.bf16.msra.mxu0 %v3669
  %4198 = vmatpush.bf16.msra.mxu0 %v3637
  %4199 = vmatpush.bf16.msra.mxu0 %v3605
  %4200 = vmatpush.bf16.msra.mxu0 %v3573
  %4201 = vmatpush.bf16.msra.mxu0 %v3541
  %4202 = vmatpush.bf16.msra.mxu0 %v3509
  %4203 = vmatpush.bf16.msra.mxu0 %v3477
  %4204 = vmatpush.bf16.msra.mxu0 %v3445
  %4205 = vmatmul.bf16.gmra.mxu0 %v2328
  %v4206 = vpop.f32.mrf.mxu0
  %v4207 = vadd.f32 %v2613, %v4206
  %v4208 = vpop.f32.mrf.mxu0
  %4209 = vdwg.mxu0
  %4210 = vmatpush.bf16.msra.mxu0 %v3670
  %4211 = vmatpush.bf16.msra.mxu0 %v3638
  %4212 = vmatpush.bf16.msra.mxu0 %v3606
  %4213 = vmatpush.bf16.msra.mxu0 %v3574
  %4214 = vmatpush.bf16.msra.mxu0 %v3542
  %4215 = vmatpush.bf16.msra.mxu0 %v3510
  %4216 = vmatpush.bf16.msra.mxu0 %v3478
  %4217 = vmatpush.bf16.msra.mxu0 %v3446
  %4218 = vmatmul.bf16.gmra.mxu0 %v2328
  %v4219 = vpop.f32.mrf.mxu0
  %v4220 = vadd.f32 %v2614, %v4219
  %v4221 = vpop.f32.mrf.mxu0
  %4222 = vdwg.mxu0
  %4223 = vmatpush.bf16.msra.mxu0 %v3671
  %4224 = vmatpush.bf16.msra.mxu0 %v3639
  %4225 = vmatpush.bf16.msra.mxu0 %v3607
  %4226 = vmatpush.bf16.msra.mxu0 %v3575
  %4227 = vmatpush.bf16.msra.mxu0 %v3543
  %4228 = vmatpush.bf16.msra.mxu0 %v3511
  %4229 = vmatpush.bf16.msra.mxu0 %v3479
  %4230 = vmatpush.bf16.msra.mxu0 %v3447
  %4231 = vmatmul.bf16.gmra.mxu0 %v2328
  %v4232 = vpop.f32.mrf.mxu0
  %v4233 = vadd.f32 %v2615, %v4232
  %v4234 = vpop.f32.mrf.mxu0
  %4235 = vdwg.mxu0
  %4236 = vmatpush.bf16.msra.mxu0 %v3672
  %4237 = vmatpush.bf16.msra.mxu0 %v3640
  %4238 = vmatpush.bf16.msra.mxu0 %v3608
  %4239 = vmatpush.bf16.msra.mxu0 %v3576
  %4240 = vmatpush.bf16.msra.mxu0 %v3544
  %4241 = vmatpush.bf16.msra.mxu0 %v3512
  %4242 = vmatpush.bf16.msra.mxu0 %v3480
  %4243 = vmatpush.bf16.msra.mxu0 %v3448
  %4244 = vmatmul.bf16.gmra.mxu0 %v2328
  %v4245 = vpop.f32.mrf.mxu0
  %v4246 = vadd.f32 %v2616, %v4245
  %v4247 = vpop.f32.mrf.mxu0
  %4248 = vdwg.mxu0
  %4249 = vmatpush.bf16.msra.mxu0 %v3673
  %4250 = vmatpush.bf16.msra.mxu0 %v3641
  %4251 = vmatpush.bf16.msra.mxu0 %v3609
  %4252 = vmatpush.bf16.msra.mxu0 %v3577
  %4253 = vmatpush.bf16.msra.mxu0 %v3545
  %4254 = vmatpush.bf16.msra.mxu0 %v3513
  %4255 = vmatpush.bf16.msra.mxu0 %v3481
  %4256 = vmatpush.bf16.msra.mxu0 %v3449
  %4257 = vmatmul.bf16.gmra.mxu0 %v2328
  %v4258 = vpop.f32.mrf.mxu0
  %v4259 = vadd.f32 %v2617, %v4258
  %v4260 = vpop.f32.mrf.mxu0
  %4261 = vdwg.mxu0
  %4262 = vmatpush.bf16.msra.mxu0 %v3674
  %4263 = vmatpush.bf16.msra.mxu0 %v3642
  %4264 = vmatpush.bf16.msra.mxu0 %v3610
  %4265 = vmatpush.bf16.msra.mxu0 %v3578
  %4266 = vmatpush.bf16.msra.mxu0 %v3546
  %4267 = vmatpush.bf16.msra.mxu0 %v3514
  %4268 = vmatpush.bf16.msra.mxu0 %v3482
  %4269 = vmatpush.bf16.msra.mxu0 %v3450
  %4270 = vmatmul.bf16.gmra.mxu0 %v2328
  %v4271 = vpop.f32.mrf.mxu0
  %v4272 = vadd.f32 %v2618, %v4271
  %v4273 = vpop.f32.mrf.mxu0
  %4274 = vdwg.mxu0
  %4275 = vmatpush.bf16.msra.mxu0 %v3675
  %4276 = vmatpush.bf16.msra.mxu0 %v3643
  %4277 = vmatpush.bf16.msra.mxu0 %v3611
  %4278 = vmatpush.bf16.msra.mxu0 %v3579
  %4279 = vmatpush.bf16.msra.mxu0 %v3547
  %4280 = vmatpush.bf16.msra.mxu0 %v3515
  %4281 = vmatpush.bf16.msra.mxu0 %v3483
  %4282 = vmatpush.bf16.msra.mxu0 %v3451
  %4283 = vmatmul.bf16.gmra.mxu0 %v2328
  %v4284 = vpop.f32.mrf.mxu0
  %v4285 = vadd.f32 %v2619, %v4284
  %v4286 = vpop.f32.mrf.mxu0
  %4287 = vdwg.mxu0
  %4288 = vmatpush.bf16.msra.mxu0 %v3676
  %4289 = vmatpush.bf16.msra.mxu0 %v3644
  %4290 = vmatpush.bf16.msra.mxu0 %v3612
  %4291 = vmatpush.bf16.msra.mxu0 %v3580
  %4292 = vmatpush.bf16.msra.mxu0 %v3548
  %4293 = vmatpush.bf16.msra.mxu0 %v3516
  %4294 = vmatpush.bf16.msra.mxu0 %v3484
  %4295 = vmatpush.bf16.msra.mxu0 %v3452
  %4296 = vmatmul.bf16.gmra.mxu0 %v2328
  %v4297 = vpop.f32.mrf.mxu0
  %v4298 = vadd.f32 %v2620, %v4297
  %v4299 = vpop.f32.mrf.mxu0
  %4300 = vdwg.mxu0
  %4301 = vmatpush.bf16.msra.mxu0 %v3677
  %4302 = vmatpush.bf16.msra.mxu0 %v3645
  %4303 = vmatpush.bf16.msra.mxu0 %v3613
  %4304 = vmatpush.bf16.msra.mxu0 %v3581
  %4305 = vmatpush.bf16.msra.mxu0 %v3549
  %4306 = vmatpush.bf16.msra.mxu0 %v3517
  %4307 = vmatpush.bf16.msra.mxu0 %v3485
  %4308 = vmatpush.bf16.msra.mxu0 %v3453
  %4309 = vmatmul.bf16.gmra.mxu0 %v2328
  %v4310 = vpop.f32.mrf.mxu0
  %v4311 = vadd.f32 %v2621, %v4310
  %v4312 = vpop.f32.mrf.mxu0
  %4313 = vdwg.mxu0
  %4314 = vmatpush.bf16.msra.mxu0 %v3678
  %4315 = vmatpush.bf16.msra.mxu0 %v3646
  %4316 = vmatpush.bf16.msra.mxu0 %v3614
  %4317 = vmatpush.bf16.msra.mxu0 %v3582
  %4318 = vmatpush.bf16.msra.mxu0 %v3550
  %4319 = vmatpush.bf16.msra.mxu0 %v3518
  %4320 = vmatpush.bf16.msra.mxu0 %v3486
  %4321 = vmatpush.bf16.msra.mxu0 %v3454
  %4322 = vmatmul.bf16.gmra.mxu0 %v2328
  %v4323 = vpop.f32.mrf.mxu0
  %v4324 = vadd.f32 %v2622, %v4323
  %v4325 = vpop.f32.mrf.mxu0
  %4326 = vdwg.mxu0
  %4327 = vmatpush.bf16.msra.mxu0 %v3679
  %4328 = vmatpush.bf16.msra.mxu0 %v3647
  %4329 = vmatpush.bf16.msra.mxu0 %v3615
  %4330 = vmatpush.bf16.msra.mxu0 %v3583
  %4331 = vmatpush.bf16.msra.mxu0 %v3551
  %4332 = vmatpush.bf16.msra.mxu0 %v3519
  %4333 = vmatpush.bf16.msra.mxu0 %v3487
  %4334 = vmatpush.bf16.msra.mxu0 %v3455
  %4335 = vmatmul.bf16.gmra.mxu0 %v2328
  %v4336 = vpop.f32.mrf.mxu0
  %v4337 = vadd.f32 %v2623, %v4336
  %v4338 = vpop.f32.mrf.mxu0
  %4339 = vdwg.mxu0
  %4340 = vmatpush.bf16.msra.mxu0 %v3680
  %4341 = vmatpush.bf16.msra.mxu0 %v3648
  %4342 = vmatpush.bf16.msra.mxu0 %v3616
  %4343 = vmatpush.bf16.msra.mxu0 %v3584
  %4344 = vmatpush.bf16.msra.mxu0 %v3552
  %4345 = vmatpush.bf16.msra.mxu0 %v3520
  %4346 = vmatpush.bf16.msra.mxu0 %v3488
  %4347 = vmatpush.bf16.msra.mxu0 %v3456
  %4348 = vmatmul.bf16.gmra.mxu0 %v2328
  %v4349 = vpop.f32.mrf.mxu0
  %v4350 = vadd.f32 %v2624, %v4349
  %v4351 = vpop.f32.mrf.mxu0
  %4352 = vdwg.mxu0
  %v4385 = vrot.slane %v3960, 6
  %v4386 = vrot.slane %v3973, 4
  %v4387 = vrot.slane %v3986, 2
  %v4388 = vrot.slane %v4012, 6
  %v4389 = vrot.slane %v4025, 4
  %v4390 = vrot.slane %v4038, 2
  %v4391 = vrot.slane %v4064, 6
  %v4392 = vrot.slane %v4077, 4
  %v4393 = vrot.slane %v4090, 2
  %v4394 = vrot.slane %v4116, 6
  %v4395 = vrot.slane %v4129, 4
  %v4396 = vrot.slane %v4142, 2
  %v4397 = vrot.slane %v4168, 6
  %v4398 = vrot.slane %v4181, 4
  %v4399 = vrot.slane %v4194, 2
  %v4400 = vrot.slane %v4220, 6
  %v4401 = vrot.slane %v4233, 4
  %v4402 = vrot.slane %v4246, 2
  %v4403 = vrot.slane %v4272, 6
  %v4404 = vrot.slane %v4285, 4
  %v4405 = vrot.slane %v4298, 2
  %v4406 = vrot.slane %v4324, 6
  %v4407 = vrot.slane %v4337, 4
  %v4408 = vrot.slane %v4350, 2
  %vm4409 = vcmask 1041408
  %v4410 = vsel %vm4409, %v3947, %v4385
  %vm4411 = vcmask 1045508
  %v4412 = vsel %vm4411, %v4386, %v4387
  %vm4413 = vcmask 1043456
  %v4414 = vsel %vm4413, %v4410, %v4412
  %v4415 = vsel %vm4409, %v3999, %v4388
  %v4416 = vsel %vm4411, %v4389, %v4390
  %v4417 = vsel %vm4413, %v4415, %v4416
  %v4418 = vsel %vm4409, %v4051, %v4391
  %v4419 = vsel %vm4411, %v4392, %v4393
  %v4420 = vsel %vm4413, %v4418, %v4419
  %v4421 = vsel %vm4409, %v4103, %v4394
  %v4422 = vsel %vm4411, %v4395, %v4396
  %v4423 = vsel %vm4413, %v4421, %v4422
  %v4424 = vsel %vm4409, %v4155, %v4397
  %v4425 = vsel %vm4411, %v4398, %v4399
  %v4426 = vsel %vm4413, %v4424, %v4425
  %v4427 = vsel %vm4409, %v4207, %v4400
  %v4428 = vsel %vm4411, %v4401, %v4402
  %v4429 = vsel %vm4413, %v4427, %v4428
  %v4430 = vsel %vm4409, %v4259, %v4403
  %v4431 = vsel %vm4411, %v4404, %v4405
  %v4432 = vsel %vm4413, %v4430, %v4431
  %v4433 = vsel %vm4409, %v4311, %v4406
  %v4434 = vsel %vm4411, %v4407, %v4408
  %v4435 = vsel %vm4413, %v4433, %v4434
  %4444 = vst [vmem:[%s7] sm:$0xff] %v4414
  %4445 = vst [vmem:[%s7 + $0x8] sm:$0xff] %v4417
  %4446 = vst [vmem:[%s7 + $0x10] sm:$0xff] %v4420
  %4447 = vst [vmem:[%s7 + $0x18] sm:$0xff] %v4423
  %4448 = vst [vmem:[%s7 + $0x20] sm:$0xff] %v4426
  %4449 = vst [vmem:[%s7 + $0x28] sm:$0xff] %v4429
  %4450 = vst [vmem:[%s7 + $0x30] sm:$0xff] %v4432
  %4451 = vst [vmem:[%s7 + $0x38] sm:$0xff] %v4435
  // Predicated region
  $region30: #{feature_transform_forward.8} parent=0 // pred_check
    _
  $region31: #{feature_transform_forward.8} parent=0 // pred_check_branch
    %4453 = sbr.rel (0) target = $region33
  $region32: #{feature_transform_forward.8} parent=0 // pred_region
    _
  $region33: #{feature_transform_forward.8} parent=0 // pred_fallthru
    _
  // Predicated region
  $region34: #{feature_transform_forward.8} parent=0 // pred_check
    _
  $region35: #{feature_transform_forward.8} parent=0 // pred_check_branch
    %4455 = sbr.rel (0) target = $region37
  $region36: #{feature_transform_forward.8} parent=0 // pred_region
    _
  $region37: #{feature_transform_forward.8} parent=0 // pred_fallthru
    _

</llo_original>
